<compile_context>
chip_gen: v7x
topology: tpu7x:2x2x1
jax: 0.10.0
libtpu: 0.0.40
codegen_flags: <defaults>
</compile_context>

<pallas_src>
import functools

import jax
import jax.numpy as jnp
from jax import lax
from jax.experimental import pallas as pl
from jax.experimental.pallas import tpu as pltpu


# ---------------------------------------------------------------------------
# helpers
# ---------------------------------------------------------------------------

def _row_tile(m, cap=256):
    """Largest power-of-two row tile (multiple of 16) dividing m, capped at
    m//2 so every matmul grid has >= 2 'parallel' steps (keeps both v7x
    TensorCores busy; ~0.35us/step extra on single-core v5e/v6e)."""
    cap = min(cap, max(m // 2, 16))
    for t in (256, 128, 64, 32, 16):
        if t <= cap and m % t == 0:
            return t
    return m  # fallback: single block (only hit for tiny / odd M)


def _conv_row_block(ho, wo):
    """Output rows per conv block: keeps the f32 vreg accumulator <= ~8 vregs
    and keeps the (hblk, wo, C)->(hblk*wo, C) merge bf16-tile-aligned
    (wo % 16 == 0) or a pure squeeze (hblk == 1) -- no f32-LHS fallback."""
    if wo % 16 != 0:
        return 1
    h = max(1, 64 // wo)
    while ho % h:
        h -= 1
    return h


def _pad_phase_split(x, pad, stride, pad_value):
    """NHWC pad + stride-phase split (host side, ~1x traffic of `x`).

    Returns (B, stride*stride, Hq/stride, Wq/stride, C) where phase (p, q)
    holds padded pixels at rows stride*a+p, cols stride*b+q.  Inside the
    conv/pool kernels every tap is then a contiguous static/dynamic slice of
    one phase -- no strided in-kernel access, no HBM im2col blow-up.
    """
    B, H, W, C = x.shape
    xp = jnp.pad(x, ((0, 0), (pad, pad), (pad, pad), (0, 0)),
                 constant_values=pad_value)
    Hp, Wp = H + 2 * pad, W + 2 * pad
    Hq = -(-Hp // stride) * stride
    Wq = -(-Wp // stride) * stride
    if (Hq, Wq) != (Hp, Wp):
        xp = jnp.pad(xp, ((0, 0), (0, Hq - Hp), (0, Wq - Wp), (0, 0)),
                     constant_values=pad_value)
    xps = xp.reshape(B, Hq // stride, stride, Wq // stride, stride, C)
    xps = jnp.transpose(xps, (0, 2, 4, 1, 3, 5))
    return xps.reshape(B, stride * stride, Hq // stride, Wq // stride, C)


def _stem_im2col(x, k, stride, pad):
    """Fold the k*k taps of a small-Cin conv into the contraction (host side).

    Only used for the Cin=3 stem: the K = k*k*Cin = 147 patch tensor costs
    ~294 bytes/output-pixel in HBM (trivial for 3 input channels) and turns
    the stem into a single full-depth MXU matmul instead of 49 K=3 matmuls.
    """
    B, H, W, C = x.shape
    Ho = (H + 2 * pad - k) // stride + 1
    Wo = (W + 2 * pad - k) // stride + 1
    xp = jnp.pad(x, ((0, 0), (pad, pad), (pad, pad), (0, 0)))
    taps = []
    for i in range(k):
        for j in range(k):
            taps.append(lax.slice(
                xp, (0, i, j, 0),
                (B, i + (Ho - 1) * stride + 1, j + (Wo - 1) * stride + 1, C),
                (1, stride, stride, 1)))
    patches = jnp.concatenate(taps, axis=-1)          # (B, Ho, Wo, k*k*C)
    return patches.reshape(B * Ho * Wo, k * k * C), Ho, Wo


# ---------------------------------------------------------------------------
# Pallas kernels
# ---------------------------------------------------------------------------

def _conv_kernel(x_ref, w_ref, b_ref, o_ref, *, k, stride, hblk, wo, relu):
    """KxK conv, taps accumulated in vregs (no VMEM accumulator round trip).

    x_ref : (P, Hq, Wq, Cin)  phase-split padded input, one batch element
    w_ref : (k*k, Cin, Cout)  per-tap weights (bf16)
    o_ref : (hblk, wo, Cout)  one block of output rows
    """
    cin = x_ref.shape[-1]
    cout = o_ref.shape[-1]
    r0 = pl.multiple_of(pl.program_id(1) * hblk, hblk)
    acc = jnp.zeros((hblk * wo, cout), jnp.float32)
    for i in range(k):
        for j in range(k):
            ph = (i % stride) * stride + (j % stride)
            oi, oj = i // stride, j // stride
            patch = x_ref[ph, pl.ds(r0 + oi, hblk), oj:oj + wo, :]
            # (hblk, wo, Cin)->(hblk*wo, Cin): aligned merge or squeeze, bf16 MXU
            acc = acc + jnp.dot(patch.reshape(hblk * wo, cin), w_ref[i * k + j],
                                preferred_element_type=jnp.float32)
    y = acc + b_ref[...]
    if relu:
        y = jnp.maximum(y, 0.0)
    o_ref[...] = y.reshape(hblk, wo, cout).astype(o_ref.dtype)


def _maxpool_kernel(x_ref, o_ref, *, k, stride, ho, wo):
    """Running max over the k*k shifted views (pure VPU, no patch stack)."""
    m = None
    for i in range(k):
        for j in range(k):
            ph = (i % stride) * stride + (j % stride)
            oi, oj = i // stride, j // stride
            v = x_ref[ph, oi:oi + ho, oj:oj + wo, :]
            m = v if m is None else jnp.maximum(m, v)
    o_ref[...] = m


def _pw_kernel(x_ref, w_ref, b_ref, o_ref, *, relu):
    """Row-tiled matmul + bias (+ReLU): 1x1 convs and the im2col'd stem."""
    acc = jnp.dot(x_ref[...], w_ref[...],
                  preferred_element_type=jnp.float32) + b_ref[...]
    if relu:
        acc = jnp.maximum(acc, 0.0)
    o_ref[...] = acc.astype(o_ref.dtype)


def _res_kernel(a_ref, s_ref, w_ref, b_ref, o_ref):
    """Fused bottleneck tail: one K-concatenated dot.

    relu([y2 | shortcut_x] @ [w3; wd] + (b3+bd)); both operands are 128-lane
    aligned so the in-kernel lane concat is cheap and the single K=256 dot
    fills the 256-deep v6e/v7x MXU.
    """
    lhs = jnp.concatenate([a_ref[...], s_ref[...]], axis=-1)
    acc = jnp.dot(lhs, w_ref[...],
                  preferred_element_type=jnp.float32) + b_ref[...]
    o_ref[...] = jnp.maximum(acc, 0.0).astype(o_ref.dtype)


def _head_kernel(x_ref, w_ref, b_ref, o_ref):
    """Fused global average pool + embed Linear (trainable layer, f32)."""
    feats = jnp.mean(x_ref[...].astype(jnp.float32), axis=1)   # (B, C)
    o_ref[...] = (jnp.dot(feats, w_ref[...],
                          preferred_element_type=jnp.float32) + b_ref[...])


# ---------------------------------------------------------------------------
# pallas_call wrappers
# ---------------------------------------------------------------------------

_PAR = pltpu.CompilerParams(dimension_semantics=("parallel",))


def conv3x3(x, w_taps, bias, *, stride, relu):
    """3x3 conv (NHWC, bf16), grid over (batch, output-row blocks)."""
    B, H, W, C = x.shape
    k, pad = 3, 1
    Cout = w_taps.shape[-1]
    Ho = (H + 2 * pad - k) // stride + 1
    Wo = (W + 2 * pad - k) // stride + 1
    hblk = _conv_row_block(Ho, Wo)
    xps = _pad_phase_split(x, pad, stride, 0.0)
    _, P, Hq, Wq, _ = xps.shape
    assert (k - 1) // stride + Ho <= Hq and (k - 1) // stride + Wo <= Wq
    kern = functools.partial(_conv_kernel, k=k, stride=stride, hblk=hblk,
                             wo=Wo, relu=relu)
    return pl.pallas_call(
        kern,
        out_shape=jax.ShapeDtypeStruct((B, Ho, Wo, Cout), jnp.bfloat16),
        grid=(B, Ho // hblk),
        in_specs=[
            pl.BlockSpec((None, P, Hq, Wq, C), lambda bi, ri: (bi, 0, 0, 0, 0)),
            pl.BlockSpec((k * k, C, Cout), lambda bi, ri: (0, 0, 0)),
            pl.BlockSpec((1, Cout), lambda bi, ri: (0, 0)),
        ],
        out_specs=pl.BlockSpec((None, hblk, Wo, Cout),
                               lambda bi, ri: (bi, ri, 0, 0)),
        compiler_params=pltpu.CompilerParams(
            dimension_semantics=("parallel", "parallel")),
    )(xps, w_taps, bias.reshape(1, Cout))


def maxpool_3x3_s2(x):
    B, H, W, C = x.shape
    Ho = (H + 2 - 3) // 2 + 1
    Wo = (W + 2 - 3) // 2 + 1
    xps = _pad_phase_split(x, 1, 2, -jnp.inf)
    _, P, Hq, Wq, _ = xps.shape
    return pl.pallas_call(
        functools.partial(_maxpool_kernel, k=3, stride=2, ho=Ho, wo=Wo),
        out_shape=jax.ShapeDtypeStruct((B, Ho, Wo, C), jnp.bfloat16),
        grid=(B,),
        in_specs=[pl.BlockSpec((None, P, Hq, Wq, C),
                               lambda bi: (bi, 0, 0, 0, 0))],
        out_specs=pl.BlockSpec((None, Ho, Wo, C), lambda bi: (bi, 0, 0, 0)),
        compiler_params=_PAR,
    )(xps)


def pointwise(x_rows, w, bias, *, relu):
    M, K = x_rows.shape
    N = w.shape[1]
    tm = _row_tile(M)
    return pl.pallas_call(
        functools.partial(_pw_kernel, relu=relu),
        out_shape=jax.ShapeDtypeStruct((M, N), jnp.bfloat16),
        grid=(M // tm,),
        in_specs=[
            pl.BlockSpec((tm, K), lambda i: (i, 0)),
            pl.BlockSpec((K, N), lambda i: (0, 0)),
            pl.BlockSpec((1, N), lambda i: (0, 0)),
        ],
        out_specs=pl.BlockSpec((tm, N), lambda i: (i, 0)),
        compiler_params=_PAR,
    )(x_rows, w, bias.reshape(1, N))


def residual_pointwise(a_rows, s_rows, w_cat, bias):
    """Fused bottleneck tail: [a | s] @ [w3; wd] + bias, then ReLU."""
    M, K1 = a_rows.shape
    K2 = s_rows.shape[1]
    N = w_cat.shape[1]
    tm = _row_tile(M)
    return pl.pallas_call(
        _res_kernel,
        out_shape=jax.ShapeDtypeStruct((M, N), jnp.bfloat16),
        grid=(M // tm,),
        in_specs=[
            pl.BlockSpec((tm, K1), lambda i: (i, 0)),
            pl.BlockSpec((tm, K2), lambda i: (i, 0)),
            pl.BlockSpec((K1 + K2, N), lambda i: (0, 0)),
            pl.BlockSpec((1, N), lambda i: (0, 0)),
        ],
        out_specs=pl.BlockSpec((tm, N), lambda i: (i, 0)),
        compiler_params=_PAR,
    )(a_rows, s_rows, w_cat, bias.reshape(1, N))


def head(x_rows, w, bias):
    B, HW, C = x_rows.shape
    E = w.shape[1]
    return pl.pallas_call(
        _head_kernel,
        out_shape=jax.ShapeDtypeStruct((B, E), jnp.float32),
        grid=(1,),
        in_specs=[
            pl.BlockSpec((B, HW, C), lambda i: (0, 0, 0)),
            pl.BlockSpec((C, E), lambda i: (0, 0)),
            pl.BlockSpec((1, E), lambda i: (0, 0)),
        ],
        out_specs=pl.BlockSpec((B, E), lambda i: (0, 0)),
        compiler_params=pltpu.CompilerParams(
            dimension_semantics=("arbitrary",)),
    )(x_rows, w, bias.reshape(1, E))


# ---------------------------------------------------------------------------
# Model: scaled-down ResNet-style encoder + Linear embed
# ---------------------------------------------------------------------------

def bottleneck(x, p, prefix, stride):
    B, H, W, C = x.shape
    cmid = p[f"{prefix}_w1"].shape[1]
    cout = p[f"{prefix}_w3d"].shape[1]
    # 1x1 reduce + ReLU (row-tiled matmul, >=2 parallel steps)
    y1 = pointwise(x.reshape(B * H * W, C),
                   p[f"{prefix}_w1"], p[f"{prefix}_b1"], relu=True)
    y1 = y1.reshape(B, H, W, cmid)
    # 3x3 (stride s) + ReLU, taps accumulated in vregs
    y2 = conv3x3(y1, p[f"{prefix}_w2"], p[f"{prefix}_b2"],
                 stride=stride, relu=True)
    Bo, Ho, Wo, _ = y2.shape
    # fused tail: ONE K-concatenated dot of [y2 | shortcut] against [w3; wd].
    # (the stride-2 shortcut subsample stays a tiny host-side slice of x)
    scx = x if stride == 1 else x[:, ::stride, ::stride, :]
    out = residual_pointwise(y2.reshape(Bo * Ho * Wo, cmid),
                             scx.reshape(Bo * Ho * Wo, C),
                             p[f"{prefix}_w3d"], p[f"{prefix}_b3d"])
    return out.reshape(Bo, Ho, Wo, cout)


def init_params(key, embed_size):
    keys = iter(jax.random.split(key, 24))

    def w_init(shape, dtype=jnp.bfloat16):     # fan-in scaled
        fan_in = 1
        for s in shape[:-1]:
            fan_in *= s
        w = jax.random.normal(next(keys), shape, jnp.float32)
        return (w / jnp.sqrt(jnp.float32(fan_in))).astype(dtype)

    def b_init(n):
        return jax.random.normal(next(keys), (n,), jnp.float32) * 0.01

    # >=128 channel intermediates keep every store lane-dense (full 128 lanes).
    cs, m1, o1, m2, o2 = 128, 128, 128, 128, 256
    p = {}
    # stem: 7x7 s2 conv 3->128, taps folded into the contraction (K = 147),
    # eval-mode BatchNorm folded into weight/bias.
    p["stem_w"], p["stem_b"] = w_init((7 * 7 * 3, cs)), b_init(cs)
    # bottleneck 1 (stride 1): 1x1 reduce, 3x3, fused [1x1 expand ; projection]
    p["b1_w1"], p["b1_b1"] = w_init((cs, m1)), b_init(m1)
    p["b1_w2"], p["b1_b2"] = w_init((3 * 3, m1, m1)), b_init(m1)
    p["b1_w3d"], p["b1_b3d"] = w_init((m1 + cs, o1)), b_init(o1)  # [w3; wd]
    # bottleneck 2 (stride 2)
    p["b2_w1"], p["b2_b1"] = w_init((o1, m2)), b_init(m2)
    p["b2_w2"], p["b2_b2"] = w_init((3 * 3, m2, m2)), b_init(m2)
    p["b2_w3d"], p["b2_b3d"] = w_init((m2 + o1, o2)), b_init(o2)  # [w3; wd]
    # embed: Linear(in_features=256, embed_size)  (trainable layer, kept f32)
    p["embed_w"] = w_init((o2, embed_size), jnp.float32)
    p["embed_b"] = b_init(embed_size)
    return p


def encoder_cnn_forward(params, images_nchw):
    # NCHW (PyTorch) -> NHWC bf16 for the kernels.
    x = jnp.transpose(images_nchw, (0, 2, 3, 1)).astype(jnp.bfloat16)
    B = x.shape[0]
    # stem 7x7/2: taps folded into the contraction -> one row-tiled MXU matmul
    patches, Ho, Wo = _stem_im2col(x, k=7, stride=2, pad=3)
    cs = params["stem_w"].shape[1]
    x = pointwise(patches, params["stem_w"], params["stem_b"], relu=True)
    x = x.reshape(B, Ho, Wo, cs)                              # (B,32,32,128)
    x = maxpool_3x3_s2(x)                                     # (B,16,16,128)
    x = bottleneck(x, params, "b1", stride=1)                 # (B,16,16,128)
    x = bottleneck(x, params, "b2", stride=2)                 # (B, 8, 8,256)
    B, H, W, C = x.shape
    # fused AdaptiveAvgPool2d((1,1)) + view(B,-1) + Linear
    return head(x.reshape(B, H * W, C),
                params["embed_w"], params["embed_b"])         # (B, embed)


if __name__ == "__main__":
    key = jax.random.PRNGKey(0)
    k_img, k_par = jax.random.split(key)
    embed_size = 256
    images = jax.random.normal(k_img, (2, 3, 64, 64), jnp.float32)  # NCHW
    params = init_params(k_par, embed_size)

    features = jax.jit(encoder_cnn_forward)(params, images)
    features = jax.block_until_ready(features)

    assert features.shape == (2, embed_size), features.shape
    assert features.dtype == jnp.float32
    assert bool(jnp.all(jnp.isfinite(features)))
    print("KERNEL_OK")
</pallas_src>

<mosaic_0001>
module attributes {stable_mosaic.version = 11 : i64} {
  func.func @_pw_kernel(%arg0: i32, %arg1: memref<256x147xbf16, #tpu.memory_space<vmem>>, %arg2: memref<147x128xbf16, #tpu.memory_space<vmem>>, %arg3: memref<1x128xf32, #tpu.memory_space<vmem>>, %arg4: memref<256x128xbf16, #tpu.memory_space<vmem>>) attributes {dimension_semantics = [#tpu.dimension_semantics<parallel>], iteration_bounds = array<i64: 8>, scalar_prefetch = 0 : i64, scratch_operands = 0 : i64, tpu.core_type = #tpu.core_type<tc>, window_params = [{transform_indices = @transform_0, window_bounds = array<i64: 256, 147>}, {pipeline_mode = #tpu.pipeline_mode<synchronous>, transform_indices = @transform_1, window_bounds = array<i64: 147, 128>}, {pipeline_mode = #tpu.pipeline_mode<synchronous>, transform_indices = @transform_2, window_bounds = array<i64: 1, 128>}, {transform_indices = @transform_3, window_bounds = array<i64: 256, 128>}]} {
    %c0 = arith.constant 0 : index
    %c0_0 = arith.constant 0 : index
    %0 = vector.load %arg1[%c0, %c0_0] : memref<256x147xbf16, #tpu.memory_space<vmem>>, vector<256x147xbf16>
    %c0_1 = arith.constant 0 : index
    %c0_2 = arith.constant 0 : index
    %1 = vector.load %arg2[%c0_1, %c0_2] : memref<147x128xbf16, #tpu.memory_space<vmem>>, vector<147x128xbf16>
    %cst = arith.constant dense<0.000000e+00> : vector<256x128xf32>
    %2 = tpu.matmul %0, %1, %cst {dimension_numbers = #tpu.dot_dimension_numbers<[1], [0], [0], [1], [0, 0, 1, 1], [], []>} : vector<256x147xbf16>, vector<147x128xbf16>, vector<256x128xf32> -> vector<256x128xf32>
    %c0_3 = arith.constant 0 : index
    %c0_4 = arith.constant 0 : index
    %3 = vector.load %arg3[%c0_3, %c0_4] : memref<1x128xf32, #tpu.memory_space<vmem>>, vector<1x128xf32>
    %4 = vector.broadcast %3 : vector<1x128xf32> to vector<256x128xf32>
    %5 = arith.addf %2, %4 : vector<256x128xf32>
    %cst_5 = arith.constant 0.000000e+00 : f32
    %6 = vector.broadcast %cst_5 : f32 to vector<256x128xf32>
    %7 = arith.maximumf %5, %6 : vector<256x128xf32>
    %8 = arith.truncf %7 : vector<256x128xf32> to vector<256x128xbf16>
    %c0_6 = arith.constant 0 : index
    %c0_7 = arith.constant 0 : index
    %9 = vector.load %arg4[%c0_6, %c0_7] : memref<256x128xbf16, #tpu.memory_space<vmem>>, vector<256x128xbf16>
    tpu.vector_store %arg4[%c0_6, %c0_7], %8 {strides = array<i32>} : memref<256x128xbf16, #tpu.memory_space<vmem>>, vector<256x128xbf16>,
    return
  }
  func.func @transform_0(%arg0: i32) -> (i32, i32) {
    %c0_i32 = arith.constant 0 : i32
    %c0_i32_0 = arith.constant 0 : i32
    return %arg0, %c0_i32 : i32, i32
  }
  func.func @transform_1(%arg0: i32) -> (i32, i32) {
    %c0_i32 = arith.constant 0 : i32
    %c0_i32_0 = arith.constant 0 : i32
    %c0_i32_1 = arith.constant 0 : i32
    return %c0_i32, %c0_i32_0 : i32, i32
  }
  func.func @transform_2(%arg0: i32) -> (i32, i32) {
    %c0_i32 = arith.constant 0 : i32
    %c0_i32_0 = arith.constant 0 : i32
    %c0_i32_1 = arith.constant 0 : i32
    return %c0_i32, %c0_i32_0 : i32, i32
  }
  func.func @transform_3(%arg0: i32) -> (i32, i32) {
    %c0_i32 = arith.constant 0 : i32
    %c0_i32_0 = arith.constant 0 : i32
    return %arg0, %c0_i32 : i32, i32
  }
}

module attributes {stable_mosaic.version = 11 : i64} {
  func.func @_maxpool_kernel(%arg0: i32, %arg1: memref<1x4x17x17x128xbf16, #tpu.memory_space<vmem>>, %arg2: memref<1x16x16x128xbf16, #tpu.memory_space<vmem>>) attributes {dimension_semantics = [#tpu.dimension_semantics<parallel>], iteration_bounds = array<i64: 2>, scalar_prefetch = 0 : i64, scratch_operands = 0 : i64, tpu.core_type = #tpu.core_type<tc>, window_params = [{transform_indices = @transform_0, window_bounds = array<i64: 1, 4, 17, 17, 128>}, {transform_indices = @transform_1, window_bounds = array<i64: 1, 16, 16, 128>}]} {
    %c0 = arith.constant 0 : index
    %c0_0 = arith.constant 0 : index
    %c0_1 = arith.constant 0 : index
    %c0_2 = arith.constant 0 : index
    %c0_3 = arith.constant 0 : index
    %0 = vector.load %arg1[%c0, %c0_0, %c0_1, %c0_2, %c0_3] : memref<1x4x17x17x128xbf16, #tpu.memory_space<vmem>>, vector<1x1x16x16x128xbf16>
    %1 = vector.shape_cast %0 : vector<1x1x16x16x128xbf16> to vector<16x16x128xbf16>
    %c0_4 = arith.constant 0 : index
    %c1 = arith.constant 1 : index
    %c0_5 = arith.constant 0 : index
    %c0_6 = arith.constant 0 : index
    %c0_7 = arith.constant 0 : index
    %2 = vector.load %arg1[%c0_4, %c1, %c0_5, %c0_6, %c0_7] : memref<1x4x17x17x128xbf16, #tpu.memory_space<vmem>>, vector<1x1x16x16x128xbf16>
    %3 = vector.shape_cast %2 : vector<1x1x16x16x128xbf16> to vector<16x16x128xbf16>
    %4 = arith.maximumf %1, %3 : vector<16x16x128xbf16>
    %c0_8 = arith.constant 0 : index
    %c0_9 = arith.constant 0 : index
    %c0_10 = arith.constant 0 : index
    %c1_11 = arith.constant 1 : index
    %c0_12 = arith.constant 0 : index
    %5 = vector.load %arg1[%c0_8, %c0_9, %c0_10, %c1_11, %c0_12] : memref<1x4x17x17x128xbf16, #tpu.memory_space<vmem>>, vector<1x1x16x16x128xbf16>
    %6 = vector.shape_cast %5 : vector<1x1x16x16x128xbf16> to vector<16x16x128xbf16>
    %7 = arith.maximumf %4, %6 : vector<16x16x128xbf16>
    %c0_13 = arith.constant 0 : index
    %c2 = arith.constant 2 : index
    %c0_14 = arith.constant 0 : index
    %c0_15 = arith.constant 0 : index
    %c0_16 = arith.constant 0 : index
    %8 = vector.load %arg1[%c0_13, %c2, %c0_14, %c0_15, %c0_16] : memref<1x4x17x17x128xbf16, #tpu.memory_space<vmem>>, vector<1x1x16x16x128xbf16>
    %9 = vector.shape_cast %8 : vector<1x1x16x16x128xbf16> to vector<16x16x128xbf16>
    %10 = arith.maximumf %7, %9 : vector<16x16x128xbf16>
    %c0_17 = arith.constant 0 : index
    %c3 = arith.constant 3 : index
    %c0_18 = arith.constant 0 : index
    %c0_19 = arith.constant 0 : index
    %c0_20 = arith.constant 0 : index
    %11 = vector.load %arg1[%c0_17, %c3, %c0_18, %c0_19, %c0_20] : memref<1x4x17x17x128xbf16, #tpu.memory_space<vmem>>, vector<1x1x16x16x128xbf16>
    %12 = vector.shape_cast %11 : vector<1x1x16x16x128xbf16> to vector<16x16x128xbf16>
    %13 = arith.maximumf %10, %12 : vector<16x16x128xbf16>
    %c0_21 = arith.constant 0 : index
    %c2_22 = arith.constant 2 : index
    %c0_23 = arith.constant 0 : index
    %c1_24 = arith.constant 1 : index
    %c0_25 = arith.constant 0 : index
    %14 = vector.load %arg1[%c0_21, %c2_22, %c0_23, %c1_24, %c0_25] : memref<1x4x17x17x128xbf16, #tpu.memory_space<vmem>>, vector<1x1x16x16x128xbf16>
    %15 = vector.shape_cast %14 : vector<1x1x16x16x128xbf16> to vector<16x16x128xbf16>
    %16 = arith.maximumf %13, %15 : vector<16x16x128xbf16>
    %c0_26 = arith.constant 0 : index
    %c0_27 = arith.constant 0 : index
    %c1_28 = arith.constant 1 : index
    %c0_29 = arith.constant 0 : index
    %c0_30 = arith.constant 0 : index
    %17 = vector.load %arg1[%c0_26, %c0_27, %c1_28, %c0_29, %c0_30] : memref<1x4x17x17x128xbf16, #tpu.memory_space<vmem>>, vector<1x1x16x16x128xbf16>
    %18 = vector.shape_cast %17 : vector<1x1x16x16x128xbf16> to vector<16x16x128xbf16>
    %19 = arith.maximumf %16, %18 : vector<16x16x128xbf16>
    %c0_31 = arith.constant 0 : index
    %c1_32 = arith.constant 1 : index
    %c1_33 = arith.constant 1 : index
    %c0_34 = arith.constant 0 : index
    %c0_35 = arith.constant 0 : index
    %20 = vector.load %arg1[%c0_31, %c1_32, %c1_33, %c0_34, %c0_35] : memref<1x4x17x17x128xbf16, #tpu.memory_space<vmem>>, vector<1x1x16x16x128xbf16>
    %21 = vector.shape_cast %20 : vector<1x1x16x16x128xbf16> to vector<16x16x128xbf16>
    %22 = arith.maximumf %19, %21 : vector<16x16x128xbf16>
    %c0_36 = arith.constant 0 : index
    %c0_37 = arith.constant 0 : index
    %c1_38 = arith.constant 1 : index
    %c1_39 = arith.constant 1 : index
    %c0_40 = arith.constant 0 : index
    %23 = vector.load %arg1[%c0_36, %c0_37, %c1_38, %c1_39, %c0_40] : memref<1x4x17x17x128xbf16, #tpu.memory_space<vmem>>, vector<1x1x16x16x128xbf16>
    %24 = vector.shape_cast %23 : vector<1x1x16x16x128xbf16> to vector<16x16x128xbf16>
    %25 = arith.maximumf %22, %24 : vector<16x16x128xbf16>
    %c0_41 = arith.constant 0 : index
    %c0_42 = arith.constant 0 : index
    %c0_43 = arith.constant 0 : index
    %c0_44 = arith.constant 0 : index
    %26 = vector.load %arg2[%c0_41, %c0_42, %c0_43, %c0_44] : memref<1x16x16x128xbf16, #tpu.memory_space<vmem>>, vector<1x16x16x128xbf16>
    %27 = vector.shape_cast %26 : vector<1x16x16x128xbf16> to vector<16x16x128xbf16>
    %28 = vector.shape_cast %25 : vector<16x16x128xbf16> to vector<1x16x16x128xbf16>
    tpu.vector_store %arg2[%c0_41, %c0_42, %c0_43, %c0_44], %28 {strides = array<i32>} : memref<1x16x16x128xbf16, #tpu.memory_space<vmem>>, vector<1x16x16x128xbf16>,
    return
  }
  func.func @transform_0(%arg0: i32) -> (i32, i32, i32, i32, i32) {
    %c0_i32 = arith.constant 0 : i32
    %c0_i32_0 = arith.constant 0 : i32
    %c0_i32_1 = arith.constant 0 : i32
    %c0_i32_2 = arith.constant 0 : i32
    %c0_i32_3 = arith.constant 0 : i32
    return %arg0, %c0_i32, %c0_i32_0, %c0_i32_1, %c0_i32_2 : i32, i32, i32, i32, i32
  }
  func.func @transform_1(%arg0: i32) -> (i32, i32, i32, i32) {
    %c0_i32 = arith.constant 0 : i32
    %c0_i32_0 = arith.constant 0 : i32
    %c0_i32_1 = arith.constant 0 : i32
    %c0_i32_2 = arith.constant 0 : i32
    return %arg0, %c0_i32, %c0_i32_0, %c0_i32_1 : i32, i32, i32, i32
  }
}

module attributes {stable_mosaic.version = 11 : i64} {
  func.func @_pw_kernel(%arg0: i32, %arg1: memref<256x128xbf16, #tpu.memory_space<vmem>>, %arg2: memref<128x128xbf16, #tpu.memory_space<vmem>>, %arg3: memref<1x128xf32, #tpu.memory_space<vmem>>, %arg4: memref<256x128xbf16, #tpu.memory_space<vmem>>) attributes {dimension_semantics = [#tpu.dimension_semantics<parallel>], iteration_bounds = array<i64: 2>, scalar_prefetch = 0 : i64, scratch_operands = 0 : i64, tpu.core_type = #tpu.core_type<tc>, window_params = [{transform_indices = @transform_0, window_bounds = array<i64: 256, 128>}, {pipeline_mode = #tpu.pipeline_mode<synchronous>, transform_indices = @transform_1, window_bounds = array<i64: 128, 128>}, {pipeline_mode = #tpu.pipeline_mode<synchronous>, transform_indices = @transform_2, window_bounds = array<i64: 1, 128>}, {transform_indices = @transform_3, window_bounds = array<i64: 256, 128>}]} {
    %c0 = arith.constant 0 : index
    %c0_0 = arith.constant 0 : index
    %0 = vector.load %arg1[%c0, %c0_0] : memref<256x128xbf16, #tpu.memory_space<vmem>>, vector<256x128xbf16>
    %c0_1 = arith.constant 0 : index
    %c0_2 = arith.constant 0 : index
    %1 = vector.load %arg2[%c0_1, %c0_2] : memref<128x128xbf16, #tpu.memory_space<vmem>>, vector<128x128xbf16>
    %cst = arith.constant dense<0.000000e+00> : vector<256x128xf32>
    %2 = tpu.matmul %0, %1, %cst {dimension_numbers = #tpu.dot_dimension_numbers<[1], [0], [0], [1], [0, 0, 1, 1], [], []>} : vector<256x128xbf16>, vector<128x128xbf16>, vector<256x128xf32> -> vector<256x128xf32>
    %c0_3 = arith.constant 0 : index
    %c0_4 = arith.constant 0 : index
    %3 = vector.load %arg3[%c0_3, %c0_4] : memref<1x128xf32, #tpu.memory_space<vmem>>, vector<1x128xf32>
    %4 = vector.broadcast %3 : vector<1x128xf32> to vector<256x128xf32>
    %5 = arith.addf %2, %4 : vector<256x128xf32>
    %cst_5 = arith.constant 0.000000e+00 : f32
    %6 = vector.broadcast %cst_5 : f32 to vector<256x128xf32>
    %7 = arith.maximumf %5, %6 : vector<256x128xf32>
    %8 = arith.truncf %7 : vector<256x128xf32> to vector<256x128xbf16>
    %c0_6 = arith.constant 0 : index
    %c0_7 = arith.constant 0 : index
    %9 = vector.load %arg4[%c0_6, %c0_7] : memref<256x128xbf16, #tpu.memory_space<vmem>>, vector<256x128xbf16>
    tpu.vector_store %arg4[%c0_6, %c0_7], %8 {strides = array<i32>} : memref<256x128xbf16, #tpu.memory_space<vmem>>, vector<256x128xbf16>,
    return
  }
  func.func @transform_0(%arg0: i32) -> (i32, i32) {
    %c0_i32 = arith.constant 0 : i32
    %c0_i32_0 = arith.constant 0 : i32
    return %arg0, %c0_i32 : i32, i32
  }
  func.func @transform_1(%arg0: i32) -> (i32, i32) {
    %c0_i32 = arith.constant 0 : i32
    %c0_i32_0 = arith.constant 0 : i32
    %c0_i32_1 = arith.constant 0 : i32
    return %c0_i32, %c0_i32_0 : i32, i32
  }
  func.func @transform_2(%arg0: i32) -> (i32, i32) {
    %c0_i32 = arith.constant 0 : i32
    %c0_i32_0 = arith.constant 0 : i32
    %c0_i32_1 = arith.constant 0 : i32
    return %c0_i32, %c0_i32_0 : i32, i32
  }
  func.func @transform_3(%arg0: i32) -> (i32, i32) {
    %c0_i32 = arith.constant 0 : i32
    %c0_i32_0 = arith.constant 0 : i32
    return %arg0, %c0_i32 : i32, i32
  }
}

module attributes {stable_mosaic.version = 11 : i64} {
  func.func @_conv_kernel(%arg0: i32, %arg1: i32, %arg2: memref<1x1x18x18x128xbf16, #tpu.memory_space<vmem>>, %arg3: memref<9x128x128xbf16, #tpu.memory_space<vmem>>, %arg4: memref<1x128xf32, #tpu.memory_space<vmem>>, %arg5: memref<1x4x16x128xbf16, #tpu.memory_space<vmem>>) attributes {dimension_semantics = [#tpu.dimension_semantics<parallel>, #tpu.dimension_semantics<parallel>], iteration_bounds = array<i64: 2, 4>, scalar_prefetch = 0 : i64, scratch_operands = 0 : i64, tpu.core_type = #tpu.core_type<tc>, window_params = [{transform_indices = @transform_0, window_bounds = array<i64: 1, 1, 18, 18, 128>}, {pipeline_mode = #tpu.pipeline_mode<synchronous>, transform_indices = @transform_1, window_bounds = array<i64: 9, 128, 128>}, {pipeline_mode = #tpu.pipeline_mode<synchronous>, transform_indices = @transform_2, window_bounds = array<i64: 1, 128>}, {transform_indices = @transform_3, window_bounds = array<i64: 1, 4, 16, 128>}]} {
    %c4_i32 = arith.constant 4 : i32
    %0 = arith.muli %arg1, %c4_i32 : i32
    %1 = tpu.assume_multiple %0, 4 : i32
    %cst = arith.constant 0.000000e+00 : f32
    %2 = vector.broadcast %cst : f32 to vector<64x128xf32>
    %c0_i32 = arith.constant 0 : i32
    %3 = arith.addi %1, %c0_i32 : i32
    %c0 = arith.constant 0 : index
    %c0_0 = arith.constant 0 : index
    %4 = arith.index_cast %3 : i32 to index
    %c0_1 = arith.constant 0 : index
    %c0_2 = arith.constant 0 : index
    %5 = vector.load %arg2[%c0, %c0_0, %4, %c0_1, %c0_2] : memref<1x1x18x18x128xbf16, #tpu.memory_space<vmem>>, vector<1x1x4x16x128xbf16>
    %6 = vector.shape_cast %5 : vector<1x1x4x16x128xbf16> to vector<4x16x128xbf16>
    %7 = vector.shape_cast %6 : vector<4x16x128xbf16> to vector<64x128xbf16>
    %c0_3 = arith.constant 0 : index
    %c0_4 = arith.constant 0 : index
    %c0_5 = arith.constant 0 : index
    %8 = vector.load %arg3[%c0_3, %c0_4, %c0_5] : memref<9x128x128xbf16, #tpu.memory_space<vmem>>, vector<1x128x128xbf16>
    %9 = vector.shape_cast %8 : vector<1x128x128xbf16> to vector<128x128xbf16>
    %cst_6 = arith.constant dense<0.000000e+00> : vector<64x128xf32>
    %10 = tpu.matmul %7, %9, %cst_6 {dimension_numbers = #tpu.dot_dimension_numbers<[1], [0], [0], [1], [0, 0, 1, 1], [], []>} : vector<64x128xbf16>, vector<128x128xbf16>, vector<64x128xf32> -> vector<64x128xf32>
    %11 = arith.addf %2, %10 : vector<64x128xf32>
    %c0_i32_7 = arith.constant 0 : i32
    %12 = arith.addi %1, %c0_i32_7 : i32
    %c0_8 = arith.constant 0 : index
    %c0_9 = arith.constant 0 : index
    %13 = arith.index_cast %12 : i32 to index
    %c1 = arith.constant 1 : index
    %c0_10 = arith.constant 0 : index
    %14 = vector.load %arg2[%c0_8, %c0_9, %13, %c1, %c0_10] : memref<1x1x18x18x128xbf16, #tpu.memory_space<vmem>>, vector<1x1x4x16x128xbf16>
    %15 = vector.shape_cast %14 : vector<1x1x4x16x128xbf16> to vector<4x16x128xbf16>
    %16 = vector.shape_cast %15 : vector<4x16x128xbf16> to vector<64x128xbf16>
    %c1_11 = arith.constant 1 : index
    %c0_12 = arith.constant 0 : index
    %c0_13 = arith.constant 0 : index
    %17 = vector.load %arg3[%c1_11, %c0_12, %c0_13] : memref<9x128x128xbf16, #tpu.memory_space<vmem>>, vector<1x128x128xbf16>
    %18 = vector.shape_cast %17 : vector<1x128x128xbf16> to vector<128x128xbf16>
    %cst_14 = arith.constant dense<0.000000e+00> : vector<64x128xf32>
    %19 = tpu.matmul %16, %18, %cst_14 {dimension_numbers = #tpu.dot_dimension_numbers<[1], [0], [0], [1], [0, 0, 1, 1], [], []>} : vector<64x128xbf16>, vector<128x128xbf16>, vector<64x128xf32> -> vector<64x128xf32>
    %20 = arith.addf %11, %19 : vector<64x128xf32>
    %c0_i32_15 = arith.constant 0 : i32
    %21 = arith.addi %1, %c0_i32_15 : i32
    %c0_16 = arith.constant 0 : index
    %c0_17 = arith.constant 0 : index
    %22 = arith.index_cast %21 : i32 to index
    %c2 = arith.constant 2 : index
    %c0_18 = arith.constant 0 : index
    %23 = vector.load %arg2[%c0_16, %c0_17, %22, %c2, %c0_18] : memref<1x1x18x18x128xbf16, #tpu.memory_space<vmem>>, vector<1x1x4x16x128xbf16>
    %24 = vector.shape_cast %23 : vector<1x1x4x16x128xbf16> to vector<4x16x128xbf16>
    %25 = vector.shape_cast %24 : vector<4x16x128xbf16> to vector<64x128xbf16>
    %c2_19 = arith.constant 2 : index
    %c0_20 = arith.constant 0 : index
    %c0_21 = arith.constant 0 : index
    %26 = vector.load %arg3[%c2_19, %c0_20, %c0_21] : memref<9x128x128xbf16, #tpu.memory_space<vmem>>, vector<1x128x128xbf16>
    %27 = vector.shape_cast %26 : vector<1x128x128xbf16> to vector<128x128xbf16>
    %cst_22 = arith.constant dense<0.000000e+00> : vector<64x128xf32>
    %28 = tpu.matmul %25, %27, %cst_22 {dimension_numbers = #tpu.dot_dimension_numbers<[1], [0], [0], [1], [0, 0, 1, 1], [], []>} : vector<64x128xbf16>, vector<128x128xbf16>, vector<64x128xf32> -> vector<64x128xf32>
    %29 = arith.addf %20, %28 : vector<64x128xf32>
    %c1_i32 = arith.constant 1 : i32
    %30 = arith.addi %1, %c1_i32 : i32
    %c0_23 = arith.constant 0 : index
    %c0_24 = arith.constant 0 : index
    %31 = arith.index_cast %30 : i32 to index
    %c0_25 = arith.constant 0 : index
    %c0_26 = arith.constant 0 : index
    %32 = vector.load %arg2[%c0_23, %c0_24, %31, %c0_25, %c0_26] : memref<1x1x18x18x128xbf16, #tpu.memory_space<vmem>>, vector<1x1x4x16x128xbf16>
    %33 = vector.shape_cast %32 : vector<1x1x4x16x128xbf16> to vector<4x16x128xbf16>
    %34 = vector.shape_cast %33 : vector<4x16x128xbf16> to vector<64x128xbf16>
    %c3 = arith.constant 3 : index
    %c0_27 = arith.constant 0 : index
    %c0_28 = arith.constant 0 : index
    %35 = vector.load %arg3[%c3, %c0_27, %c0_28] : memref<9x128x128xbf16, #tpu.memory_space<vmem>>, vector<1x128x128xbf16>
    %36 = vector.shape_cast %35 : vector<1x128x128xbf16> to vector<128x128xbf16>
    %cst_29 = arith.constant dense<0.000000e+00> : vector<64x128xf32>
    %37 = tpu.matmul %34, %36, %cst_29 {dimension_numbers = #tpu.dot_dimension_numbers<[1], [0], [0], [1], [0, 0, 1, 1], [], []>} : vector<64x128xbf16>, vector<128x128xbf16>, vector<64x128xf32> -> vector<64x128xf32>
    %38 = arith.addf %29, %37 : vector<64x128xf32>
    %c1_i32_30 = arith.constant 1 : i32
    %39 = arith.addi %1, %c1_i32_30 : i32
    %c0_31 = arith.constant 0 : index
    %c0_32 = arith.constant 0 : index
    %40 = arith.index_cast %39 : i32 to index
    %c1_33 = arith.constant 1 : index
    %c0_34 = arith.constant 0 : index
    %41 = vector.load %arg2[%c0_31, %c0_32, %40, %c1_33, %c0_34] : memref<1x1x18x18x128xbf16, #tpu.memory_space<vmem>>, vector<1x1x4x16x128xbf16>
    %42 = vector.shape_cast %41 : vector<1x1x4x16x128xbf16> to vector<4x16x128xbf16>
    %43 = vector.shape_cast %42 : vector<4x16x128xbf16> to vector<64x128xbf16>
    %c4 = arith.constant 4 : index
    %c0_35 = arith.constant 0 : index
    %c0_36 = arith.constant 0 : index
    %44 = vector.load %arg3[%c4, %c0_35, %c0_36] : memref<9x128x128xbf16, #tpu.memory_space<vmem>>, vector<1x128x128xbf16>
    %45 = vector.shape_cast %44 : vector<1x128x128xbf16> to vector<128x128xbf16>
    %cst_37 = arith.constant dense<0.000000e+00> : vector<64x128xf32>
    %46 = tpu.matmul %43, %45, %cst_37 {dimension_numbers = #tpu.dot_dimension_numbers<[1], [0], [0], [1], [0, 0, 1, 1], [], []>} : vector<64x128xbf16>, vector<128x128xbf16>, vector<64x128xf32> -> vector<64x128xf32>
    %47 = arith.addf %38, %46 : vector<64x128xf32>
    %c1_i32_38 = arith.constant 1 : i32
    %48 = arith.addi %1, %c1_i32_38 : i32
    %c0_39 = arith.constant 0 : index
    %c0_40 = arith.constant 0 : index
    %49 = arith.index_cast %48 : i32 to index
    %c2_41 = arith.constant 2 : index
    %c0_42 = arith.constant 0 : index
    %50 = vector.load %arg2[%c0_39, %c0_40, %49, %c2_41, %c0_42] : memref<1x1x18x18x128xbf16, #tpu.memory_space<vmem>>, vector<1x1x4x16x128xbf16>
    %51 = vector.shape_cast %50 : vector<1x1x4x16x128xbf16> to vector<4x16x128xbf16>
    %52 = vector.shape_cast %51 : vector<4x16x128xbf16> to vector<64x128xbf16>
    %c5 = arith.constant 5 : index
    %c0_43 = arith.constant 0 : index
    %c0_44 = arith.constant 0 : index
    %53 = vector.load %arg3[%c5, %c0_43, %c0_44] : memref<9x128x128xbf16, #tpu.memory_space<vmem>>, vector<1x128x128xbf16>
    %54 = vector.shape_cast %53 : vector<1x128x128xbf16> to vector<128x128xbf16>
    %cst_45 = arith.constant dense<0.000000e+00> : vector<64x128xf32>
    %55 = tpu.matmul %52, %54, %cst_45 {dimension_numbers = #tpu.dot_dimension_numbers<[1], [0], [0], [1], [0, 0, 1, 1], [], []>} : vector<64x128xbf16>, vector<128x128xbf16>, vector<64x128xf32> -> vector<64x128xf32>
    %56 = arith.addf %47, %55 : vector<64x128xf32>
    %c2_i32 = arith.constant 2 : i32
    %57 = arith.addi %1, %c2_i32 : i32
    %c0_46 = arith.constant 0 : index
    %c0_47 = arith.constant 0 : index
    %58 = arith.index_cast %57 : i32 to index
    %c0_48 = arith.constant 0 : index
    %c0_49 = arith.constant 0 : index
    %59 = vector.load %arg2[%c0_46, %c0_47, %58, %c0_48, %c0_49] : memref<1x1x18x18x128xbf16, #tpu.memory_space<vmem>>, vector<1x1x4x16x128xbf16>
    %60 = vector.shape_cast %59 : vector<1x1x4x16x128xbf16> to vector<4x16x128xbf16>
    %61 = vector.shape_cast %60 : vector<4x16x128xbf16> to vector<64x128xbf16>
    %c6 = arith.constant 6 : index
    %c0_50 = arith.constant 0 : index
    %c0_51 = arith.constant 0 : index
    %62 = vector.load %arg3[%c6, %c0_50, %c0_51] : memref<9x128x128xbf16, #tpu.memory_space<vmem>>, vector<1x128x128xbf16>
    %63 = vector.shape_cast %62 : vector<1x128x128xbf16> to vector<128x128xbf16>
    %cst_52 = arith.constant dense<0.000000e+00> : vector<64x128xf32>
    %64 = tpu.matmul %61, %63, %cst_52 {dimension_numbers = #tpu.dot_dimension_numbers<[1], [0], [0], [1], [0, 0, 1, 1], [], []>} : vector<64x128xbf16>, vector<128x128xbf16>, vector<64x128xf32> -> vector<64x128xf32>
    %65 = arith.addf %56, %64 : vector<64x128xf32>
    %c2_i32_53 = arith.constant 2 : i32
    %66 = arith.addi %1, %c2_i32_53 : i32
    %c0_54 = arith.constant 0 : index
    %c0_55 = arith.constant 0 : index
    %67 = arith.index_cast %66 : i32 to index
    %c1_56 = arith.constant 1 : index
    %c0_57 = arith.constant 0 : index
    %68 = vector.load %arg2[%c0_54, %c0_55, %67, %c1_56, %c0_57] : memref<1x1x18x18x128xbf16, #tpu.memory_space<vmem>>, vector<1x1x4x16x128xbf16>
    %69 = vector.shape_cast %68 : vector<1x1x4x16x128xbf16> to vector<4x16x128xbf16>
    %70 = vector.shape_cast %69 : vector<4x16x128xbf16> to vector<64x128xbf16>
    %c7 = arith.constant 7 : index
    %c0_58 = arith.constant 0 : index
    %c0_59 = arith.constant 0 : index
    %71 = vector.load %arg3[%c7, %c0_58, %c0_59] : memref<9x128x128xbf16, #tpu.memory_space<vmem>>, vector<1x128x128xbf16>
    %72 = vector.shape_cast %71 : vector<1x128x128xbf16> to vector<128x128xbf16>
    %cst_60 = arith.constant dense<0.000000e+00> : vector<64x128xf32>
    %73 = tpu.matmul %70, %72, %cst_60 {dimension_numbers = #tpu.dot_dimension_numbers<[1], [0], [0], [1], [0, 0, 1, 1], [], []>} : vector<64x128xbf16>, vector<128x128xbf16>, vector<64x128xf32> -> vector<64x128xf32>
    %74 = arith.addf %65, %73 : vector<64x128xf32>
    %c2_i32_61 = arith.constant 2 : i32
    %75 = arith.addi %1, %c2_i32_61 : i32
    %c0_62 = arith.constant 0 : index
    %c0_63 = arith.constant 0 : index
    %76 = arith.index_cast %75 : i32 to index
    %c2_64 = arith.constant 2 : index
    %c0_65 = arith.constant 0 : index
    %77 = vector.load %arg2[%c0_62, %c0_63, %76, %c2_64, %c0_65] : memref<1x1x18x18x128xbf16, #tpu.memory_space<vmem>>, vector<1x1x4x16x128xbf16>
    %78 = vector.shape_cast %77 : vector<1x1x4x16x128xbf16> to vector<4x16x128xbf16>
    %79 = vector.shape_cast %78 : vector<4x16x128xbf16> to vector<64x128xbf16>
    %c8 = arith.constant 8 : index
    %c0_66 = arith.constant 0 : index
    %c0_67 = arith.constant 0 : index
    %80 = vector.load %arg3[%c8, %c0_66, %c0_67] : memref<9x128x128xbf16, #tpu.memory_space<vmem>>, vector<1x128x128xbf16>
    %81 = vector.shape_cast %80 : vector<1x128x128xbf16> to vector<128x128xbf16>
    %cst_68 = arith.constant dense<0.000000e+00> : vector<64x128xf32>
    %82 = tpu.matmul %79, %81, %cst_68 {dimension_numbers = #tpu.dot_dimension_numbers<[1], [0], [0], [1], [0, 0, 1, 1], [], []>} : vector<64x128xbf16>, vector<128x128xbf16>, vector<64x128xf32> -> vector<64x128xf32>
    %83 = arith.addf %74, %82 : vector<64x128xf32>
    %c0_69 = arith.constant 0 : index
    %c0_70 = arith.constant 0 : index
    %84 = vector.load %arg4[%c0_69, %c0_70] : memref<1x128xf32, #tpu.memory_space<vmem>>, vector<1x128xf32>
    %85 = vector.broadcast %84 : vector<1x128xf32> to vector<64x128xf32>
    %86 = arith.addf %83, %85 : vector<64x128xf32>
    %cst_71 = arith.constant 0.000000e+00 : f32
    %87 = vector.broadcast %cst_71 : f32 to vector<64x128xf32>
    %88 = arith.maximumf %86, %87 : vector<64x128xf32>
    %89 = vector.shape_cast %88 : vector<64x128xf32> to vector<4x16x128xf32>
    %90 = arith.truncf %89 : vector<4x16x128xf32> to vector<4x16x128xbf16>
    %c0_72 = arith.constant 0 : index
    %c0_73 = arith.constant 0 : index
    %c0_74 = arith.constant 0 : index
    %c0_75 = arith.constant 0 : index
    %91 = vector.load %arg5[%c0_72, %c0_73, %c0_74, %c0_75] : memref<1x4x16x128xbf16, #tpu.memory_space<vmem>>, vector<1x4x16x128xbf16>
    %92 = vector.shape_cast %91 : vector<1x4x16x128xbf16> to vector<4x16x128xbf16>
    %93 = vector.shape_cast %90 : vector<4x16x128xbf16> to vector<1x4x16x128xbf16>
    tpu.vector_store %arg5[%c0_72, %c0_73, %c0_74, %c0_75], %93 {strides = array<i32>} : memref<1x4x16x128xbf16, #tpu.memory_space<vmem>>, vector<1x4x16x128xbf16>,
    return
  }
  func.func @transform_0(%arg0: i32, %arg1: i32) -> (i32, i32, i32, i32, i32) {
    %c0_i32 = arith.constant 0 : i32
    %c0_i32_0 = arith.constant 0 : i32
    %c0_i32_1 = arith.constant 0 : i32
    %c0_i32_2 = arith.constant 0 : i32
    %c0_i32_3 = arith.constant 0 : i32
    return %arg0, %c0_i32, %c0_i32_0, %c0_i32_1, %c0_i32_2 : i32, i32, i32, i32, i32
  }
  func.func @transform_1(%arg0: i32, %arg1: i32) -> (i32, i32, i32) {
    %c0_i32 = arith.constant 0 : i32
    %c0_i32_0 = arith.constant 0 : i32
    %c0_i32_1 = arith.constant 0 : i32
    %c0_i32_2 = arith.constant 0 : i32
    return %c0_i32, %c0_i32_0, %c0_i32_1 : i32, i32, i32
  }
  func.func @transform_2(%arg0: i32, %arg1: i32) -> (i32, i32) {
    %c0_i32 = arith.constant 0 : i32
    %c0_i32_0 = arith.constant 0 : i32
    %c0_i32_1 = arith.constant 0 : i32
    return %c0_i32, %c0_i32_0 : i32, i32
  }
  func.func @transform_3(%arg0: i32, %arg1: i32) -> (i32, i32, i32, i32) {
    %c0_i32 = arith.constant 0 : i32
    %c0_i32_0 = arith.constant 0 : i32
    %c0_i32_1 = arith.constant 0 : i32
    return %arg0, %arg1, %c0_i32, %c0_i32_0 : i32, i32, i32, i32
  }
}

module attributes {stable_mosaic.version = 11 : i64} {
  func.func @_res_kernel(%arg0: i32, %arg1: memref<256x128xbf16, #tpu.memory_space<vmem>>, %arg2: memref<256x128xbf16, #tpu.memory_space<vmem>>, %arg3: memref<256x128xbf16, #tpu.memory_space<vmem>>, %arg4: memref<1x128xf32, #tpu.memory_space<vmem>>, %arg5: memref<256x128xbf16, #tpu.memory_space<vmem>>) attributes {dimension_semantics = [#tpu.dimension_semantics<parallel>], iteration_bounds = array<i64: 2>, scalar_prefetch = 0 : i64, scratch_operands = 0 : i64, tpu.core_type = #tpu.core_type<tc>, window_params = [{transform_indices = @transform_0, window_bounds = array<i64: 256, 128>}, {transform_indices = @transform_1, window_bounds = array<i64: 256, 128>}, {pipeline_mode = #tpu.pipeline_mode<synchronous>, transform_indices = @transform_2, window_bounds = array<i64: 256, 128>}, {pipeline_mode = #tpu.pipeline_mode<synchronous>, transform_indices = @transform_3, window_bounds = array<i64: 1, 128>}, {transform_indices = @transform_4, window_bounds = array<i64: 256, 128>}]} {
    %c0 = arith.constant 0 : index
    %c0_0 = arith.constant 0 : index
    %0 = vector.load %arg1[%c0, %c0_0] : memref<256x128xbf16, #tpu.memory_space<vmem>>, vector<256x128xbf16>
    %c0_1 = arith.constant 0 : index
    %c0_2 = arith.constant 0 : index
    %1 = vector.load %arg2[%c0_1, %c0_2] : memref<256x128xbf16, #tpu.memory_space<vmem>>, vector<256x128xbf16>
    %2 = tpu.concatenate %0, %1 in 1 : vector<256x128xbf16>, vector<256x128xbf16> -> vector<256x256xbf16>
    %c0_3 = arith.constant 0 : index
    %c0_4 = arith.constant 0 : index
    %3 = vector.load %arg3[%c0_3, %c0_4] : memref<256x128xbf16, #tpu.memory_space<vmem>>, vector<256x128xbf16>
    %cst = arith.constant dense<0.000000e+00> : vector<256x128xf32>
    %4 = tpu.matmul %2, %3, %cst {dimension_numbers = #tpu.dot_dimension_numbers<[1], [0], [0], [1], [0, 0, 1, 1], [], []>} : vector<256x256xbf16>, vector<256x128xbf16>, vector<256x128xf32> -> vector<256x128xf32>
    %c0_5 = arith.constant 0 : index
    %c0_6 = arith.constant 0 : index
    %5 = vector.load %arg4[%c0_5, %c0_6] : memref<1x128xf32, #tpu.memory_space<vmem>>, vector<1x128xf32>
    %6 = vector.broadcast %5 : vector<1x128xf32> to vector<256x128xf32>
    %7 = arith.addf %4, %6 : vector<256x128xf32>
    %cst_7 = arith.constant 0.000000e+00 : f32
    %8 = vector.broadcast %cst_7 : f32 to vector<256x128xf32>
    %9 = arith.maximumf %7, %8 : vector<256x128xf32>
    %10 = arith.truncf %9 : vector<256x128xf32> to vector<256x128xbf16>
    %c0_8 = arith.constant 0 : index
    %c0_9 = arith.constant 0 : index
    %11 = vector.load %arg5[%c0_8, %c0_9] : memref<256x128xbf16, #tpu.memory_space<vmem>>, vector<256x128xbf16>
    tpu.vector_store %arg5[%c0_8, %c0_9], %10 {strides = array<i32>} : memref<256x128xbf16, #tpu.memory_space<vmem>>, vector<256x128xbf16>,
    return
  }
  func.func @transform_0(%arg0: i32) -> (i32, i32) {
    %c0_i32 = arith.constant 0 : i32
    %c0_i32_0 = arith.constant 0 : i32
    return %arg0, %c0_i32 : i32, i32
  }
  func.func @transform_1(%arg0: i32) -> (i32, i32) {
    %c0_i32 = arith.constant 0 : i32
    %c0_i32_0 = arith.constant 0 : i32
    return %arg0, %c0_i32 : i32, i32
  }
  func.func @transform_2(%arg0: i32) -> (i32, i32) {
    %c0_i32 = arith.constant 0 : i32
    %c0_i32_0 = arith.constant 0 : i32
    %c0_i32_1 = arith.constant 0 : i32
    return %c0_i32, %c0_i32_0 : i32, i32
  }
  func.func @transform_3(%arg0: i32) -> (i32, i32) {
    %c0_i32 = arith.constant 0 : i32
    %c0_i32_0 = arith.constant 0 : i32
    %c0_i32_1 = arith.constant 0 : i32
    return %c0_i32, %c0_i32_0 : i32, i32
  }
  func.func @transform_4(%arg0: i32) -> (i32, i32) {
    %c0_i32 = arith.constant 0 : i32
    %c0_i32_0 = arith.constant 0 : i32
    return %arg0, %c0_i32 : i32, i32
  }
}

module attributes {stable_mosaic.version = 11 : i64} {
  func.func @_conv_kernel(%arg0: i32, %arg1: i32, %arg2: memref<1x4x9x9x128xbf16, #tpu.memory_space<vmem>>, %arg3: memref<9x128x128xbf16, #tpu.memory_space<vmem>>, %arg4: memref<1x128xf32, #tpu.memory_space<vmem>>, %arg5: memref<1x1x8x128xbf16, #tpu.memory_space<vmem>>) attributes {dimension_semantics = [#tpu.dimension_semantics<parallel>, #tpu.dimension_semantics<parallel>], iteration_bounds = array<i64: 2, 8>, scalar_prefetch = 0 : i64, scratch_operands = 0 : i64, tpu.core_type = #tpu.core_type<tc>, window_params = [{transform_indices = @transform_0, window_bounds = array<i64: 1, 4, 9, 9, 128>}, {pipeline_mode = #tpu.pipeline_mode<synchronous>, transform_indices = @transform_1, window_bounds = array<i64: 9, 128, 128>}, {pipeline_mode = #tpu.pipeline_mode<synchronous>, transform_indices = @transform_2, window_bounds = array<i64: 1, 128>}, {transform_indices = @transform_3, window_bounds = array<i64: 1, 1, 8, 128>}]} {
    %c1_i32 = arith.constant 1 : i32
    %0 = arith.muli %arg1, %c1_i32 : i32
    %1 = tpu.assume_multiple %0, 1 : i32
    %cst = arith.constant 0.000000e+00 : f32
    %2 = vector.broadcast %cst : f32 to vector<8x128xf32>
    %c0_i32 = arith.constant 0 : i32
    %3 = arith.addi %1, %c0_i32 : i32
    %c0 = arith.constant 0 : index
    %c0_0 = arith.constant 0 : index
    %4 = arith.index_cast %3 : i32 to index
    %c0_1 = arith.constant 0 : index
    %c0_2 = arith.constant 0 : index
    %5 = vector.load %arg2[%c0, %c0_0, %4, %c0_1, %c0_2] : memref<1x4x9x9x128xbf16, #tpu.memory_space<vmem>>, vector<1x1x1x8x128xbf16>
    %6 = vector.shape_cast %5 : vector<1x1x1x8x128xbf16> to vector<1x8x128xbf16>
    %7 = vector.shape_cast %6 : vector<1x8x128xbf16> to vector<8x128xbf16>
    %c0_3 = arith.constant 0 : index
    %c0_4 = arith.constant 0 : index
    %c0_5 = arith.constant 0 : index
    %8 = vector.load %arg3[%c0_3, %c0_4, %c0_5] : memref<9x128x128xbf16, #tpu.memory_space<vmem>>, vector<1x128x128xbf16>
    %9 = vector.shape_cast %8 : vector<1x128x128xbf16> to vector<128x128xbf16>
    %cst_6 = arith.constant dense<0.000000e+00> : vector<8x128xf32>
    %10 = tpu.matmul %7, %9, %cst_6 {dimension_numbers = #tpu.dot_dimension_numbers<[1], [0], [0], [1], [0, 0, 1, 1], [], []>} : vector<8x128xbf16>, vector<128x128xbf16>, vector<8x128xf32> -> vector<8x128xf32>
    %11 = arith.addf %2, %10 : vector<8x128xf32>
    %c0_i32_7 = arith.constant 0 : i32
    %12 = arith.addi %1, %c0_i32_7 : i32
    %c0_8 = arith.constant 0 : index
    %c1 = arith.constant 1 : index
    %13 = arith.index_cast %12 : i32 to index
    %c0_9 = arith.constant 0 : index
    %c0_10 = arith.constant 0 : index
    %14 = vector.load %arg2[%c0_8, %c1, %13, %c0_9, %c0_10] : memref<1x4x9x9x128xbf16, #tpu.memory_space<vmem>>, vector<1x1x1x8x128xbf16>
    %15 = vector.shape_cast %14 : vector<1x1x1x8x128xbf16> to vector<1x8x128xbf16>
    %16 = vector.shape_cast %15 : vector<1x8x128xbf16> to vector<8x128xbf16>
    %c1_11 = arith.constant 1 : index
    %c0_12 = arith.constant 0 : index
    %c0_13 = arith.constant 0 : index
    %17 = vector.load %arg3[%c1_11, %c0_12, %c0_13] : memref<9x128x128xbf16, #tpu.memory_space<vmem>>, vector<1x128x128xbf16>
    %18 = vector.shape_cast %17 : vector<1x128x128xbf16> to vector<128x128xbf16>
    %cst_14 = arith.constant dense<0.000000e+00> : vector<8x128xf32>
    %19 = tpu.matmul %16, %18, %cst_14 {dimension_numbers = #tpu.dot_dimension_numbers<[1], [0], [0], [1], [0, 0, 1, 1], [], []>} : vector<8x128xbf16>, vector<128x128xbf16>, vector<8x128xf32> -> vector<8x128xf32>
    %20 = arith.addf %11, %19 : vector<8x128xf32>
    %c0_i32_15 = arith.constant 0 : i32
    %21 = arith.addi %1, %c0_i32_15 : i32
    %c0_16 = arith.constant 0 : index
    %c0_17 = arith.constant 0 : index
    %22 = arith.index_cast %21 : i32 to index
    %c1_18 = arith.constant 1 : index
    %c0_19 = arith.constant 0 : index
    %23 = vector.load %arg2[%c0_16, %c0_17, %22, %c1_18, %c0_19] : memref<1x4x9x9x128xbf16, #tpu.memory_space<vmem>>, vector<1x1x1x8x128xbf16>
    %24 = vector.shape_cast %23 : vector<1x1x1x8x128xbf16> to vector<1x8x128xbf16>
    %25 = vector.shape_cast %24 : vector<1x8x128xbf16> to vector<8x128xbf16>
    %c2 = arith.constant 2 : index
    %c0_20 = arith.constant 0 : index
    %c0_21 = arith.constant 0 : index
    %26 = vector.load %arg3[%c2, %c0_20, %c0_21] : memref<9x128x128xbf16, #tpu.memory_space<vmem>>, vector<1x128x128xbf16>
    %27 = vector.shape_cast %26 : vector<1x128x128xbf16> to vector<128x128xbf16>
    %cst_22 = arith.constant dense<0.000000e+00> : vector<8x128xf32>
    %28 = tpu.matmul %25, %27, %cst_22 {dimension_numbers = #tpu.dot_dimension_numbers<[1], [0], [0], [1], [0, 0, 1, 1], [], []>} : vector<8x128xbf16>, vector<128x128xbf16>, vector<8x128xf32> -> vector<8x128xf32>
    %29 = arith.addf %20, %28 : vector<8x128xf32>
    %c0_i32_23 = arith.constant 0 : i32
    %30 = arith.addi %1, %c0_i32_23 : i32
    %c0_24 = arith.constant 0 : index
    %c2_25 = arith.constant 2 : index
    %31 = arith.index_cast %30 : i32 to index
    %c0_26 = arith.constant 0 : index
    %c0_27 = arith.constant 0 : index
    %32 = vector.load %arg2[%c0_24, %c2_25, %31, %c0_26, %c0_27] : memref<1x4x9x9x128xbf16, #tpu.memory_space<vmem>>, vector<1x1x1x8x128xbf16>
    %33 = vector.shape_cast %32 : vector<1x1x1x8x128xbf16> to vector<1x8x128xbf16>
    %34 = vector.shape_cast %33 : vector<1x8x128xbf16> to vector<8x128xbf16>
    %c3 = arith.constant 3 : index
    %c0_28 = arith.constant 0 : index
    %c0_29 = arith.constant 0 : index
    %35 = vector.load %arg3[%c3, %c0_28, %c0_29] : memref<9x128x128xbf16, #tpu.memory_space<vmem>>, vector<1x128x128xbf16>
    %36 = vector.shape_cast %35 : vector<1x128x128xbf16> to vector<128x128xbf16>
    %cst_30 = arith.constant dense<0.000000e+00> : vector<8x128xf32>
    %37 = tpu.matmul %34, %36, %cst_30 {dimension_numbers = #tpu.dot_dimension_numbers<[1], [0], [0], [1], [0, 0, 1, 1], [], []>} : vector<8x128xbf16>, vector<128x128xbf16>, vector<8x128xf32> -> vector<8x128xf32>
    %38 = arith.addf %29, %37 : vector<8x128xf32>
    %c0_i32_31 = arith.constant 0 : i32
    %39 = arith.addi %1, %c0_i32_31 : i32
    %c0_32 = arith.constant 0 : index
    %c3_33 = arith.constant 3 : index
    %40 = arith.index_cast %39 : i32 to index
    %c0_34 = arith.constant 0 : index
    %c0_35 = arith.constant 0 : index
    %41 = vector.load %arg2[%c0_32, %c3_33, %40, %c0_34, %c0_35] : memref<1x4x9x9x128xbf16, #tpu.memory_space<vmem>>, vector<1x1x1x8x128xbf16>
    %42 = vector.shape_cast %41 : vector<1x1x1x8x128xbf16> to vector<1x8x128xbf16>
    %43 = vector.shape_cast %42 : vector<1x8x128xbf16> to vector<8x128xbf16>
    %c4 = arith.constant 4 : index
    %c0_36 = arith.constant 0 : index
    %c0_37 = arith.constant 0 : index
    %44 = vector.load %arg3[%c4, %c0_36, %c0_37] : memref<9x128x128xbf16, #tpu.memory_space<vmem>>, vector<1x128x128xbf16>
    %45 = vector.shape_cast %44 : vector<1x128x128xbf16> to vector<128x128xbf16>
    %cst_38 = arith.constant dense<0.000000e+00> : vector<8x128xf32>
    %46 = tpu.matmul %43, %45, %cst_38 {dimension_numbers = #tpu.dot_dimension_numbers<[1], [0], [0], [1], [0, 0, 1, 1], [], []>} : vector<8x128xbf16>, vector<128x128xbf16>, vector<8x128xf32> -> vector<8x128xf32>
    %47 = arith.addf %38, %46 : vector<8x128xf32>
    %c0_i32_39 = arith.constant 0 : i32
    %48 = arith.addi %1, %c0_i32_39 : i32
    %c0_40 = arith.constant 0 : index
    %c2_41 = arith.constant 2 : index
    %49 = arith.index_cast %48 : i32 to index
    %c1_42 = arith.constant 1 : index
    %c0_43 = arith.constant 0 : index
    %50 = vector.load %arg2[%c0_40, %c2_41, %49, %c1_42, %c0_43] : memref<1x4x9x9x128xbf16, #tpu.memory_space<vmem>>, vector<1x1x1x8x128xbf16>
    %51 = vector.shape_cast %50 : vector<1x1x1x8x128xbf16> to vector<1x8x128xbf16>
    %52 = vector.shape_cast %51 : vector<1x8x128xbf16> to vector<8x128xbf16>
    %c5 = arith.constant 5 : index
    %c0_44 = arith.constant 0 : index
    %c0_45 = arith.constant 0 : index
    %53 = vector.load %arg3[%c5, %c0_44, %c0_45] : memref<9x128x128xbf16, #tpu.memory_space<vmem>>, vector<1x128x128xbf16>
    %54 = vector.shape_cast %53 : vector<1x128x128xbf16> to vector<128x128xbf16>
    %cst_46 = arith.constant dense<0.000000e+00> : vector<8x128xf32>
    %55 = tpu.matmul %52, %54, %cst_46 {dimension_numbers = #tpu.dot_dimension_numbers<[1], [0], [0], [1], [0, 0, 1, 1], [], []>} : vector<8x128xbf16>, vector<128x128xbf16>, vector<8x128xf32> -> vector<8x128xf32>
    %56 = arith.addf %47, %55 : vector<8x128xf32>
    %c1_i32_47 = arith.constant 1 : i32
    %57 = arith.addi %1, %c1_i32_47 : i32
    %c0_48 = arith.constant 0 : index
    %c0_49 = arith.constant 0 : index
    %58 = arith.index_cast %57 : i32 to index
    %c0_50 = arith.constant 0 : index
    %c0_51 = arith.constant 0 : index
    %59 = vector.load %arg2[%c0_48, %c0_49, %58, %c0_50, %c0_51] : memref<1x4x9x9x128xbf16, #tpu.memory_space<vmem>>, vector<1x1x1x8x128xbf16>
    %60 = vector.shape_cast %59 : vector<1x1x1x8x128xbf16> to vector<1x8x128xbf16>
    %61 = vector.shape_cast %60 : vector<1x8x128xbf16> to vector<8x128xbf16>
    %c6 = arith.constant 6 : index
    %c0_52 = arith.constant 0 : index
    %c0_53 = arith.constant 0 : index
    %62 = vector.load %arg3[%c6, %c0_52, %c0_53] : memref<9x128x128xbf16, #tpu.memory_space<vmem>>, vector<1x128x128xbf16>
    %63 = vector.shape_cast %62 : vector<1x128x128xbf16> to vector<128x128xbf16>
    %cst_54 = arith.constant dense<0.000000e+00> : vector<8x128xf32>
    %64 = tpu.matmul %61, %63, %cst_54 {dimension_numbers = #tpu.dot_dimension_numbers<[1], [0], [0], [1], [0, 0, 1, 1], [], []>} : vector<8x128xbf16>, vector<128x128xbf16>, vector<8x128xf32> -> vector<8x128xf32>
    %65 = arith.addf %56, %64 : vector<8x128xf32>
    %c1_i32_55 = arith.constant 1 : i32
    %66 = arith.addi %1, %c1_i32_55 : i32
    %c0_56 = arith.constant 0 : index
    %c1_57 = arith.constant 1 : index
    %67 = arith.index_cast %66 : i32 to index
    %c0_58 = arith.constant 0 : index
    %c0_59 = arith.constant 0 : index
    %68 = vector.load %arg2[%c0_56, %c1_57, %67, %c0_58, %c0_59] : memref<1x4x9x9x128xbf16, #tpu.memory_space<vmem>>, vector<1x1x1x8x128xbf16>
    %69 = vector.shape_cast %68 : vector<1x1x1x8x128xbf16> to vector<1x8x128xbf16>
    %70 = vector.shape_cast %69 : vector<1x8x128xbf16> to vector<8x128xbf16>
    %c7 = arith.constant 7 : index
    %c0_60 = arith.constant 0 : index
    %c0_61 = arith.constant 0 : index
    %71 = vector.load %arg3[%c7, %c0_60, %c0_61] : memref<9x128x128xbf16, #tpu.memory_space<vmem>>, vector<1x128x128xbf16>
    %72 = vector.shape_cast %71 : vector<1x128x128xbf16> to vector<128x128xbf16>
    %cst_62 = arith.constant dense<0.000000e+00> : vector<8x128xf32>
    %73 = tpu.matmul %70, %72, %cst_62 {dimension_numbers = #tpu.dot_dimension_numbers<[1], [0], [0], [1], [0, 0, 1, 1], [], []>} : vector<8x128xbf16>, vector<128x128xbf16>, vector<8x128xf32> -> vector<8x128xf32>
    %74 = arith.addf %65, %73 : vector<8x128xf32>
    %c1_i32_63 = arith.constant 1 : i32
    %75 = arith.addi %1, %c1_i32_63 : i32
    %c0_64 = arith.constant 0 : index
    %c0_65 = arith.constant 0 : index
    %76 = arith.index_cast %75 : i32 to index
    %c1_66 = arith.constant 1 : index
    %c0_67 = arith.constant 0 : index
    %77 = vector.load %arg2[%c0_64, %c0_65, %76, %c1_66, %c0_67] : memref<1x4x9x9x128xbf16, #tpu.memory_space<vmem>>, vector<1x1x1x8x128xbf16>
    %78 = vector.shape_cast %77 : vector<1x1x1x8x128xbf16> to vector<1x8x128xbf16>
    %79 = vector.shape_cast %78 : vector<1x8x128xbf16> to vector<8x128xbf16>
    %c8 = arith.constant 8 : index
    %c0_68 = arith.constant 0 : index
    %c0_69 = arith.constant 0 : index
    %80 = vector.load %arg3[%c8, %c0_68, %c0_69] : memref<9x128x128xbf16, #tpu.memory_space<vmem>>, vector<1x128x128xbf16>
    %81 = vector.shape_cast %80 : vector<1x128x128xbf16> to vector<128x128xbf16>
    %cst_70 = arith.constant dense<0.000000e+00> : vector<8x128xf32>
    %82 = tpu.matmul %79, %81, %cst_70 {dimension_numbers = #tpu.dot_dimension_numbers<[1], [0], [0], [1], [0, 0, 1, 1], [], []>} : vector<8x128xbf16>, vector<128x128xbf16>, vector<8x128xf32> -> vector<8x128xf32>
    %83 = arith.addf %74, %82 : vector<8x128xf32>
    %c0_71 = arith.constant 0 : index
    %c0_72 = arith.constant 0 : index
    %84 = vector.load %arg4[%c0_71, %c0_72] : memref<1x128xf32, #tpu.memory_space<vmem>>, vector<1x128xf32>
    %85 = vector.broadcast %84 : vector<1x128xf32> to vector<8x128xf32>
    %86 = arith.addf %83, %85 : vector<8x128xf32>
    %cst_73 = arith.constant 0.000000e+00 : f32
    %87 = vector.broadcast %cst_73 : f32 to vector<8x128xf32>
    %88 = arith.maximumf %86, %87 : vector<8x128xf32>
    %89 = vector.shape_cast %88 : vector<8x128xf32> to vector<1x8x128xf32>
    %90 = arith.truncf %89 : vector<1x8x128xf32> to vector<1x8x128xbf16>
    %c0_74 = arith.constant 0 : index
    %c0_75 = arith.constant 0 : index
    %c0_76 = arith.constant 0 : index
    %c0_77 = arith.constant 0 : index
    %91 = vector.load %arg5[%c0_74, %c0_75, %c0_76, %c0_77] : memref<1x1x8x128xbf16, #tpu.memory_space<vmem>>, vector<1x1x8x128xbf16>
    %92 = vector.shape_cast %91 : vector<1x1x8x128xbf16> to vector<1x8x128xbf16>
    %93 = vector.shape_cast %90 : vector<1x8x128xbf16> to vector<1x1x8x128xbf16>
    tpu.vector_store %arg5[%c0_74, %c0_75, %c0_76, %c0_77], %93 {strides = array<i32>} : memref<1x1x8x128xbf16, #tpu.memory_space<vmem>>, vector<1x1x8x128xbf16>,
    return
  }
  func.func @transform_0(%arg0: i32, %arg1: i32) -> (i32, i32, i32, i32, i32) {
    %c0_i32 = arith.constant 0 : i32
    %c0_i32_0 = arith.constant 0 : i32
    %c0_i32_1 = arith.constant 0 : i32
    %c0_i32_2 = arith.constant 0 : i32
    %c0_i32_3 = arith.constant 0 : i32
    return %arg0, %c0_i32, %c0_i32_0, %c0_i32_1, %c0_i32_2 : i32, i32, i32, i32, i32
  }
  func.func @transform_1(%arg0: i32, %arg1: i32) -> (i32, i32, i32) {
    %c0_i32 = arith.constant 0 : i32
    %c0_i32_0 = arith.constant 0 : i32
    %c0_i32_1 = arith.constant 0 : i32
    %c0_i32_2 = arith.constant 0 : i32
    return %c0_i32, %c0_i32_0, %c0_i32_1 : i32, i32, i32
  }
  func.func @transform_2(%arg0: i32, %arg1: i32) -> (i32, i32) {
    %c0_i32 = arith.constant 0 : i32
    %c0_i32_0 = arith.constant 0 : i32
    %c0_i32_1 = arith.constant 0 : i32
    return %c0_i32, %c0_i32_0 : i32, i32
  }
  func.func @transform_3(%arg0: i32, %arg1: i32) -> (i32, i32, i32, i32) {
    %c0_i32 = arith.constant 0 : i32
    %c0_i32_0 = arith.constant 0 : i32
    %c0_i32_1 = arith.constant 0 : i32
    return %arg0, %arg1, %c0_i32, %c0_i32_0 : i32, i32, i32, i32
  }
}

module attributes {stable_mosaic.version = 11 : i64} {
  func.func @_head_kernel(%arg0: i32, %arg1: memref<2x64x256xbf16, #tpu.memory_space<vmem>>, %arg2: memref<256x256xf32, #tpu.memory_space<vmem>>, %arg3: memref<1x256xf32, #tpu.memory_space<vmem>>, %arg4: memref<2x256xf32, #tpu.memory_space<vmem>>) attributes {dimension_semantics = [#tpu.dimension_semantics<arbitrary>], iteration_bounds = array<i64: 1>, scalar_prefetch = 0 : i64, scratch_operands = 0 : i64, tpu.core_type = #tpu.core_type<tc>, window_params = [{pipeline_mode = #tpu.pipeline_mode<synchronous>, transform_indices = @transform_0, window_bounds = array<i64: 2, 64, 256>}, {pipeline_mode = #tpu.pipeline_mode<synchronous>, transform_indices = @transform_1, window_bounds = array<i64: 256, 256>}, {pipeline_mode = #tpu.pipeline_mode<synchronous>, transform_indices = @transform_2, window_bounds = array<i64: 1, 256>}, {pipeline_mode = #tpu.pipeline_mode<synchronous>, transform_indices = @transform_3, window_bounds = array<i64: 2, 256>}]} {
    %c0 = arith.constant 0 : index
    %c0_0 = arith.constant 0 : index
    %c0_1 = arith.constant 0 : index
    %0 = vector.load %arg1[%c0, %c0_0, %c0_1] : memref<2x64x256xbf16, #tpu.memory_space<vmem>>, vector<2x64x256xbf16>
    %1 = arith.extf %0 : vector<2x64x256xbf16> to vector<2x64x256xf32>
    %cst = arith.constant dense<0.000000e+00> : vector<2x256xf32>
    %2 = vector.multi_reduction <add>, %1, %cst [1] : vector<2x64x256xf32> to vector<2x256xf32>
    %cst_2 = arith.constant 6.400000e+01 : f32
    %3 = vector.broadcast %cst_2 : f32 to vector<2x256xf32>
    %4 = arith.divf %2, %3 : vector<2x256xf32>
    %c0_3 = arith.constant 0 : index
    %c0_4 = arith.constant 0 : index
    %5 = vector.load %arg2[%c0_3, %c0_4] : memref<256x256xf32, #tpu.memory_space<vmem>>, vector<256x256xf32>
    %cst_5 = arith.constant dense<0.000000e+00> : vector<2x256xf32>
    %6 = tpu.matmul %4, %5, %cst_5 {dimension_numbers = #tpu.dot_dimension_numbers<[1], [0], [0], [1], [0, 0, 1, 1], [], []>} : vector<2x256xf32>, vector<256x256xf32>, vector<2x256xf32> -> vector<2x256xf32>
    %c0_6 = arith.constant 0 : index
    %c0_7 = arith.constant 0 : index
    %7 = vector.load %arg3[%c0_6, %c0_7] : memref<1x256xf32, #tpu.memory_space<vmem>>, vector<1x256xf32>
    %8 = vector.broadcast %7 : vector<1x256xf32> to vector<2x256xf32>
    %9 = arith.addf %6, %8 : vector<2x256xf32>
    %c0_8 = arith.constant 0 : index
    %c0_9 = arith.constant 0 : index
    %10 = vector.load %arg4[%c0_8, %c0_9] : memref<2x256xf32, #tpu.memory_space<vmem>>, vector<2x256xf32>
    tpu.vector_store %arg4[%c0_8, %c0_9], %9 {strides = array<i32>} : memref<2x256xf32, #tpu.memory_space<vmem>>, vector<2x256xf32>,
    return
  }
  func.func @transform_0(%arg0: i32) -> (i32, i32, i32) {
    %c0_i32 = arith.constant 0 : i32
    %c0_i32_0 = arith.constant 0 : i32
    %c0_i32_1 = arith.constant 0 : i32
    %c0_i32_2 = arith.constant 0 : i32
    return %c0_i32, %c0_i32_0, %c0_i32_1 : i32, i32, i32
  }
  func.func @transform_1(%arg0: i32) -> (i32, i32) {
    %c0_i32 = arith.constant 0 : i32
    %c0_i32_0 = arith.constant 0 : i32
    %c0_i32_1 = arith.constant 0 : i32
    return %c0_i32, %c0_i32_0 : i32, i32
  }
  func.func @transform_2(%arg0: i32) -> (i32, i32) {
    %c0_i32 = arith.constant 0 : i32
    %c0_i32_0 = arith.constant 0 : i32
    %c0_i32_1 = arith.constant 0 : i32
    return %c0_i32, %c0_i32_0 : i32, i32
  }
  func.func @transform_3(%arg0: i32) -> (i32, i32) {
    %c0_i32 = arith.constant 0 : i32
    %c0_i32_0 = arith.constant 0 : i32
    %c0_i32_1 = arith.constant 0 : i32
    return %c0_i32, %c0_i32_0 : i32, i32
  }
}

module attributes {stable_mosaic.version = 11 : i64} {
  func.func @_res_kernel(%arg0: i32, %arg1: memref<64x128xbf16, #tpu.memory_space<vmem>>, %arg2: memref<64x128xbf16, #tpu.memory_space<vmem>>, %arg3: memref<256x256xbf16, #tpu.memory_space<vmem>>, %arg4: memref<1x256xf32, #tpu.memory_space<vmem>>, %arg5: memref<64x256xbf16, #tpu.memory_space<vmem>>) attributes {dimension_semantics = [#tpu.dimension_semantics<parallel>], iteration_bounds = array<i64: 2>, scalar_prefetch = 0 : i64, scratch_operands = 0 : i64, tpu.core_type = #tpu.core_type<tc>, window_params = [{transform_indices = @transform_0, window_bounds = array<i64: 64, 128>}, {transform_indices = @transform_1, window_bounds = array<i64: 64, 128>}, {pipeline_mode = #tpu.pipeline_mode<synchronous>, transform_indices = @transform_2, window_bounds = array<i64: 256, 256>}, {pipeline_mode = #tpu.pipeline_mode<synchronous>, transform_indices = @transform_3, window_bounds = array<i64: 1, 256>}, {transform_indices = @transform_4, window_bounds = array<i64: 64, 256>}]} {
    %c0 = arith.constant 0 : index
    %c0_0 = arith.constant 0 : index
    %0 = vector.load %arg1[%c0, %c0_0] : memref<64x128xbf16, #tpu.memory_space<vmem>>, vector<64x128xbf16>
    %c0_1 = arith.constant 0 : index
    %c0_2 = arith.constant 0 : index
    %1 = vector.load %arg2[%c0_1, %c0_2] : memref<64x128xbf16, #tpu.memory_space<vmem>>, vector<64x128xbf16>
    %2 = tpu.concatenate %0, %1 in 1 : vector<64x128xbf16>, vector<64x128xbf16> -> vector<64x256xbf16>
    %c0_3 = arith.constant 0 : index
    %c0_4 = arith.constant 0 : index
    %3 = vector.load %arg3[%c0_3, %c0_4] : memref<256x256xbf16, #tpu.memory_space<vmem>>, vector<256x256xbf16>
    %cst = arith.constant dense<0.000000e+00> : vector<64x256xf32>
    %4 = tpu.matmul %2, %3, %cst {dimension_numbers = #tpu.dot_dimension_numbers<[1], [0], [0], [1], [0, 0, 1, 1], [], []>} : vector<64x256xbf16>, vector<256x256xbf16>, vector<64x256xf32> -> vector<64x256xf32>
    %c0_5 = arith.constant 0 : index
    %c0_6 = arith.constant 0 : index
    %5 = vector.load %arg4[%c0_5, %c0_6] : memref<1x256xf32, #tpu.memory_space<vmem>>, vector<1x256xf32>
    %6 = vector.broadcast %5 : vector<1x256xf32> to vector<64x256xf32>
    %7 = arith.addf %4, %6 : vector<64x256xf32>
    %cst_7 = arith.constant 0.000000e+00 : f32
    %8 = vector.broadcast %cst_7 : f32 to vector<64x256xf32>
    %9 = arith.maximumf %7, %8 : vector<64x256xf32>
    %10 = arith.truncf %9 : vector<64x256xf32> to vector<64x256xbf16>
    %c0_8 = arith.constant 0 : index
    %c0_9 = arith.constant 0 : index
    %11 = vector.load %arg5[%c0_8, %c0_9] : memref<64x256xbf16, #tpu.memory_space<vmem>>, vector<64x256xbf16>
    tpu.vector_store %arg5[%c0_8, %c0_9], %10 {strides = array<i32>} : memref<64x256xbf16, #tpu.memory_space<vmem>>, vector<64x256xbf16>,
    return
  }
  func.func @transform_0(%arg0: i32) -> (i32, i32) {
    %c0_i32 = arith.constant 0 : i32
    %c0_i32_0 = arith.constant 0 : i32
    return %arg0, %c0_i32 : i32, i32
  }
  func.func @transform_1(%arg0: i32) -> (i32, i32) {
    %c0_i32 = arith.constant 0 : i32
    %c0_i32_0 = arith.constant 0 : i32
    return %arg0, %c0_i32 : i32, i32
  }
  func.func @transform_2(%arg0: i32) -> (i32, i32) {
    %c0_i32 = arith.constant 0 : i32
    %c0_i32_0 = arith.constant 0 : i32
    %c0_i32_1 = arith.constant 0 : i32
    return %c0_i32, %c0_i32_0 : i32, i32
  }
  func.func @transform_3(%arg0: i32) -> (i32, i32) {
    %c0_i32 = arith.constant 0 : i32
    %c0_i32_0 = arith.constant 0 : i32
    %c0_i32_1 = arith.constant 0 : i32
    return %c0_i32, %c0_i32_0 : i32, i32
  }
  func.func @transform_4(%arg0: i32) -> (i32, i32) {
    %c0_i32 = arith.constant 0 : i32
    %c0_i32_0 = arith.constant 0 : i32
    return %arg0, %c0_i32 : i32, i32
  }
}

</mosaic_0001>

<llo_original>
// kernel: encoder_cnn_forward.9
$region0: #{encoder_cnn_forward.9}
  #allocation0 [shape = 'u32[]', space=smem, size = 0x4, offset = 0x4, fixed_abs, tag = 'smem constant byte address 0x4 - core index']
  #allocation1 [shape = 'u32[144,128]{1,0:T(1,128)}', space=vmem, size = 0x12000, scoped, tag = 'internal scratch']
  %s0 = inlined_call_operand.vmem [shape: bf16[2048,147], index: 0, kind: input, shape index: {}]
  %s1 = inlined_call_operand.vmem [shape: bf16[147,128], index: 1, kind: input, shape index: {}]
  %s2 = inlined_call_operand.vmem [shape: f32[1,128], index: 2, kind: input, shape index: {}]
  %s3 = inlined_call_operand.vmem [shape: bf16[2048,128], index: 3, kind: output, shape index: {}]
  %s4 = sld [smem:[#allocation0]]
  $region45: #{encoder_cnn_forward.9} parent=0
    _
  %s6 = ssub.s32 1, %s4
  %s7 = scalar_select 0, %s6, %s4
  loop: start=0, step=1, limit=10
  $region2: #{encoder_cnn_forward.9} parent=0 // loop_pre_header
    _
  $region3: #{encoder_cnn_forward.9} parent=0 // loop_header
    %s9 = sphi 0, %s13
    %p10 = scmp.ge.s32.totalorder %s9, 10
    %s19 = sphi 0, %s21
    %s22 = sphi 0, %s19
    %s23 = sphi 0, %s22
    %s39 = sphi 0, %s23
    %s43 = sphi 0, %s43
    %s45 = sphi 0, %s43
    %s46 = sphi 0, %s45
    %s60 = sphi 0, %s46
    %s64 = sphi 0, %s64
    %s66 = sphi 0, %s64
    %s67 = sphi 0, %s66
    %s81 = sphi 0, %s67
    %s87 = sphi 0, %s89
    %s90 = sphi 0, %s87
    %s91 = sphi 0, %s90
    %s107 = sphi 0, %s91
  $region4: #{encoder_cnn_forward.9} parent=0 // loop_header_branch
    %12 = sbr.rel (%p10) target = $region8
  $region5: #{encoder_cnn_forward.9} parent=0 // loop_body
    %s14 = ssub.s32 %s9, 1
    %s15 = ssub.s32 %s9, 2
    %s16 = sadd.s32 %s9, 1
    %s17 = ssub.s32 %s9, %s16
    %p18 = scmp.eq.s32.totalorder %s17, 0
    %s20 = sadd.s32 %s19, 1
    %s21 = scalar_select %p18, %s19, %s20
    %p24 = pneg %p18
    %p25 = scmp.eq.s32.totalorder %s9, 7
    %p26 = por %p24, %p25
    %p27 = scmp.ne.s32.totalorder %s19, %s22
    %p28 = scmp.eq.s32.totalorder %s9, 0
    %p29 = por %p27, %p28
    %p30 = scmp.ne.s32.totalorder %s19, %s22
    %p31 = scmp.eq.s32.totalorder %s14, 7
    %p32 = por %p30, %p31
    %p33 = scmp.ne.s32.totalorder %s22, %s23
    %p34 = scmp.eq.s32.totalorder %s14, 0
    %p35 = por %p33, %p34
    %p36 = scmp.ne.s32.totalorder %s22, %s23
    %p37 = scmp.eq.s32.totalorder %s15, 7
    %p38 = por %p36, %p37
    %p40 = scmp.ne.s32.totalorder %s23, %s39
    %p41 = scmp.eq.s32.totalorder %s15, 0
    %p42 = por %p40, %p41
    %s44 = sadd.s32 %s43, 1
    %p47 = scmp.eq.s32.totalorder %s9, 7
    %p48 = scmp.ne.s32.totalorder %s43, %s45
    %p49 = scmp.eq.s32.totalorder %s9, 0
    %p50 = por %p48, %p49
    %p51 = scmp.ne.s32.totalorder %s43, %s45
    %p52 = scmp.eq.s32.totalorder %s14, 7
    %p53 = por %p51, %p52
    %p54 = scmp.ne.s32.totalorder %s45, %s46
    %p55 = scmp.eq.s32.totalorder %s14, 0
    %p56 = por %p54, %p55
    %p57 = scmp.ne.s32.totalorder %s45, %s46
    %p58 = scmp.eq.s32.totalorder %s15, 7
    %p59 = por %p57, %p58
    %p61 = scmp.ne.s32.totalorder %s46, %s60
    %p62 = scmp.eq.s32.totalorder %s15, 0
    %p63 = por %p61, %p62
    %s65 = sadd.s32 %s64, 1
    %p68 = scmp.eq.s32.totalorder %s9, 7
    %p69 = scmp.ne.s32.totalorder %s64, %s66
    %p70 = scmp.eq.s32.totalorder %s9, 0
    %p71 = por %p69, %p70
    %p72 = scmp.ne.s32.totalorder %s64, %s66
    %p73 = scmp.eq.s32.totalorder %s14, 7
    %p74 = por %p72, %p73
    %p75 = scmp.ne.s32.totalorder %s66, %s67
    %p76 = scmp.eq.s32.totalorder %s14, 0
    %p77 = por %p75, %p76
    %p78 = scmp.ne.s32.totalorder %s66, %s67
    %p79 = scmp.eq.s32.totalorder %s15, 7
    %p80 = por %p78, %p79
    %p82 = scmp.ne.s32.totalorder %s67, %s81
    %p83 = scmp.eq.s32.totalorder %s15, 0
    %p84 = por %p82, %p83
    %s85 = ssub.s32 %s9, %s16
    %p86 = scmp.eq.s32.totalorder %s85, 0
    %s88 = sadd.s32 %s87, 1
    %s89 = scalar_select %p86, %s87, %s88
    %p92 = pneg %p86
    %p93 = scmp.eq.s32.totalorder %s9, 7
    %p94 = por %p92, %p93
    %p95 = scmp.ne.s32.totalorder %s87, %s90
    %p96 = scmp.eq.s32.totalorder %s9, 0
    %p97 = por %p95, %p96
    %p98 = scmp.ne.s32.totalorder %s87, %s90
    %p99 = scmp.eq.s32.totalorder %s14, 7
    %p100 = por %p98, %p99
    %p101 = scmp.ne.s32.totalorder %s90, %s91
    %p102 = scmp.eq.s32.totalorder %s14, 0
    %p103 = por %p101, %p102
    %p104 = scmp.ne.s32.totalorder %s90, %s91
    %p105 = scmp.eq.s32.totalorder %s15, 7
    %p106 = por %p104, %p105
    %p108 = scmp.ne.s32.totalorder %s91, %s107
    %p109 = scmp.eq.s32.totalorder %s15, 0
    %p110 = por %p108, %p109
    %p111 = scmp.le.s32.totalorder 1, %s9
    %p112 = scmp.lt.s32.totalorder %s9, 9
    %p113 = pnand %p111, %p112
    %p114 = pneg %p113
    // Predicated region
    $region9: #{encoder_cnn_forward.9} parent=5 // pred_check
      _
    $region10: #{encoder_cnn_forward.9} parent=5 // pred_check_branch
      %116 = sbr.rel (%p113) target = $region12
    $region11: #{encoder_cnn_forward.9} parent=5 // pred_region
      %s117 = ssub.s32 %s9, 1
      // Predicated region
      $region13: #{encoder_cnn_forward.9} parent=11 // pred_check
        %p118 = pneg %p56
      $region14: #{encoder_cnn_forward.9} parent=11 // pred_check_branch
        %120 = sbr.rel (%p118) target = $region16
      $region15: #{encoder_cnn_forward.9} parent=11 // pred_region
        _
      $region16: #{encoder_cnn_forward.9} parent=11 // pred_fallthru
        _
      // Predicated region
      $region17: #{encoder_cnn_forward.9} parent=11 // pred_check
        %p121 = pneg %p77
      $region18: #{encoder_cnn_forward.9} parent=11 // pred_check_branch
        %123 = sbr.rel (%p121) target = $region20
      $region19: #{encoder_cnn_forward.9} parent=11 // pred_region
        _
      $region20: #{encoder_cnn_forward.9} parent=11 // pred_fallthru
        _
    $region12: #{encoder_cnn_forward.9} parent=5 // pred_fallthru
      _
    %p124 = scmp.lt.s32.totalorder %s9, 8
    // Predicated region
    $region21: #{encoder_cnn_forward.9} parent=5 // pred_check
      %p125 = pneg %p124
    $region22: #{encoder_cnn_forward.9} parent=5 // pred_check_branch
      %127 = sbr.rel (%p125) target = $region24
    $region23: #{encoder_cnn_forward.9} parent=5 // pred_region
      // Predicated region
      $region25: #{encoder_cnn_forward.9} parent=23 // pred_check
        %p128 = pneg %p29
      $region26: #{encoder_cnn_forward.9} parent=23 // pred_check_branch
        %130 = sbr.rel (%p128) target = $region28
      $region27: #{encoder_cnn_forward.9} parent=23 // pred_region
        %s131 = smul.u32 32, %s9
        %p132 = scmp.lt.s32.totalorder %s131, 255
        %s133 = scalar_select %p132, %s131, 255
        %s134 = smul.addr %s133, 2
        %s135 = smul.addr %s134, 4
        %s136 = scalar_lea.vmem %s0, %s135
        %s137 = smul.u32 32, %s9
      $region28: #{encoder_cnn_forward.9} parent=23 // pred_fallthru
        _
    $region24: #{encoder_cnn_forward.9} parent=5 // pred_fallthru
      _
    %p138 = scmp.le.s32.totalorder 1, %s9
    %p139 = scmp.lt.s32.totalorder %s9, 9
    %p140 = pnand %p138, %p139
    %p141 = pneg %p140
    // Predicated region
    $region29: #{encoder_cnn_forward.9} parent=5 // pred_check
      _
    $region30: #{encoder_cnn_forward.9} parent=5 // pred_check_branch
      %143 = sbr.rel (%p140) target = $region32
    $region31: #{encoder_cnn_forward.9} parent=5 // pred_region
      %s144 = ssub.s32 %s9, 1
      %s145 = smul.u32 32, %s14
      %p146 = scmp.lt.s32.totalorder %s145, 255
      %s147 = scalar_select %p146, %s145, 255
      %s148 = smul.addr %s147, 2
      %s149 = smul.addr %s148, 4
      %s150 = scalar_lea.vmem %s0, %s149
      %p151 = pneg %p35
      %p152 = pneg %p32
      %p153 = pneg %p56
      %p154 = pneg %p53
      %p155 = pneg %p77
      %p156 = pneg %p74
      %p157 = pneg %p103
      %p158 = pneg %p100
      %s159 = smul.u32 32, %s14
      %p160 = scmp.lt.s32.totalorder %s159, 255
      %s161 = scalar_select %p160, %s159, 255
      %s162 = smul.addr %s161, 4
      %s163 = scalar_lea.vmem %s3, %s162
      %s164 = smul.u32 32, %s14
      %p165 = scmp.lt.s32.totalorder %s164, 255
      %s166 = scalar_select %p165, %s164, 255
      %s167 = smul.addr %s166, 2
      %s168 = smul.addr %s167, 4
      %s169 = scalar_lea.vmem %s0, %s168
      %s170 = smul.u32 32, %s14
      %s171 = smul.u32 32, %s14
      %p172 = scmp.lt.s32.totalorder %s171, 255
      %s173 = scalar_select %p172, %s171, 255
      %s174 = smul.addr %s173, 4
      %s175 = scalar_lea.vmem %s3, %s174
      %s176 = smul.u32 32, %s14
      %v178 = vld [vmem:[%s169] sm:$0xff]
      %v179 = vld [vmem:[%s169 + $0x8] sm:$0xff]
      %v180 = vld [vmem:[%s169 + $0x10] sm:$0xff]
      %v181 = vld [vmem:[%s169 + $0x18] sm:$0xff]
      %v182 = vld [vmem:[%s169 + $0x20] sm:$0xff]
      %v183 = vld [vmem:[%s169 + $0x28] sm:$0xff]
      %v184 = vld [vmem:[%s169 + $0x30] sm:$0xff]
      %v185 = vld [vmem:[%s169 + $0x38] sm:$0xff]
      %v186 = vld [vmem:[%s169 + $0x40] sm:$0xff]
      %v187 = vld [vmem:[%s169 + $0x48] sm:$0xff]
      %v188 = vld [vmem:[%s169 + $0x50] sm:$0xff]
      %v189 = vld [vmem:[%s169 + $0x58] sm:$0xff]
      %v190 = vld [vmem:[%s169 + $0x60] sm:$0xff]
      %v191 = vld [vmem:[%s169 + $0x68] sm:$0xff]
      %v192 = vld [vmem:[%s169 + $0x70] sm:$0xff]
      %v193 = vld [vmem:[%s169 + $0x78] sm:$0xff]
      %v194 = vld [vmem:[%s169 + $0x80] sm:$0xff]
      %v195 = vld [vmem:[%s169 + $0x88] sm:$0xff]
      %v196 = vld [vmem:[%s169 + $0x90] sm:$0xff]
      %v197 = vld [vmem:[%s169 + $0x98] sm:$0xff]
      %v198 = vld [vmem:[%s169 + $0xa0] sm:$0xff]
      %v199 = vld [vmem:[%s169 + $0xa8] sm:$0xff]
      %v200 = vld [vmem:[%s169 + $0xb0] sm:$0xff]
      %v201 = vld [vmem:[%s169 + $0xb8] sm:$0xff]
      %v202 = vld [vmem:[%s169 + $0xc0] sm:$0xff]
      %v203 = vld [vmem:[%s169 + $0xc8] sm:$0xff]
      %v204 = vld [vmem:[%s169 + $0xd0] sm:$0xff]
      %v205 = vld [vmem:[%s169 + $0xd8] sm:$0xff]
      %v206 = vld [vmem:[%s169 + $0xe0] sm:$0xff]
      %v207 = vld [vmem:[%s169 + $0xe8] sm:$0xff]
      %v208 = vld [vmem:[%s169 + $0xf0] sm:$0xff]
      %v209 = vld [vmem:[%s169 + $0xf8] sm:$0xff]
      %v210 = vld [vmem:[%s1] sm:$0xf]
      %v211 = vld [vmem:[%s1 + $0x4] sm:$0xf]
      %v212 = vld [vmem:[%s1 + $0x8] sm:$0xf]
      %v213 = vld [vmem:[%s1 + $0xc] sm:$0xf]
      %v214 = vld [vmem:[%s1 + $0x10] sm:$0xf]
      %v215 = vld [vmem:[%s1 + $0x14] sm:$0xf]
      %v216 = vld [vmem:[%s1 + $0x18] sm:$0xf]
      %v217 = vld [vmem:[%s1 + $0x1c] sm:$0xf]
      %v218 = vld [vmem:[%s1 + $0x20] sm:$0xf]
      %v219 = vld [vmem:[%s1 + $0x24] sm:$0xf]
      %v220 = vld [vmem:[%s1 + $0x28] sm:$0xf]
      %v221 = vld [vmem:[%s1 + $0x2c] sm:$0xf]
      %v222 = vld [vmem:[%s1 + $0x30] sm:$0xf]
      %v223 = vld [vmem:[%s1 + $0x34] sm:$0xf]
      %v224 = vld [vmem:[%s1 + $0x38] sm:$0xf]
      %v225 = vld [vmem:[%s1 + $0x3c] sm:$0xf]
      %v226 = vld [vmem:[%s1 + $0x40] sm:$0xf]
      %v227 = vld [vmem:[%s1 + $0x44] sm:$0xf]
      %v228 = vld [vmem:[%s1 + $0x48] sm:$0x3]
      %v229 = vld [vmem:[%s2] sm:$0x1]
      %v231 = vlaneseq
      %v232 = vshrl.u32 %v231, 7
      %v233 = vsub.s32 0, %v232
      %v234 = vrot.slane %v229, %v233
      %v268 = vunpack.c.l.b16 %v178
      %v269 = vunpack.c.h.b16 %v178
      %v270 = vunpack.c.l.b16 %v179
      %v271 = vunpack.c.h.b16 %v179
      %v272 = vunpack.c.l.b16 %v180
      %v273 = vunpack.c.h.b16 %v180
      %v274 = vunpack.c.l.b16 %v181
      %v275 = vunpack.c.h.b16 %v181
      %v276 = vunpack.c.l.b16 %v182
      %v277 = vunpack.c.h.b16 %v182
      %v278 = vunpack.c.l.b16 %v183
      %v279 = vunpack.c.h.b16 %v183
      %v280 = vunpack.c.l.b16 %v184
      %v281 = vunpack.c.h.b16 %v184
      %v282 = vunpack.c.l.b16 %v185
      %v283 = vunpack.c.h.b16 %v185
      %v284 = vunpack.c.l.b16 %v186
      %v285 = vunpack.c.h.b16 %v186
      %v286 = vunpack.c.l.b16 %v187
      %v287 = vunpack.c.h.b16 %v187
      %v288 = vunpack.c.l.b16 %v188
      %v289 = vunpack.c.h.b16 %v188
      %v290 = vunpack.c.l.b16 %v189
      %v291 = vunpack.c.h.b16 %v189
      %v292 = vunpack.c.l.b16 %v190
      %v293 = vunpack.c.h.b16 %v190
      %v294 = vunpack.c.l.b16 %v191
      %v295 = vunpack.c.h.b16 %v191
      %v296 = vunpack.c.l.b16 %v192
      %v297 = vunpack.c.h.b16 %v192
      %v298 = vunpack.c.l.b16 %v193
      %v299 = vunpack.c.h.b16 %v193
      %v300 = vunpack.c.l.b16 %v194
      %v301 = vunpack.c.h.b16 %v194
      %v302 = vunpack.c.l.b16 %v195
      %v303 = vunpack.c.h.b16 %v195
      %v304 = vunpack.c.l.b16 %v196
      %v305 = vunpack.c.h.b16 %v196
      %v306 = vunpack.c.l.b16 %v197
      %v307 = vunpack.c.h.b16 %v197
      %v308 = vunpack.c.l.b16 %v198
      %v309 = vunpack.c.h.b16 %v198
      %v310 = vunpack.c.l.b16 %v199
      %v311 = vunpack.c.h.b16 %v199
      %v312 = vunpack.c.l.b16 %v200
      %v313 = vunpack.c.h.b16 %v200
      %v314 = vunpack.c.l.b16 %v201
      %v315 = vunpack.c.h.b16 %v201
      %v316 = vunpack.c.l.b16 %v202
      %v317 = vunpack.c.h.b16 %v202
      %v318 = vunpack.c.l.b16 %v203
      %v319 = vunpack.c.h.b16 %v203
      %v320 = vunpack.c.l.b16 %v204
      %v321 = vunpack.c.h.b16 %v204
      %v322 = vunpack.c.l.b16 %v205
      %v323 = vunpack.c.h.b16 %v205
      %v324 = vunpack.c.l.b16 %v206
      %v325 = vunpack.c.h.b16 %v206
      %v326 = vunpack.c.l.b16 %v207
      %v327 = vunpack.c.h.b16 %v207
      %v328 = vunpack.c.l.b16 %v208
      %v329 = vunpack.c.h.b16 %v208
      %v330 = vunpack.c.l.b16 %v209
      %v331 = vunpack.c.h.b16 %v209
      %v332 = vpack.c.b16 %v270, %v268
      %v333 = vpack.c.b16 %v271, %v269
      %v334 = vpack.c.b16 %v274, %v272
      %v335 = vpack.c.b16 %v275, %v273
      %v336 = vpack.c.b16 %v278, %v276
      %v337 = vpack.c.b16 %v279, %v277
      %v338 = vpack.c.b16 %v282, %v280
      %v339 = vpack.c.b16 %v283, %v281
      %v340 = vpack.c.b16 %v286, %v284
      %v341 = vpack.c.b16 %v287, %v285
      %v342 = vpack.c.b16 %v290, %v288
      %v343 = vpack.c.b16 %v291, %v289
      %v344 = vpack.c.b16 %v294, %v292
      %v345 = vpack.c.b16 %v295, %v293
      %v346 = vpack.c.b16 %v298, %v296
      %v347 = vpack.c.b16 %v299, %v297
      %v348 = vpack.c.b16 %v302, %v300
      %v349 = vpack.c.b16 %v303, %v301
      %v350 = vpack.c.b16 %v306, %v304
      %v351 = vpack.c.b16 %v307, %v305
      %v352 = vpack.c.b16 %v310, %v308
      %v353 = vpack.c.b16 %v311, %v309
      %v354 = vpack.c.b16 %v314, %v312
      %v355 = vpack.c.b16 %v315, %v313
      %v356 = vpack.c.b16 %v318, %v316
      %v357 = vpack.c.b16 %v319, %v317
      %v358 = vpack.c.b16 %v322, %v320
      %v359 = vpack.c.b16 %v323, %v321
      %v360 = vpack.c.b16 %v326, %v324
      %v361 = vpack.c.b16 %v327, %v325
      %v362 = vpack.c.b16 %v330, %v328
      %v363 = vpack.c.b16 %v331, %v329
      %v399 = vunpack.c.l.b16 %v210
      %v400 = vunpack.c.l.b16 %v211
      %v401 = vunpack.c.l.b16 %v212
      %v402 = vunpack.c.l.b16 %v213
      %v403 = vunpack.c.l.b16 %v214
      %v404 = vunpack.c.l.b16 %v215
      %v405 = vunpack.c.l.b16 %v216
      %v406 = vunpack.c.l.b16 %v217
      %v407 = vunpack.c.l.b16 %v218
      %v408 = vunpack.c.l.b16 %v219
      %v409 = vunpack.c.l.b16 %v220
      %v410 = vunpack.c.l.b16 %v221
      %v411 = vunpack.c.l.b16 %v222
      %v412 = vunpack.c.l.b16 %v223
      %v413 = vunpack.c.l.b16 %v224
      %v414 = vunpack.c.l.b16 %v225
      %v415 = vunpack.c.l.b16 %v226
      %v416 = vunpack.c.l.b16 %v227
      %v417 = vunpack.c.l.b16 %v228
      %v418 = vpack.c.b16 %v400, %v399
      %v419 = vpack.c.b16 %v402, %v401
      %v420 = vpack.c.b16 %v404, %v403
      %v421 = vpack.c.b16 %v406, %v405
      %v422 = vpack.c.b16 %v408, %v407
      %v423 = vpack.c.b16 %v410, %v409
      %v424 = vpack.c.b16 %v412, %v411
      %v425 = vpack.c.b16 %v414, %v413
      %v426 = vpack.c.b16 %v416, %v415
      %v427 = vpack.c.b16 %v417, %v417
      %vm437 = vcmask 154624
      %v439 = vsel %vm437, %v333, 0
      %v442 = vsel %vm437, %v335, 0
      %v445 = vsel %vm437, %v337, 0
      %v448 = vsel %vm437, %v339, 0
      %v451 = vsel %vm437, %v341, 0
      %v454 = vsel %vm437, %v343, 0
      %v457 = vsel %vm437, %v345, 0
      %v460 = vsel %vm437, %v347, 0
      %v463 = vsel %vm437, %v349, 0
      %v466 = vsel %vm437, %v351, 0
      %v469 = vsel %vm437, %v353, 0
      %v472 = vsel %vm437, %v355, 0
      %v475 = vsel %vm437, %v357, 0
      %v478 = vsel %vm437, %v359, 0
      %v481 = vsel %vm437, %v361, 0
      %v484 = vsel %vm437, %v363, 0
      %vm486 = vcmask 1040384
      %vm487 = vcmask 1041408
      %v488 = vsel %vm486, 4294967295, 65535
      %v489 = vsel %vm487, %v488, 0
      %v491 = vand.u32 %v427, %v489
      %493 = vmatprep.subr.bf16.mxu0 0
      %494 = vmatpush1.bf16.msra.mxu0 %v418
      %495 = vmatprep.subr.bf16.mxu0 0
      %496 = vmatpush1.bf16.msra.mxu0 %v419
      %497 = vmatprep.subr.bf16.mxu0 0
      %498 = vmatpush1.bf16.msra.mxu0 %v420
      %499 = vmatprep.subr.bf16.mxu0 0
      %500 = vmatpush1.bf16.msra.mxu0 %v421
      %501 = vmatprep.subr.bf16.mxu0 0
      %502 = vmatpush1.bf16.msra.mxu0 %v422
      %503 = vmatprep.subr.bf16.mxu0 0
      %504 = vmatpush1.bf16.msra.mxu0 %v423
      %505 = vmatprep.subr.bf16.mxu0 0
      %506 = vmatpush1.bf16.msra.mxu0 %v424
      %507 = vmatprep.subr.bf16.mxu0 0
      %508 = vmatpush1.bf16.msra.mxu0 %v425
      %509 = vmatprep.subr.bf16.mxu0 0
      %510 = vmatpush1.bf16.msra.mxu0 %v426
      %511 = vmatprep.subr.bf16.mxu0 0
      %512 = vmatpush1.bf16.msra.mxu0 %v491
      %513 = vmatprep.subr.bf16.mxu0 0
      %514 = vmatpush1.bf16.msra.mxu0 0
      %515 = vmatprep.subr.bf16.mxu0 0
      %516 = vmatpush1.bf16.msra.mxu0 0
      %517 = vmatprep.subr.bf16.mxu0 0
      %518 = vmatpush1.bf16.msra.mxu0 0
      %519 = vmatprep.subr.bf16.mxu0 0
      %520 = vmatpush1.bf16.msra.mxu0 0
      %521 = vmatprep.subr.bf16.mxu0 0
      %522 = vmatpush1.bf16.msra.mxu0 0
      %523 = vmatprep.subr.bf16.mxu0 0
      %524 = vmatpush1.bf16.msra.mxu0 0
      %525 = vmatprep.mubr.bf16.mxu0 %v439
      %526 = vmatmul.mubr.bf16.gmra.mrb[0].mxu0 %v332
      %v527 = vpop.f32.mrb[0].mxu0
      %v528 = vadd.f32 %v234, %v527
      %v529 = vpop.f32.mrb[0].mxu0
      %v530 = vpop.f32.mrb[0].mxu0
      %v531 = vadd.f32 %v234, %v530
      %v532 = vpop.f32.mrb[0].mxu0
      %533 = vmatprep.mubr.bf16.mxu0 %v442
      %534 = vmatmul.mubr.bf16.gmra.mrb[0].mxu0 %v334
      %v535 = vpop.f32.mrb[0].mxu0
      %v536 = vadd.f32 %v234, %v535
      %v537 = vpop.f32.mrb[0].mxu0
      %v538 = vpop.f32.mrb[0].mxu0
      %v539 = vadd.f32 %v234, %v538
      %v540 = vpop.f32.mrb[0].mxu0
      %541 = vmatprep.mubr.bf16.mxu0 %v445
      %542 = vmatmul.mubr.bf16.gmra.mrb[0].mxu0 %v336
      %v543 = vpop.f32.mrb[0].mxu0
      %v544 = vadd.f32 %v234, %v543
      %v545 = vpop.f32.mrb[0].mxu0
      %v546 = vpop.f32.mrb[0].mxu0
      %v547 = vadd.f32 %v234, %v546
      %v548 = vpop.f32.mrb[0].mxu0
      %549 = vmatprep.mubr.bf16.mxu0 %v448
      %550 = vmatmul.mubr.bf16.gmra.mrb[0].mxu0 %v338
      %v551 = vpop.f32.mrb[0].mxu0
      %v552 = vadd.f32 %v234, %v551
      %v553 = vpop.f32.mrb[0].mxu0
      %v554 = vpop.f32.mrb[0].mxu0
      %v555 = vadd.f32 %v234, %v554
      %v556 = vpop.f32.mrb[0].mxu0
      %557 = vmatprep.mubr.bf16.mxu0 %v451
      %558 = vmatmul.mubr.bf16.gmra.mrb[0].mxu0 %v340
      %v559 = vpop.f32.mrb[0].mxu0
      %v560 = vadd.f32 %v234, %v559
      %v561 = vpop.f32.mrb[0].mxu0
      %v562 = vpop.f32.mrb[0].mxu0
      %v563 = vadd.f32 %v234, %v562
      %v564 = vpop.f32.mrb[0].mxu0
      %565 = vmatprep.mubr.bf16.mxu0 %v454
      %566 = vmatmul.mubr.bf16.gmra.mrb[0].mxu0 %v342
      %v567 = vpop.f32.mrb[0].mxu0
      %v568 = vadd.f32 %v234, %v567
      %v569 = vpop.f32.mrb[0].mxu0
      %v570 = vpop.f32.mrb[0].mxu0
      %v571 = vadd.f32 %v234, %v570
      %v572 = vpop.f32.mrb[0].mxu0
      %573 = vmatprep.mubr.bf16.mxu0 %v457
      %574 = vmatmul.mubr.bf16.gmra.mrb[0].mxu0 %v344
      %v575 = vpop.f32.mrb[0].mxu0
      %v576 = vadd.f32 %v234, %v575
      %v577 = vpop.f32.mrb[0].mxu0
      %v578 = vpop.f32.mrb[0].mxu0
      %v579 = vadd.f32 %v234, %v578
      %v580 = vpop.f32.mrb[0].mxu0
      %581 = vmatprep.mubr.bf16.mxu0 %v460
      %582 = vmatmul.mubr.bf16.gmra.mrb[0].mxu0 %v346
      %v583 = vpop.f32.mrb[0].mxu0
      %v584 = vadd.f32 %v234, %v583
      %v585 = vpop.f32.mrb[0].mxu0
      %v586 = vpop.f32.mrb[0].mxu0
      %v587 = vadd.f32 %v234, %v586
      %v588 = vpop.f32.mrb[0].mxu0
      %589 = vmatprep.mubr.bf16.mxu0 %v463
      %590 = vmatmul.mubr.bf16.gmra.mrb[0].mxu0 %v348
      %v591 = vpop.f32.mrb[0].mxu0
      %v592 = vadd.f32 %v234, %v591
      %v593 = vpop.f32.mrb[0].mxu0
      %v594 = vpop.f32.mrb[0].mxu0
      %v595 = vadd.f32 %v234, %v594
      %v596 = vpop.f32.mrb[0].mxu0
      %597 = vmatprep.mubr.bf16.mxu0 %v466
      %598 = vmatmul.mubr.bf16.gmra.mrb[0].mxu0 %v350
      %v599 = vpop.f32.mrb[0].mxu0
      %v600 = vadd.f32 %v234, %v599
      %v601 = vpop.f32.mrb[0].mxu0
      %v602 = vpop.f32.mrb[0].mxu0
      %v603 = vadd.f32 %v234, %v602
      %v604 = vpop.f32.mrb[0].mxu0
      %605 = vmatprep.mubr.bf16.mxu0 %v469
      %606 = vmatmul.mubr.bf16.gmra.mrb[0].mxu0 %v352
      %v607 = vpop.f32.mrb[0].mxu0
      %v608 = vadd.f32 %v234, %v607
      %v609 = vpop.f32.mrb[0].mxu0
      %v610 = vpop.f32.mrb[0].mxu0
      %v611 = vadd.f32 %v234, %v610
      %v612 = vpop.f32.mrb[0].mxu0
      %613 = vmatprep.mubr.bf16.mxu0 %v472
      %614 = vmatmul.mubr.bf16.gmra.mrb[0].mxu0 %v354
      %v615 = vpop.f32.mrb[0].mxu0
      %v616 = vadd.f32 %v234, %v615
      %v617 = vpop.f32.mrb[0].mxu0
      %v618 = vpop.f32.mrb[0].mxu0
      %v619 = vadd.f32 %v234, %v618
      %v620 = vpop.f32.mrb[0].mxu0
      %621 = vmatprep.mubr.bf16.mxu0 %v475
      %622 = vmatmul.mubr.bf16.gmra.mrb[0].mxu0 %v356
      %v623 = vpop.f32.mrb[0].mxu0
      %v624 = vadd.f32 %v234, %v623
      %v625 = vpop.f32.mrb[0].mxu0
      %v626 = vpop.f32.mrb[0].mxu0
      %v627 = vadd.f32 %v234, %v626
      %v628 = vpop.f32.mrb[0].mxu0
      %629 = vmatprep.mubr.bf16.mxu0 %v478
      %630 = vmatmul.mubr.bf16.gmra.mrb[0].mxu0 %v358
      %v631 = vpop.f32.mrb[0].mxu0
      %v632 = vadd.f32 %v234, %v631
      %v633 = vpop.f32.mrb[0].mxu0
      %v634 = vpop.f32.mrb[0].mxu0
      %v635 = vadd.f32 %v234, %v634
      %v636 = vpop.f32.mrb[0].mxu0
      %637 = vmatprep.mubr.bf16.mxu0 %v481
      %638 = vmatmul.mubr.bf16.gmra.mrb[0].mxu0 %v360
      %v639 = vpop.f32.mrb[0].mxu0
      %v640 = vadd.f32 %v234, %v639
      %v641 = vpop.f32.mrb[0].mxu0
      %v642 = vpop.f32.mrb[0].mxu0
      %v643 = vadd.f32 %v234, %v642
      %v644 = vpop.f32.mrb[0].mxu0
      %645 = vmatprep.mubr.bf16.mxu0 %v484
      %646 = vmatmul.mubr.bf16.gmra.mrb[0].mxu0 %v362
      %v647 = vpop.f32.mrb[0].mxu0
      %v648 = vadd.f32 %v234, %v647
      %v649 = vpop.f32.mrb[0].mxu0
      %v650 = vpop.f32.mrb[0].mxu0
      %v651 = vadd.f32 %v234, %v650
      %v652 = vpop.f32.mrb[0].mxu0
      %653 = vdwg.mxu0
      %v654 = vmax.f32 %v528, 0.0
      %v655 = vmax.f32 %v531, 0.0
      %v656 = vmax.f32 %v536, 0.0
      %v657 = vmax.f32 %v539, 0.0
      %v658 = vmax.f32 %v544, 0.0
      %v659 = vmax.f32 %v547, 0.0
      %v660 = vmax.f32 %v552, 0.0
      %v661 = vmax.f32 %v555, 0.0
      %v662 = vmax.f32 %v560, 0.0
      %v663 = vmax.f32 %v563, 0.0
      %v664 = vmax.f32 %v568, 0.0
      %v665 = vmax.f32 %v571, 0.0
      %v666 = vmax.f32 %v576, 0.0
      %v667 = vmax.f32 %v579, 0.0
      %v668 = vmax.f32 %v584, 0.0
      %v669 = vmax.f32 %v587, 0.0
      %v670 = vmax.f32 %v592, 0.0
      %v671 = vmax.f32 %v595, 0.0
      %v672 = vmax.f32 %v600, 0.0
      %v673 = vmax.f32 %v603, 0.0
      %v674 = vmax.f32 %v608, 0.0
      %v675 = vmax.f32 %v611, 0.0
      %v676 = vmax.f32 %v616, 0.0
      %v677 = vmax.f32 %v619, 0.0
      %v678 = vmax.f32 %v624, 0.0
      %v679 = vmax.f32 %v627, 0.0
      %v680 = vmax.f32 %v632, 0.0
      %v681 = vmax.f32 %v635, 0.0
      %v682 = vmax.f32 %v640, 0.0
      %v683 = vmax.f32 %v643, 0.0
      %v684 = vmax.f32 %v648, 0.0
      %v685 = vmax.f32 %v651, 0.0
      %v686 = vpack.c.bf16 %v655, %v654
      %v687 = vpack.c.bf16 %v657, %v656
      %v688 = vpack.c.bf16 %v659, %v658
      %v689 = vpack.c.bf16 %v661, %v660
      %v690 = vpack.c.bf16 %v663, %v662
      %v691 = vpack.c.bf16 %v665, %v664
      %v692 = vpack.c.bf16 %v667, %v666
      %v693 = vpack.c.bf16 %v669, %v668
      %v694 = vpack.c.bf16 %v671, %v670
      %v695 = vpack.c.bf16 %v673, %v672
      %v696 = vpack.c.bf16 %v675, %v674
      %v697 = vpack.c.bf16 %v677, %v676
      %v698 = vpack.c.bf16 %v679, %v678
      %v699 = vpack.c.bf16 %v681, %v680
      %v700 = vpack.c.bf16 %v683, %v682
      %v701 = vpack.c.bf16 %v685, %v684
      %v718 = vunpack.c.l.b16 %v686
      %v719 = vunpack.c.h.b16 %v686
      %v720 = vunpack.c.l.b16 %v687
      %v721 = vunpack.c.h.b16 %v687
      %v722 = vunpack.c.l.b16 %v688
      %v723 = vunpack.c.h.b16 %v688
      %v724 = vunpack.c.l.b16 %v689
      %v725 = vunpack.c.h.b16 %v689
      %v726 = vunpack.c.l.b16 %v690
      %v727 = vunpack.c.h.b16 %v690
      %v728 = vunpack.c.l.b16 %v691
      %v729 = vunpack.c.h.b16 %v691
      %v730 = vunpack.c.l.b16 %v692
      %v731 = vunpack.c.h.b16 %v692
      %v732 = vunpack.c.l.b16 %v693
      %v733 = vunpack.c.h.b16 %v693
      %v734 = vunpack.c.l.b16 %v694
      %v735 = vunpack.c.h.b16 %v694
      %v736 = vunpack.c.l.b16 %v695
      %v737 = vunpack.c.h.b16 %v695
      %v738 = vunpack.c.l.b16 %v696
      %v739 = vunpack.c.h.b16 %v696
      %v740 = vunpack.c.l.b16 %v697
      %v741 = vunpack.c.h.b16 %v697
      %v742 = vunpack.c.l.b16 %v698
      %v743 = vunpack.c.h.b16 %v698
      %v744 = vunpack.c.l.b16 %v699
      %v745 = vunpack.c.h.b16 %v699
      %v746 = vunpack.c.l.b16 %v700
      %v747 = vunpack.c.h.b16 %v700
      %v748 = vunpack.c.l.b16 %v701
      %v749 = vunpack.c.h.b16 %v701
      %v750 = vpack.c.b16 %v718, %v718
      %v751 = vpack.c.b16 %v719, %v719
      %v752 = vpack.c.b16 %v720, %v720
      %v753 = vpack.c.b16 %v721, %v721
      %v754 = vpack.c.b16 %v722, %v722
      %v755 = vpack.c.b16 %v723, %v723
      %v756 = vpack.c.b16 %v724, %v724
      %v757 = vpack.c.b16 %v725, %v725
      %v758 = vpack.c.b16 %v726, %v726
      %v759 = vpack.c.b16 %v727, %v727
      %v760 = vpack.c.b16 %v728, %v728
      %v761 = vpack.c.b16 %v729, %v729
      %v762 = vpack.c.b16 %v730, %v730
      %v763 = vpack.c.b16 %v731, %v731
      %v764 = vpack.c.b16 %v732, %v732
      %v765 = vpack.c.b16 %v733, %v733
      %v766 = vpack.c.b16 %v734, %v734
      %v767 = vpack.c.b16 %v735, %v735
      %v768 = vpack.c.b16 %v736, %v736
      %v769 = vpack.c.b16 %v737, %v737
      %v770 = vpack.c.b16 %v738, %v738
      %v771 = vpack.c.b16 %v739, %v739
      %v772 = vpack.c.b16 %v740, %v740
      %v773 = vpack.c.b16 %v741, %v741
      %v774 = vpack.c.b16 %v742, %v742
      %v775 = vpack.c.b16 %v743, %v743
      %v776 = vpack.c.b16 %v744, %v744
      %v777 = vpack.c.b16 %v745, %v745
      %v778 = vpack.c.b16 %v746, %v746
      %v779 = vpack.c.b16 %v747, %v747
      %v780 = vpack.c.b16 %v748, %v748
      %v781 = vpack.c.b16 %v749, %v749
      %814 = vst [vmem:[%s175] sm:$0xf] %v750
      %815 = vst [vmem:[%s175 + $0x4] sm:$0xf] %v751
      %816 = vst [vmem:[%s175 + $0x8] sm:$0xf] %v752
      %817 = vst [vmem:[%s175 + $0xc] sm:$0xf] %v753
      %818 = vst [vmem:[%s175 + $0x10] sm:$0xf] %v754
      %819 = vst [vmem:[%s175 + $0x14] sm:$0xf] %v755
      %820 = vst [vmem:[%s175 + $0x18] sm:$0xf] %v756
      %821 = vst [vmem:[%s175 + $0x1c] sm:$0xf] %v757
      %822 = vst [vmem:[%s175 + $0x20] sm:$0xf] %v758
      %823 = vst [vmem:[%s175 + $0x24] sm:$0xf] %v759
      %824 = vst [vmem:[%s175 + $0x28] sm:$0xf] %v760
      %825 = vst [vmem:[%s175 + $0x2c] sm:$0xf] %v761
      %826 = vst [vmem:[%s175 + $0x30] sm:$0xf] %v762
      %827 = vst [vmem:[%s175 + $0x34] sm:$0xf] %v763
      %828 = vst [vmem:[%s175 + $0x38] sm:$0xf] %v764
      %829 = vst [vmem:[%s175 + $0x3c] sm:$0xf] %v765
      %830 = vst [vmem:[%s175 + $0x40] sm:$0xf] %v766
      %831 = vst [vmem:[%s175 + $0x44] sm:$0xf] %v767
      %832 = vst [vmem:[%s175 + $0x48] sm:$0xf] %v768
      %833 = vst [vmem:[%s175 + $0x4c] sm:$0xf] %v769
      %834 = vst [vmem:[%s175 + $0x50] sm:$0xf] %v770
      %835 = vst [vmem:[%s175 + $0x54] sm:$0xf] %v771
      %836 = vst [vmem:[%s175 + $0x58] sm:$0xf] %v772
      %837 = vst [vmem:[%s175 + $0x5c] sm:$0xf] %v773
      %838 = vst [vmem:[%s175 + $0x60] sm:$0xf] %v774
      %839 = vst [vmem:[%s175 + $0x64] sm:$0xf] %v775
      %840 = vst [vmem:[%s175 + $0x68] sm:$0xf] %v776
      %841 = vst [vmem:[%s175 + $0x6c] sm:$0xf] %v777
      %842 = vst [vmem:[%s175 + $0x70] sm:$0xf] %v778
      %843 = vst [vmem:[%s175 + $0x74] sm:$0xf] %v779
      %844 = vst [vmem:[%s175 + $0x78] sm:$0xf] %v780
      %845 = vst [vmem:[%s175 + $0x7c] sm:$0xf] %v781
      %s846 = smul.u32 32, %s14
      %p847 = scmp.lt.s32.totalorder %s846, 255
      %s848 = scalar_select %p847, %s846, 255
      %s849 = smul.addr %s848, 4
      %s850 = scalar_lea.vmem %s3, %s849
      // Predicated region
      $region33: #{encoder_cnn_forward.9} parent=31 // pred_check
        %p851 = pneg %p100
      $region34: #{encoder_cnn_forward.9} parent=31 // pred_check_branch
        %853 = sbr.rel (%p851) target = $region36
      $region35: #{encoder_cnn_forward.9} parent=31 // pred_region
        %s854 = smul.u32 32, %s14
      $region36: #{encoder_cnn_forward.9} parent=31 // pred_fallthru
        _
    $region32: #{encoder_cnn_forward.9} parent=5 // pred_fallthru
      _
    %p855 = scmp.le.s32.totalorder 2, %s9
    // Predicated region
    $region37: #{encoder_cnn_forward.9} parent=5 // pred_check
      %p856 = pneg %p855
    $region38: #{encoder_cnn_forward.9} parent=5 // pred_check_branch
      %858 = sbr.rel (%p856) target = $region40
    $region39: #{encoder_cnn_forward.9} parent=5 // pred_region
      %s859 = ssub.s32 %s9, 2
      // Predicated region
      $region41: #{encoder_cnn_forward.9} parent=39 // pred_check
        %p860 = pneg %p106
      $region42: #{encoder_cnn_forward.9} parent=39 // pred_check_branch
        %862 = sbr.rel (%p860) target = $region44
      $region43: #{encoder_cnn_forward.9} parent=39 // pred_region
        %s863 = smul.u32 32, %s15
        %p864 = scmp.lt.s32.totalorder %s863, 255
        %s865 = scalar_select %p864, %s863, 255
        %s866 = smul.addr %s865, 4
        %s867 = scalar_lea.vmem %s3, %s866
      $region44: #{encoder_cnn_forward.9} parent=39 // pred_fallthru
        _
    $region40: #{encoder_cnn_forward.9} parent=5 // pred_fallthru
      _
  $region6: #{encoder_cnn_forward.9} parent=0 // loop_footer
    %s13 = sadd.s32 1, %s9
  $region7: #{encoder_cnn_forward.9} parent=0 // loop_footer_branch
    %8 = sbr.rel target = $region3
  $region8: #{encoder_cnn_forward.9} parent=0 // loop_exit
    _

// kernel: encoder_cnn_forward.10
$region0: #{encoder_cnn_forward.10}
  #allocation0 [shape = 'u32[]', space=smem, size = 0x4, offset = 0x4, fixed_abs, tag = 'smem constant byte address 0x4 - core index']
  #allocation1 [shape = 'u32[144,128]{1,0:T(1,128)}', space=vmem, size = 0x12000, scoped, tag = 'internal scratch']
  %s0 = inlined_call_operand.vmem [shape: bf16[2,4,17,17,128], index: 0, kind: input, shape index: {}]
  %s1 = inlined_call_operand.vmem [shape: bf16[2,16,16,128], index: 1, kind: output, shape index: {}]
  %s2 = sld [smem:[#allocation0]]
  $region37: #{encoder_cnn_forward.10} parent=0
    _
  %s4 = ssub.s32 1, %s2
  %s5 = scalar_select 0, %s4, %s2
  loop: start=0, step=1, limit=4
  $region2: #{encoder_cnn_forward.10} parent=0 // loop_pre_header
    _
  $region3: #{encoder_cnn_forward.10} parent=0 // loop_header
    %s7 = sphi 0, %s11
    %p8 = scmp.ge.s32.totalorder %s7, 4
    %s17 = sphi 0, %s19
    %s20 = sphi 0, %s17
    %s21 = sphi 0, %s20
    %s37 = sphi 0, %s21
    %s43 = sphi 0, %s45
    %s46 = sphi 0, %s43
    %s47 = sphi 0, %s46
    %s63 = sphi 0, %s47
  $region4: #{encoder_cnn_forward.10} parent=0 // loop_header_branch
    %10 = sbr.rel (%p8) target = $region8
  $region5: #{encoder_cnn_forward.10} parent=0 // loop_body
    %s12 = ssub.s32 %s7, 1
    %s13 = ssub.s32 %s7, 2
    %s14 = sadd.s32 %s7, 1
    %s15 = ssub.s32 %s7, %s14
    %p16 = scmp.eq.s32.totalorder %s15, 0
    %s18 = sadd.s32 %s17, 1
    %s19 = scalar_select %p16, %s17, %s18
    %p22 = pneg %p16
    %p23 = scmp.eq.s32.totalorder %s7, 1
    %p24 = por %p22, %p23
    %p25 = scmp.ne.s32.totalorder %s17, %s20
    %p26 = scmp.eq.s32.totalorder %s7, 0
    %p27 = por %p25, %p26
    %p28 = scmp.ne.s32.totalorder %s17, %s20
    %p29 = scmp.eq.s32.totalorder %s12, 1
    %p30 = por %p28, %p29
    %p31 = scmp.ne.s32.totalorder %s20, %s21
    %p32 = scmp.eq.s32.totalorder %s12, 0
    %p33 = por %p31, %p32
    %p34 = scmp.ne.s32.totalorder %s20, %s21
    %p35 = scmp.eq.s32.totalorder %s13, 1
    %p36 = por %p34, %p35
    %p38 = scmp.ne.s32.totalorder %s21, %s37
    %p39 = scmp.eq.s32.totalorder %s13, 0
    %p40 = por %p38, %p39
    %s41 = ssub.s32 %s7, %s14
    %p42 = scmp.eq.s32.totalorder %s41, 0
    %s44 = sadd.s32 %s43, 1
    %s45 = scalar_select %p42, %s43, %s44
    %p48 = pneg %p42
    %p49 = scmp.eq.s32.totalorder %s7, 1
    %p50 = por %p48, %p49
    %p51 = scmp.ne.s32.totalorder %s43, %s46
    %p52 = scmp.eq.s32.totalorder %s7, 0
    %p53 = por %p51, %p52
    %p54 = scmp.ne.s32.totalorder %s43, %s46
    %p55 = scmp.eq.s32.totalorder %s12, 1
    %p56 = por %p54, %p55
    %p57 = scmp.ne.s32.totalorder %s46, %s47
    %p58 = scmp.eq.s32.totalorder %s12, 0
    %p59 = por %p57, %p58
    %p60 = scmp.ne.s32.totalorder %s46, %s47
    %p61 = scmp.eq.s32.totalorder %s13, 1
    %p62 = por %p60, %p61
    %p64 = scmp.ne.s32.totalorder %s47, %s63
    %p65 = scmp.eq.s32.totalorder %s13, 0
    %p66 = por %p64, %p65
    %p67 = scmp.le.s32.totalorder 1, %s7
    %p68 = scmp.lt.s32.totalorder %s7, 3
    %p69 = pnand %p67, %p68
    %p70 = pneg %p69
    // Predicated region
    $region9: #{encoder_cnn_forward.10} parent=5 // pred_check
      _
    $region10: #{encoder_cnn_forward.10} parent=5 // pred_check_branch
      %72 = sbr.rel (%p69) target = $region12
    $region11: #{encoder_cnn_forward.10} parent=5 // pred_region
      %s73 = ssub.s32 %s7, 1
    $region12: #{encoder_cnn_forward.10} parent=5 // pred_fallthru
      _
    %p74 = scmp.lt.s32.totalorder %s7, 2
    // Predicated region
    $region13: #{encoder_cnn_forward.10} parent=5 // pred_check
      %p75 = pneg %p74
    $region14: #{encoder_cnn_forward.10} parent=5 // pred_check_branch
      %77 = sbr.rel (%p75) target = $region16
    $region15: #{encoder_cnn_forward.10} parent=5 // pred_region
      // Predicated region
      $region17: #{encoder_cnn_forward.10} parent=15 // pred_check
        %p78 = pneg %p27
      $region18: #{encoder_cnn_forward.10} parent=15 // pred_check_branch
        %80 = sbr.rel (%p78) target = $region20
      $region19: #{encoder_cnn_forward.10} parent=15 // pred_region
        %p81 = scmp.lt.s32.totalorder %s7, 1
        %s82 = scalar_select %p81, %s7, 1
        %s83 = smul.addr %s82, 204
        %s84 = smul.addr %s83, 4
        %s85 = scalar_lea.vmem %s0, %s84
      $region20: #{encoder_cnn_forward.10} parent=15 // pred_fallthru
        _
    $region16: #{encoder_cnn_forward.10} parent=5 // pred_fallthru
      _
    %p86 = scmp.le.s32.totalorder 1, %s7
    %p87 = scmp.lt.s32.totalorder %s7, 3
    %p88 = pnand %p86, %p87
    %p89 = pneg %p88
    // Predicated region
    $region21: #{encoder_cnn_forward.10} parent=5 // pred_check
      _
    $region22: #{encoder_cnn_forward.10} parent=5 // pred_check_branch
      %91 = sbr.rel (%p88) target = $region24
    $region23: #{encoder_cnn_forward.10} parent=5 // pred_region
      %s92 = ssub.s32 %s7, 1
      %p93 = scmp.lt.s32.totalorder %s12, 1
      %s94 = scalar_select %p93, %s12, 1
      %s95 = smul.addr %s94, 204
      %s96 = smul.addr %s95, 4
      %s97 = scalar_lea.vmem %s0, %s96
      %p98 = pneg %p33
      %p99 = pneg %p30
      %p100 = pneg %p59
      %p101 = pneg %p56
      %p102 = scmp.lt.s32.totalorder %s12, 1
      %s103 = scalar_select %p102, %s12, 1
      %s104 = smul.addr %s103, 32
      %s105 = smul.addr %s104, 4
      %s106 = scalar_lea.vmem %s1, %s105
      %p107 = scmp.lt.s32.totalorder %s12, 1
      %s108 = scalar_select %p107, %s12, 1
      %s109 = smul.addr %s108, 204
      %s110 = smul.addr %s109, 4
      %s111 = scalar_lea.vmem %s0, %s110
      %p112 = scmp.lt.s32.totalorder %s12, 1
      %s113 = scalar_select %p112, %s12, 1
      %s114 = smul.addr %s113, 32
      %s115 = smul.addr %s114, 4
      %s116 = scalar_lea.vmem %s1, %s115
      %v117 = vld [vmem:[%s111] sm:$0xf]
      %v118 = vld [vmem:[%s111 + $0x4] sm:$0xf]
      %v119 = vld [vmem:[%s111 + $0xc] sm:$0xf]
      %v120 = vld [vmem:[%s111 + $0x10] sm:$0xf]
      %v121 = vld [vmem:[%s111 + $0x18] sm:$0xf]
      %v122 = vld [vmem:[%s111 + $0x1c] sm:$0xf]
      %v123 = vld [vmem:[%s111 + $0x24] sm:$0xf]
      %v124 = vld [vmem:[%s111 + $0x28] sm:$0xf]
      %v125 = vld [vmem:[%s111 + $0x30] sm:$0xf]
      %v126 = vld [vmem:[%s111 + $0x34] sm:$0xf]
      %v127 = vld [vmem:[%s111 + $0x3c] sm:$0xf]
      %v128 = vld [vmem:[%s111 + $0x40] sm:$0xf]
      %v129 = vld [vmem:[%s111 + $0x48] sm:$0xf]
      %v130 = vld [vmem:[%s111 + $0x4c] sm:$0xf]
      %v131 = vld [vmem:[%s111 + $0x54] sm:$0xf]
      %v132 = vld [vmem:[%s111 + $0x58] sm:$0xf]
      %v133 = vld [vmem:[%s111 + $0x60] sm:$0xf]
      %v134 = vld [vmem:[%s111 + $0x64] sm:$0xf]
      %v135 = vld [vmem:[%s111 + $0x6c] sm:$0xf]
      %v136 = vld [vmem:[%s111 + $0x70] sm:$0xf]
      %v137 = vld [vmem:[%s111 + $0x78] sm:$0xf]
      %v138 = vld [vmem:[%s111 + $0x7c] sm:$0xf]
      %v139 = vld [vmem:[%s111 + $0x84] sm:$0xf]
      %v140 = vld [vmem:[%s111 + $0x88] sm:$0xf]
      %v141 = vld [vmem:[%s111 + $0x90] sm:$0xf]
      %v142 = vld [vmem:[%s111 + $0x94] sm:$0xf]
      %v143 = vld [vmem:[%s111 + $0x9c] sm:$0xf]
      %v144 = vld [vmem:[%s111 + $0xa0] sm:$0xf]
      %v145 = vld [vmem:[%s111 + $0xa8] sm:$0xf]
      %v146 = vld [vmem:[%s111 + $0xac] sm:$0xf]
      %v147 = vld [vmem:[%s111 + $0xb4] sm:$0xf]
      %v148 = vld [vmem:[%s111 + $0xb8] sm:$0xf]
      %s149 = scalar_lea.vmem %s111, 204
      %v150 = vld [vmem:[%s149] sm:$0xf]
      %v151 = vld [vmem:[%s149 + $0x4] sm:$0xf]
      %v152 = vld [vmem:[%s149 + $0xc] sm:$0xf]
      %v153 = vld [vmem:[%s149 + $0x10] sm:$0xf]
      %v154 = vld [vmem:[%s149 + $0x18] sm:$0xf]
      %v155 = vld [vmem:[%s149 + $0x1c] sm:$0xf]
      %v156 = vld [vmem:[%s149 + $0x24] sm:$0xf]
      %v157 = vld [vmem:[%s149 + $0x28] sm:$0xf]
      %v158 = vld [vmem:[%s149 + $0x30] sm:$0xf]
      %v159 = vld [vmem:[%s149 + $0x34] sm:$0xf]
      %v160 = vld [vmem:[%s149 + $0x3c] sm:$0xf]
      %v161 = vld [vmem:[%s149 + $0x40] sm:$0xf]
      %v162 = vld [vmem:[%s149 + $0x48] sm:$0xf]
      %v163 = vld [vmem:[%s149 + $0x4c] sm:$0xf]
      %v164 = vld [vmem:[%s149 + $0x54] sm:$0xf]
      %v165 = vld [vmem:[%s149 + $0x58] sm:$0xf]
      %v166 = vld [vmem:[%s149 + $0x60] sm:$0xf]
      %v167 = vld [vmem:[%s149 + $0x64] sm:$0xf]
      %v168 = vld [vmem:[%s149 + $0x6c] sm:$0xf]
      %v169 = vld [vmem:[%s149 + $0x70] sm:$0xf]
      %v170 = vld [vmem:[%s149 + $0x78] sm:$0xf]
      %v171 = vld [vmem:[%s149 + $0x7c] sm:$0xf]
      %v172 = vld [vmem:[%s149 + $0x84] sm:$0xf]
      %v173 = vld [vmem:[%s149 + $0x88] sm:$0xf]
      %v174 = vld [vmem:[%s149 + $0x90] sm:$0xf]
      %v175 = vld [vmem:[%s149 + $0x94] sm:$0xf]
      %v176 = vld [vmem:[%s149 + $0x9c] sm:$0xf]
      %v177 = vld [vmem:[%s149 + $0xa0] sm:$0xf]
      %v178 = vld [vmem:[%s149 + $0xa8] sm:$0xf]
      %v179 = vld [vmem:[%s149 + $0xac] sm:$0xf]
      %v180 = vld [vmem:[%s149 + $0xb4] sm:$0xf]
      %v181 = vld [vmem:[%s149 + $0xb8] sm:$0xf]
      %v182 = vmax.bf16 %v117, %v150
      %v183 = vmax.bf16 %v118, %v151
      %v184 = vmax.bf16 %v119, %v152
      %v185 = vmax.bf16 %v120, %v153
      %v186 = vmax.bf16 %v121, %v154
      %v187 = vmax.bf16 %v122, %v155
      %v188 = vmax.bf16 %v123, %v156
      %v189 = vmax.bf16 %v124, %v157
      %v190 = vmax.bf16 %v125, %v158
      %v191 = vmax.bf16 %v126, %v159
      %v192 = vmax.bf16 %v127, %v160
      %v193 = vmax.bf16 %v128, %v161
      %v194 = vmax.bf16 %v129, %v162
      %v195 = vmax.bf16 %v130, %v163
      %v196 = vmax.bf16 %v131, %v164
      %v197 = vmax.bf16 %v132, %v165
      %v198 = vmax.bf16 %v133, %v166
      %v199 = vmax.bf16 %v134, %v167
      %v200 = vmax.bf16 %v135, %v168
      %v201 = vmax.bf16 %v136, %v169
      %v202 = vmax.bf16 %v137, %v170
      %v203 = vmax.bf16 %v138, %v171
      %v204 = vmax.bf16 %v139, %v172
      %v205 = vmax.bf16 %v140, %v173
      %v206 = vmax.bf16 %v141, %v174
      %v207 = vmax.bf16 %v142, %v175
      %v208 = vmax.bf16 %v143, %v176
      %v209 = vmax.bf16 %v144, %v177
      %v210 = vmax.bf16 %v145, %v178
      %v211 = vmax.bf16 %v146, %v179
      %v212 = vmax.bf16 %v147, %v180
      %v213 = vmax.bf16 %v148, %v181
      %v214 = vld [vmem:[%s111 + $0x8] sm:$0x1]
      %v215 = vld [vmem:[%s111 + $0x14] sm:$0x1]
      %v216 = vld [vmem:[%s111 + $0x20] sm:$0x1]
      %v217 = vld [vmem:[%s111 + $0x2c] sm:$0x1]
      %v218 = vld [vmem:[%s111 + $0x38] sm:$0x1]
      %v219 = vld [vmem:[%s111 + $0x44] sm:$0x1]
      %v220 = vld [vmem:[%s111 + $0x50] sm:$0x1]
      %v221 = vld [vmem:[%s111 + $0x5c] sm:$0x1]
      %v222 = vld [vmem:[%s111 + $0x68] sm:$0x1]
      %v223 = vld [vmem:[%s111 + $0x74] sm:$0x1]
      %v224 = vld [vmem:[%s111 + $0x80] sm:$0x1]
      %v225 = vld [vmem:[%s111 + $0x8c] sm:$0x1]
      %v226 = vld [vmem:[%s111 + $0x98] sm:$0x1]
      %v227 = vld [vmem:[%s111 + $0xa4] sm:$0x1]
      %v228 = vld [vmem:[%s111 + $0xb0] sm:$0x1]
      %v229 = vld [vmem:[%s111 + $0xbc] sm:$0x1]
      %vm230 = vsmask.f32 3328
      %vm231 = vsmask.f32 7440
      %vm232 = vmor %vm230, %vm231
      %v234 = vshrl.u32 %v117, 16
      %v236 = vrot.slane %v234, 4
      %v237 = vshll.u32 %v117, 16
      %v239 = vrot.slane %v237, 5
      %v240 = vor.u32 %v236, %v239
      %v241 = vrot.slane %v240, 4
      %v243 = vshll.u32 %v118, 16
      %v245 = vrot.slane %v243, 5
      %v246 = vsel %vm232, %v241, %v245
      %v247 = vshrl.u32 %v118, 16
      %v249 = vrot.slane %v247, 4
      %v250 = vor.u32 %v249, %v245
      %v251 = vrot.slane %v250, 4
      %v253 = vshll.u32 %v214, 16
      %v255 = vrot.slane %v253, 5
      %v256 = vsel %vm232, %v251, %v255
      %v258 = vshrl.u32 %v119, 16
      %v260 = vrot.slane %v258, 4
      %v261 = vshll.u32 %v119, 16
      %v263 = vrot.slane %v261, 5
      %v264 = vor.u32 %v260, %v263
      %v265 = vrot.slane %v264, 4
      %v267 = vshll.u32 %v120, 16
      %v269 = vrot.slane %v267, 5
      %v270 = vsel %vm232, %v265, %v269
      %v271 = vshrl.u32 %v120, 16
      %v273 = vrot.slane %v271, 4
      %v274 = vor.u32 %v273, %v269
      %v275 = vrot.slane %v274, 4
      %v277 = vshll.u32 %v215, 16
      %v279 = vrot.slane %v277, 5
      %v280 = vsel %vm232, %v275, %v279
      %v282 = vshrl.u32 %v121, 16
      %v284 = vrot.slane %v282, 4
      %v285 = vshll.u32 %v121, 16
      %v287 = vrot.slane %v285, 5
      %v288 = vor.u32 %v284, %v287
      %v289 = vrot.slane %v288, 4
      %v291 = vshll.u32 %v122, 16
      %v293 = vrot.slane %v291, 5
      %v294 = vsel %vm232, %v289, %v293
      %v295 = vshrl.u32 %v122, 16
      %v297 = vrot.slane %v295, 4
      %v298 = vor.u32 %v297, %v293
      %v299 = vrot.slane %v298, 4
      %v301 = vshll.u32 %v216, 16
      %v303 = vrot.slane %v301, 5
      %v304 = vsel %vm232, %v299, %v303
      %v306 = vshrl.u32 %v123, 16
      %v308 = vrot.slane %v306, 4
      %v309 = vshll.u32 %v123, 16
      %v311 = vrot.slane %v309, 5
      %v312 = vor.u32 %v308, %v311
      %v313 = vrot.slane %v312, 4
      %v315 = vshll.u32 %v124, 16
      %v317 = vrot.slane %v315, 5
      %v318 = vsel %vm232, %v313, %v317
      %v319 = vshrl.u32 %v124, 16
      %v321 = vrot.slane %v319, 4
      %v322 = vor.u32 %v321, %v317
      %v323 = vrot.slane %v322, 4
      %v325 = vshll.u32 %v217, 16
      %v327 = vrot.slane %v325, 5
      %v328 = vsel %vm232, %v323, %v327
      %v330 = vshrl.u32 %v125, 16
      %v332 = vrot.slane %v330, 4
      %v333 = vshll.u32 %v125, 16
      %v335 = vrot.slane %v333, 5
      %v336 = vor.u32 %v332, %v335
      %v337 = vrot.slane %v336, 4
      %v339 = vshll.u32 %v126, 16
      %v341 = vrot.slane %v339, 5
      %v342 = vsel %vm232, %v337, %v341
      %v343 = vshrl.u32 %v126, 16
      %v345 = vrot.slane %v343, 4
      %v346 = vor.u32 %v345, %v341
      %v347 = vrot.slane %v346, 4
      %v349 = vshll.u32 %v218, 16
      %v351 = vrot.slane %v349, 5
      %v352 = vsel %vm232, %v347, %v351
      %v354 = vshrl.u32 %v127, 16
      %v356 = vrot.slane %v354, 4
      %v357 = vshll.u32 %v127, 16
      %v359 = vrot.slane %v357, 5
      %v360 = vor.u32 %v356, %v359
      %v361 = vrot.slane %v360, 4
      %v363 = vshll.u32 %v128, 16
      %v365 = vrot.slane %v363, 5
      %v366 = vsel %vm232, %v361, %v365
      %v367 = vshrl.u32 %v128, 16
      %v369 = vrot.slane %v367, 4
      %v370 = vor.u32 %v369, %v365
      %v371 = vrot.slane %v370, 4
      %v373 = vshll.u32 %v219, 16
      %v375 = vrot.slane %v373, 5
      %v376 = vsel %vm232, %v371, %v375
      %v378 = vshrl.u32 %v129, 16
      %v380 = vrot.slane %v378, 4
      %v381 = vshll.u32 %v129, 16
      %v383 = vrot.slane %v381, 5
      %v384 = vor.u32 %v380, %v383
      %v385 = vrot.slane %v384, 4
      %v387 = vshll.u32 %v130, 16
      %v389 = vrot.slane %v387, 5
      %v390 = vsel %vm232, %v385, %v389
      %v391 = vshrl.u32 %v130, 16
      %v393 = vrot.slane %v391, 4
      %v394 = vor.u32 %v393, %v389
      %v395 = vrot.slane %v394, 4
      %v397 = vshll.u32 %v220, 16
      %v399 = vrot.slane %v397, 5
      %v400 = vsel %vm232, %v395, %v399
      %v402 = vshrl.u32 %v131, 16
      %v404 = vrot.slane %v402, 4
      %v405 = vshll.u32 %v131, 16
      %v407 = vrot.slane %v405, 5
      %v408 = vor.u32 %v404, %v407
      %v409 = vrot.slane %v408, 4
      %v411 = vshll.u32 %v132, 16
      %v413 = vrot.slane %v411, 5
      %v414 = vsel %vm232, %v409, %v413
      %v415 = vshrl.u32 %v132, 16
      %v417 = vrot.slane %v415, 4
      %v418 = vor.u32 %v417, %v413
      %v419 = vrot.slane %v418, 4
      %v421 = vshll.u32 %v221, 16
      %v423 = vrot.slane %v421, 5
      %v424 = vsel %vm232, %v419, %v423
      %v426 = vshrl.u32 %v133, 16
      %v428 = vrot.slane %v426, 4
      %v429 = vshll.u32 %v133, 16
      %v431 = vrot.slane %v429, 5
      %v432 = vor.u32 %v428, %v431
      %v433 = vrot.slane %v432, 4
      %v435 = vshll.u32 %v134, 16
      %v437 = vrot.slane %v435, 5
      %v438 = vsel %vm232, %v433, %v437
      %v439 = vshrl.u32 %v134, 16
      %v441 = vrot.slane %v439, 4
      %v442 = vor.u32 %v441, %v437
      %v443 = vrot.slane %v442, 4
      %v445 = vshll.u32 %v222, 16
      %v447 = vrot.slane %v445, 5
      %v448 = vsel %vm232, %v443, %v447
      %v450 = vshrl.u32 %v135, 16
      %v452 = vrot.slane %v450, 4
      %v453 = vshll.u32 %v135, 16
      %v455 = vrot.slane %v453, 5
      %v456 = vor.u32 %v452, %v455
      %v457 = vrot.slane %v456, 4
      %v459 = vshll.u32 %v136, 16
      %v461 = vrot.slane %v459, 5
      %v462 = vsel %vm232, %v457, %v461
      %v463 = vshrl.u32 %v136, 16
      %v465 = vrot.slane %v463, 4
      %v466 = vor.u32 %v465, %v461
      %v467 = vrot.slane %v466, 4
      %v469 = vshll.u32 %v223, 16
      %v471 = vrot.slane %v469, 5
      %v472 = vsel %vm232, %v467, %v471
      %v474 = vshrl.u32 %v137, 16
      %v476 = vrot.slane %v474, 4
      %v477 = vshll.u32 %v137, 16
      %v479 = vrot.slane %v477, 5
      %v480 = vor.u32 %v476, %v479
      %v481 = vrot.slane %v480, 4
      %v483 = vshll.u32 %v138, 16
      %v485 = vrot.slane %v483, 5
      %v486 = vsel %vm232, %v481, %v485
      %v487 = vshrl.u32 %v138, 16
      %v489 = vrot.slane %v487, 4
      %v490 = vor.u32 %v489, %v485
      %v491 = vrot.slane %v490, 4
      %v493 = vshll.u32 %v224, 16
      %v495 = vrot.slane %v493, 5
      %v496 = vsel %vm232, %v491, %v495
      %v498 = vshrl.u32 %v139, 16
      %v500 = vrot.slane %v498, 4
      %v501 = vshll.u32 %v139, 16
      %v503 = vrot.slane %v501, 5
      %v504 = vor.u32 %v500, %v503
      %v505 = vrot.slane %v504, 4
      %v507 = vshll.u32 %v140, 16
      %v509 = vrot.slane %v507, 5
      %v510 = vsel %vm232, %v505, %v509
      %v511 = vshrl.u32 %v140, 16
      %v513 = vrot.slane %v511, 4
      %v514 = vor.u32 %v513, %v509
      %v515 = vrot.slane %v514, 4
      %v517 = vshll.u32 %v225, 16
      %v519 = vrot.slane %v517, 5
      %v520 = vsel %vm232, %v515, %v519
      %v522 = vshrl.u32 %v141, 16
      %v524 = vrot.slane %v522, 4
      %v525 = vshll.u32 %v141, 16
      %v527 = vrot.slane %v525, 5
      %v528 = vor.u32 %v524, %v527
      %v529 = vrot.slane %v528, 4
      %v531 = vshll.u32 %v142, 16
      %v533 = vrot.slane %v531, 5
      %v534 = vsel %vm232, %v529, %v533
      %v535 = vshrl.u32 %v142, 16
      %v537 = vrot.slane %v535, 4
      %v538 = vor.u32 %v537, %v533
      %v539 = vrot.slane %v538, 4
      %v541 = vshll.u32 %v226, 16
      %v543 = vrot.slane %v541, 5
      %v544 = vsel %vm232, %v539, %v543
      %v546 = vshrl.u32 %v143, 16
      %v548 = vrot.slane %v546, 4
      %v549 = vshll.u32 %v143, 16
      %v551 = vrot.slane %v549, 5
      %v552 = vor.u32 %v548, %v551
      %v553 = vrot.slane %v552, 4
      %v555 = vshll.u32 %v144, 16
      %v557 = vrot.slane %v555, 5
      %v558 = vsel %vm232, %v553, %v557
      %v559 = vshrl.u32 %v144, 16
      %v561 = vrot.slane %v559, 4
      %v562 = vor.u32 %v561, %v557
      %v563 = vrot.slane %v562, 4
      %v565 = vshll.u32 %v227, 16
      %v567 = vrot.slane %v565, 5
      %v568 = vsel %vm232, %v563, %v567
      %v570 = vshrl.u32 %v145, 16
      %v572 = vrot.slane %v570, 4
      %v573 = vshll.u32 %v145, 16
      %v575 = vrot.slane %v573, 5
      %v576 = vor.u32 %v572, %v575
      %v577 = vrot.slane %v576, 4
      %v579 = vshll.u32 %v146, 16
      %v581 = vrot.slane %v579, 5
      %v582 = vsel %vm232, %v577, %v581
      %v583 = vshrl.u32 %v146, 16
      %v585 = vrot.slane %v583, 4
      %v586 = vor.u32 %v585, %v581
      %v587 = vrot.slane %v586, 4
      %v589 = vshll.u32 %v228, 16
      %v591 = vrot.slane %v589, 5
      %v592 = vsel %vm232, %v587, %v591
      %v594 = vshrl.u32 %v147, 16
      %v596 = vrot.slane %v594, 4
      %v597 = vshll.u32 %v147, 16
      %v599 = vrot.slane %v597, 5
      %v600 = vor.u32 %v596, %v599
      %v601 = vrot.slane %v600, 4
      %v603 = vshll.u32 %v148, 16
      %v605 = vrot.slane %v603, 5
      %v606 = vsel %vm232, %v601, %v605
      %v607 = vshrl.u32 %v148, 16
      %v609 = vrot.slane %v607, 4
      %v610 = vor.u32 %v609, %v605
      %v611 = vrot.slane %v610, 4
      %v613 = vshll.u32 %v229, 16
      %v615 = vrot.slane %v613, 5
      %v616 = vsel %vm232, %v611, %v615
      %v649 = vmax.bf16 %v182, %v246
      %v650 = vmax.bf16 %v183, %v256
      %v651 = vmax.bf16 %v184, %v270
      %v652 = vmax.bf16 %v185, %v280
      %v653 = vmax.bf16 %v186, %v294
      %v654 = vmax.bf16 %v187, %v304
      %v655 = vmax.bf16 %v188, %v318
      %v656 = vmax.bf16 %v189, %v328
      %v657 = vmax.bf16 %v190, %v342
      %v658 = vmax.bf16 %v191, %v352
      %v659 = vmax.bf16 %v192, %v366
      %v660 = vmax.bf16 %v193, %v376
      %v661 = vmax.bf16 %v194, %v390
      %v662 = vmax.bf16 %v195, %v400
      %v663 = vmax.bf16 %v196, %v414
      %v664 = vmax.bf16 %v197, %v424
      %v665 = vmax.bf16 %v198, %v438
      %v666 = vmax.bf16 %v199, %v448
      %v667 = vmax.bf16 %v200, %v462
      %v668 = vmax.bf16 %v201, %v472
      %v669 = vmax.bf16 %v202, %v486
      %v670 = vmax.bf16 %v203, %v496
      %v671 = vmax.bf16 %v204, %v510
      %v672 = vmax.bf16 %v205, %v520
      %v673 = vmax.bf16 %v206, %v534
      %v674 = vmax.bf16 %v207, %v544
      %v675 = vmax.bf16 %v208, %v558
      %v676 = vmax.bf16 %v209, %v568
      %v677 = vmax.bf16 %v210, %v582
      %v678 = vmax.bf16 %v211, %v592
      %v679 = vmax.bf16 %v212, %v606
      %v680 = vmax.bf16 %v213, %v616
      %s681 = scalar_lea.vmem %s111, 408
      %v682 = vld [vmem:[%s681] sm:$0xf]
      %v683 = vld [vmem:[%s681 + $0x4] sm:$0xf]
      %v684 = vld [vmem:[%s681 + $0xc] sm:$0xf]
      %v685 = vld [vmem:[%s681 + $0x10] sm:$0xf]
      %v686 = vld [vmem:[%s681 + $0x18] sm:$0xf]
      %v687 = vld [vmem:[%s681 + $0x1c] sm:$0xf]
      %v688 = vld [vmem:[%s681 + $0x24] sm:$0xf]
      %v689 = vld [vmem:[%s681 + $0x28] sm:$0xf]
      %v690 = vld [vmem:[%s681 + $0x30] sm:$0xf]
      %v691 = vld [vmem:[%s681 + $0x34] sm:$0xf]
      %v692 = vld [vmem:[%s681 + $0x3c] sm:$0xf]
      %v693 = vld [vmem:[%s681 + $0x40] sm:$0xf]
      %v694 = vld [vmem:[%s681 + $0x48] sm:$0xf]
      %v695 = vld [vmem:[%s681 + $0x4c] sm:$0xf]
      %v696 = vld [vmem:[%s681 + $0x54] sm:$0xf]
      %v697 = vld [vmem:[%s681 + $0x58] sm:$0xf]
      %v698 = vld [vmem:[%s681 + $0x60] sm:$0xf]
      %v699 = vld [vmem:[%s681 + $0x64] sm:$0xf]
      %v700 = vld [vmem:[%s681 + $0x6c] sm:$0xf]
      %v701 = vld [vmem:[%s681 + $0x70] sm:$0xf]
      %v702 = vld [vmem:[%s681 + $0x78] sm:$0xf]
      %v703 = vld [vmem:[%s681 + $0x7c] sm:$0xf]
      %v704 = vld [vmem:[%s681 + $0x84] sm:$0xf]
      %v705 = vld [vmem:[%s681 + $0x88] sm:$0xf]
      %v706 = vld [vmem:[%s681 + $0x90] sm:$0xf]
      %v707 = vld [vmem:[%s681 + $0x94] sm:$0xf]
      %v708 = vld [vmem:[%s681 + $0x9c] sm:$0xf]
      %v709 = vld [vmem:[%s681 + $0xa0] sm:$0xf]
      %v710 = vld [vmem:[%s681 + $0xa8] sm:$0xf]
      %v711 = vld [vmem:[%s681 + $0xac] sm:$0xf]
      %v712 = vld [vmem:[%s681 + $0xb4] sm:$0xf]
      %v713 = vld [vmem:[%s681 + $0xb8] sm:$0xf]
      %v714 = vmax.bf16 %v649, %v682
      %v715 = vmax.bf16 %v650, %v683
      %v716 = vmax.bf16 %v651, %v684
      %v717 = vmax.bf16 %v652, %v685
      %v718 = vmax.bf16 %v653, %v686
      %v719 = vmax.bf16 %v654, %v687
      %v720 = vmax.bf16 %v655, %v688
      %v721 = vmax.bf16 %v656, %v689
      %v722 = vmax.bf16 %v657, %v690
      %v723 = vmax.bf16 %v658, %v691
      %v724 = vmax.bf16 %v659, %v692
      %v725 = vmax.bf16 %v660, %v693
      %v726 = vmax.bf16 %v661, %v694
      %v727 = vmax.bf16 %v662, %v695
      %v728 = vmax.bf16 %v663, %v696
      %v729 = vmax.bf16 %v664, %v697
      %v730 = vmax.bf16 %v665, %v698
      %v731 = vmax.bf16 %v666, %v699
      %v732 = vmax.bf16 %v667, %v700
      %v733 = vmax.bf16 %v668, %v701
      %v734 = vmax.bf16 %v669, %v702
      %v735 = vmax.bf16 %v670, %v703
      %v736 = vmax.bf16 %v671, %v704
      %v737 = vmax.bf16 %v672, %v705
      %v738 = vmax.bf16 %v673, %v706
      %v739 = vmax.bf16 %v674, %v707
      %v740 = vmax.bf16 %v675, %v708
      %v741 = vmax.bf16 %v676, %v709
      %v742 = vmax.bf16 %v677, %v710
      %v743 = vmax.bf16 %v678, %v711
      %v744 = vmax.bf16 %v679, %v712
      %v745 = vmax.bf16 %v680, %v713
      %s746 = scalar_lea.vmem %s111, 612
      %v747 = vld [vmem:[%s746] sm:$0xf]
      %v748 = vld [vmem:[%s746 + $0x4] sm:$0xf]
      %v749 = vld [vmem:[%s746 + $0xc] sm:$0xf]
      %v750 = vld [vmem:[%s746 + $0x10] sm:$0xf]
      %v751 = vld [vmem:[%s746 + $0x18] sm:$0xf]
      %v752 = vld [vmem:[%s746 + $0x1c] sm:$0xf]
      %v753 = vld [vmem:[%s746 + $0x24] sm:$0xf]
      %v754 = vld [vmem:[%s746 + $0x28] sm:$0xf]
      %v755 = vld [vmem:[%s746 + $0x30] sm:$0xf]
      %v756 = vld [vmem:[%s746 + $0x34] sm:$0xf]
      %v757 = vld [vmem:[%s746 + $0x3c] sm:$0xf]
      %v758 = vld [vmem:[%s746 + $0x40] sm:$0xf]
      %v759 = vld [vmem:[%s746 + $0x48] sm:$0xf]
      %v760 = vld [vmem:[%s746 + $0x4c] sm:$0xf]
      %v761 = vld [vmem:[%s746 + $0x54] sm:$0xf]
      %v762 = vld [vmem:[%s746 + $0x58] sm:$0xf]
      %v763 = vld [vmem:[%s746 + $0x60] sm:$0xf]
      %v764 = vld [vmem:[%s746 + $0x64] sm:$0xf]
      %v765 = vld [vmem:[%s746 + $0x6c] sm:$0xf]
      %v766 = vld [vmem:[%s746 + $0x70] sm:$0xf]
      %v767 = vld [vmem:[%s746 + $0x78] sm:$0xf]
      %v768 = vld [vmem:[%s746 + $0x7c] sm:$0xf]
      %v769 = vld [vmem:[%s746 + $0x84] sm:$0xf]
      %v770 = vld [vmem:[%s746 + $0x88] sm:$0xf]
      %v771 = vld [vmem:[%s746 + $0x90] sm:$0xf]
      %v772 = vld [vmem:[%s746 + $0x94] sm:$0xf]
      %v773 = vld [vmem:[%s746 + $0x9c] sm:$0xf]
      %v774 = vld [vmem:[%s746 + $0xa0] sm:$0xf]
      %v775 = vld [vmem:[%s746 + $0xa8] sm:$0xf]
      %v776 = vld [vmem:[%s746 + $0xac] sm:$0xf]
      %v777 = vld [vmem:[%s746 + $0xb4] sm:$0xf]
      %v778 = vld [vmem:[%s746 + $0xb8] sm:$0xf]
      %v779 = vmax.bf16 %v714, %v747
      %v780 = vmax.bf16 %v715, %v748
      %v781 = vmax.bf16 %v716, %v749
      %v782 = vmax.bf16 %v717, %v750
      %v783 = vmax.bf16 %v718, %v751
      %v784 = vmax.bf16 %v719, %v752
      %v785 = vmax.bf16 %v720, %v753
      %v786 = vmax.bf16 %v721, %v754
      %v787 = vmax.bf16 %v722, %v755
      %v788 = vmax.bf16 %v723, %v756
      %v789 = vmax.bf16 %v724, %v757
      %v790 = vmax.bf16 %v725, %v758
      %v791 = vmax.bf16 %v726, %v759
      %v792 = vmax.bf16 %v727, %v760
      %v793 = vmax.bf16 %v728, %v761
      %v794 = vmax.bf16 %v729, %v762
      %v795 = vmax.bf16 %v730, %v763
      %v796 = vmax.bf16 %v731, %v764
      %v797 = vmax.bf16 %v732, %v765
      %v798 = vmax.bf16 %v733, %v766
      %v799 = vmax.bf16 %v734, %v767
      %v800 = vmax.bf16 %v735, %v768
      %v801 = vmax.bf16 %v736, %v769
      %v802 = vmax.bf16 %v737, %v770
      %v803 = vmax.bf16 %v738, %v771
      %v804 = vmax.bf16 %v739, %v772
      %v805 = vmax.bf16 %v740, %v773
      %v806 = vmax.bf16 %v741, %v774
      %v807 = vmax.bf16 %v742, %v775
      %v808 = vmax.bf16 %v743, %v776
      %v809 = vmax.bf16 %v744, %v777
      %v810 = vmax.bf16 %v745, %v778
      %v811 = vld [vmem:[%s681 + $0x8] sm:$0x1]
      %v812 = vld [vmem:[%s681 + $0x14] sm:$0x1]
      %v813 = vld [vmem:[%s681 + $0x20] sm:$0x1]
      %v814 = vld [vmem:[%s681 + $0x2c] sm:$0x1]
      %v815 = vld [vmem:[%s681 + $0x38] sm:$0x1]
      %v816 = vld [vmem:[%s681 + $0x44] sm:$0x1]
      %v817 = vld [vmem:[%s681 + $0x50] sm:$0x1]
      %v818 = vld [vmem:[%s681 + $0x5c] sm:$0x1]
      %v819 = vld [vmem:[%s681 + $0x68] sm:$0x1]
      %v820 = vld [vmem:[%s681 + $0x74] sm:$0x1]
      %v821 = vld [vmem:[%s681 + $0x80] sm:$0x1]
      %v822 = vld [vmem:[%s681 + $0x8c] sm:$0x1]
      %v823 = vld [vmem:[%s681 + $0x98] sm:$0x1]
      %v824 = vld [vmem:[%s681 + $0xa4] sm:$0x1]
      %v825 = vld [vmem:[%s681 + $0xb0] sm:$0x1]
      %v826 = vld [vmem:[%s681 + $0xbc] sm:$0x1]
      %v828 = vshrl.u32 %v682, 16
      %v830 = vrot.slane %v828, 4
      %v831 = vshll.u32 %v682, 16
      %v833 = vrot.slane %v831, 5
      %v834 = vor.u32 %v830, %v833
      %v835 = vrot.slane %v834, 4
      %v837 = vshll.u32 %v683, 16
      %v839 = vrot.slane %v837, 5
      %v840 = vsel %vm232, %v835, %v839
      %v841 = vshrl.u32 %v683, 16
      %v843 = vrot.slane %v841, 4
      %v844 = vor.u32 %v843, %v839
      %v845 = vrot.slane %v844, 4
      %v847 = vshll.u32 %v811, 16
      %v849 = vrot.slane %v847, 5
      %v850 = vsel %vm232, %v845, %v849
      %v852 = vshrl.u32 %v684, 16
      %v854 = vrot.slane %v852, 4
      %v855 = vshll.u32 %v684, 16
      %v857 = vrot.slane %v855, 5
      %v858 = vor.u32 %v854, %v857
      %v859 = vrot.slane %v858, 4
      %v861 = vshll.u32 %v685, 16
      %v863 = vrot.slane %v861, 5
      %v864 = vsel %vm232, %v859, %v863
      %v865 = vshrl.u32 %v685, 16
      %v867 = vrot.slane %v865, 4
      %v868 = vor.u32 %v867, %v863
      %v869 = vrot.slane %v868, 4
      %v871 = vshll.u32 %v812, 16
      %v873 = vrot.slane %v871, 5
      %v874 = vsel %vm232, %v869, %v873
      %v876 = vshrl.u32 %v686, 16
      %v878 = vrot.slane %v876, 4
      %v879 = vshll.u32 %v686, 16
      %v881 = vrot.slane %v879, 5
      %v882 = vor.u32 %v878, %v881
      %v883 = vrot.slane %v882, 4
      %v885 = vshll.u32 %v687, 16
      %v887 = vrot.slane %v885, 5
      %v888 = vsel %vm232, %v883, %v887
      %v889 = vshrl.u32 %v687, 16
      %v891 = vrot.slane %v889, 4
      %v892 = vor.u32 %v891, %v887
      %v893 = vrot.slane %v892, 4
      %v895 = vshll.u32 %v813, 16
      %v897 = vrot.slane %v895, 5
      %v898 = vsel %vm232, %v893, %v897
      %v900 = vshrl.u32 %v688, 16
      %v902 = vrot.slane %v900, 4
      %v903 = vshll.u32 %v688, 16
      %v905 = vrot.slane %v903, 5
      %v906 = vor.u32 %v902, %v905
      %v907 = vrot.slane %v906, 4
      %v909 = vshll.u32 %v689, 16
      %v911 = vrot.slane %v909, 5
      %v912 = vsel %vm232, %v907, %v911
      %v913 = vshrl.u32 %v689, 16
      %v915 = vrot.slane %v913, 4
      %v916 = vor.u32 %v915, %v911
      %v917 = vrot.slane %v916, 4
      %v919 = vshll.u32 %v814, 16
      %v921 = vrot.slane %v919, 5
      %v922 = vsel %vm232, %v917, %v921
      %v924 = vshrl.u32 %v690, 16
      %v926 = vrot.slane %v924, 4
      %v927 = vshll.u32 %v690, 16
      %v929 = vrot.slane %v927, 5
      %v930 = vor.u32 %v926, %v929
      %v931 = vrot.slane %v930, 4
      %v933 = vshll.u32 %v691, 16
      %v935 = vrot.slane %v933, 5
      %v936 = vsel %vm232, %v931, %v935
      %v937 = vshrl.u32 %v691, 16
      %v939 = vrot.slane %v937, 4
      %v940 = vor.u32 %v939, %v935
      %v941 = vrot.slane %v940, 4
      %v943 = vshll.u32 %v815, 16
      %v945 = vrot.slane %v943, 5
      %v946 = vsel %vm232, %v941, %v945
      %v948 = vshrl.u32 %v692, 16
      %v950 = vrot.slane %v948, 4
      %v951 = vshll.u32 %v692, 16
      %v953 = vrot.slane %v951, 5
      %v954 = vor.u32 %v950, %v953
      %v955 = vrot.slane %v954, 4
      %v957 = vshll.u32 %v693, 16
      %v959 = vrot.slane %v957, 5
      %v960 = vsel %vm232, %v955, %v959
      %v961 = vshrl.u32 %v693, 16
      %v963 = vrot.slane %v961, 4
      %v964 = vor.u32 %v963, %v959
      %v965 = vrot.slane %v964, 4
      %v967 = vshll.u32 %v816, 16
      %v969 = vrot.slane %v967, 5
      %v970 = vsel %vm232, %v965, %v969
      %v972 = vshrl.u32 %v694, 16
      %v974 = vrot.slane %v972, 4
      %v975 = vshll.u32 %v694, 16
      %v977 = vrot.slane %v975, 5
      %v978 = vor.u32 %v974, %v977
      %v979 = vrot.slane %v978, 4
      %v981 = vshll.u32 %v695, 16
      %v983 = vrot.slane %v981, 5
      %v984 = vsel %vm232, %v979, %v983
      %v985 = vshrl.u32 %v695, 16
      %v987 = vrot.slane %v985, 4
      %v988 = vor.u32 %v987, %v983
      %v989 = vrot.slane %v988, 4
      %v991 = vshll.u32 %v817, 16
      %v993 = vrot.slane %v991, 5
      %v994 = vsel %vm232, %v989, %v993
      %v996 = vshrl.u32 %v696, 16
      %v998 = vrot.slane %v996, 4
      %v999 = vshll.u32 %v696, 16
      %v1001 = vrot.slane %v999, 5
      %v1002 = vor.u32 %v998, %v1001
      %v1003 = vrot.slane %v1002, 4
      %v1005 = vshll.u32 %v697, 16
      %v1007 = vrot.slane %v1005, 5
      %v1008 = vsel %vm232, %v1003, %v1007
      %v1009 = vshrl.u32 %v697, 16
      %v1011 = vrot.slane %v1009, 4
      %v1012 = vor.u32 %v1011, %v1007
      %v1013 = vrot.slane %v1012, 4
      %v1015 = vshll.u32 %v818, 16
      %v1017 = vrot.slane %v1015, 5
      %v1018 = vsel %vm232, %v1013, %v1017
      %v1020 = vshrl.u32 %v698, 16
      %v1022 = vrot.slane %v1020, 4
      %v1023 = vshll.u32 %v698, 16
      %v1025 = vrot.slane %v1023, 5
      %v1026 = vor.u32 %v1022, %v1025
      %v1027 = vrot.slane %v1026, 4
      %v1029 = vshll.u32 %v699, 16
      %v1031 = vrot.slane %v1029, 5
      %v1032 = vsel %vm232, %v1027, %v1031
      %v1033 = vshrl.u32 %v699, 16
      %v1035 = vrot.slane %v1033, 4
      %v1036 = vor.u32 %v1035, %v1031
      %v1037 = vrot.slane %v1036, 4
      %v1039 = vshll.u32 %v819, 16
      %v1041 = vrot.slane %v1039, 5
      %v1042 = vsel %vm232, %v1037, %v1041
      %v1044 = vshrl.u32 %v700, 16
      %v1046 = vrot.slane %v1044, 4
      %v1047 = vshll.u32 %v700, 16
      %v1049 = vrot.slane %v1047, 5
      %v1050 = vor.u32 %v1046, %v1049
      %v1051 = vrot.slane %v1050, 4
      %v1053 = vshll.u32 %v701, 16
      %v1055 = vrot.slane %v1053, 5
      %v1056 = vsel %vm232, %v1051, %v1055
      %v1057 = vshrl.u32 %v701, 16
      %v1059 = vrot.slane %v1057, 4
      %v1060 = vor.u32 %v1059, %v1055
      %v1061 = vrot.slane %v1060, 4
      %v1063 = vshll.u32 %v820, 16
      %v1065 = vrot.slane %v1063, 5
      %v1066 = vsel %vm232, %v1061, %v1065
      %v1068 = vshrl.u32 %v702, 16
      %v1070 = vrot.slane %v1068, 4
      %v1071 = vshll.u32 %v702, 16
      %v1073 = vrot.slane %v1071, 5
      %v1074 = vor.u32 %v1070, %v1073
      %v1075 = vrot.slane %v1074, 4
      %v1077 = vshll.u32 %v703, 16
      %v1079 = vrot.slane %v1077, 5
      %v1080 = vsel %vm232, %v1075, %v1079
      %v1081 = vshrl.u32 %v703, 16
      %v1083 = vrot.slane %v1081, 4
      %v1084 = vor.u32 %v1083, %v1079
      %v1085 = vrot.slane %v1084, 4
      %v1087 = vshll.u32 %v821, 16
      %v1089 = vrot.slane %v1087, 5
      %v1090 = vsel %vm232, %v1085, %v1089
      %v1092 = vshrl.u32 %v704, 16
      %v1094 = vrot.slane %v1092, 4
      %v1095 = vshll.u32 %v704, 16
      %v1097 = vrot.slane %v1095, 5
      %v1098 = vor.u32 %v1094, %v1097
      %v1099 = vrot.slane %v1098, 4
      %v1101 = vshll.u32 %v705, 16
      %v1103 = vrot.slane %v1101, 5
      %v1104 = vsel %vm232, %v1099, %v1103
      %v1105 = vshrl.u32 %v705, 16
      %v1107 = vrot.slane %v1105, 4
      %v1108 = vor.u32 %v1107, %v1103
      %v1109 = vrot.slane %v1108, 4
      %v1111 = vshll.u32 %v822, 16
      %v1113 = vrot.slane %v1111, 5
      %v1114 = vsel %vm232, %v1109, %v1113
      %v1116 = vshrl.u32 %v706, 16
      %v1118 = vrot.slane %v1116, 4
      %v1119 = vshll.u32 %v706, 16
      %v1121 = vrot.slane %v1119, 5
      %v1122 = vor.u32 %v1118, %v1121
      %v1123 = vrot.slane %v1122, 4
      %v1125 = vshll.u32 %v707, 16
      %v1127 = vrot.slane %v1125, 5
      %v1128 = vsel %vm232, %v1123, %v1127
      %v1129 = vshrl.u32 %v707, 16
      %v1131 = vrot.slane %v1129, 4
      %v1132 = vor.u32 %v1131, %v1127
      %v1133 = vrot.slane %v1132, 4
      %v1135 = vshll.u32 %v823, 16
      %v1137 = vrot.slane %v1135, 5
      %v1138 = vsel %vm232, %v1133, %v1137
      %v1140 = vshrl.u32 %v708, 16
      %v1142 = vrot.slane %v1140, 4
      %v1143 = vshll.u32 %v708, 16
      %v1145 = vrot.slane %v1143, 5
      %v1146 = vor.u32 %v1142, %v1145
      %v1147 = vrot.slane %v1146, 4
      %v1149 = vshll.u32 %v709, 16
      %v1151 = vrot.slane %v1149, 5
      %v1152 = vsel %vm232, %v1147, %v1151
      %v1153 = vshrl.u32 %v709, 16
      %v1155 = vrot.slane %v1153, 4
      %v1156 = vor.u32 %v1155, %v1151
      %v1157 = vrot.slane %v1156, 4
      %v1159 = vshll.u32 %v824, 16
      %v1161 = vrot.slane %v1159, 5
      %v1162 = vsel %vm232, %v1157, %v1161
      %v1164 = vshrl.u32 %v710, 16
      %v1166 = vrot.slane %v1164, 4
      %v1167 = vshll.u32 %v710, 16
      %v1169 = vrot.slane %v1167, 5
      %v1170 = vor.u32 %v1166, %v1169
      %v1171 = vrot.slane %v1170, 4
      %v1173 = vshll.u32 %v711, 16
      %v1175 = vrot.slane %v1173, 5
      %v1176 = vsel %vm232, %v1171, %v1175
      %v1177 = vshrl.u32 %v711, 16
      %v1179 = vrot.slane %v1177, 4
      %v1180 = vor.u32 %v1179, %v1175
      %v1181 = vrot.slane %v1180, 4
      %v1183 = vshll.u32 %v825, 16
      %v1185 = vrot.slane %v1183, 5
      %v1186 = vsel %vm232, %v1181, %v1185
      %v1188 = vshrl.u32 %v712, 16
      %v1190 = vrot.slane %v1188, 4
      %v1191 = vshll.u32 %v712, 16
      %v1193 = vrot.slane %v1191, 5
      %v1194 = vor.u32 %v1190, %v1193
      %v1195 = vrot.slane %v1194, 4
      %v1197 = vshll.u32 %v713, 16
      %v1199 = vrot.slane %v1197, 5
      %v1200 = vsel %vm232, %v1195, %v1199
      %v1201 = vshrl.u32 %v713, 16
      %v1203 = vrot.slane %v1201, 4
      %v1204 = vor.u32 %v1203, %v1199
      %v1205 = vrot.slane %v1204, 4
      %v1207 = vshll.u32 %v826, 16
      %v1209 = vrot.slane %v1207, 5
      %v1210 = vsel %vm232, %v1205, %v1209
      %v1243 = vmax.bf16 %v779, %v840
      %v1244 = vmax.bf16 %v780, %v850
      %v1245 = vmax.bf16 %v781, %v864
      %v1246 = vmax.bf16 %v782, %v874
      %v1247 = vmax.bf16 %v783, %v888
      %v1248 = vmax.bf16 %v784, %v898
      %v1249 = vmax.bf16 %v785, %v912
      %v1250 = vmax.bf16 %v786, %v922
      %v1251 = vmax.bf16 %v787, %v936
      %v1252 = vmax.bf16 %v788, %v946
      %v1253 = vmax.bf16 %v789, %v960
      %v1254 = vmax.bf16 %v790, %v970
      %v1255 = vmax.bf16 %v791, %v984
      %v1256 = vmax.bf16 %v792, %v994
      %v1257 = vmax.bf16 %v793, %v1008
      %v1258 = vmax.bf16 %v794, %v1018
      %v1259 = vmax.bf16 %v795, %v1032
      %v1260 = vmax.bf16 %v796, %v1042
      %v1261 = vmax.bf16 %v797, %v1056
      %v1262 = vmax.bf16 %v798, %v1066
      %v1263 = vmax.bf16 %v799, %v1080
      %v1264 = vmax.bf16 %v800, %v1090
      %v1265 = vmax.bf16 %v801, %v1104
      %v1266 = vmax.bf16 %v802, %v1114
      %v1267 = vmax.bf16 %v803, %v1128
      %v1268 = vmax.bf16 %v804, %v1138
      %v1269 = vmax.bf16 %v805, %v1152
      %v1270 = vmax.bf16 %v806, %v1162
      %v1271 = vmax.bf16 %v807, %v1176
      %v1272 = vmax.bf16 %v808, %v1186
      %v1273 = vmax.bf16 %v809, %v1200
      %v1274 = vmax.bf16 %v810, %v1210
      %s1275 = scalar_lea.vmem %s111, 12
      %v1276 = vld [vmem:[%s1275] sm:$0xf]
      %v1277 = vld [vmem:[%s1275 + $0x4] sm:$0xf]
      %v1278 = vld [vmem:[%s1275 + $0xc] sm:$0xf]
      %v1279 = vld [vmem:[%s1275 + $0x10] sm:$0xf]
      %v1280 = vld [vmem:[%s1275 + $0x18] sm:$0xf]
      %v1281 = vld [vmem:[%s1275 + $0x1c] sm:$0xf]
      %v1282 = vld [vmem:[%s1275 + $0x24] sm:$0xf]
      %v1283 = vld [vmem:[%s1275 + $0x28] sm:$0xf]
      %v1284 = vld [vmem:[%s1275 + $0x30] sm:$0xf]
      %v1285 = vld [vmem:[%s1275 + $0x34] sm:$0xf]
      %v1286 = vld [vmem:[%s1275 + $0x3c] sm:$0xf]
      %v1287 = vld [vmem:[%s1275 + $0x40] sm:$0xf]
      %v1288 = vld [vmem:[%s1275 + $0x48] sm:$0xf]
      %v1289 = vld [vmem:[%s1275 + $0x4c] sm:$0xf]
      %v1290 = vld [vmem:[%s1275 + $0x54] sm:$0xf]
      %v1291 = vld [vmem:[%s1275 + $0x58] sm:$0xf]
      %v1292 = vld [vmem:[%s1275 + $0x60] sm:$0xf]
      %v1293 = vld [vmem:[%s1275 + $0x64] sm:$0xf]
      %v1294 = vld [vmem:[%s1275 + $0x6c] sm:$0xf]
      %v1295 = vld [vmem:[%s1275 + $0x70] sm:$0xf]
      %v1296 = vld [vmem:[%s1275 + $0x78] sm:$0xf]
      %v1297 = vld [vmem:[%s1275 + $0x7c] sm:$0xf]
      %v1298 = vld [vmem:[%s1275 + $0x84] sm:$0xf]
      %v1299 = vld [vmem:[%s1275 + $0x88] sm:$0xf]
      %v1300 = vld [vmem:[%s1275 + $0x90] sm:$0xf]
      %v1301 = vld [vmem:[%s1275 + $0x94] sm:$0xf]
      %v1302 = vld [vmem:[%s1275 + $0x9c] sm:$0xf]
      %v1303 = vld [vmem:[%s1275 + $0xa0] sm:$0xf]
      %v1304 = vld [vmem:[%s1275 + $0xa8] sm:$0xf]
      %v1305 = vld [vmem:[%s1275 + $0xac] sm:$0xf]
      %v1306 = vld [vmem:[%s1275 + $0xb4] sm:$0xf]
      %v1307 = vld [vmem:[%s1275 + $0xb8] sm:$0xf]
      %v1308 = vmax.bf16 %v1243, %v1276
      %v1309 = vmax.bf16 %v1244, %v1277
      %v1310 = vmax.bf16 %v1245, %v1278
      %v1311 = vmax.bf16 %v1246, %v1279
      %v1312 = vmax.bf16 %v1247, %v1280
      %v1313 = vmax.bf16 %v1248, %v1281
      %v1314 = vmax.bf16 %v1249, %v1282
      %v1315 = vmax.bf16 %v1250, %v1283
      %v1316 = vmax.bf16 %v1251, %v1284
      %v1317 = vmax.bf16 %v1252, %v1285
      %v1318 = vmax.bf16 %v1253, %v1286
      %v1319 = vmax.bf16 %v1254, %v1287
      %v1320 = vmax.bf16 %v1255, %v1288
      %v1321 = vmax.bf16 %v1256, %v1289
      %v1322 = vmax.bf16 %v1257, %v1290
      %v1323 = vmax.bf16 %v1258, %v1291
      %v1324 = vmax.bf16 %v1259, %v1292
      %v1325 = vmax.bf16 %v1260, %v1293
      %v1326 = vmax.bf16 %v1261, %v1294
      %v1327 = vmax.bf16 %v1262, %v1295
      %v1328 = vmax.bf16 %v1263, %v1296
      %v1329 = vmax.bf16 %v1264, %v1297
      %v1330 = vmax.bf16 %v1265, %v1298
      %v1331 = vmax.bf16 %v1266, %v1299
      %v1332 = vmax.bf16 %v1267, %v1300
      %v1333 = vmax.bf16 %v1268, %v1301
      %v1334 = vmax.bf16 %v1269, %v1302
      %v1335 = vmax.bf16 %v1270, %v1303
      %v1336 = vmax.bf16 %v1271, %v1304
      %v1337 = vmax.bf16 %v1272, %v1305
      %v1338 = vmax.bf16 %v1273, %v1306
      %v1339 = vmax.bf16 %v1274, %v1307
      %s1340 = scalar_lea.vmem %s111, 216
      %v1341 = vld [vmem:[%s1340] sm:$0xf]
      %v1342 = vld [vmem:[%s1340 + $0x4] sm:$0xf]
      %v1343 = vld [vmem:[%s1340 + $0xc] sm:$0xf]
      %v1344 = vld [vmem:[%s1340 + $0x10] sm:$0xf]
      %v1345 = vld [vmem:[%s1340 + $0x18] sm:$0xf]
      %v1346 = vld [vmem:[%s1340 + $0x1c] sm:$0xf]
      %v1347 = vld [vmem:[%s1340 + $0x24] sm:$0xf]
      %v1348 = vld [vmem:[%s1340 + $0x28] sm:$0xf]
      %v1349 = vld [vmem:[%s1340 + $0x30] sm:$0xf]
      %v1350 = vld [vmem:[%s1340 + $0x34] sm:$0xf]
      %v1351 = vld [vmem:[%s1340 + $0x3c] sm:$0xf]
      %v1352 = vld [vmem:[%s1340 + $0x40] sm:$0xf]
      %v1353 = vld [vmem:[%s1340 + $0x48] sm:$0xf]
      %v1354 = vld [vmem:[%s1340 + $0x4c] sm:$0xf]
      %v1355 = vld [vmem:[%s1340 + $0x54] sm:$0xf]
      %v1356 = vld [vmem:[%s1340 + $0x58] sm:$0xf]
      %v1357 = vld [vmem:[%s1340 + $0x60] sm:$0xf]
      %v1358 = vld [vmem:[%s1340 + $0x64] sm:$0xf]
      %v1359 = vld [vmem:[%s1340 + $0x6c] sm:$0xf]
      %v1360 = vld [vmem:[%s1340 + $0x70] sm:$0xf]
      %v1361 = vld [vmem:[%s1340 + $0x78] sm:$0xf]
      %v1362 = vld [vmem:[%s1340 + $0x7c] sm:$0xf]
      %v1363 = vld [vmem:[%s1340 + $0x84] sm:$0xf]
      %v1364 = vld [vmem:[%s1340 + $0x88] sm:$0xf]
      %v1365 = vld [vmem:[%s1340 + $0x90] sm:$0xf]
      %v1366 = vld [vmem:[%s1340 + $0x94] sm:$0xf]
      %v1367 = vld [vmem:[%s1340 + $0x9c] sm:$0xf]
      %v1368 = vld [vmem:[%s1340 + $0xa0] sm:$0xf]
      %v1369 = vld [vmem:[%s1340 + $0xa8] sm:$0xf]
      %v1370 = vld [vmem:[%s1340 + $0xac] sm:$0xf]
      %v1371 = vld [vmem:[%s1340 + $0xb4] sm:$0xf]
      %v1372 = vld [vmem:[%s1340 + $0xb8] sm:$0xf]
      %v1373 = vmax.bf16 %v1308, %v1341
      %v1374 = vmax.bf16 %v1309, %v1342
      %v1375 = vmax.bf16 %v1310, %v1343
      %v1376 = vmax.bf16 %v1311, %v1344
      %v1377 = vmax.bf16 %v1312, %v1345
      %v1378 = vmax.bf16 %v1313, %v1346
      %v1379 = vmax.bf16 %v1314, %v1347
      %v1380 = vmax.bf16 %v1315, %v1348
      %v1381 = vmax.bf16 %v1316, %v1349
      %v1382 = vmax.bf16 %v1317, %v1350
      %v1383 = vmax.bf16 %v1318, %v1351
      %v1384 = vmax.bf16 %v1319, %v1352
      %v1385 = vmax.bf16 %v1320, %v1353
      %v1386 = vmax.bf16 %v1321, %v1354
      %v1387 = vmax.bf16 %v1322, %v1355
      %v1388 = vmax.bf16 %v1323, %v1356
      %v1389 = vmax.bf16 %v1324, %v1357
      %v1390 = vmax.bf16 %v1325, %v1358
      %v1391 = vmax.bf16 %v1326, %v1359
      %v1392 = vmax.bf16 %v1327, %v1360
      %v1393 = vmax.bf16 %v1328, %v1361
      %v1394 = vmax.bf16 %v1329, %v1362
      %v1395 = vmax.bf16 %v1330, %v1363
      %v1396 = vmax.bf16 %v1331, %v1364
      %v1397 = vmax.bf16 %v1332, %v1365
      %v1398 = vmax.bf16 %v1333, %v1366
      %v1399 = vmax.bf16 %v1334, %v1367
      %v1400 = vmax.bf16 %v1335, %v1368
      %v1401 = vmax.bf16 %v1336, %v1369
      %v1402 = vmax.bf16 %v1337, %v1370
      %v1403 = vmax.bf16 %v1338, %v1371
      %v1404 = vmax.bf16 %v1339, %v1372
      %v1405 = vld [vmem:[%s1275 + $0x8] sm:$0x1]
      %v1406 = vld [vmem:[%s1275 + $0x14] sm:$0x1]
      %v1407 = vld [vmem:[%s1275 + $0x20] sm:$0x1]
      %v1408 = vld [vmem:[%s1275 + $0x2c] sm:$0x1]
      %v1409 = vld [vmem:[%s1275 + $0x38] sm:$0x1]
      %v1410 = vld [vmem:[%s1275 + $0x44] sm:$0x1]
      %v1411 = vld [vmem:[%s1275 + $0x50] sm:$0x1]
      %v1412 = vld [vmem:[%s1275 + $0x5c] sm:$0x1]
      %v1413 = vld [vmem:[%s1275 + $0x68] sm:$0x1]
      %v1414 = vld [vmem:[%s1275 + $0x74] sm:$0x1]
      %v1415 = vld [vmem:[%s1275 + $0x80] sm:$0x1]
      %v1416 = vld [vmem:[%s1275 + $0x8c] sm:$0x1]
      %v1417 = vld [vmem:[%s1275 + $0x98] sm:$0x1]
      %v1418 = vld [vmem:[%s1275 + $0xa4] sm:$0x1]
      %v1419 = vld [vmem:[%s1275 + $0xb0] sm:$0x1]
      %v1420 = vld [vmem:[%s1275 + $0xbc] sm:$0x1]
      %v1422 = vshrl.u32 %v1276, 16
      %v1424 = vrot.slane %v1422, 4
      %v1425 = vshll.u32 %v1276, 16
      %v1427 = vrot.slane %v1425, 5
      %v1428 = vor.u32 %v1424, %v1427
      %v1429 = vrot.slane %v1428, 4
      %v1431 = vshll.u32 %v1277, 16
      %v1433 = vrot.slane %v1431, 5
      %v1434 = vsel %vm232, %v1429, %v1433
      %v1435 = vshrl.u32 %v1277, 16
      %v1437 = vrot.slane %v1435, 4
      %v1438 = vor.u32 %v1437, %v1433
      %v1439 = vrot.slane %v1438, 4
      %v1441 = vshll.u32 %v1405, 16
      %v1443 = vrot.slane %v1441, 5
      %v1444 = vsel %vm232, %v1439, %v1443
      %v1446 = vshrl.u32 %v1278, 16
      %v1448 = vrot.slane %v1446, 4
      %v1449 = vshll.u32 %v1278, 16
      %v1451 = vrot.slane %v1449, 5
      %v1452 = vor.u32 %v1448, %v1451
      %v1453 = vrot.slane %v1452, 4
      %v1455 = vshll.u32 %v1279, 16
      %v1457 = vrot.slane %v1455, 5
      %v1458 = vsel %vm232, %v1453, %v1457
      %v1459 = vshrl.u32 %v1279, 16
      %v1461 = vrot.slane %v1459, 4
      %v1462 = vor.u32 %v1461, %v1457
      %v1463 = vrot.slane %v1462, 4
      %v1465 = vshll.u32 %v1406, 16
      %v1467 = vrot.slane %v1465, 5
      %v1468 = vsel %vm232, %v1463, %v1467
      %v1470 = vshrl.u32 %v1280, 16
      %v1472 = vrot.slane %v1470, 4
      %v1473 = vshll.u32 %v1280, 16
      %v1475 = vrot.slane %v1473, 5
      %v1476 = vor.u32 %v1472, %v1475
      %v1477 = vrot.slane %v1476, 4
      %v1479 = vshll.u32 %v1281, 16
      %v1481 = vrot.slane %v1479, 5
      %v1482 = vsel %vm232, %v1477, %v1481
      %v1483 = vshrl.u32 %v1281, 16
      %v1485 = vrot.slane %v1483, 4
      %v1486 = vor.u32 %v1485, %v1481
      %v1487 = vrot.slane %v1486, 4
      %v1489 = vshll.u32 %v1407, 16
      %v1491 = vrot.slane %v1489, 5
      %v1492 = vsel %vm232, %v1487, %v1491
      %v1494 = vshrl.u32 %v1282, 16
      %v1496 = vrot.slane %v1494, 4
      %v1497 = vshll.u32 %v1282, 16
      %v1499 = vrot.slane %v1497, 5
      %v1500 = vor.u32 %v1496, %v1499
      %v1501 = vrot.slane %v1500, 4
      %v1503 = vshll.u32 %v1283, 16
      %v1505 = vrot.slane %v1503, 5
      %v1506 = vsel %vm232, %v1501, %v1505
      %v1507 = vshrl.u32 %v1283, 16
      %v1509 = vrot.slane %v1507, 4
      %v1510 = vor.u32 %v1509, %v1505
      %v1511 = vrot.slane %v1510, 4
      %v1513 = vshll.u32 %v1408, 16
      %v1515 = vrot.slane %v1513, 5
      %v1516 = vsel %vm232, %v1511, %v1515
      %v1518 = vshrl.u32 %v1284, 16
      %v1520 = vrot.slane %v1518, 4
      %v1521 = vshll.u32 %v1284, 16
      %v1523 = vrot.slane %v1521, 5
      %v1524 = vor.u32 %v1520, %v1523
      %v1525 = vrot.slane %v1524, 4
      %v1527 = vshll.u32 %v1285, 16
      %v1529 = vrot.slane %v1527, 5
      %v1530 = vsel %vm232, %v1525, %v1529
      %v1531 = vshrl.u32 %v1285, 16
      %v1533 = vrot.slane %v1531, 4
      %v1534 = vor.u32 %v1533, %v1529
      %v1535 = vrot.slane %v1534, 4
      %v1537 = vshll.u32 %v1409, 16
      %v1539 = vrot.slane %v1537, 5
      %v1540 = vsel %vm232, %v1535, %v1539
      %v1542 = vshrl.u32 %v1286, 16
      %v1544 = vrot.slane %v1542, 4
      %v1545 = vshll.u32 %v1286, 16
      %v1547 = vrot.slane %v1545, 5
      %v1548 = vor.u32 %v1544, %v1547
      %v1549 = vrot.slane %v1548, 4
      %v1551 = vshll.u32 %v1287, 16
      %v1553 = vrot.slane %v1551, 5
      %v1554 = vsel %vm232, %v1549, %v1553
      %v1555 = vshrl.u32 %v1287, 16
      %v1557 = vrot.slane %v1555, 4
      %v1558 = vor.u32 %v1557, %v1553
      %v1559 = vrot.slane %v1558, 4
      %v1561 = vshll.u32 %v1410, 16
      %v1563 = vrot.slane %v1561, 5
      %v1564 = vsel %vm232, %v1559, %v1563
      %v1566 = vshrl.u32 %v1288, 16
      %v1568 = vrot.slane %v1566, 4
      %v1569 = vshll.u32 %v1288, 16
      %v1571 = vrot.slane %v1569, 5
      %v1572 = vor.u32 %v1568, %v1571
      %v1573 = vrot.slane %v1572, 4
      %v1575 = vshll.u32 %v1289, 16
      %v1577 = vrot.slane %v1575, 5
      %v1578 = vsel %vm232, %v1573, %v1577
      %v1579 = vshrl.u32 %v1289, 16
      %v1581 = vrot.slane %v1579, 4
      %v1582 = vor.u32 %v1581, %v1577
      %v1583 = vrot.slane %v1582, 4
      %v1585 = vshll.u32 %v1411, 16
      %v1587 = vrot.slane %v1585, 5
      %v1588 = vsel %vm232, %v1583, %v1587
      %v1590 = vshrl.u32 %v1290, 16
      %v1592 = vrot.slane %v1590, 4
      %v1593 = vshll.u32 %v1290, 16
      %v1595 = vrot.slane %v1593, 5
      %v1596 = vor.u32 %v1592, %v1595
      %v1597 = vrot.slane %v1596, 4
      %v1599 = vshll.u32 %v1291, 16
      %v1601 = vrot.slane %v1599, 5
      %v1602 = vsel %vm232, %v1597, %v1601
      %v1603 = vshrl.u32 %v1291, 16
      %v1605 = vrot.slane %v1603, 4
      %v1606 = vor.u32 %v1605, %v1601
      %v1607 = vrot.slane %v1606, 4
      %v1609 = vshll.u32 %v1412, 16
      %v1611 = vrot.slane %v1609, 5
      %v1612 = vsel %vm232, %v1607, %v1611
      %v1614 = vshrl.u32 %v1292, 16
      %v1616 = vrot.slane %v1614, 4
      %v1617 = vshll.u32 %v1292, 16
      %v1619 = vrot.slane %v1617, 5
      %v1620 = vor.u32 %v1616, %v1619
      %v1621 = vrot.slane %v1620, 4
      %v1623 = vshll.u32 %v1293, 16
      %v1625 = vrot.slane %v1623, 5
      %v1626 = vsel %vm232, %v1621, %v1625
      %v1627 = vshrl.u32 %v1293, 16
      %v1629 = vrot.slane %v1627, 4
      %v1630 = vor.u32 %v1629, %v1625
      %v1631 = vrot.slane %v1630, 4
      %v1633 = vshll.u32 %v1413, 16
      %v1635 = vrot.slane %v1633, 5
      %v1636 = vsel %vm232, %v1631, %v1635
      %v1638 = vshrl.u32 %v1294, 16
      %v1640 = vrot.slane %v1638, 4
      %v1641 = vshll.u32 %v1294, 16
      %v1643 = vrot.slane %v1641, 5
      %v1644 = vor.u32 %v1640, %v1643
      %v1645 = vrot.slane %v1644, 4
      %v1647 = vshll.u32 %v1295, 16
      %v1649 = vrot.slane %v1647, 5
      %v1650 = vsel %vm232, %v1645, %v1649
      %v1651 = vshrl.u32 %v1295, 16
      %v1653 = vrot.slane %v1651, 4
      %v1654 = vor.u32 %v1653, %v1649
      %v1655 = vrot.slane %v1654, 4
      %v1657 = vshll.u32 %v1414, 16
      %v1659 = vrot.slane %v1657, 5
      %v1660 = vsel %vm232, %v1655, %v1659
      %v1662 = vshrl.u32 %v1296, 16
      %v1664 = vrot.slane %v1662, 4
      %v1665 = vshll.u32 %v1296, 16
      %v1667 = vrot.slane %v1665, 5
      %v1668 = vor.u32 %v1664, %v1667
      %v1669 = vrot.slane %v1668, 4
      %v1671 = vshll.u32 %v1297, 16
      %v1673 = vrot.slane %v1671, 5
      %v1674 = vsel %vm232, %v1669, %v1673
      %v1675 = vshrl.u32 %v1297, 16
      %v1677 = vrot.slane %v1675, 4
      %v1678 = vor.u32 %v1677, %v1673
      %v1679 = vrot.slane %v1678, 4
      %v1681 = vshll.u32 %v1415, 16
      %v1683 = vrot.slane %v1681, 5
      %v1684 = vsel %vm232, %v1679, %v1683
      %v1686 = vshrl.u32 %v1298, 16
      %v1688 = vrot.slane %v1686, 4
      %v1689 = vshll.u32 %v1298, 16
      %v1691 = vrot.slane %v1689, 5
      %v1692 = vor.u32 %v1688, %v1691
      %v1693 = vrot.slane %v1692, 4
      %v1695 = vshll.u32 %v1299, 16
      %v1697 = vrot.slane %v1695, 5
      %v1698 = vsel %vm232, %v1693, %v1697
      %v1699 = vshrl.u32 %v1299, 16
      %v1701 = vrot.slane %v1699, 4
      %v1702 = vor.u32 %v1701, %v1697
      %v1703 = vrot.slane %v1702, 4
      %v1705 = vshll.u32 %v1416, 16
      %v1707 = vrot.slane %v1705, 5
      %v1708 = vsel %vm232, %v1703, %v1707
      %v1710 = vshrl.u32 %v1300, 16
      %v1712 = vrot.slane %v1710, 4
      %v1713 = vshll.u32 %v1300, 16
      %v1715 = vrot.slane %v1713, 5
      %v1716 = vor.u32 %v1712, %v1715
      %v1717 = vrot.slane %v1716, 4
      %v1719 = vshll.u32 %v1301, 16
      %v1721 = vrot.slane %v1719, 5
      %v1722 = vsel %vm232, %v1717, %v1721
      %v1723 = vshrl.u32 %v1301, 16
      %v1725 = vrot.slane %v1723, 4
      %v1726 = vor.u32 %v1725, %v1721
      %v1727 = vrot.slane %v1726, 4
      %v1729 = vshll.u32 %v1417, 16
      %v1731 = vrot.slane %v1729, 5
      %v1732 = vsel %vm232, %v1727, %v1731
      %v1734 = vshrl.u32 %v1302, 16
      %v1736 = vrot.slane %v1734, 4
      %v1737 = vshll.u32 %v1302, 16
      %v1739 = vrot.slane %v1737, 5
      %v1740 = vor.u32 %v1736, %v1739
      %v1741 = vrot.slane %v1740, 4
      %v1743 = vshll.u32 %v1303, 16
      %v1745 = vrot.slane %v1743, 5
      %v1746 = vsel %vm232, %v1741, %v1745
      %v1747 = vshrl.u32 %v1303, 16
      %v1749 = vrot.slane %v1747, 4
      %v1750 = vor.u32 %v1749, %v1745
      %v1751 = vrot.slane %v1750, 4
      %v1753 = vshll.u32 %v1418, 16
      %v1755 = vrot.slane %v1753, 5
      %v1756 = vsel %vm232, %v1751, %v1755
      %v1758 = vshrl.u32 %v1304, 16
      %v1760 = vrot.slane %v1758, 4
      %v1761 = vshll.u32 %v1304, 16
      %v1763 = vrot.slane %v1761, 5
      %v1764 = vor.u32 %v1760, %v1763
      %v1765 = vrot.slane %v1764, 4
      %v1767 = vshll.u32 %v1305, 16
      %v1769 = vrot.slane %v1767, 5
      %v1770 = vsel %vm232, %v1765, %v1769
      %v1771 = vshrl.u32 %v1305, 16
      %v1773 = vrot.slane %v1771, 4
      %v1774 = vor.u32 %v1773, %v1769
      %v1775 = vrot.slane %v1774, 4
      %v1777 = vshll.u32 %v1419, 16
      %v1779 = vrot.slane %v1777, 5
      %v1780 = vsel %vm232, %v1775, %v1779
      %v1782 = vshrl.u32 %v1306, 16
      %v1784 = vrot.slane %v1782, 4
      %v1785 = vshll.u32 %v1306, 16
      %v1787 = vrot.slane %v1785, 5
      %v1788 = vor.u32 %v1784, %v1787
      %v1789 = vrot.slane %v1788, 4
      %v1791 = vshll.u32 %v1307, 16
      %v1793 = vrot.slane %v1791, 5
      %v1794 = vsel %vm232, %v1789, %v1793
      %v1795 = vshrl.u32 %v1307, 16
      %v1797 = vrot.slane %v1795, 4
      %v1798 = vor.u32 %v1797, %v1793
      %v1799 = vrot.slane %v1798, 4
      %v1801 = vshll.u32 %v1420, 16
      %v1803 = vrot.slane %v1801, 5
      %v1804 = vsel %vm232, %v1799, %v1803
      %v1837 = vmax.bf16 %v1373, %v1434
      %v1838 = vmax.bf16 %v1374, %v1444
      %v1839 = vmax.bf16 %v1375, %v1458
      %v1840 = vmax.bf16 %v1376, %v1468
      %v1841 = vmax.bf16 %v1377, %v1482
      %v1842 = vmax.bf16 %v1378, %v1492
      %v1843 = vmax.bf16 %v1379, %v1506
      %v1844 = vmax.bf16 %v1380, %v1516
      %v1845 = vmax.bf16 %v1381, %v1530
      %v1846 = vmax.bf16 %v1382, %v1540
      %v1847 = vmax.bf16 %v1383, %v1554
      %v1848 = vmax.bf16 %v1384, %v1564
      %v1849 = vmax.bf16 %v1385, %v1578
      %v1850 = vmax.bf16 %v1386, %v1588
      %v1851 = vmax.bf16 %v1387, %v1602
      %v1852 = vmax.bf16 %v1388, %v1612
      %v1853 = vmax.bf16 %v1389, %v1626
      %v1854 = vmax.bf16 %v1390, %v1636
      %v1855 = vmax.bf16 %v1391, %v1650
      %v1856 = vmax.bf16 %v1392, %v1660
      %v1857 = vmax.bf16 %v1393, %v1674
      %v1858 = vmax.bf16 %v1394, %v1684
      %v1859 = vmax.bf16 %v1395, %v1698
      %v1860 = vmax.bf16 %v1396, %v1708
      %v1861 = vmax.bf16 %v1397, %v1722
      %v1862 = vmax.bf16 %v1398, %v1732
      %v1863 = vmax.bf16 %v1399, %v1746
      %v1864 = vmax.bf16 %v1400, %v1756
      %v1865 = vmax.bf16 %v1401, %v1770
      %v1866 = vmax.bf16 %v1402, %v1780
      %v1867 = vmax.bf16 %v1403, %v1794
      %v1868 = vmax.bf16 %v1404, %v1804
      %1869 = vst [vmem:[%s116] sm:$0xf] %v1837
      %1870 = vst [vmem:[%s116 + $0x4] sm:$0xf] %v1838
      %1871 = vst [vmem:[%s116 + $0x8] sm:$0xf] %v1839
      %1872 = vst [vmem:[%s116 + $0xc] sm:$0xf] %v1840
      %1873 = vst [vmem:[%s116 + $0x10] sm:$0xf] %v1841
      %1874 = vst [vmem:[%s116 + $0x14] sm:$0xf] %v1842
      %1875 = vst [vmem:[%s116 + $0x18] sm:$0xf] %v1843
      %1876 = vst [vmem:[%s116 + $0x1c] sm:$0xf] %v1844
      %1877 = vst [vmem:[%s116 + $0x20] sm:$0xf] %v1845
      %1878 = vst [vmem:[%s116 + $0x24] sm:$0xf] %v1846
      %1879 = vst [vmem:[%s116 + $0x28] sm:$0xf] %v1847
      %1880 = vst [vmem:[%s116 + $0x2c] sm:$0xf] %v1848
      %1881 = vst [vmem:[%s116 + $0x30] sm:$0xf] %v1849
      %1882 = vst [vmem:[%s116 + $0x34] sm:$0xf] %v1850
      %1883 = vst [vmem:[%s116 + $0x38] sm:$0xf] %v1851
      %1884 = vst [vmem:[%s116 + $0x3c] sm:$0xf] %v1852
      %1885 = vst [vmem:[%s116 + $0x40] sm:$0xf] %v1853
      %1886 = vst [vmem:[%s116 + $0x44] sm:$0xf] %v1854
      %1887 = vst [vmem:[%s116 + $0x48] sm:$0xf] %v1855
      %1888 = vst [vmem:[%s116 + $0x4c] sm:$0xf] %v1856
      %1889 = vst [vmem:[%s116 + $0x50] sm:$0xf] %v1857
      %1890 = vst [vmem:[%s116 + $0x54] sm:$0xf] %v1858
      %1891 = vst [vmem:[%s116 + $0x58] sm:$0xf] %v1859
      %1892 = vst [vmem:[%s116 + $0x5c] sm:$0xf] %v1860
      %1893 = vst [vmem:[%s116 + $0x60] sm:$0xf] %v1861
      %1894 = vst [vmem:[%s116 + $0x64] sm:$0xf] %v1862
      %1895 = vst [vmem:[%s116 + $0x68] sm:$0xf] %v1863
      %1896 = vst [vmem:[%s116 + $0x6c] sm:$0xf] %v1864
      %1897 = vst [vmem:[%s116 + $0x70] sm:$0xf] %v1865
      %1898 = vst [vmem:[%s116 + $0x74] sm:$0xf] %v1866
      %1899 = vst [vmem:[%s116 + $0x78] sm:$0xf] %v1867
      %1900 = vst [vmem:[%s116 + $0x7c] sm:$0xf] %v1868
      %p1901 = scmp.lt.s32.totalorder %s12, 1
      %s1902 = scalar_select %p1901, %s12, 1
      %s1903 = smul.addr %s1902, 32
      %s1904 = smul.addr %s1903, 4
      %s1905 = scalar_lea.vmem %s1, %s1904
      // Predicated region
      $region25: #{encoder_cnn_forward.10} parent=23 // pred_check
        %p1906 = pneg %p56
      $region26: #{encoder_cnn_forward.10} parent=23 // pred_check_branch
        %1908 = sbr.rel (%p1906) target = $region28
      $region27: #{encoder_cnn_forward.10} parent=23 // pred_region
        _
      $region28: #{encoder_cnn_forward.10} parent=23 // pred_fallthru
        _
    $region24: #{encoder_cnn_forward.10} parent=5 // pred_fallthru
      _
    %p1909 = scmp.le.s32.totalorder 2, %s7
    // Predicated region
    $region29: #{encoder_cnn_forward.10} parent=5 // pred_check
      %p1910 = pneg %p1909
    $region30: #{encoder_cnn_forward.10} parent=5 // pred_check_branch
      %1912 = sbr.rel (%p1910) target = $region32
    $region31: #{encoder_cnn_forward.10} parent=5 // pred_region
      %s1913 = ssub.s32 %s7, 2
      // Predicated region
      $region33: #{encoder_cnn_forward.10} parent=31 // pred_check
        %p1914 = pneg %p62
      $region34: #{encoder_cnn_forward.10} parent=31 // pred_check_branch
        %1916 = sbr.rel (%p1914) target = $region36
      $region35: #{encoder_cnn_forward.10} parent=31 // pred_region
        %p1917 = scmp.lt.s32.totalorder %s13, 1
        %s1918 = scalar_select %p1917, %s13, 1
        %s1919 = smul.addr %s1918, 32
        %s1920 = smul.addr %s1919, 4
        %s1921 = scalar_lea.vmem %s1, %s1920
      $region36: #{encoder_cnn_forward.10} parent=31 // pred_fallthru
        _
    $region32: #{encoder_cnn_forward.10} parent=5 // pred_fallthru
      _
  $region6: #{encoder_cnn_forward.10} parent=0 // loop_footer
    %s11 = sadd.s32 1, %s7
  $region7: #{encoder_cnn_forward.10} parent=0 // loop_footer_branch
    %6 = sbr.rel target = $region3
  $region8: #{encoder_cnn_forward.10} parent=0 // loop_exit
    _

// kernel: encoder_cnn_forward.11
$region0: #{encoder_cnn_forward.11}
  #allocation0 [shape = 'u32[]', space=smem, size = 0x4, offset = 0x4, fixed_abs, tag = 'smem constant byte address 0x4 - core index']
  #allocation1 [shape = 'u32[144,128]{1,0:T(1,128)}', space=vmem, size = 0x12000, scoped, tag = 'internal scratch']
  %s0 = inlined_call_operand.vmem [shape: bf16[512,128], index: 0, kind: input, shape index: {}]
  %s1 = inlined_call_operand.vmem [shape: bf16[128,128], index: 1, kind: input, shape index: {}]
  %s2 = inlined_call_operand.vmem [shape: f32[1,128], index: 2, kind: input, shape index: {}]
  %s3 = inlined_call_operand.vmem [shape: bf16[512,128], index: 3, kind: output, shape index: {}]
  %s4 = sld [smem:[#allocation0]]
  $region45: #{encoder_cnn_forward.11} parent=0
    _
  %s6 = ssub.s32 1, %s4
  %s7 = scalar_select 0, %s6, %s4
  loop: start=0, step=1, limit=4
  $region2: #{encoder_cnn_forward.11} parent=0 // loop_pre_header
    _
  $region3: #{encoder_cnn_forward.11} parent=0 // loop_header
    %s9 = sphi 0, %s13
    %p10 = scmp.ge.s32.totalorder %s9, 4
    %s19 = sphi 0, %s21
    %s22 = sphi 0, %s19
    %s23 = sphi 0, %s22
    %s39 = sphi 0, %s23
    %s43 = sphi 0, %s43
    %s45 = sphi 0, %s43
    %s46 = sphi 0, %s45
    %s60 = sphi 0, %s46
    %s64 = sphi 0, %s64
    %s66 = sphi 0, %s64
    %s67 = sphi 0, %s66
    %s81 = sphi 0, %s67
    %s87 = sphi 0, %s89
    %s90 = sphi 0, %s87
    %s91 = sphi 0, %s90
    %s107 = sphi 0, %s91
  $region4: #{encoder_cnn_forward.11} parent=0 // loop_header_branch
    %12 = sbr.rel (%p10) target = $region8
  $region5: #{encoder_cnn_forward.11} parent=0 // loop_body
    %s14 = ssub.s32 %s9, 1
    %s15 = ssub.s32 %s9, 2
    %s16 = sadd.s32 %s9, 1
    %s17 = ssub.s32 %s9, %s16
    %p18 = scmp.eq.s32.totalorder %s17, 0
    %s20 = sadd.s32 %s19, 1
    %s21 = scalar_select %p18, %s19, %s20
    %p24 = pneg %p18
    %p25 = scmp.eq.s32.totalorder %s9, 1
    %p26 = por %p24, %p25
    %p27 = scmp.ne.s32.totalorder %s19, %s22
    %p28 = scmp.eq.s32.totalorder %s9, 0
    %p29 = por %p27, %p28
    %p30 = scmp.ne.s32.totalorder %s19, %s22
    %p31 = scmp.eq.s32.totalorder %s14, 1
    %p32 = por %p30, %p31
    %p33 = scmp.ne.s32.totalorder %s22, %s23
    %p34 = scmp.eq.s32.totalorder %s14, 0
    %p35 = por %p33, %p34
    %p36 = scmp.ne.s32.totalorder %s22, %s23
    %p37 = scmp.eq.s32.totalorder %s15, 1
    %p38 = por %p36, %p37
    %p40 = scmp.ne.s32.totalorder %s23, %s39
    %p41 = scmp.eq.s32.totalorder %s15, 0
    %p42 = por %p40, %p41
    %s44 = sadd.s32 %s43, 1
    %p47 = scmp.eq.s32.totalorder %s9, 1
    %p48 = scmp.ne.s32.totalorder %s43, %s45
    %p49 = scmp.eq.s32.totalorder %s9, 0
    %p50 = por %p48, %p49
    %p51 = scmp.ne.s32.totalorder %s43, %s45
    %p52 = scmp.eq.s32.totalorder %s14, 1
    %p53 = por %p51, %p52
    %p54 = scmp.ne.s32.totalorder %s45, %s46
    %p55 = scmp.eq.s32.totalorder %s14, 0
    %p56 = por %p54, %p55
    %p57 = scmp.ne.s32.totalorder %s45, %s46
    %p58 = scmp.eq.s32.totalorder %s15, 1
    %p59 = por %p57, %p58
    %p61 = scmp.ne.s32.totalorder %s46, %s60
    %p62 = scmp.eq.s32.totalorder %s15, 0
    %p63 = por %p61, %p62
    %s65 = sadd.s32 %s64, 1
    %p68 = scmp.eq.s32.totalorder %s9, 1
    %p69 = scmp.ne.s32.totalorder %s64, %s66
    %p70 = scmp.eq.s32.totalorder %s9, 0
    %p71 = por %p69, %p70
    %p72 = scmp.ne.s32.totalorder %s64, %s66
    %p73 = scmp.eq.s32.totalorder %s14, 1
    %p74 = por %p72, %p73
    %p75 = scmp.ne.s32.totalorder %s66, %s67
    %p76 = scmp.eq.s32.totalorder %s14, 0
    %p77 = por %p75, %p76
    %p78 = scmp.ne.s32.totalorder %s66, %s67
    %p79 = scmp.eq.s32.totalorder %s15, 1
    %p80 = por %p78, %p79
    %p82 = scmp.ne.s32.totalorder %s67, %s81
    %p83 = scmp.eq.s32.totalorder %s15, 0
    %p84 = por %p82, %p83
    %s85 = ssub.s32 %s9, %s16
    %p86 = scmp.eq.s32.totalorder %s85, 0
    %s88 = sadd.s32 %s87, 1
    %s89 = scalar_select %p86, %s87, %s88
    %p92 = pneg %p86
    %p93 = scmp.eq.s32.totalorder %s9, 1
    %p94 = por %p92, %p93
    %p95 = scmp.ne.s32.totalorder %s87, %s90
    %p96 = scmp.eq.s32.totalorder %s9, 0
    %p97 = por %p95, %p96
    %p98 = scmp.ne.s32.totalorder %s87, %s90
    %p99 = scmp.eq.s32.totalorder %s14, 1
    %p100 = por %p98, %p99
    %p101 = scmp.ne.s32.totalorder %s90, %s91
    %p102 = scmp.eq.s32.totalorder %s14, 0
    %p103 = por %p101, %p102
    %p104 = scmp.ne.s32.totalorder %s90, %s91
    %p105 = scmp.eq.s32.totalorder %s15, 1
    %p106 = por %p104, %p105
    %p108 = scmp.ne.s32.totalorder %s91, %s107
    %p109 = scmp.eq.s32.totalorder %s15, 0
    %p110 = por %p108, %p109
    %p111 = scmp.le.s32.totalorder 1, %s9
    %p112 = scmp.lt.s32.totalorder %s9, 3
    %p113 = pnand %p111, %p112
    %p114 = pneg %p113
    // Predicated region
    $region9: #{encoder_cnn_forward.11} parent=5 // pred_check
      _
    $region10: #{encoder_cnn_forward.11} parent=5 // pred_check_branch
      %116 = sbr.rel (%p113) target = $region12
    $region11: #{encoder_cnn_forward.11} parent=5 // pred_region
      %s117 = ssub.s32 %s9, 1
      // Predicated region
      $region13: #{encoder_cnn_forward.11} parent=11 // pred_check
        %p118 = pneg %p56
      $region14: #{encoder_cnn_forward.11} parent=11 // pred_check_branch
        %120 = sbr.rel (%p118) target = $region16
      $region15: #{encoder_cnn_forward.11} parent=11 // pred_region
        _
      $region16: #{encoder_cnn_forward.11} parent=11 // pred_fallthru
        _
      // Predicated region
      $region17: #{encoder_cnn_forward.11} parent=11 // pred_check
        %p121 = pneg %p77
      $region18: #{encoder_cnn_forward.11} parent=11 // pred_check_branch
        %123 = sbr.rel (%p121) target = $region20
      $region19: #{encoder_cnn_forward.11} parent=11 // pred_region
        _
      $region20: #{encoder_cnn_forward.11} parent=11 // pred_fallthru
        _
    $region12: #{encoder_cnn_forward.11} parent=5 // pred_fallthru
      _
    %p124 = scmp.lt.s32.totalorder %s9, 2
    // Predicated region
    $region21: #{encoder_cnn_forward.11} parent=5 // pred_check
      %p125 = pneg %p124
    $region22: #{encoder_cnn_forward.11} parent=5 // pred_check_branch
      %127 = sbr.rel (%p125) target = $region24
    $region23: #{encoder_cnn_forward.11} parent=5 // pred_region
      // Predicated region
      $region25: #{encoder_cnn_forward.11} parent=23 // pred_check
        %p128 = pneg %p29
      $region26: #{encoder_cnn_forward.11} parent=23 // pred_check_branch
        %130 = sbr.rel (%p128) target = $region28
      $region27: #{encoder_cnn_forward.11} parent=23 // pred_region
        %s131 = smul.u32 32, %s9
        %p132 = scmp.lt.s32.totalorder %s131, 63
        %s133 = scalar_select %p132, %s131, 63
        %s134 = smul.addr %s133, 4
        %s135 = scalar_lea.vmem %s0, %s134
        %s136 = smul.u32 32, %s9
      $region28: #{encoder_cnn_forward.11} parent=23 // pred_fallthru
        _
    $region24: #{encoder_cnn_forward.11} parent=5 // pred_fallthru
      _
    %p137 = scmp.le.s32.totalorder 1, %s9
    %p138 = scmp.lt.s32.totalorder %s9, 3
    %p139 = pnand %p137, %p138
    %p140 = pneg %p139
    // Predicated region
    $region29: #{encoder_cnn_forward.11} parent=5 // pred_check
      _
    $region30: #{encoder_cnn_forward.11} parent=5 // pred_check_branch
      %142 = sbr.rel (%p139) target = $region32
    $region31: #{encoder_cnn_forward.11} parent=5 // pred_region
      %s143 = ssub.s32 %s9, 1
      %s144 = smul.u32 32, %s14
      %p145 = scmp.lt.s32.totalorder %s144, 63
      %s146 = scalar_select %p145, %s144, 63
      %s147 = smul.addr %s146, 4
      %s148 = scalar_lea.vmem %s0, %s147
      %p149 = pneg %p35
      %p150 = pneg %p32
      %p151 = pneg %p56
      %p152 = pneg %p53
      %p153 = pneg %p77
      %p154 = pneg %p74
      %p155 = pneg %p103
      %p156 = pneg %p100
      %s157 = smul.u32 32, %s14
      %p158 = scmp.lt.s32.totalorder %s157, 63
      %s159 = scalar_select %p158, %s157, 63
      %s160 = smul.addr %s159, 4
      %s161 = scalar_lea.vmem %s3, %s160
      %s162 = smul.u32 32, %s14
      %p163 = scmp.lt.s32.totalorder %s162, 63
      %s164 = scalar_select %p163, %s162, 63
      %s165 = smul.addr %s164, 4
      %s166 = scalar_lea.vmem %s0, %s165
      %s167 = smul.u32 32, %s14
      %s168 = smul.u32 32, %s14
      %p169 = scmp.lt.s32.totalorder %s168, 63
      %s170 = scalar_select %p169, %s168, 63
      %s171 = smul.addr %s170, 4
      %s172 = scalar_lea.vmem %s3, %s171
      %s173 = smul.u32 32, %s14
      %v175 = vld [vmem:[%s166] sm:$0xf]
      %v176 = vld [vmem:[%s166 + $0x4] sm:$0xf]
      %v177 = vld [vmem:[%s166 + $0x8] sm:$0xf]
      %v178 = vld [vmem:[%s166 + $0xc] sm:$0xf]
      %v179 = vld [vmem:[%s166 + $0x10] sm:$0xf]
      %v180 = vld [vmem:[%s166 + $0x14] sm:$0xf]
      %v181 = vld [vmem:[%s166 + $0x18] sm:$0xf]
      %v182 = vld [vmem:[%s166 + $0x1c] sm:$0xf]
      %v183 = vld [vmem:[%s166 + $0x20] sm:$0xf]
      %v184 = vld [vmem:[%s166 + $0x24] sm:$0xf]
      %v185 = vld [vmem:[%s166 + $0x28] sm:$0xf]
      %v186 = vld [vmem:[%s166 + $0x2c] sm:$0xf]
      %v187 = vld [vmem:[%s166 + $0x30] sm:$0xf]
      %v188 = vld [vmem:[%s166 + $0x34] sm:$0xf]
      %v189 = vld [vmem:[%s166 + $0x38] sm:$0xf]
      %v190 = vld [vmem:[%s166 + $0x3c] sm:$0xf]
      %v191 = vld [vmem:[%s166 + $0x40] sm:$0xf]
      %v192 = vld [vmem:[%s166 + $0x44] sm:$0xf]
      %v193 = vld [vmem:[%s166 + $0x48] sm:$0xf]
      %v194 = vld [vmem:[%s166 + $0x4c] sm:$0xf]
      %v195 = vld [vmem:[%s166 + $0x50] sm:$0xf]
      %v196 = vld [vmem:[%s166 + $0x54] sm:$0xf]
      %v197 = vld [vmem:[%s166 + $0x58] sm:$0xf]
      %v198 = vld [vmem:[%s166 + $0x5c] sm:$0xf]
      %v199 = vld [vmem:[%s166 + $0x60] sm:$0xf]
      %v200 = vld [vmem:[%s166 + $0x64] sm:$0xf]
      %v201 = vld [vmem:[%s166 + $0x68] sm:$0xf]
      %v202 = vld [vmem:[%s166 + $0x6c] sm:$0xf]
      %v203 = vld [vmem:[%s166 + $0x70] sm:$0xf]
      %v204 = vld [vmem:[%s166 + $0x74] sm:$0xf]
      %v205 = vld [vmem:[%s166 + $0x78] sm:$0xf]
      %v206 = vld [vmem:[%s166 + $0x7c] sm:$0xf]
      %v207 = vld [vmem:[%s1] sm:$0xf]
      %v208 = vld [vmem:[%s1 + $0x4] sm:$0xf]
      %v209 = vld [vmem:[%s1 + $0x8] sm:$0xf]
      %v210 = vld [vmem:[%s1 + $0xc] sm:$0xf]
      %v211 = vld [vmem:[%s1 + $0x10] sm:$0xf]
      %v212 = vld [vmem:[%s1 + $0x14] sm:$0xf]
      %v213 = vld [vmem:[%s1 + $0x18] sm:$0xf]
      %v214 = vld [vmem:[%s1 + $0x1c] sm:$0xf]
      %v215 = vld [vmem:[%s1 + $0x20] sm:$0xf]
      %v216 = vld [vmem:[%s1 + $0x24] sm:$0xf]
      %v217 = vld [vmem:[%s1 + $0x28] sm:$0xf]
      %v218 = vld [vmem:[%s1 + $0x2c] sm:$0xf]
      %v219 = vld [vmem:[%s1 + $0x30] sm:$0xf]
      %v220 = vld [vmem:[%s1 + $0x34] sm:$0xf]
      %v221 = vld [vmem:[%s1 + $0x38] sm:$0xf]
      %v222 = vld [vmem:[%s1 + $0x3c] sm:$0xf]
      %v223 = vld [vmem:[%s2] sm:$0x1]
      %v225 = vlaneseq
      %v226 = vshrl.u32 %v225, 7
      %v227 = vsub.s32 0, %v226
      %v228 = vrot.slane %v223, %v227
      %v262 = vunpack.c.l.b16 %v175
      %v263 = vunpack.c.l.b16 %v176
      %v264 = vunpack.c.l.b16 %v177
      %v265 = vunpack.c.l.b16 %v178
      %v266 = vunpack.c.l.b16 %v179
      %v267 = vunpack.c.l.b16 %v180
      %v268 = vunpack.c.l.b16 %v181
      %v269 = vunpack.c.l.b16 %v182
      %v270 = vunpack.c.l.b16 %v183
      %v271 = vunpack.c.l.b16 %v184
      %v272 = vunpack.c.l.b16 %v185
      %v273 = vunpack.c.l.b16 %v186
      %v274 = vunpack.c.l.b16 %v187
      %v275 = vunpack.c.l.b16 %v188
      %v276 = vunpack.c.l.b16 %v189
      %v277 = vunpack.c.l.b16 %v190
      %v278 = vunpack.c.l.b16 %v191
      %v279 = vunpack.c.l.b16 %v192
      %v280 = vunpack.c.l.b16 %v193
      %v281 = vunpack.c.l.b16 %v194
      %v282 = vunpack.c.l.b16 %v195
      %v283 = vunpack.c.l.b16 %v196
      %v284 = vunpack.c.l.b16 %v197
      %v285 = vunpack.c.l.b16 %v198
      %v286 = vunpack.c.l.b16 %v199
      %v287 = vunpack.c.l.b16 %v200
      %v288 = vunpack.c.l.b16 %v201
      %v289 = vunpack.c.l.b16 %v202
      %v290 = vunpack.c.l.b16 %v203
      %v291 = vunpack.c.l.b16 %v204
      %v292 = vunpack.c.l.b16 %v205
      %v293 = vunpack.c.l.b16 %v206
      %v294 = vpack.c.b16 %v263, %v262
      %v295 = vpack.c.b16 %v265, %v264
      %v296 = vpack.c.b16 %v267, %v266
      %v297 = vpack.c.b16 %v269, %v268
      %v298 = vpack.c.b16 %v271, %v270
      %v299 = vpack.c.b16 %v273, %v272
      %v300 = vpack.c.b16 %v275, %v274
      %v301 = vpack.c.b16 %v277, %v276
      %v302 = vpack.c.b16 %v279, %v278
      %v303 = vpack.c.b16 %v281, %v280
      %v304 = vpack.c.b16 %v283, %v282
      %v305 = vpack.c.b16 %v285, %v284
      %v306 = vpack.c.b16 %v287, %v286
      %v307 = vpack.c.b16 %v289, %v288
      %v308 = vpack.c.b16 %v291, %v290
      %v309 = vpack.c.b16 %v293, %v292
      %v342 = vunpack.c.l.b16 %v207
      %v343 = vunpack.c.l.b16 %v208
      %v344 = vunpack.c.l.b16 %v209
      %v345 = vunpack.c.l.b16 %v210
      %v346 = vunpack.c.l.b16 %v211
      %v347 = vunpack.c.l.b16 %v212
      %v348 = vunpack.c.l.b16 %v213
      %v349 = vunpack.c.l.b16 %v214
      %v350 = vunpack.c.l.b16 %v215
      %v351 = vunpack.c.l.b16 %v216
      %v352 = vunpack.c.l.b16 %v217
      %v353 = vunpack.c.l.b16 %v218
      %v354 = vunpack.c.l.b16 %v219
      %v355 = vunpack.c.l.b16 %v220
      %v356 = vunpack.c.l.b16 %v221
      %v357 = vunpack.c.l.b16 %v222
      %v358 = vpack.c.b16 %v343, %v342
      %v359 = vpack.c.b16 %v345, %v344
      %v360 = vpack.c.b16 %v347, %v346
      %v361 = vpack.c.b16 %v349, %v348
      %v362 = vpack.c.b16 %v351, %v350
      %v363 = vpack.c.b16 %v353, %v352
      %v364 = vpack.c.b16 %v355, %v354
      %v365 = vpack.c.b16 %v357, %v356
      %374 = vmatprep.subr.bf16.mxu0 0
      %375 = vmatpush1.bf16.msra.mxu0 %v358
      %376 = vmatprep.subr.bf16.mxu0 0
      %377 = vmatpush1.bf16.msra.mxu0 %v359
      %378 = vmatprep.subr.bf16.mxu0 0
      %379 = vmatpush1.bf16.msra.mxu0 %v360
      %380 = vmatprep.subr.bf16.mxu0 0
      %381 = vmatpush1.bf16.msra.mxu0 %v361
      %382 = vmatprep.subr.bf16.mxu0 0
      %383 = vmatpush1.bf16.msra.mxu0 %v362
      %384 = vmatprep.subr.bf16.mxu0 0
      %385 = vmatpush1.bf16.msra.mxu0 %v363
      %386 = vmatprep.subr.bf16.mxu0 0
      %387 = vmatpush1.bf16.msra.mxu0 %v364
      %388 = vmatprep.subr.bf16.mxu0 0
      %389 = vmatpush1.bf16.msra.mxu0 %v365
      %390 = vmatprep.subr.bf16.mxu0 0
      %391 = vmatpush1.bf16.msra.mxu0 0
      %392 = vmatprep.subr.bf16.mxu0 0
      %393 = vmatpush1.bf16.msra.mxu0 0
      %394 = vmatprep.subr.bf16.mxu0 0
      %395 = vmatpush1.bf16.msra.mxu0 0
      %396 = vmatprep.subr.bf16.mxu0 0
      %397 = vmatpush1.bf16.msra.mxu0 0
      %398 = vmatprep.subr.bf16.mxu0 0
      %399 = vmatpush1.bf16.msra.mxu0 0
      %400 = vmatprep.subr.bf16.mxu0 0
      %401 = vmatpush1.bf16.msra.mxu0 0
      %402 = vmatprep.subr.bf16.mxu0 0
      %403 = vmatpush1.bf16.msra.mxu0 0
      %404 = vmatprep.subr.bf16.mxu0 0
      %405 = vmatpush1.bf16.msra.mxu0 0
      %406 = vmatprep.mubr.bf16.mxu0 0
      %407 = vmatmul.mubr.bf16.gmra.mrb[0].mxu0 %v294
      %v408 = vpop.f32.mrb[0].mxu0
      %v409 = vadd.f32 %v228, %v408
      %v410 = vpop.f32.mrb[0].mxu0
      %v411 = vpop.f32.mrb[0].mxu0
      %v412 = vadd.f32 %v228, %v411
      %v413 = vpop.f32.mrb[0].mxu0
      %414 = vmatprep.mubr.bf16.mxu0 0
      %415 = vmatmul.mubr.bf16.gmra.mrb[0].mxu0 %v295
      %v416 = vpop.f32.mrb[0].mxu0
      %v417 = vadd.f32 %v228, %v416
      %v418 = vpop.f32.mrb[0].mxu0
      %v419 = vpop.f32.mrb[0].mxu0
      %v420 = vadd.f32 %v228, %v419
      %v421 = vpop.f32.mrb[0].mxu0
      %422 = vmatprep.mubr.bf16.mxu0 0
      %423 = vmatmul.mubr.bf16.gmra.mrb[0].mxu0 %v296
      %v424 = vpop.f32.mrb[0].mxu0
      %v425 = vadd.f32 %v228, %v424
      %v426 = vpop.f32.mrb[0].mxu0
      %v427 = vpop.f32.mrb[0].mxu0
      %v428 = vadd.f32 %v228, %v427
      %v429 = vpop.f32.mrb[0].mxu0
      %430 = vmatprep.mubr.bf16.mxu0 0
      %431 = vmatmul.mubr.bf16.gmra.mrb[0].mxu0 %v297
      %v432 = vpop.f32.mrb[0].mxu0
      %v433 = vadd.f32 %v228, %v432
      %v434 = vpop.f32.mrb[0].mxu0
      %v435 = vpop.f32.mrb[0].mxu0
      %v436 = vadd.f32 %v228, %v435
      %v437 = vpop.f32.mrb[0].mxu0
      %438 = vmatprep.mubr.bf16.mxu0 0
      %439 = vmatmul.mubr.bf16.gmra.mrb[0].mxu0 %v298
      %v440 = vpop.f32.mrb[0].mxu0
      %v441 = vadd.f32 %v228, %v440
      %v442 = vpop.f32.mrb[0].mxu0
      %v443 = vpop.f32.mrb[0].mxu0
      %v444 = vadd.f32 %v228, %v443
      %v445 = vpop.f32.mrb[0].mxu0
      %446 = vmatprep.mubr.bf16.mxu0 0
      %447 = vmatmul.mubr.bf16.gmra.mrb[0].mxu0 %v299
      %v448 = vpop.f32.mrb[0].mxu0
      %v449 = vadd.f32 %v228, %v448
      %v450 = vpop.f32.mrb[0].mxu0
      %v451 = vpop.f32.mrb[0].mxu0
      %v452 = vadd.f32 %v228, %v451
      %v453 = vpop.f32.mrb[0].mxu0
      %454 = vmatprep.mubr.bf16.mxu0 0
      %455 = vmatmul.mubr.bf16.gmra.mrb[0].mxu0 %v300
      %v456 = vpop.f32.mrb[0].mxu0
      %v457 = vadd.f32 %v228, %v456
      %v458 = vpop.f32.mrb[0].mxu0
      %v459 = vpop.f32.mrb[0].mxu0
      %v460 = vadd.f32 %v228, %v459
      %v461 = vpop.f32.mrb[0].mxu0
      %462 = vmatprep.mubr.bf16.mxu0 0
      %463 = vmatmul.mubr.bf16.gmra.mrb[0].mxu0 %v301
      %v464 = vpop.f32.mrb[0].mxu0
      %v465 = vadd.f32 %v228, %v464
      %v466 = vpop.f32.mrb[0].mxu0
      %v467 = vpop.f32.mrb[0].mxu0
      %v468 = vadd.f32 %v228, %v467
      %v469 = vpop.f32.mrb[0].mxu0
      %470 = vmatprep.mubr.bf16.mxu0 0
      %471 = vmatmul.mubr.bf16.gmra.mrb[0].mxu0 %v302
      %v472 = vpop.f32.mrb[0].mxu0
      %v473 = vadd.f32 %v228, %v472
      %v474 = vpop.f32.mrb[0].mxu0
      %v475 = vpop.f32.mrb[0].mxu0
      %v476 = vadd.f32 %v228, %v475
      %v477 = vpop.f32.mrb[0].mxu0
      %478 = vmatprep.mubr.bf16.mxu0 0
      %479 = vmatmul.mubr.bf16.gmra.mrb[0].mxu0 %v303
      %v480 = vpop.f32.mrb[0].mxu0
      %v481 = vadd.f32 %v228, %v480
      %v482 = vpop.f32.mrb[0].mxu0
      %v483 = vpop.f32.mrb[0].mxu0
      %v484 = vadd.f32 %v228, %v483
      %v485 = vpop.f32.mrb[0].mxu0
      %486 = vmatprep.mubr.bf16.mxu0 0
      %487 = vmatmul.mubr.bf16.gmra.mrb[0].mxu0 %v304
      %v488 = vpop.f32.mrb[0].mxu0
      %v489 = vadd.f32 %v228, %v488
      %v490 = vpop.f32.mrb[0].mxu0
      %v491 = vpop.f32.mrb[0].mxu0
      %v492 = vadd.f32 %v228, %v491
      %v493 = vpop.f32.mrb[0].mxu0
      %494 = vmatprep.mubr.bf16.mxu0 0
      %495 = vmatmul.mubr.bf16.gmra.mrb[0].mxu0 %v305
      %v496 = vpop.f32.mrb[0].mxu0
      %v497 = vadd.f32 %v228, %v496
      %v498 = vpop.f32.mrb[0].mxu0
      %v499 = vpop.f32.mrb[0].mxu0
      %v500 = vadd.f32 %v228, %v499
      %v501 = vpop.f32.mrb[0].mxu0
      %502 = vmatprep.mubr.bf16.mxu0 0
      %503 = vmatmul.mubr.bf16.gmra.mrb[0].mxu0 %v306
      %v504 = vpop.f32.mrb[0].mxu0
      %v505 = vadd.f32 %v228, %v504
      %v506 = vpop.f32.mrb[0].mxu0
      %v507 = vpop.f32.mrb[0].mxu0
      %v508 = vadd.f32 %v228, %v507
      %v509 = vpop.f32.mrb[0].mxu0
      %510 = vmatprep.mubr.bf16.mxu0 0
      %511 = vmatmul.mubr.bf16.gmra.mrb[0].mxu0 %v307
      %v512 = vpop.f32.mrb[0].mxu0
      %v513 = vadd.f32 %v228, %v512
      %v514 = vpop.f32.mrb[0].mxu0
      %v515 = vpop.f32.mrb[0].mxu0
      %v516 = vadd.f32 %v228, %v515
      %v517 = vpop.f32.mrb[0].mxu0
      %518 = vmatprep.mubr.bf16.mxu0 0
      %519 = vmatmul.mubr.bf16.gmra.mrb[0].mxu0 %v308
      %v520 = vpop.f32.mrb[0].mxu0
      %v521 = vadd.f32 %v228, %v520
      %v522 = vpop.f32.mrb[0].mxu0
      %v523 = vpop.f32.mrb[0].mxu0
      %v524 = vadd.f32 %v228, %v523
      %v525 = vpop.f32.mrb[0].mxu0
      %526 = vmatprep.mubr.bf16.mxu0 0
      %527 = vmatmul.mubr.bf16.gmra.mrb[0].mxu0 %v309
      %v528 = vpop.f32.mrb[0].mxu0
      %v529 = vadd.f32 %v228, %v528
      %v530 = vpop.f32.mrb[0].mxu0
      %v531 = vpop.f32.mrb[0].mxu0
      %v532 = vadd.f32 %v228, %v531
      %v533 = vpop.f32.mrb[0].mxu0
      %534 = vdwg.mxu0
      %v535 = vmax.f32 %v409, 0.0
      %v536 = vmax.f32 %v412, 0.0
      %v537 = vmax.f32 %v417, 0.0
      %v538 = vmax.f32 %v420, 0.0
      %v539 = vmax.f32 %v425, 0.0
      %v540 = vmax.f32 %v428, 0.0
      %v541 = vmax.f32 %v433, 0.0
      %v542 = vmax.f32 %v436, 0.0
      %v543 = vmax.f32 %v441, 0.0
      %v544 = vmax.f32 %v444, 0.0
      %v545 = vmax.f32 %v449, 0.0
      %v546 = vmax.f32 %v452, 0.0
      %v547 = vmax.f32 %v457, 0.0
      %v548 = vmax.f32 %v460, 0.0
      %v549 = vmax.f32 %v465, 0.0
      %v550 = vmax.f32 %v468, 0.0
      %v551 = vmax.f32 %v473, 0.0
      %v552 = vmax.f32 %v476, 0.0
      %v553 = vmax.f32 %v481, 0.0
      %v554 = vmax.f32 %v484, 0.0
      %v555 = vmax.f32 %v489, 0.0
      %v556 = vmax.f32 %v492, 0.0
      %v557 = vmax.f32 %v497, 0.0
      %v558 = vmax.f32 %v500, 0.0
      %v559 = vmax.f32 %v505, 0.0
      %v560 = vmax.f32 %v508, 0.0
      %v561 = vmax.f32 %v513, 0.0
      %v562 = vmax.f32 %v516, 0.0
      %v563 = vmax.f32 %v521, 0.0
      %v564 = vmax.f32 %v524, 0.0
      %v565 = vmax.f32 %v529, 0.0
      %v566 = vmax.f32 %v532, 0.0
      %v567 = vpack.c.bf16 %v536, %v535
      %v568 = vpack.c.bf16 %v538, %v537
      %v569 = vpack.c.bf16 %v540, %v539
      %v570 = vpack.c.bf16 %v542, %v541
      %v571 = vpack.c.bf16 %v544, %v543
      %v572 = vpack.c.bf16 %v546, %v545
      %v573 = vpack.c.bf16 %v548, %v547
      %v574 = vpack.c.bf16 %v550, %v549
      %v575 = vpack.c.bf16 %v552, %v551
      %v576 = vpack.c.bf16 %v554, %v553
      %v577 = vpack.c.bf16 %v556, %v555
      %v578 = vpack.c.bf16 %v558, %v557
      %v579 = vpack.c.bf16 %v560, %v559
      %v580 = vpack.c.bf16 %v562, %v561
      %v581 = vpack.c.bf16 %v564, %v563
      %v582 = vpack.c.bf16 %v566, %v565
      %v599 = vunpack.c.l.b16 %v567
      %v600 = vunpack.c.h.b16 %v567
      %v601 = vunpack.c.l.b16 %v568
      %v602 = vunpack.c.h.b16 %v568
      %v603 = vunpack.c.l.b16 %v569
      %v604 = vunpack.c.h.b16 %v569
      %v605 = vunpack.c.l.b16 %v570
      %v606 = vunpack.c.h.b16 %v570
      %v607 = vunpack.c.l.b16 %v571
      %v608 = vunpack.c.h.b16 %v571
      %v609 = vunpack.c.l.b16 %v572
      %v610 = vunpack.c.h.b16 %v572
      %v611 = vunpack.c.l.b16 %v573
      %v612 = vunpack.c.h.b16 %v573
      %v613 = vunpack.c.l.b16 %v574
      %v614 = vunpack.c.h.b16 %v574
      %v615 = vunpack.c.l.b16 %v575
      %v616 = vunpack.c.h.b16 %v575
      %v617 = vunpack.c.l.b16 %v576
      %v618 = vunpack.c.h.b16 %v576
      %v619 = vunpack.c.l.b16 %v577
      %v620 = vunpack.c.h.b16 %v577
      %v621 = vunpack.c.l.b16 %v578
      %v622 = vunpack.c.h.b16 %v578
      %v623 = vunpack.c.l.b16 %v579
      %v624 = vunpack.c.h.b16 %v579
      %v625 = vunpack.c.l.b16 %v580
      %v626 = vunpack.c.h.b16 %v580
      %v627 = vunpack.c.l.b16 %v581
      %v628 = vunpack.c.h.b16 %v581
      %v629 = vunpack.c.l.b16 %v582
      %v630 = vunpack.c.h.b16 %v582
      %v631 = vpack.c.b16 %v599, %v599
      %v632 = vpack.c.b16 %v600, %v600
      %v633 = vpack.c.b16 %v601, %v601
      %v634 = vpack.c.b16 %v602, %v602
      %v635 = vpack.c.b16 %v603, %v603
      %v636 = vpack.c.b16 %v604, %v604
      %v637 = vpack.c.b16 %v605, %v605
      %v638 = vpack.c.b16 %v606, %v606
      %v639 = vpack.c.b16 %v607, %v607
      %v640 = vpack.c.b16 %v608, %v608
      %v641 = vpack.c.b16 %v609, %v609
      %v642 = vpack.c.b16 %v610, %v610
      %v643 = vpack.c.b16 %v611, %v611
      %v644 = vpack.c.b16 %v612, %v612
      %v645 = vpack.c.b16 %v613, %v613
      %v646 = vpack.c.b16 %v614, %v614
      %v647 = vpack.c.b16 %v615, %v615
      %v648 = vpack.c.b16 %v616, %v616
      %v649 = vpack.c.b16 %v617, %v617
      %v650 = vpack.c.b16 %v618, %v618
      %v651 = vpack.c.b16 %v619, %v619
      %v652 = vpack.c.b16 %v620, %v620
      %v653 = vpack.c.b16 %v621, %v621
      %v654 = vpack.c.b16 %v622, %v622
      %v655 = vpack.c.b16 %v623, %v623
      %v656 = vpack.c.b16 %v624, %v624
      %v657 = vpack.c.b16 %v625, %v625
      %v658 = vpack.c.b16 %v626, %v626
      %v659 = vpack.c.b16 %v627, %v627
      %v660 = vpack.c.b16 %v628, %v628
      %v661 = vpack.c.b16 %v629, %v629
      %v662 = vpack.c.b16 %v630, %v630
      %695 = vst [vmem:[%s172] sm:$0xf] %v631
      %696 = vst [vmem:[%s172 + $0x4] sm:$0xf] %v632
      %697 = vst [vmem:[%s172 + $0x8] sm:$0xf] %v633
      %698 = vst [vmem:[%s172 + $0xc] sm:$0xf] %v634
      %699 = vst [vmem:[%s172 + $0x10] sm:$0xf] %v635
      %700 = vst [vmem:[%s172 + $0x14] sm:$0xf] %v636
      %701 = vst [vmem:[%s172 + $0x18] sm:$0xf] %v637
      %702 = vst [vmem:[%s172 + $0x1c] sm:$0xf] %v638
      %703 = vst [vmem:[%s172 + $0x20] sm:$0xf] %v639
      %704 = vst [vmem:[%s172 + $0x24] sm:$0xf] %v640
      %705 = vst [vmem:[%s172 + $0x28] sm:$0xf] %v641
      %706 = vst [vmem:[%s172 + $0x2c] sm:$0xf] %v642
      %707 = vst [vmem:[%s172 + $0x30] sm:$0xf] %v643
      %708 = vst [vmem:[%s172 + $0x34] sm:$0xf] %v644
      %709 = vst [vmem:[%s172 + $0x38] sm:$0xf] %v645
      %710 = vst [vmem:[%s172 + $0x3c] sm:$0xf] %v646
      %711 = vst [vmem:[%s172 + $0x40] sm:$0xf] %v647
      %712 = vst [vmem:[%s172 + $0x44] sm:$0xf] %v648
      %713 = vst [vmem:[%s172 + $0x48] sm:$0xf] %v649
      %714 = vst [vmem:[%s172 + $0x4c] sm:$0xf] %v650
      %715 = vst [vmem:[%s172 + $0x50] sm:$0xf] %v651
      %716 = vst [vmem:[%s172 + $0x54] sm:$0xf] %v652
      %717 = vst [vmem:[%s172 + $0x58] sm:$0xf] %v653
      %718 = vst [vmem:[%s172 + $0x5c] sm:$0xf] %v654
      %719 = vst [vmem:[%s172 + $0x60] sm:$0xf] %v655
      %720 = vst [vmem:[%s172 + $0x64] sm:$0xf] %v656
      %721 = vst [vmem:[%s172 + $0x68] sm:$0xf] %v657
      %722 = vst [vmem:[%s172 + $0x6c] sm:$0xf] %v658
      %723 = vst [vmem:[%s172 + $0x70] sm:$0xf] %v659
      %724 = vst [vmem:[%s172 + $0x74] sm:$0xf] %v660
      %725 = vst [vmem:[%s172 + $0x78] sm:$0xf] %v661
      %726 = vst [vmem:[%s172 + $0x7c] sm:$0xf] %v662
      %s727 = smul.u32 32, %s14
      %p728 = scmp.lt.s32.totalorder %s727, 63
      %s729 = scalar_select %p728, %s727, 63
      %s730 = smul.addr %s729, 4
      %s731 = scalar_lea.vmem %s3, %s730
      // Predicated region
      $region33: #{encoder_cnn_forward.11} parent=31 // pred_check
        %p732 = pneg %p100
      $region34: #{encoder_cnn_forward.11} parent=31 // pred_check_branch
        %734 = sbr.rel (%p732) target = $region36
      $region35: #{encoder_cnn_forward.11} parent=31 // pred_region
        %s735 = smul.u32 32, %s14
      $region36: #{encoder_cnn_forward.11} parent=31 // pred_fallthru
        _
    $region32: #{encoder_cnn_forward.11} parent=5 // pred_fallthru
      _
    %p736 = scmp.le.s32.totalorder 2, %s9
    // Predicated region
    $region37: #{encoder_cnn_forward.11} parent=5 // pred_check
      %p737 = pneg %p736
    $region38: #{encoder_cnn_forward.11} parent=5 // pred_check_branch
      %739 = sbr.rel (%p737) target = $region40
    $region39: #{encoder_cnn_forward.11} parent=5 // pred_region
      %s740 = ssub.s32 %s9, 2
      // Predicated region
      $region41: #{encoder_cnn_forward.11} parent=39 // pred_check
        %p741 = pneg %p106
      $region42: #{encoder_cnn_forward.11} parent=39 // pred_check_branch
        %743 = sbr.rel (%p741) target = $region44
      $region43: #{encoder_cnn_forward.11} parent=39 // pred_region
        %s744 = smul.u32 32, %s15
        %p745 = scmp.lt.s32.totalorder %s744, 63
        %s746 = scalar_select %p745, %s744, 63
        %s747 = smul.addr %s746, 4
        %s748 = scalar_lea.vmem %s3, %s747
      $region44: #{encoder_cnn_forward.11} parent=39 // pred_fallthru
        _
    $region40: #{encoder_cnn_forward.11} parent=5 // pred_fallthru
      _
  $region6: #{encoder_cnn_forward.11} parent=0 // loop_footer
    %s13 = sadd.s32 1, %s9
  $region7: #{encoder_cnn_forward.11} parent=0 // loop_footer_branch
    %8 = sbr.rel target = $region3
  $region8: #{encoder_cnn_forward.11} parent=0 // loop_exit
    _

// kernel: encoder_cnn_forward.13
$region0: #{encoder_cnn_forward.13}
  #allocation0 [shape = 'u32[]', space=smem, size = 0x4, offset = 0x4, fixed_abs, tag = 'smem constant byte address 0x4 - core index']
  #allocation1 [shape = 'u32[144,128]{1,0:T(1,128)}', space=vmem, size = 0x12000, scoped, tag = 'internal scratch']
  %s0 = inlined_call_operand.vmem [shape: bf16[512,128], index: 0, kind: input, shape index: {}]
  %s1 = inlined_call_operand.vmem [shape: bf16[512,128], index: 1, kind: input, shape index: {}]
  %s2 = inlined_call_operand.vmem [shape: bf16[256,128], index: 2, kind: input, shape index: {}]
  %s3 = inlined_call_operand.vmem [shape: f32[1,128], index: 3, kind: input, shape index: {}]
  %s4 = inlined_call_operand.vmem [shape: bf16[512,128], index: 4, kind: output, shape index: {}]
  %s5 = sld [smem:[#allocation0]]
  $region49: #{encoder_cnn_forward.13} parent=0
    _
  %s7 = ssub.s32 1, %s5
  %s8 = scalar_select 0, %s7, %s5
  loop: start=0, step=1, limit=4
  $region2: #{encoder_cnn_forward.13} parent=0 // loop_pre_header
    _
  $region3: #{encoder_cnn_forward.13} parent=0 // loop_header
    %s10 = sphi 0, %s14
    %p11 = scmp.ge.s32.totalorder %s10, 4
    %s20 = sphi 0, %s22
    %s23 = sphi 0, %s20
    %s24 = sphi 0, %s23
    %s40 = sphi 0, %s24
    %s46 = sphi 0, %s48
    %s49 = sphi 0, %s46
    %s50 = sphi 0, %s49
    %s66 = sphi 0, %s50
    %s70 = sphi 0, %s70
    %s72 = sphi 0, %s70
    %s73 = sphi 0, %s72
    %s87 = sphi 0, %s73
    %s91 = sphi 0, %s91
    %s93 = sphi 0, %s91
    %s94 = sphi 0, %s93
    %s108 = sphi 0, %s94
    %s114 = sphi 0, %s116
    %s117 = sphi 0, %s114
    %s118 = sphi 0, %s117
    %s134 = sphi 0, %s118
  $region4: #{encoder_cnn_forward.13} parent=0 // loop_header_branch
    %13 = sbr.rel (%p11) target = $region8
  $region5: #{encoder_cnn_forward.13} parent=0 // loop_body
    %s15 = ssub.s32 %s10, 1
    %s16 = ssub.s32 %s10, 2
    %s17 = sadd.s32 %s10, 1
    %s18 = ssub.s32 %s10, %s17
    %p19 = scmp.eq.s32.totalorder %s18, 0
    %s21 = sadd.s32 %s20, 1
    %s22 = scalar_select %p19, %s20, %s21
    %p25 = pneg %p19
    %p26 = scmp.eq.s32.totalorder %s10, 1
    %p27 = por %p25, %p26
    %p28 = scmp.ne.s32.totalorder %s20, %s23
    %p29 = scmp.eq.s32.totalorder %s10, 0
    %p30 = por %p28, %p29
    %p31 = scmp.ne.s32.totalorder %s20, %s23
    %p32 = scmp.eq.s32.totalorder %s15, 1
    %p33 = por %p31, %p32
    %p34 = scmp.ne.s32.totalorder %s23, %s24
    %p35 = scmp.eq.s32.totalorder %s15, 0
    %p36 = por %p34, %p35
    %p37 = scmp.ne.s32.totalorder %s23, %s24
    %p38 = scmp.eq.s32.totalorder %s16, 1
    %p39 = por %p37, %p38
    %p41 = scmp.ne.s32.totalorder %s24, %s40
    %p42 = scmp.eq.s32.totalorder %s16, 0
    %p43 = por %p41, %p42
    %s44 = ssub.s32 %s10, %s17
    %p45 = scmp.eq.s32.totalorder %s44, 0
    %s47 = sadd.s32 %s46, 1
    %s48 = scalar_select %p45, %s46, %s47
    %p51 = pneg %p45
    %p52 = scmp.eq.s32.totalorder %s10, 1
    %p53 = por %p51, %p52
    %p54 = scmp.ne.s32.totalorder %s46, %s49
    %p55 = scmp.eq.s32.totalorder %s10, 0
    %p56 = por %p54, %p55
    %p57 = scmp.ne.s32.totalorder %s46, %s49
    %p58 = scmp.eq.s32.totalorder %s15, 1
    %p59 = por %p57, %p58
    %p60 = scmp.ne.s32.totalorder %s49, %s50
    %p61 = scmp.eq.s32.totalorder %s15, 0
    %p62 = por %p60, %p61
    %p63 = scmp.ne.s32.totalorder %s49, %s50
    %p64 = scmp.eq.s32.totalorder %s16, 1
    %p65 = por %p63, %p64
    %p67 = scmp.ne.s32.totalorder %s50, %s66
    %p68 = scmp.eq.s32.totalorder %s16, 0
    %p69 = por %p67, %p68
    %s71 = sadd.s32 %s70, 1
    %p74 = scmp.eq.s32.totalorder %s10, 1
    %p75 = scmp.ne.s32.totalorder %s70, %s72
    %p76 = scmp.eq.s32.totalorder %s10, 0
    %p77 = por %p75, %p76
    %p78 = scmp.ne.s32.totalorder %s70, %s72
    %p79 = scmp.eq.s32.totalorder %s15, 1
    %p80 = por %p78, %p79
    %p81 = scmp.ne.s32.totalorder %s72, %s73
    %p82 = scmp.eq.s32.totalorder %s15, 0
    %p83 = por %p81, %p82
    %p84 = scmp.ne.s32.totalorder %s72, %s73
    %p85 = scmp.eq.s32.totalorder %s16, 1
    %p86 = por %p84, %p85
    %p88 = scmp.ne.s32.totalorder %s73, %s87
    %p89 = scmp.eq.s32.totalorder %s16, 0
    %p90 = por %p88, %p89
    %s92 = sadd.s32 %s91, 1
    %p95 = scmp.eq.s32.totalorder %s10, 1
    %p96 = scmp.ne.s32.totalorder %s91, %s93
    %p97 = scmp.eq.s32.totalorder %s10, 0
    %p98 = por %p96, %p97
    %p99 = scmp.ne.s32.totalorder %s91, %s93
    %p100 = scmp.eq.s32.totalorder %s15, 1
    %p101 = por %p99, %p100
    %p102 = scmp.ne.s32.totalorder %s93, %s94
    %p103 = scmp.eq.s32.totalorder %s15, 0
    %p104 = por %p102, %p103
    %p105 = scmp.ne.s32.totalorder %s93, %s94
    %p106 = scmp.eq.s32.totalorder %s16, 1
    %p107 = por %p105, %p106
    %p109 = scmp.ne.s32.totalorder %s94, %s108
    %p110 = scmp.eq.s32.totalorder %s16, 0
    %p111 = por %p109, %p110
    %s112 = ssub.s32 %s10, %s17
    %p113 = scmp.eq.s32.totalorder %s112, 0
    %s115 = sadd.s32 %s114, 1
    %s116 = scalar_select %p113, %s114, %s115
    %p119 = pneg %p113
    %p120 = scmp.eq.s32.totalorder %s10, 1
    %p121 = por %p119, %p120
    %p122 = scmp.ne.s32.totalorder %s114, %s117
    %p123 = scmp.eq.s32.totalorder %s10, 0
    %p124 = por %p122, %p123
    %p125 = scmp.ne.s32.totalorder %s114, %s117
    %p126 = scmp.eq.s32.totalorder %s15, 1
    %p127 = por %p125, %p126
    %p128 = scmp.ne.s32.totalorder %s117, %s118
    %p129 = scmp.eq.s32.totalorder %s15, 0
    %p130 = por %p128, %p129
    %p131 = scmp.ne.s32.totalorder %s117, %s118
    %p132 = scmp.eq.s32.totalorder %s16, 1
    %p133 = por %p131, %p132
    %p135 = scmp.ne.s32.totalorder %s118, %s134
    %p136 = scmp.eq.s32.totalorder %s16, 0
    %p137 = por %p135, %p136
    %p138 = scmp.le.s32.totalorder 1, %s10
    %p139 = scmp.lt.s32.totalorder %s10, 3
    %p140 = pnand %p138, %p139
    %p141 = pneg %p140
    // Predicated region
    $region9: #{encoder_cnn_forward.13} parent=5 // pred_check
      _
    $region10: #{encoder_cnn_forward.13} parent=5 // pred_check_branch
      %143 = sbr.rel (%p140) target = $region12
    $region11: #{encoder_cnn_forward.13} parent=5 // pred_region
      %s144 = ssub.s32 %s10, 1
      // Predicated region
      $region13: #{encoder_cnn_forward.13} parent=11 // pred_check
        %p145 = pneg %p83
      $region14: #{encoder_cnn_forward.13} parent=11 // pred_check_branch
        %147 = sbr.rel (%p145) target = $region16
      $region15: #{encoder_cnn_forward.13} parent=11 // pred_region
        _
      $region16: #{encoder_cnn_forward.13} parent=11 // pred_fallthru
        _
      // Predicated region
      $region17: #{encoder_cnn_forward.13} parent=11 // pred_check
        %p148 = pneg %p104
      $region18: #{encoder_cnn_forward.13} parent=11 // pred_check_branch
        %150 = sbr.rel (%p148) target = $region20
      $region19: #{encoder_cnn_forward.13} parent=11 // pred_region
        _
      $region20: #{encoder_cnn_forward.13} parent=11 // pred_fallthru
        _
    $region12: #{encoder_cnn_forward.13} parent=5 // pred_fallthru
      _
    %p151 = scmp.lt.s32.totalorder %s10, 2
    // Predicated region
    $region21: #{encoder_cnn_forward.13} parent=5 // pred_check
      %p152 = pneg %p151
    $region22: #{encoder_cnn_forward.13} parent=5 // pred_check_branch
      %154 = sbr.rel (%p152) target = $region24
    $region23: #{encoder_cnn_forward.13} parent=5 // pred_region
      // Predicated region
      $region25: #{encoder_cnn_forward.13} parent=23 // pred_check
        %p155 = pneg %p30
      $region26: #{encoder_cnn_forward.13} parent=23 // pred_check_branch
        %157 = sbr.rel (%p155) target = $region28
      $region27: #{encoder_cnn_forward.13} parent=23 // pred_region
        %s158 = smul.u32 32, %s10
        %p159 = scmp.lt.s32.totalorder %s158, 63
        %s160 = scalar_select %p159, %s158, 63
        %s161 = smul.addr %s160, 4
        %s162 = scalar_lea.vmem %s0, %s161
        %s163 = smul.u32 32, %s10
      $region28: #{encoder_cnn_forward.13} parent=23 // pred_fallthru
        _
      // Predicated region
      $region29: #{encoder_cnn_forward.13} parent=23 // pred_check
        %p164 = pneg %p56
      $region30: #{encoder_cnn_forward.13} parent=23 // pred_check_branch
        %166 = sbr.rel (%p164) target = $region32
      $region31: #{encoder_cnn_forward.13} parent=23 // pred_region
        %s167 = smul.u32 32, %s10
        %p168 = scmp.lt.s32.totalorder %s167, 63
        %s169 = scalar_select %p168, %s167, 63
        %s170 = smul.addr %s169, 4
        %s171 = scalar_lea.vmem %s1, %s170
        %s172 = smul.u32 32, %s10
      $region32: #{encoder_cnn_forward.13} parent=23 // pred_fallthru
        _
    $region24: #{encoder_cnn_forward.13} parent=5 // pred_fallthru
      _
    %p173 = scmp.le.s32.totalorder 1, %s10
    %p174 = scmp.lt.s32.totalorder %s10, 3
    %p175 = pnand %p173, %p174
    %p176 = pneg %p175
    // Predicated region
    $region33: #{encoder_cnn_forward.13} parent=5 // pred_check
      _
    $region34: #{encoder_cnn_forward.13} parent=5 // pred_check_branch
      %178 = sbr.rel (%p175) target = $region36
    $region35: #{encoder_cnn_forward.13} parent=5 // pred_region
      %s179 = ssub.s32 %s10, 1
      %s180 = smul.u32 32, %s15
      %p181 = scmp.lt.s32.totalorder %s180, 63
      %s182 = scalar_select %p181, %s180, 63
      %s183 = smul.addr %s182, 4
      %s184 = scalar_lea.vmem %s0, %s183
      %p185 = pneg %p36
      %p186 = pneg %p33
      %s187 = smul.u32 32, %s15
      %p188 = scmp.lt.s32.totalorder %s187, 63
      %s189 = scalar_select %p188, %s187, 63
      %s190 = smul.addr %s189, 4
      %s191 = scalar_lea.vmem %s1, %s190
      %p192 = pneg %p62
      %p193 = pneg %p59
      %p194 = pneg %p83
      %p195 = pneg %p80
      %p196 = pneg %p104
      %p197 = pneg %p101
      %p198 = pneg %p130
      %p199 = pneg %p127
      %s200 = smul.u32 32, %s15
      %p201 = scmp.lt.s32.totalorder %s200, 63
      %s202 = scalar_select %p201, %s200, 63
      %s203 = smul.addr %s202, 4
      %s204 = scalar_lea.vmem %s4, %s203
      %s205 = smul.u32 32, %s15
      %p206 = scmp.lt.s32.totalorder %s205, 63
      %s207 = scalar_select %p206, %s205, 63
      %s208 = smul.addr %s207, 4
      %s209 = scalar_lea.vmem %s0, %s208
      %s210 = smul.u32 32, %s15
      %s211 = smul.u32 32, %s15
      %p212 = scmp.lt.s32.totalorder %s211, 63
      %s213 = scalar_select %p212, %s211, 63
      %s214 = smul.addr %s213, 4
      %s215 = scalar_lea.vmem %s1, %s214
      %s216 = smul.u32 32, %s15
      %s217 = smul.u32 32, %s15
      %p218 = scmp.lt.s32.totalorder %s217, 63
      %s219 = scalar_select %p218, %s217, 63
      %s220 = smul.addr %s219, 4
      %s221 = scalar_lea.vmem %s4, %s220
      %s222 = smul.u32 32, %s15
      %v224 = vld [vmem:[%s209] sm:$0xf]
      %v225 = vld [vmem:[%s209 + $0x4] sm:$0xf]
      %v226 = vld [vmem:[%s209 + $0x8] sm:$0xf]
      %v227 = vld [vmem:[%s209 + $0xc] sm:$0xf]
      %v228 = vld [vmem:[%s209 + $0x10] sm:$0xf]
      %v229 = vld [vmem:[%s209 + $0x14] sm:$0xf]
      %v230 = vld [vmem:[%s209 + $0x18] sm:$0xf]
      %v231 = vld [vmem:[%s209 + $0x1c] sm:$0xf]
      %v232 = vld [vmem:[%s209 + $0x20] sm:$0xf]
      %v233 = vld [vmem:[%s209 + $0x24] sm:$0xf]
      %v234 = vld [vmem:[%s209 + $0x28] sm:$0xf]
      %v235 = vld [vmem:[%s209 + $0x2c] sm:$0xf]
      %v236 = vld [vmem:[%s209 + $0x30] sm:$0xf]
      %v237 = vld [vmem:[%s209 + $0x34] sm:$0xf]
      %v238 = vld [vmem:[%s209 + $0x38] sm:$0xf]
      %v239 = vld [vmem:[%s209 + $0x3c] sm:$0xf]
      %v240 = vld [vmem:[%s209 + $0x40] sm:$0xf]
      %v241 = vld [vmem:[%s209 + $0x44] sm:$0xf]
      %v242 = vld [vmem:[%s209 + $0x48] sm:$0xf]
      %v243 = vld [vmem:[%s209 + $0x4c] sm:$0xf]
      %v244 = vld [vmem:[%s209 + $0x50] sm:$0xf]
      %v245 = vld [vmem:[%s209 + $0x54] sm:$0xf]
      %v246 = vld [vmem:[%s209 + $0x58] sm:$0xf]
      %v247 = vld [vmem:[%s209 + $0x5c] sm:$0xf]
      %v248 = vld [vmem:[%s209 + $0x60] sm:$0xf]
      %v249 = vld [vmem:[%s209 + $0x64] sm:$0xf]
      %v250 = vld [vmem:[%s209 + $0x68] sm:$0xf]
      %v251 = vld [vmem:[%s209 + $0x6c] sm:$0xf]
      %v252 = vld [vmem:[%s209 + $0x70] sm:$0xf]
      %v253 = vld [vmem:[%s209 + $0x74] sm:$0xf]
      %v254 = vld [vmem:[%s209 + $0x78] sm:$0xf]
      %v255 = vld [vmem:[%s209 + $0x7c] sm:$0xf]
      %v256 = vld [vmem:[%s215] sm:$0xf]
      %v257 = vld [vmem:[%s215 + $0x4] sm:$0xf]
      %v258 = vld [vmem:[%s215 + $0x8] sm:$0xf]
      %v259 = vld [vmem:[%s215 + $0xc] sm:$0xf]
      %v260 = vld [vmem:[%s215 + $0x10] sm:$0xf]
      %v261 = vld [vmem:[%s215 + $0x14] sm:$0xf]
      %v262 = vld [vmem:[%s215 + $0x18] sm:$0xf]
      %v263 = vld [vmem:[%s215 + $0x1c] sm:$0xf]
      %v264 = vld [vmem:[%s215 + $0x20] sm:$0xf]
      %v265 = vld [vmem:[%s215 + $0x24] sm:$0xf]
      %v266 = vld [vmem:[%s215 + $0x28] sm:$0xf]
      %v267 = vld [vmem:[%s215 + $0x2c] sm:$0xf]
      %v268 = vld [vmem:[%s215 + $0x30] sm:$0xf]
      %v269 = vld [vmem:[%s215 + $0x34] sm:$0xf]
      %v270 = vld [vmem:[%s215 + $0x38] sm:$0xf]
      %v271 = vld [vmem:[%s215 + $0x3c] sm:$0xf]
      %v272 = vld [vmem:[%s215 + $0x40] sm:$0xf]
      %v273 = vld [vmem:[%s215 + $0x44] sm:$0xf]
      %v274 = vld [vmem:[%s215 + $0x48] sm:$0xf]
      %v275 = vld [vmem:[%s215 + $0x4c] sm:$0xf]
      %v276 = vld [vmem:[%s215 + $0x50] sm:$0xf]
      %v277 = vld [vmem:[%s215 + $0x54] sm:$0xf]
      %v278 = vld [vmem:[%s215 + $0x58] sm:$0xf]
      %v279 = vld [vmem:[%s215 + $0x5c] sm:$0xf]
      %v280 = vld [vmem:[%s215 + $0x60] sm:$0xf]
      %v281 = vld [vmem:[%s215 + $0x64] sm:$0xf]
      %v282 = vld [vmem:[%s215 + $0x68] sm:$0xf]
      %v283 = vld [vmem:[%s215 + $0x6c] sm:$0xf]
      %v284 = vld [vmem:[%s215 + $0x70] sm:$0xf]
      %v285 = vld [vmem:[%s215 + $0x74] sm:$0xf]
      %v286 = vld [vmem:[%s215 + $0x78] sm:$0xf]
      %v287 = vld [vmem:[%s215 + $0x7c] sm:$0xf]
      %v320 = vunpack.c.l.b16 %v224
      %v321 = vunpack.c.l.b16 %v225
      %v322 = vunpack.c.l.b16 %v226
      %v323 = vunpack.c.l.b16 %v227
      %v324 = vunpack.c.l.b16 %v228
      %v325 = vunpack.c.l.b16 %v229
      %v326 = vunpack.c.l.b16 %v230
      %v327 = vunpack.c.l.b16 %v231
      %v328 = vunpack.c.l.b16 %v232
      %v329 = vunpack.c.l.b16 %v233
      %v330 = vunpack.c.l.b16 %v234
      %v331 = vunpack.c.l.b16 %v235
      %v332 = vunpack.c.l.b16 %v236
      %v333 = vunpack.c.l.b16 %v237
      %v334 = vunpack.c.l.b16 %v238
      %v335 = vunpack.c.l.b16 %v239
      %v336 = vunpack.c.l.b16 %v240
      %v337 = vunpack.c.l.b16 %v241
      %v338 = vunpack.c.l.b16 %v242
      %v339 = vunpack.c.l.b16 %v243
      %v340 = vunpack.c.l.b16 %v244
      %v341 = vunpack.c.l.b16 %v245
      %v342 = vunpack.c.l.b16 %v246
      %v343 = vunpack.c.l.b16 %v247
      %v344 = vunpack.c.l.b16 %v248
      %v345 = vunpack.c.l.b16 %v249
      %v346 = vunpack.c.l.b16 %v250
      %v347 = vunpack.c.l.b16 %v251
      %v348 = vunpack.c.l.b16 %v252
      %v349 = vunpack.c.l.b16 %v253
      %v350 = vunpack.c.l.b16 %v254
      %v351 = vunpack.c.l.b16 %v255
      %v352 = vpack.c.b16 %v321, %v320
      %v353 = vpack.c.b16 %v323, %v322
      %v354 = vpack.c.b16 %v325, %v324
      %v355 = vpack.c.b16 %v327, %v326
      %v356 = vpack.c.b16 %v329, %v328
      %v357 = vpack.c.b16 %v331, %v330
      %v358 = vpack.c.b16 %v333, %v332
      %v359 = vpack.c.b16 %v335, %v334
      %v360 = vpack.c.b16 %v337, %v336
      %v361 = vpack.c.b16 %v339, %v338
      %v362 = vpack.c.b16 %v341, %v340
      %v363 = vpack.c.b16 %v343, %v342
      %v364 = vpack.c.b16 %v345, %v344
      %v365 = vpack.c.b16 %v347, %v346
      %v366 = vpack.c.b16 %v349, %v348
      %v367 = vpack.c.b16 %v351, %v350
      %v416 = vunpack.c.l.b16 %v256
      %v417 = vunpack.c.l.b16 %v257
      %v418 = vunpack.c.l.b16 %v258
      %v419 = vunpack.c.l.b16 %v259
      %v420 = vunpack.c.l.b16 %v260
      %v421 = vunpack.c.l.b16 %v261
      %v422 = vunpack.c.l.b16 %v262
      %v423 = vunpack.c.l.b16 %v263
      %v424 = vunpack.c.l.b16 %v264
      %v425 = vunpack.c.l.b16 %v265
      %v426 = vunpack.c.l.b16 %v266
      %v427 = vunpack.c.l.b16 %v267
      %v428 = vunpack.c.l.b16 %v268
      %v429 = vunpack.c.l.b16 %v269
      %v430 = vunpack.c.l.b16 %v270
      %v431 = vunpack.c.l.b16 %v271
      %v432 = vunpack.c.l.b16 %v272
      %v433 = vunpack.c.l.b16 %v273
      %v434 = vunpack.c.l.b16 %v274
      %v435 = vunpack.c.l.b16 %v275
      %v436 = vunpack.c.l.b16 %v276
      %v437 = vunpack.c.l.b16 %v277
      %v438 = vunpack.c.l.b16 %v278
      %v439 = vunpack.c.l.b16 %v279
      %v440 = vunpack.c.l.b16 %v280
      %v441 = vunpack.c.l.b16 %v281
      %v442 = vunpack.c.l.b16 %v282
      %v443 = vunpack.c.l.b16 %v283
      %v444 = vunpack.c.l.b16 %v284
      %v445 = vunpack.c.l.b16 %v285
      %v446 = vunpack.c.l.b16 %v286
      %v447 = vunpack.c.l.b16 %v287
      %v448 = vpack.c.b16 %v417, %v416
      %v449 = vpack.c.b16 %v419, %v418
      %v450 = vpack.c.b16 %v421, %v420
      %v451 = vpack.c.b16 %v423, %v422
      %v452 = vpack.c.b16 %v425, %v424
      %v453 = vpack.c.b16 %v427, %v426
      %v454 = vpack.c.b16 %v429, %v428
      %v455 = vpack.c.b16 %v431, %v430
      %v456 = vpack.c.b16 %v433, %v432
      %v457 = vpack.c.b16 %v435, %v434
      %v458 = vpack.c.b16 %v437, %v436
      %v459 = vpack.c.b16 %v439, %v438
      %v460 = vpack.c.b16 %v441, %v440
      %v461 = vpack.c.b16 %v443, %v442
      %v462 = vpack.c.b16 %v445, %v444
      %v463 = vpack.c.b16 %v447, %v446
      %v480 = vld [vmem:[%s2] sm:$0xf]
      %v481 = vld [vmem:[%s2 + $0x4] sm:$0xf]
      %v482 = vld [vmem:[%s2 + $0x8] sm:$0xf]
      %v483 = vld [vmem:[%s2 + $0xc] sm:$0xf]
      %v484 = vld [vmem:[%s2 + $0x10] sm:$0xf]
      %v485 = vld [vmem:[%s2 + $0x14] sm:$0xf]
      %v486 = vld [vmem:[%s2 + $0x18] sm:$0xf]
      %v487 = vld [vmem:[%s2 + $0x1c] sm:$0xf]
      %v488 = vld [vmem:[%s2 + $0x20] sm:$0xf]
      %v489 = vld [vmem:[%s2 + $0x24] sm:$0xf]
      %v490 = vld [vmem:[%s2 + $0x28] sm:$0xf]
      %v491 = vld [vmem:[%s2 + $0x2c] sm:$0xf]
      %v492 = vld [vmem:[%s2 + $0x30] sm:$0xf]
      %v493 = vld [vmem:[%s2 + $0x34] sm:$0xf]
      %v494 = vld [vmem:[%s2 + $0x38] sm:$0xf]
      %v495 = vld [vmem:[%s2 + $0x3c] sm:$0xf]
      %v496 = vld [vmem:[%s2 + $0x40] sm:$0xf]
      %v497 = vld [vmem:[%s2 + $0x44] sm:$0xf]
      %v498 = vld [vmem:[%s2 + $0x48] sm:$0xf]
      %v499 = vld [vmem:[%s2 + $0x4c] sm:$0xf]
      %v500 = vld [vmem:[%s2 + $0x50] sm:$0xf]
      %v501 = vld [vmem:[%s2 + $0x54] sm:$0xf]
      %v502 = vld [vmem:[%s2 + $0x58] sm:$0xf]
      %v503 = vld [vmem:[%s2 + $0x5c] sm:$0xf]
      %v504 = vld [vmem:[%s2 + $0x60] sm:$0xf]
      %v505 = vld [vmem:[%s2 + $0x64] sm:$0xf]
      %v506 = vld [vmem:[%s2 + $0x68] sm:$0xf]
      %v507 = vld [vmem:[%s2 + $0x6c] sm:$0xf]
      %v508 = vld [vmem:[%s2 + $0x70] sm:$0xf]
      %v509 = vld [vmem:[%s2 + $0x74] sm:$0xf]
      %v510 = vld [vmem:[%s2 + $0x78] sm:$0xf]
      %v511 = vld [vmem:[%s2 + $0x7c] sm:$0xf]
      %v512 = vld [vmem:[%s3] sm:$0x1]
      %v514 = vlaneseq
      %v515 = vshrl.u32 %v514, 7
      %v516 = vsub.s32 0, %v515
      %v517 = vrot.slane %v512, %v516
      %v551 = vunpack.c.l.b16 %v480
      %v552 = vunpack.c.l.b16 %v481
      %v553 = vunpack.c.l.b16 %v482
      %v554 = vunpack.c.l.b16 %v483
      %v555 = vunpack.c.l.b16 %v484
      %v556 = vunpack.c.l.b16 %v485
      %v557 = vunpack.c.l.b16 %v486
      %v558 = vunpack.c.l.b16 %v487
      %v559 = vunpack.c.l.b16 %v488
      %v560 = vunpack.c.l.b16 %v489
      %v561 = vunpack.c.l.b16 %v490
      %v562 = vunpack.c.l.b16 %v491
      %v563 = vunpack.c.l.b16 %v492
      %v564 = vunpack.c.l.b16 %v493
      %v565 = vunpack.c.l.b16 %v494
      %v566 = vunpack.c.l.b16 %v495
      %v567 = vunpack.c.l.b16 %v496
      %v568 = vunpack.c.l.b16 %v497
      %v569 = vunpack.c.l.b16 %v498
      %v570 = vunpack.c.l.b16 %v499
      %v571 = vunpack.c.l.b16 %v500
      %v572 = vunpack.c.l.b16 %v501
      %v573 = vunpack.c.l.b16 %v502
      %v574 = vunpack.c.l.b16 %v503
      %v575 = vunpack.c.l.b16 %v504
      %v576 = vunpack.c.l.b16 %v505
      %v577 = vunpack.c.l.b16 %v506
      %v578 = vunpack.c.l.b16 %v507
      %v579 = vunpack.c.l.b16 %v508
      %v580 = vunpack.c.l.b16 %v509
      %v581 = vunpack.c.l.b16 %v510
      %v582 = vunpack.c.l.b16 %v511
      %v583 = vpack.c.b16 %v552, %v551
      %v584 = vpack.c.b16 %v554, %v553
      %v585 = vpack.c.b16 %v556, %v555
      %v586 = vpack.c.b16 %v558, %v557
      %v587 = vpack.c.b16 %v560, %v559
      %v588 = vpack.c.b16 %v562, %v561
      %v589 = vpack.c.b16 %v564, %v563
      %v590 = vpack.c.b16 %v566, %v565
      %v591 = vpack.c.b16 %v568, %v567
      %v592 = vpack.c.b16 %v570, %v569
      %v593 = vpack.c.b16 %v572, %v571
      %v594 = vpack.c.b16 %v574, %v573
      %v595 = vpack.c.b16 %v576, %v575
      %v596 = vpack.c.b16 %v578, %v577
      %v597 = vpack.c.b16 %v580, %v579
      %v598 = vpack.c.b16 %v582, %v581
      %615 = vmatprep.subr.bf16.mxu0 0
      %616 = vmatpush1.bf16.msra.mxu0 %v583
      %617 = vmatprep.subr.bf16.mxu0 0
      %618 = vmatpush1.bf16.msra.mxu0 %v584
      %619 = vmatprep.subr.bf16.mxu0 0
      %620 = vmatpush1.bf16.msra.mxu0 %v585
      %621 = vmatprep.subr.bf16.mxu0 0
      %622 = vmatpush1.bf16.msra.mxu0 %v586
      %623 = vmatprep.subr.bf16.mxu0 0
      %624 = vmatpush1.bf16.msra.mxu0 %v587
      %625 = vmatprep.subr.bf16.mxu0 0
      %626 = vmatpush1.bf16.msra.mxu0 %v588
      %627 = vmatprep.subr.bf16.mxu0 0
      %628 = vmatpush1.bf16.msra.mxu0 %v589
      %629 = vmatprep.subr.bf16.mxu0 0
      %630 = vmatpush1.bf16.msra.mxu0 %v590
      %631 = vmatprep.subr.bf16.mxu0 0
      %632 = vmatpush1.bf16.msra.mxu0 %v591
      %633 = vmatprep.subr.bf16.mxu0 0
      %634 = vmatpush1.bf16.msra.mxu0 %v592
      %635 = vmatprep.subr.bf16.mxu0 0
      %636 = vmatpush1.bf16.msra.mxu0 %v593
      %637 = vmatprep.subr.bf16.mxu0 0
      %638 = vmatpush1.bf16.msra.mxu0 %v594
      %639 = vmatprep.subr.bf16.mxu0 0
      %640 = vmatpush1.bf16.msra.mxu0 %v595
      %641 = vmatprep.subr.bf16.mxu0 0
      %642 = vmatpush1.bf16.msra.mxu0 %v596
      %643 = vmatprep.subr.bf16.mxu0 0
      %644 = vmatpush1.bf16.msra.mxu0 %v597
      %645 = vmatprep.subr.bf16.mxu0 0
      %646 = vmatpush1.bf16.msra.mxu0 %v598
      %647 = vmatprep.mubr.bf16.mxu0 %v448
      %648 = vmatmul.mubr.bf16.gmra.mrb[0].mxu0 %v352
      %v649 = vpop.f32.mrb[0].mxu0
      %v650 = vadd.f32 %v517, %v649
      %v651 = vpop.f32.mrb[0].mxu0
      %v652 = vpop.f32.mrb[0].mxu0
      %v653 = vadd.f32 %v517, %v652
      %v654 = vpop.f32.mrb[0].mxu0
      %655 = vmatprep.mubr.bf16.mxu0 %v449
      %656 = vmatmul.mubr.bf16.gmra.mrb[0].mxu0 %v353
      %v657 = vpop.f32.mrb[0].mxu0
      %v658 = vadd.f32 %v517, %v657
      %v659 = vpop.f32.mrb[0].mxu0
      %v660 = vpop.f32.mrb[0].mxu0
      %v661 = vadd.f32 %v517, %v660
      %v662 = vpop.f32.mrb[0].mxu0
      %663 = vmatprep.mubr.bf16.mxu0 %v450
      %664 = vmatmul.mubr.bf16.gmra.mrb[0].mxu0 %v354
      %v665 = vpop.f32.mrb[0].mxu0
      %v666 = vadd.f32 %v517, %v665
      %v667 = vpop.f32.mrb[0].mxu0
      %v668 = vpop.f32.mrb[0].mxu0
      %v669 = vadd.f32 %v517, %v668
      %v670 = vpop.f32.mrb[0].mxu0
      %671 = vmatprep.mubr.bf16.mxu0 %v451
      %672 = vmatmul.mubr.bf16.gmra.mrb[0].mxu0 %v355
      %v673 = vpop.f32.mrb[0].mxu0
      %v674 = vadd.f32 %v517, %v673
      %v675 = vpop.f32.mrb[0].mxu0
      %v676 = vpop.f32.mrb[0].mxu0
      %v677 = vadd.f32 %v517, %v676
      %v678 = vpop.f32.mrb[0].mxu0
      %679 = vmatprep.mubr.bf16.mxu0 %v452
      %680 = vmatmul.mubr.bf16.gmra.mrb[0].mxu0 %v356
      %v681 = vpop.f32.mrb[0].mxu0
      %v682 = vadd.f32 %v517, %v681
      %v683 = vpop.f32.mrb[0].mxu0
      %v684 = vpop.f32.mrb[0].mxu0
      %v685 = vadd.f32 %v517, %v684
      %v686 = vpop.f32.mrb[0].mxu0
      %687 = vmatprep.mubr.bf16.mxu0 %v453
      %688 = vmatmul.mubr.bf16.gmra.mrb[0].mxu0 %v357
      %v689 = vpop.f32.mrb[0].mxu0
      %v690 = vadd.f32 %v517, %v689
      %v691 = vpop.f32.mrb[0].mxu0
      %v692 = vpop.f32.mrb[0].mxu0
      %v693 = vadd.f32 %v517, %v692
      %v694 = vpop.f32.mrb[0].mxu0
      %695 = vmatprep.mubr.bf16.mxu0 %v454
      %696 = vmatmul.mubr.bf16.gmra.mrb[0].mxu0 %v358
      %v697 = vpop.f32.mrb[0].mxu0
      %v698 = vadd.f32 %v517, %v697
      %v699 = vpop.f32.mrb[0].mxu0
      %v700 = vpop.f32.mrb[0].mxu0
      %v701 = vadd.f32 %v517, %v700
      %v702 = vpop.f32.mrb[0].mxu0
      %703 = vmatprep.mubr.bf16.mxu0 %v455
      %704 = vmatmul.mubr.bf16.gmra.mrb[0].mxu0 %v359
      %v705 = vpop.f32.mrb[0].mxu0
      %v706 = vadd.f32 %v517, %v705
      %v707 = vpop.f32.mrb[0].mxu0
      %v708 = vpop.f32.mrb[0].mxu0
      %v709 = vadd.f32 %v517, %v708
      %v710 = vpop.f32.mrb[0].mxu0
      %711 = vmatprep.mubr.bf16.mxu0 %v456
      %712 = vmatmul.mubr.bf16.gmra.mrb[0].mxu0 %v360
      %v713 = vpop.f32.mrb[0].mxu0
      %v714 = vadd.f32 %v517, %v713
      %v715 = vpop.f32.mrb[0].mxu0
      %v716 = vpop.f32.mrb[0].mxu0
      %v717 = vadd.f32 %v517, %v716
      %v718 = vpop.f32.mrb[0].mxu0
      %719 = vmatprep.mubr.bf16.mxu0 %v457
      %720 = vmatmul.mubr.bf16.gmra.mrb[0].mxu0 %v361
      %v721 = vpop.f32.mrb[0].mxu0
      %v722 = vadd.f32 %v517, %v721
      %v723 = vpop.f32.mrb[0].mxu0
      %v724 = vpop.f32.mrb[0].mxu0
      %v725 = vadd.f32 %v517, %v724
      %v726 = vpop.f32.mrb[0].mxu0
      %727 = vmatprep.mubr.bf16.mxu0 %v458
      %728 = vmatmul.mubr.bf16.gmra.mrb[0].mxu0 %v362
      %v729 = vpop.f32.mrb[0].mxu0
      %v730 = vadd.f32 %v517, %v729
      %v731 = vpop.f32.mrb[0].mxu0
      %v732 = vpop.f32.mrb[0].mxu0
      %v733 = vadd.f32 %v517, %v732
      %v734 = vpop.f32.mrb[0].mxu0
      %735 = vmatprep.mubr.bf16.mxu0 %v459
      %736 = vmatmul.mubr.bf16.gmra.mrb[0].mxu0 %v363
      %v737 = vpop.f32.mrb[0].mxu0
      %v738 = vadd.f32 %v517, %v737
      %v739 = vpop.f32.mrb[0].mxu0
      %v740 = vpop.f32.mrb[0].mxu0
      %v741 = vadd.f32 %v517, %v740
      %v742 = vpop.f32.mrb[0].mxu0
      %743 = vmatprep.mubr.bf16.mxu0 %v460
      %744 = vmatmul.mubr.bf16.gmra.mrb[0].mxu0 %v364
      %v745 = vpop.f32.mrb[0].mxu0
      %v746 = vadd.f32 %v517, %v745
      %v747 = vpop.f32.mrb[0].mxu0
      %v748 = vpop.f32.mrb[0].mxu0
      %v749 = vadd.f32 %v517, %v748
      %v750 = vpop.f32.mrb[0].mxu0
      %751 = vmatprep.mubr.bf16.mxu0 %v461
      %752 = vmatmul.mubr.bf16.gmra.mrb[0].mxu0 %v365
      %v753 = vpop.f32.mrb[0].mxu0
      %v754 = vadd.f32 %v517, %v753
      %v755 = vpop.f32.mrb[0].mxu0
      %v756 = vpop.f32.mrb[0].mxu0
      %v757 = vadd.f32 %v517, %v756
      %v758 = vpop.f32.mrb[0].mxu0
      %759 = vmatprep.mubr.bf16.mxu0 %v462
      %760 = vmatmul.mubr.bf16.gmra.mrb[0].mxu0 %v366
      %v761 = vpop.f32.mrb[0].mxu0
      %v762 = vadd.f32 %v517, %v761
      %v763 = vpop.f32.mrb[0].mxu0
      %v764 = vpop.f32.mrb[0].mxu0
      %v765 = vadd.f32 %v517, %v764
      %v766 = vpop.f32.mrb[0].mxu0
      %767 = vmatprep.mubr.bf16.mxu0 %v463
      %768 = vmatmul.mubr.bf16.gmra.mrb[0].mxu0 %v367
      %v769 = vpop.f32.mrb[0].mxu0
      %v770 = vadd.f32 %v517, %v769
      %v771 = vpop.f32.mrb[0].mxu0
      %v772 = vpop.f32.mrb[0].mxu0
      %v773 = vadd.f32 %v517, %v772
      %v774 = vpop.f32.mrb[0].mxu0
      %775 = vdwg.mxu0
      %v776 = vmax.f32 %v650, 0.0
      %v777 = vmax.f32 %v653, 0.0
      %v778 = vmax.f32 %v658, 0.0
      %v779 = vmax.f32 %v661, 0.0
      %v780 = vmax.f32 %v666, 0.0
      %v781 = vmax.f32 %v669, 0.0
      %v782 = vmax.f32 %v674, 0.0
      %v783 = vmax.f32 %v677, 0.0
      %v784 = vmax.f32 %v682, 0.0
      %v785 = vmax.f32 %v685, 0.0
      %v786 = vmax.f32 %v690, 0.0
      %v787 = vmax.f32 %v693, 0.0
      %v788 = vmax.f32 %v698, 0.0
      %v789 = vmax.f32 %v701, 0.0
      %v790 = vmax.f32 %v706, 0.0
      %v791 = vmax.f32 %v709, 0.0
      %v792 = vmax.f32 %v714, 0.0
      %v793 = vmax.f32 %v717, 0.0
      %v794 = vmax.f32 %v722, 0.0
      %v795 = vmax.f32 %v725, 0.0
      %v796 = vmax.f32 %v730, 0.0
      %v797 = vmax.f32 %v733, 0.0
      %v798 = vmax.f32 %v738, 0.0
      %v799 = vmax.f32 %v741, 0.0
      %v800 = vmax.f32 %v746, 0.0
      %v801 = vmax.f32 %v749, 0.0
      %v802 = vmax.f32 %v754, 0.0
      %v803 = vmax.f32 %v757, 0.0
      %v804 = vmax.f32 %v762, 0.0
      %v805 = vmax.f32 %v765, 0.0
      %v806 = vmax.f32 %v770, 0.0
      %v807 = vmax.f32 %v773, 0.0
      %v808 = vpack.c.bf16 %v777, %v776
      %v809 = vpack.c.bf16 %v779, %v778
      %v810 = vpack.c.bf16 %v781, %v780
      %v811 = vpack.c.bf16 %v783, %v782
      %v812 = vpack.c.bf16 %v785, %v784
      %v813 = vpack.c.bf16 %v787, %v786
      %v814 = vpack.c.bf16 %v789, %v788
      %v815 = vpack.c.bf16 %v791, %v790
      %v816 = vpack.c.bf16 %v793, %v792
      %v817 = vpack.c.bf16 %v795, %v794
      %v818 = vpack.c.bf16 %v797, %v796
      %v819 = vpack.c.bf16 %v799, %v798
      %v820 = vpack.c.bf16 %v801, %v800
      %v821 = vpack.c.bf16 %v803, %v802
      %v822 = vpack.c.bf16 %v805, %v804
      %v823 = vpack.c.bf16 %v807, %v806
      %v840 = vunpack.c.l.b16 %v808
      %v841 = vunpack.c.h.b16 %v808
      %v842 = vunpack.c.l.b16 %v809
      %v843 = vunpack.c.h.b16 %v809
      %v844 = vunpack.c.l.b16 %v810
      %v845 = vunpack.c.h.b16 %v810
      %v846 = vunpack.c.l.b16 %v811
      %v847 = vunpack.c.h.b16 %v811
      %v848 = vunpack.c.l.b16 %v812
      %v849 = vunpack.c.h.b16 %v812
      %v850 = vunpack.c.l.b16 %v813
      %v851 = vunpack.c.h.b16 %v813
      %v852 = vunpack.c.l.b16 %v814
      %v853 = vunpack.c.h.b16 %v814
      %v854 = vunpack.c.l.b16 %v815
      %v855 = vunpack.c.h.b16 %v815
      %v856 = vunpack.c.l.b16 %v816
      %v857 = vunpack.c.h.b16 %v816
      %v858 = vunpack.c.l.b16 %v817
      %v859 = vunpack.c.h.b16 %v817
      %v860 = vunpack.c.l.b16 %v818
      %v861 = vunpack.c.h.b16 %v818
      %v862 = vunpack.c.l.b16 %v819
      %v863 = vunpack.c.h.b16 %v819
      %v864 = vunpack.c.l.b16 %v820
      %v865 = vunpack.c.h.b16 %v820
      %v866 = vunpack.c.l.b16 %v821
      %v867 = vunpack.c.h.b16 %v821
      %v868 = vunpack.c.l.b16 %v822
      %v869 = vunpack.c.h.b16 %v822
      %v870 = vunpack.c.l.b16 %v823
      %v871 = vunpack.c.h.b16 %v823
      %v872 = vpack.c.b16 %v840, %v840
      %v873 = vpack.c.b16 %v841, %v841
      %v874 = vpack.c.b16 %v842, %v842
      %v875 = vpack.c.b16 %v843, %v843
      %v876 = vpack.c.b16 %v844, %v844
      %v877 = vpack.c.b16 %v845, %v845
      %v878 = vpack.c.b16 %v846, %v846
      %v879 = vpack.c.b16 %v847, %v847
      %v880 = vpack.c.b16 %v848, %v848
      %v881 = vpack.c.b16 %v849, %v849
      %v882 = vpack.c.b16 %v850, %v850
      %v883 = vpack.c.b16 %v851, %v851
      %v884 = vpack.c.b16 %v852, %v852
      %v885 = vpack.c.b16 %v853, %v853
      %v886 = vpack.c.b16 %v854, %v854
      %v887 = vpack.c.b16 %v855, %v855
      %v888 = vpack.c.b16 %v856, %v856
      %v889 = vpack.c.b16 %v857, %v857
      %v890 = vpack.c.b16 %v858, %v858
      %v891 = vpack.c.b16 %v859, %v859
      %v892 = vpack.c.b16 %v860, %v860
      %v893 = vpack.c.b16 %v861, %v861
      %v894 = vpack.c.b16 %v862, %v862
      %v895 = vpack.c.b16 %v863, %v863
      %v896 = vpack.c.b16 %v864, %v864
      %v897 = vpack.c.b16 %v865, %v865
      %v898 = vpack.c.b16 %v866, %v866
      %v899 = vpack.c.b16 %v867, %v867
      %v900 = vpack.c.b16 %v868, %v868
      %v901 = vpack.c.b16 %v869, %v869
      %v902 = vpack.c.b16 %v870, %v870
      %v903 = vpack.c.b16 %v871, %v871
      %936 = vst [vmem:[%s221] sm:$0xf] %v872
      %937 = vst [vmem:[%s221 + $0x4] sm:$0xf] %v873
      %938 = vst [vmem:[%s221 + $0x8] sm:$0xf] %v874
      %939 = vst [vmem:[%s221 + $0xc] sm:$0xf] %v875
      %940 = vst [vmem:[%s221 + $0x10] sm:$0xf] %v876
      %941 = vst [vmem:[%s221 + $0x14] sm:$0xf] %v877
      %942 = vst [vmem:[%s221 + $0x18] sm:$0xf] %v878
      %943 = vst [vmem:[%s221 + $0x1c] sm:$0xf] %v879
      %944 = vst [vmem:[%s221 + $0x20] sm:$0xf] %v880
      %945 = vst [vmem:[%s221 + $0x24] sm:$0xf] %v881
      %946 = vst [vmem:[%s221 + $0x28] sm:$0xf] %v882
      %947 = vst [vmem:[%s221 + $0x2c] sm:$0xf] %v883
      %948 = vst [vmem:[%s221 + $0x30] sm:$0xf] %v884
      %949 = vst [vmem:[%s221 + $0x34] sm:$0xf] %v885
      %950 = vst [vmem:[%s221 + $0x38] sm:$0xf] %v886
      %951 = vst [vmem:[%s221 + $0x3c] sm:$0xf] %v887
      %952 = vst [vmem:[%s221 + $0x40] sm:$0xf] %v888
      %953 = vst [vmem:[%s221 + $0x44] sm:$0xf] %v889
      %954 = vst [vmem:[%s221 + $0x48] sm:$0xf] %v890
      %955 = vst [vmem:[%s221 + $0x4c] sm:$0xf] %v891
      %956 = vst [vmem:[%s221 + $0x50] sm:$0xf] %v892
      %957 = vst [vmem:[%s221 + $0x54] sm:$0xf] %v893
      %958 = vst [vmem:[%s221 + $0x58] sm:$0xf] %v894
      %959 = vst [vmem:[%s221 + $0x5c] sm:$0xf] %v895
      %960 = vst [vmem:[%s221 + $0x60] sm:$0xf] %v896
      %961 = vst [vmem:[%s221 + $0x64] sm:$0xf] %v897
      %962 = vst [vmem:[%s221 + $0x68] sm:$0xf] %v898
      %963 = vst [vmem:[%s221 + $0x6c] sm:$0xf] %v899
      %964 = vst [vmem:[%s221 + $0x70] sm:$0xf] %v900
      %965 = vst [vmem:[%s221 + $0x74] sm:$0xf] %v901
      %966 = vst [vmem:[%s221 + $0x78] sm:$0xf] %v902
      %967 = vst [vmem:[%s221 + $0x7c] sm:$0xf] %v903
      %s968 = smul.u32 32, %s15
      %p969 = scmp.lt.s32.totalorder %s968, 63
      %s970 = scalar_select %p969, %s968, 63
      %s971 = smul.addr %s970, 4
      %s972 = scalar_lea.vmem %s4, %s971
      // Predicated region
      $region37: #{encoder_cnn_forward.13} parent=35 // pred_check
        %p973 = pneg %p127
      $region38: #{encoder_cnn_forward.13} parent=35 // pred_check_branch
        %975 = sbr.rel (%p973) target = $region40
      $region39: #{encoder_cnn_forward.13} parent=35 // pred_region
        %s976 = smul.u32 32, %s15
      $region40: #{encoder_cnn_forward.13} parent=35 // pred_fallthru
        _
    $region36: #{encoder_cnn_forward.13} parent=5 // pred_fallthru
      _
    %p977 = scmp.le.s32.totalorder 2, %s10
    // Predicated region
    $region41: #{encoder_cnn_forward.13} parent=5 // pred_check
      %p978 = pneg %p977
    $region42: #{encoder_cnn_forward.13} parent=5 // pred_check_branch
      %980 = sbr.rel (%p978) target = $region44
    $region43: #{encoder_cnn_forward.13} parent=5 // pred_region
      %s981 = ssub.s32 %s10, 2
      // Predicated region
      $region45: #{encoder_cnn_forward.13} parent=43 // pred_check
        %p982 = pneg %p133
      $region46: #{encoder_cnn_forward.13} parent=43 // pred_check_branch
        %984 = sbr.rel (%p982) target = $region48
      $region47: #{encoder_cnn_forward.13} parent=43 // pred_region
        %s985 = smul.u32 32, %s16
        %p986 = scmp.lt.s32.totalorder %s985, 63
        %s987 = scalar_select %p986, %s985, 63
        %s988 = smul.addr %s987, 4
        %s989 = scalar_lea.vmem %s4, %s988
      $region48: #{encoder_cnn_forward.13} parent=43 // pred_fallthru
        _
    $region44: #{encoder_cnn_forward.13} parent=5 // pred_fallthru
      _
  $region6: #{encoder_cnn_forward.13} parent=0 // loop_footer
    %s14 = sadd.s32 1, %s10
  $region7: #{encoder_cnn_forward.13} parent=0 // loop_footer_branch
    %9 = sbr.rel target = $region3
  $region8: #{encoder_cnn_forward.13} parent=0 // loop_exit
    _

// kernel: encoder_cnn_forward.12
$region0: #{encoder_cnn_forward.12}
  #allocation0 [shape = 'u32[]', space=smem, size = 0x4, offset = 0x4, fixed_abs, tag = 'smem constant byte address 0x4 - core index']
  #allocation1 [shape = 'u32[144,128]{1,0:T(1,128)}', space=vmem, size = 0x12000, scoped, tag = 'internal scratch']
  %s0 = inlined_call_operand.vmem [shape: bf16[2,1,18,18,128], index: 0, kind: input, shape index: {}]
  %s1 = inlined_call_operand.vmem [shape: bf16[9,128,128], index: 1, kind: input, shape index: {}]
  %s2 = inlined_call_operand.vmem [shape: f32[1,128], index: 2, kind: input, shape index: {}]
  %s3 = inlined_call_operand.vmem [shape: bf16[2,16,16,128], index: 3, kind: output, shape index: {}]
  %s4 = sld [smem:[#allocation0]]
  $region45: #{encoder_cnn_forward.12} parent=0
    _
  %s6 = ssub.s32 1, %s4
  %s7 = scalar_select 0, %s6, %s4
  loop: start=0, step=1, limit=10
  $region2: #{encoder_cnn_forward.12} parent=0 // loop_pre_header
    _
  $region3: #{encoder_cnn_forward.12} parent=0 // loop_header
    %s9 = sphi 0, %s13
    %p10 = scmp.ge.s32.totalorder %s9, 10
    %s16 = sphi 0, %s28
    %s17 = sphi 0, %s24
    %s18 = sphi 0, %s16
    %s19 = sphi 0, %s17
    %s20 = sphi 0, %s18
    %s21 = sphi 0, %s19
    %s31 = sphi 0, %s33
    %s34 = sphi 0, %s31
    %s35 = sphi 0, %s34
    %s51 = sphi 0, %s35
    %s55 = sphi 0, %s55
    %s57 = sphi 0, %s55
    %s58 = sphi 0, %s57
    %s72 = sphi 0, %s58
    %s76 = sphi 0, %s76
    %s78 = sphi 0, %s76
    %s79 = sphi 0, %s78
    %s93 = sphi 0, %s79
    %s101 = sphi 0, %s103
    %s104 = sphi 0, %s101
    %s105 = sphi 0, %s104
    %s121 = sphi 0, %s105
  $region4: #{encoder_cnn_forward.12} parent=0 // loop_header_branch
    %12 = sbr.rel (%p10) target = $region8
  $region5: #{encoder_cnn_forward.12} parent=0 // loop_body
    %s14 = ssub.s32 %s9, 1
    %s15 = ssub.s32 %s9, 2
    %s22 = sadd.s32 1, %s17
    %p23 = scmp.ge.s32.totalorder %s22, 4
    %s24 = scalar_select %p23, 0, %s22
    %s25 = sadd.s32 1, %s16
    %s26 = scalar_select %p23, %s25, %s16
    %p27 = scmp.ge.s32.totalorder %s26, 2
    %s28 = scalar_select %p27, 0, %s26
    %s29 = ssub.s32 %s16, %s28
    %p30 = scmp.eq.s32.totalorder %s29, 0
    %s32 = sadd.s32 %s31, 1
    %s33 = scalar_select %p30, %s31, %s32
    %p36 = pneg %p30
    %p37 = scmp.eq.s32.totalorder %s9, 7
    %p38 = por %p36, %p37
    %p39 = scmp.ne.s32.totalorder %s31, %s34
    %p40 = scmp.eq.s32.totalorder %s9, 0
    %p41 = por %p39, %p40
    %p42 = scmp.ne.s32.totalorder %s31, %s34
    %p43 = scmp.eq.s32.totalorder %s14, 7
    %p44 = por %p42, %p43
    %p45 = scmp.ne.s32.totalorder %s34, %s35
    %p46 = scmp.eq.s32.totalorder %s14, 0
    %p47 = por %p45, %p46
    %p48 = scmp.ne.s32.totalorder %s34, %s35
    %p49 = scmp.eq.s32.totalorder %s15, 7
    %p50 = por %p48, %p49
    %p52 = scmp.ne.s32.totalorder %s35, %s51
    %p53 = scmp.eq.s32.totalorder %s15, 0
    %p54 = por %p52, %p53
    %s56 = sadd.s32 %s55, 1
    %p59 = scmp.eq.s32.totalorder %s9, 7
    %p60 = scmp.ne.s32.totalorder %s55, %s57
    %p61 = scmp.eq.s32.totalorder %s9, 0
    %p62 = por %p60, %p61
    %p63 = scmp.ne.s32.totalorder %s55, %s57
    %p64 = scmp.eq.s32.totalorder %s14, 7
    %p65 = por %p63, %p64
    %p66 = scmp.ne.s32.totalorder %s57, %s58
    %p67 = scmp.eq.s32.totalorder %s14, 0
    %p68 = por %p66, %p67
    %p69 = scmp.ne.s32.totalorder %s57, %s58
    %p70 = scmp.eq.s32.totalorder %s15, 7
    %p71 = por %p69, %p70
    %p73 = scmp.ne.s32.totalorder %s58, %s72
    %p74 = scmp.eq.s32.totalorder %s15, 0
    %p75 = por %p73, %p74
    %s77 = sadd.s32 %s76, 1
    %p80 = scmp.eq.s32.totalorder %s9, 7
    %p81 = scmp.ne.s32.totalorder %s76, %s78
    %p82 = scmp.eq.s32.totalorder %s9, 0
    %p83 = por %p81, %p82
    %p84 = scmp.ne.s32.totalorder %s76, %s78
    %p85 = scmp.eq.s32.totalorder %s14, 7
    %p86 = por %p84, %p85
    %p87 = scmp.ne.s32.totalorder %s78, %s79
    %p88 = scmp.eq.s32.totalorder %s14, 0
    %p89 = por %p87, %p88
    %p90 = scmp.ne.s32.totalorder %s78, %s79
    %p91 = scmp.eq.s32.totalorder %s15, 7
    %p92 = por %p90, %p91
    %p94 = scmp.ne.s32.totalorder %s79, %s93
    %p95 = scmp.eq.s32.totalorder %s15, 0
    %p96 = por %p94, %p95
    %s97 = ssub.s32 %s16, %s28
    %s98 = ssub.s32 %s17, %s24
    %s99 = sor.u32 %s97, %s98
    %p100 = scmp.eq.s32.totalorder %s99, 0
    %s102 = sadd.s32 %s101, 1
    %s103 = scalar_select %p100, %s101, %s102
    %p106 = pneg %p100
    %p107 = scmp.eq.s32.totalorder %s9, 7
    %p108 = por %p106, %p107
    %p109 = scmp.ne.s32.totalorder %s101, %s104
    %p110 = scmp.eq.s32.totalorder %s9, 0
    %p111 = por %p109, %p110
    %p112 = scmp.ne.s32.totalorder %s101, %s104
    %p113 = scmp.eq.s32.totalorder %s14, 7
    %p114 = por %p112, %p113
    %p115 = scmp.ne.s32.totalorder %s104, %s105
    %p116 = scmp.eq.s32.totalorder %s14, 0
    %p117 = por %p115, %p116
    %p118 = scmp.ne.s32.totalorder %s104, %s105
    %p119 = scmp.eq.s32.totalorder %s15, 7
    %p120 = por %p118, %p119
    %p122 = scmp.ne.s32.totalorder %s105, %s121
    %p123 = scmp.eq.s32.totalorder %s15, 0
    %p124 = por %p122, %p123
    %p125 = scmp.le.s32.totalorder 1, %s9
    %p126 = scmp.lt.s32.totalorder %s9, 9
    %p127 = pnand %p125, %p126
    %p128 = pneg %p127
    // Predicated region
    $region9: #{encoder_cnn_forward.12} parent=5 // pred_check
      _
    $region10: #{encoder_cnn_forward.12} parent=5 // pred_check_branch
      %130 = sbr.rel (%p127) target = $region12
    $region11: #{encoder_cnn_forward.12} parent=5 // pred_region
      %s131 = ssub.s32 %s9, 1
      // Predicated region
      $region13: #{encoder_cnn_forward.12} parent=11 // pred_check
        %p132 = pneg %p68
      $region14: #{encoder_cnn_forward.12} parent=11 // pred_check_branch
        %134 = sbr.rel (%p132) target = $region16
      $region15: #{encoder_cnn_forward.12} parent=11 // pred_region
        _
      $region16: #{encoder_cnn_forward.12} parent=11 // pred_fallthru
        _
      // Predicated region
      $region17: #{encoder_cnn_forward.12} parent=11 // pred_check
        %p135 = pneg %p89
      $region18: #{encoder_cnn_forward.12} parent=11 // pred_check_branch
        %137 = sbr.rel (%p135) target = $region20
      $region19: #{encoder_cnn_forward.12} parent=11 // pred_region
        _
      $region20: #{encoder_cnn_forward.12} parent=11 // pred_fallthru
        _
    $region12: #{encoder_cnn_forward.12} parent=5 // pred_fallthru
      _
    %p138 = scmp.lt.s32.totalorder %s9, 8
    // Predicated region
    $region21: #{encoder_cnn_forward.12} parent=5 // pred_check
      %p139 = pneg %p138
    $region22: #{encoder_cnn_forward.12} parent=5 // pred_check_branch
      %141 = sbr.rel (%p139) target = $region24
    $region23: #{encoder_cnn_forward.12} parent=5 // pred_region
      // Predicated region
      $region25: #{encoder_cnn_forward.12} parent=23 // pred_check
        %p142 = pneg %p41
      $region26: #{encoder_cnn_forward.12} parent=23 // pred_check_branch
        %144 = sbr.rel (%p142) target = $region28
      $region27: #{encoder_cnn_forward.12} parent=23 // pred_region
        %p145 = scmp.lt.s32.totalorder %s16, 1
        %s146 = scalar_select %p145, %s16, 1
        %s147 = smul.addr %s146, 54
        %s148 = smul.addr %s147, 4
        %s149 = scalar_lea.vmem %s0, %s148
      $region28: #{encoder_cnn_forward.12} parent=23 // pred_fallthru
        _
    $region24: #{encoder_cnn_forward.12} parent=5 // pred_fallthru
      _
    %p150 = scmp.le.s32.totalorder 1, %s9
    %p151 = scmp.lt.s32.totalorder %s9, 9
    %p152 = pnand %p150, %p151
    %p153 = pneg %p152
    // Predicated region
    $region29: #{encoder_cnn_forward.12} parent=5 // pred_check
      _
    $region30: #{encoder_cnn_forward.12} parent=5 // pred_check_branch
      %155 = sbr.rel (%p152) target = $region32
    $region31: #{encoder_cnn_forward.12} parent=5 // pred_region
      %s156 = ssub.s32 %s9, 1
      %p157 = scmp.lt.s32.totalorder %s18, 1
      %s158 = scalar_select %p157, %s18, 1
      %s159 = smul.addr %s158, 54
      %s160 = smul.addr %s159, 4
      %s161 = scalar_lea.vmem %s0, %s160
      %p162 = pneg %p47
      %p163 = pneg %p44
      %p164 = pneg %p68
      %p165 = pneg %p65
      %p166 = pneg %p89
      %p167 = pneg %p86
      %p168 = pneg %p117
      %p169 = pneg %p114
      %s170 = smul.u32 4, %s19
      %p171 = scmp.lt.s32.totalorder %s18, 1
      %s172 = scalar_select %p171, %s18, 1
      %p173 = scmp.lt.s32.totalorder %s170, 15
      %s174 = scalar_select %p173, %s170, 15
      %s175 = smul.addr %s174, 2
      %s176 = smul.addr %s172, 32
      %s177 = sadd.s32 %s175, %s176
      %s178 = smul.addr %s177, 4
      %s179 = scalar_lea.vmem %s3, %s178
      %p180 = scmp.lt.s32.totalorder %s18, 1
      %s181 = scalar_select %p180, %s18, 1
      %s182 = smul.addr %s181, 54
      %s183 = smul.addr %s182, 4
      %s184 = scalar_lea.vmem %s0, %s183
      %s185 = smul.u32 4, %s19
      %p186 = scmp.lt.s32.totalorder %s18, 1
      %s187 = scalar_select %p186, %s18, 1
      %p188 = scmp.lt.s32.totalorder %s185, 15
      %s189 = scalar_select %p188, %s185, 15
      %s190 = smul.addr %s189, 2
      %s191 = smul.addr %s187, 32
      %s192 = sadd.s32 %s190, %s191
      %s193 = smul.addr %s192, 4
      %s194 = scalar_lea.vmem %s3, %s193
      %s195 = smul.u32 4, %s19
      %s197 = smul.u32 %s19, 4
      %s198 = smul.u32 %s197, 3
      %s199 = smul.addr %s198, 4
      %s200 = scalar_lea.vmem %s184, %s199
      %v201 = vld [vmem:[%s200] sm:$0xf]
      %v202 = vld [vmem:[%s200 + $0x4] sm:$0xf]
      %v203 = vld [vmem:[%s200 + $0xc] sm:$0xf]
      %v204 = vld [vmem:[%s200 + $0x10] sm:$0xf]
      %v205 = vld [vmem:[%s200 + $0x18] sm:$0xf]
      %v206 = vld [vmem:[%s200 + $0x1c] sm:$0xf]
      %v207 = vld [vmem:[%s200 + $0x24] sm:$0xf]
      %v208 = vld [vmem:[%s200 + $0x28] sm:$0xf]
      %v209 = vld [vmem:[%s1] sm:$0xf]
      %v210 = vld [vmem:[%s1 + $0x4] sm:$0xf]
      %v211 = vld [vmem:[%s1 + $0x8] sm:$0xf]
      %v212 = vld [vmem:[%s1 + $0xc] sm:$0xf]
      %v213 = vld [vmem:[%s1 + $0x10] sm:$0xf]
      %v214 = vld [vmem:[%s1 + $0x14] sm:$0xf]
      %v215 = vld [vmem:[%s1 + $0x18] sm:$0xf]
      %v216 = vld [vmem:[%s1 + $0x1c] sm:$0xf]
      %v217 = vld [vmem:[%s1 + $0x20] sm:$0xf]
      %v218 = vld [vmem:[%s1 + $0x24] sm:$0xf]
      %v219 = vld [vmem:[%s1 + $0x28] sm:$0xf]
      %v220 = vld [vmem:[%s1 + $0x2c] sm:$0xf]
      %v221 = vld [vmem:[%s1 + $0x30] sm:$0xf]
      %v222 = vld [vmem:[%s1 + $0x34] sm:$0xf]
      %v223 = vld [vmem:[%s1 + $0x38] sm:$0xf]
      %v224 = vld [vmem:[%s1 + $0x3c] sm:$0xf]
      %v225 = vld [vmem:[%s200 + $0x8] sm:$0x1]
      %v226 = vld [vmem:[%s200 + $0x14] sm:$0x1]
      %v227 = vld [vmem:[%s200 + $0x20] sm:$0x1]
      %v228 = vld [vmem:[%s200 + $0x2c] sm:$0x1]
      %vm229 = vsmask.f32 3328
      %vm230 = vsmask.f32 7440
      %vm231 = vmor %vm229, %vm230
      %v233 = vshrl.u32 %v201, 16
      %v235 = vrot.slane %v233, 4
      %v236 = vshll.u32 %v201, 16
      %v238 = vrot.slane %v236, 5
      %v239 = vor.u32 %v235, %v238
      %v240 = vrot.slane %v239, 4
      %v242 = vshll.u32 %v202, 16
      %v244 = vrot.slane %v242, 5
      %v245 = vsel %vm231, %v240, %v244
      %v246 = vshrl.u32 %v202, 16
      %v248 = vrot.slane %v246, 4
      %v249 = vor.u32 %v248, %v244
      %v250 = vrot.slane %v249, 4
      %v252 = vshll.u32 %v225, 16
      %v254 = vrot.slane %v252, 5
      %v255 = vsel %vm231, %v250, %v254
      %v257 = vshrl.u32 %v203, 16
      %v259 = vrot.slane %v257, 4
      %v260 = vshll.u32 %v203, 16
      %v262 = vrot.slane %v260, 5
      %v263 = vor.u32 %v259, %v262
      %v264 = vrot.slane %v263, 4
      %v266 = vshll.u32 %v204, 16
      %v268 = vrot.slane %v266, 5
      %v269 = vsel %vm231, %v264, %v268
      %v270 = vshrl.u32 %v204, 16
      %v272 = vrot.slane %v270, 4
      %v273 = vor.u32 %v272, %v268
      %v274 = vrot.slane %v273, 4
      %v276 = vshll.u32 %v226, 16
      %v278 = vrot.slane %v276, 5
      %v279 = vsel %vm231, %v274, %v278
      %v281 = vshrl.u32 %v205, 16
      %v283 = vrot.slane %v281, 4
      %v284 = vshll.u32 %v205, 16
      %v286 = vrot.slane %v284, 5
      %v287 = vor.u32 %v283, %v286
      %v288 = vrot.slane %v287, 4
      %v290 = vshll.u32 %v206, 16
      %v292 = vrot.slane %v290, 5
      %v293 = vsel %vm231, %v288, %v292
      %v294 = vshrl.u32 %v206, 16
      %v296 = vrot.slane %v294, 4
      %v297 = vor.u32 %v296, %v292
      %v298 = vrot.slane %v297, 4
      %v300 = vshll.u32 %v227, 16
      %v302 = vrot.slane %v300, 5
      %v303 = vsel %vm231, %v298, %v302
      %v305 = vshrl.u32 %v207, 16
      %v307 = vrot.slane %v305, 4
      %v308 = vshll.u32 %v207, 16
      %v310 = vrot.slane %v308, 5
      %v311 = vor.u32 %v307, %v310
      %v312 = vrot.slane %v311, 4
      %v314 = vshll.u32 %v208, 16
      %v316 = vrot.slane %v314, 5
      %v317 = vsel %vm231, %v312, %v316
      %v318 = vshrl.u32 %v208, 16
      %v320 = vrot.slane %v318, 4
      %v321 = vor.u32 %v320, %v316
      %v322 = vrot.slane %v321, 4
      %v324 = vshll.u32 %v228, 16
      %v326 = vrot.slane %v324, 5
      %v327 = vsel %vm231, %v322, %v326
      %s328 = scalar_lea.vmem %s1, 64
      %v329 = vld [vmem:[%s328] sm:$0xf]
      %v330 = vld [vmem:[%s328 + $0x4] sm:$0xf]
      %v331 = vld [vmem:[%s328 + $0x8] sm:$0xf]
      %v332 = vld [vmem:[%s328 + $0xc] sm:$0xf]
      %v333 = vld [vmem:[%s328 + $0x10] sm:$0xf]
      %v334 = vld [vmem:[%s328 + $0x14] sm:$0xf]
      %v335 = vld [vmem:[%s328 + $0x18] sm:$0xf]
      %v336 = vld [vmem:[%s328 + $0x1c] sm:$0xf]
      %v337 = vld [vmem:[%s328 + $0x20] sm:$0xf]
      %v338 = vld [vmem:[%s328 + $0x24] sm:$0xf]
      %v339 = vld [vmem:[%s328 + $0x28] sm:$0xf]
      %v340 = vld [vmem:[%s328 + $0x2c] sm:$0xf]
      %v341 = vld [vmem:[%s328 + $0x30] sm:$0xf]
      %v342 = vld [vmem:[%s328 + $0x34] sm:$0xf]
      %v343 = vld [vmem:[%s328 + $0x38] sm:$0xf]
      %v344 = vld [vmem:[%s328 + $0x3c] sm:$0xf]
      %v345 = vunpack.c.l.b16 %v245
      %v346 = vunpack.c.l.b16 %v255
      %v347 = vunpack.c.l.b16 %v269
      %v348 = vunpack.c.l.b16 %v279
      %v349 = vunpack.c.l.b16 %v293
      %v350 = vunpack.c.l.b16 %v303
      %v351 = vunpack.c.l.b16 %v317
      %v352 = vunpack.c.l.b16 %v327
      %v353 = vpack.c.b16 %v346, %v345
      %v354 = vpack.c.b16 %v348, %v347
      %v355 = vpack.c.b16 %v350, %v349
      %v356 = vpack.c.b16 %v352, %v351
      %v377 = vunpack.c.l.b16 %v329
      %v378 = vunpack.c.l.b16 %v330
      %v379 = vunpack.c.l.b16 %v331
      %v380 = vunpack.c.l.b16 %v332
      %v381 = vunpack.c.l.b16 %v333
      %v382 = vunpack.c.l.b16 %v334
      %v383 = vunpack.c.l.b16 %v335
      %v384 = vunpack.c.l.b16 %v336
      %v385 = vunpack.c.l.b16 %v337
      %v386 = vunpack.c.l.b16 %v338
      %v387 = vunpack.c.l.b16 %v339
      %v388 = vunpack.c.l.b16 %v340
      %v389 = vunpack.c.l.b16 %v341
      %v390 = vunpack.c.l.b16 %v342
      %v391 = vunpack.c.l.b16 %v343
      %v392 = vunpack.c.l.b16 %v344
      %v393 = vpack.c.b16 %v378, %v377
      %v394 = vpack.c.b16 %v380, %v379
      %v395 = vpack.c.b16 %v382, %v381
      %v396 = vpack.c.b16 %v384, %v383
      %v397 = vpack.c.b16 %v386, %v385
      %v398 = vpack.c.b16 %v388, %v387
      %v399 = vpack.c.b16 %v390, %v389
      %v400 = vpack.c.b16 %v392, %v391
      %409 = vmatprep.subr.bf16.mxu0 0
      %410 = vmatpush1.bf16.msra.mxu0 %v393
      %411 = vmatprep.subr.bf16.mxu0 0
      %412 = vmatpush1.bf16.msra.mxu0 %v394
      %413 = vmatprep.subr.bf16.mxu0 0
      %414 = vmatpush1.bf16.msra.mxu0 %v395
      %415 = vmatprep.subr.bf16.mxu0 0
      %416 = vmatpush1.bf16.msra.mxu0 %v396
      %417 = vmatprep.subr.bf16.mxu0 0
      %418 = vmatpush1.bf16.msra.mxu0 %v397
      %419 = vmatprep.subr.bf16.mxu0 0
      %420 = vmatpush1.bf16.msra.mxu0 %v398
      %421 = vmatprep.subr.bf16.mxu0 0
      %422 = vmatpush1.bf16.msra.mxu0 %v399
      %423 = vmatprep.subr.bf16.mxu0 0
      %424 = vmatpush1.bf16.msra.mxu0 %v400
      %425 = vmatprep.subr.bf16.mxu0 0
      %426 = vmatpush1.bf16.msra.mxu0 0
      %427 = vmatprep.subr.bf16.mxu0 0
      %428 = vmatpush1.bf16.msra.mxu0 0
      %429 = vmatprep.subr.bf16.mxu0 0
      %430 = vmatpush1.bf16.msra.mxu0 0
      %431 = vmatprep.subr.bf16.mxu0 0
      %432 = vmatpush1.bf16.msra.mxu0 0
      %433 = vmatprep.subr.bf16.mxu0 0
      %434 = vmatpush1.bf16.msra.mxu0 0
      %435 = vmatprep.subr.bf16.mxu0 0
      %436 = vmatpush1.bf16.msra.mxu0 0
      %437 = vmatprep.subr.bf16.mxu0 0
      %438 = vmatpush1.bf16.msra.mxu0 0
      %439 = vmatprep.subr.bf16.mxu0 0
      %440 = vmatpush1.bf16.msra.mxu0 0
      %441 = vmatprep.mubr.bf16.mxu0 0
      %442 = vmatmul.mubr.bf16.gmra.mrb[0].mxu0 %v353
      %v443 = vpop.f32.mrb[0].mxu0
      %v444 = vadd.f32 0.0, %v443
      %v445 = vpop.f32.mrb[0].mxu0
      %v446 = vpop.f32.mrb[0].mxu0
      %v447 = vadd.f32 0.0, %v446
      %v448 = vpop.f32.mrb[0].mxu0
      %449 = vmatprep.mubr.bf16.mxu0 0
      %450 = vmatmul.mubr.bf16.gmra.mrb[0].mxu0 %v354
      %v451 = vpop.f32.mrb[0].mxu0
      %v452 = vadd.f32 0.0, %v451
      %v453 = vpop.f32.mrb[0].mxu0
      %v454 = vpop.f32.mrb[0].mxu0
      %v455 = vadd.f32 0.0, %v454
      %v456 = vpop.f32.mrb[0].mxu0
      %457 = vmatprep.mubr.bf16.mxu0 0
      %458 = vmatmul.mubr.bf16.gmra.mrb[0].mxu0 %v355
      %v459 = vpop.f32.mrb[0].mxu0
      %v460 = vadd.f32 0.0, %v459
      %v461 = vpop.f32.mrb[0].mxu0
      %v462 = vpop.f32.mrb[0].mxu0
      %v463 = vadd.f32 0.0, %v462
      %v464 = vpop.f32.mrb[0].mxu0
      %465 = vmatprep.mubr.bf16.mxu0 0
      %466 = vmatmul.mubr.bf16.gmra.mrb[0].mxu0 %v356
      %v467 = vpop.f32.mrb[0].mxu0
      %v468 = vadd.f32 0.0, %v467
      %v469 = vpop.f32.mrb[0].mxu0
      %v470 = vpop.f32.mrb[0].mxu0
      %v471 = vadd.f32 0.0, %v470
      %v472 = vpop.f32.mrb[0].mxu0
      %473 = vdwg.mxu0
      %v482 = vunpack.c.l.b16 %v201
      %v483 = vunpack.c.l.b16 %v202
      %v484 = vunpack.c.l.b16 %v203
      %v485 = vunpack.c.l.b16 %v204
      %v486 = vunpack.c.l.b16 %v205
      %v487 = vunpack.c.l.b16 %v206
      %v488 = vunpack.c.l.b16 %v207
      %v489 = vunpack.c.l.b16 %v208
      %v490 = vpack.c.b16 %v483, %v482
      %v491 = vpack.c.b16 %v485, %v484
      %v492 = vpack.c.b16 %v487, %v486
      %v493 = vpack.c.b16 %v489, %v488
      %v514 = vunpack.c.l.b16 %v209
      %v515 = vunpack.c.l.b16 %v210
      %v516 = vunpack.c.l.b16 %v211
      %v517 = vunpack.c.l.b16 %v212
      %v518 = vunpack.c.l.b16 %v213
      %v519 = vunpack.c.l.b16 %v214
      %v520 = vunpack.c.l.b16 %v215
      %v521 = vunpack.c.l.b16 %v216
      %v522 = vunpack.c.l.b16 %v217
      %v523 = vunpack.c.l.b16 %v218
      %v524 = vunpack.c.l.b16 %v219
      %v525 = vunpack.c.l.b16 %v220
      %v526 = vunpack.c.l.b16 %v221
      %v527 = vunpack.c.l.b16 %v222
      %v528 = vunpack.c.l.b16 %v223
      %v529 = vunpack.c.l.b16 %v224
      %v530 = vpack.c.b16 %v515, %v514
      %v531 = vpack.c.b16 %v517, %v516
      %v532 = vpack.c.b16 %v519, %v518
      %v533 = vpack.c.b16 %v521, %v520
      %v534 = vpack.c.b16 %v523, %v522
      %v535 = vpack.c.b16 %v525, %v524
      %v536 = vpack.c.b16 %v527, %v526
      %v537 = vpack.c.b16 %v529, %v528
      %546 = vmatprep.subr.bf16.mxu0 0
      %547 = vmatpush1.bf16.msra.mxu0 %v530
      %548 = vmatprep.subr.bf16.mxu0 0
      %549 = vmatpush1.bf16.msra.mxu0 %v531
      %550 = vmatprep.subr.bf16.mxu0 0
      %551 = vmatpush1.bf16.msra.mxu0 %v532
      %552 = vmatprep.subr.bf16.mxu0 0
      %553 = vmatpush1.bf16.msra.mxu0 %v533
      %554 = vmatprep.subr.bf16.mxu0 0
      %555 = vmatpush1.bf16.msra.mxu0 %v534
      %556 = vmatprep.subr.bf16.mxu0 0
      %557 = vmatpush1.bf16.msra.mxu0 %v535
      %558 = vmatprep.subr.bf16.mxu0 0
      %559 = vmatpush1.bf16.msra.mxu0 %v536
      %560 = vmatprep.subr.bf16.mxu0 0
      %561 = vmatpush1.bf16.msra.mxu0 %v537
      %562 = vmatprep.subr.bf16.mxu0 0
      %563 = vmatpush1.bf16.msra.mxu0 0
      %564 = vmatprep.subr.bf16.mxu0 0
      %565 = vmatpush1.bf16.msra.mxu0 0
      %566 = vmatprep.subr.bf16.mxu0 0
      %567 = vmatpush1.bf16.msra.mxu0 0
      %568 = vmatprep.subr.bf16.mxu0 0
      %569 = vmatpush1.bf16.msra.mxu0 0
      %570 = vmatprep.subr.bf16.mxu0 0
      %571 = vmatpush1.bf16.msra.mxu0 0
      %572 = vmatprep.subr.bf16.mxu0 0
      %573 = vmatpush1.bf16.msra.mxu0 0
      %574 = vmatprep.subr.bf16.mxu0 0
      %575 = vmatpush1.bf16.msra.mxu0 0
      %576 = vmatprep.subr.bf16.mxu0 0
      %577 = vmatpush1.bf16.msra.mxu0 0
      %578 = vmatprep.mubr.bf16.mxu0 0
      %579 = vmatmul.mubr.bf16.gmra.mrb[0].mxu0 %v490
      %v580 = vpop.f32.mrb[0].mxu0
      %v581 = vadd.f32 %v444, %v580
      %v582 = vpop.f32.mrb[0].mxu0
      %v583 = vpop.f32.mrb[0].mxu0
      %v584 = vadd.f32 %v447, %v583
      %v585 = vpop.f32.mrb[0].mxu0
      %586 = vmatprep.mubr.bf16.mxu0 0
      %587 = vmatmul.mubr.bf16.gmra.mrb[0].mxu0 %v491
      %v588 = vpop.f32.mrb[0].mxu0
      %v589 = vadd.f32 %v452, %v588
      %v590 = vpop.f32.mrb[0].mxu0
      %v591 = vpop.f32.mrb[0].mxu0
      %v592 = vadd.f32 %v455, %v591
      %v593 = vpop.f32.mrb[0].mxu0
      %594 = vmatprep.mubr.bf16.mxu0 0
      %595 = vmatmul.mubr.bf16.gmra.mrb[0].mxu0 %v492
      %v596 = vpop.f32.mrb[0].mxu0
      %v597 = vadd.f32 %v460, %v596
      %v598 = vpop.f32.mrb[0].mxu0
      %v599 = vpop.f32.mrb[0].mxu0
      %v600 = vadd.f32 %v463, %v599
      %v601 = vpop.f32.mrb[0].mxu0
      %602 = vmatprep.mubr.bf16.mxu0 0
      %603 = vmatmul.mubr.bf16.gmra.mrb[0].mxu0 %v493
      %v604 = vpop.f32.mrb[0].mxu0
      %v605 = vadd.f32 %v468, %v604
      %v606 = vpop.f32.mrb[0].mxu0
      %v607 = vpop.f32.mrb[0].mxu0
      %v608 = vadd.f32 %v471, %v607
      %v609 = vpop.f32.mrb[0].mxu0
      %610 = vdwg.mxu0
      %v611 = vld [vmem:[%s200] sm:$0xe]
      %v612 = vld [vmem:[%s200 + $0xc] sm:$0xe]
      %v613 = vld [vmem:[%s200 + $0x18] sm:$0xe]
      %v614 = vld [vmem:[%s200 + $0x24] sm:$0xe]
      %vm623 = vcmask 1042432
      %vm624 = vcmask 1046532
      %vm625 = vmor %vm623, %vm624
      %v626 = vrot.slane %v611, 5
      %v627 = vrot.slane %v626, 4
      %v628 = vrot.slane %v202, 5
      %v629 = vsel %vm625, %v627, %v628
      %v630 = vrot.slane %v628, 4
      %v631 = vrot.slane %v225, 5
      %v632 = vsel %vm625, %v630, %v631
      %v633 = vrot.slane %v612, 5
      %v634 = vrot.slane %v633, 4
      %v635 = vrot.slane %v204, 5
      %v636 = vsel %vm625, %v634, %v635
      %v637 = vrot.slane %v635, 4
      %v638 = vrot.slane %v226, 5
      %v639 = vsel %vm625, %v637, %v638
      %v640 = vrot.slane %v613, 5
      %v641 = vrot.slane %v640, 4
      %v642 = vrot.slane %v206, 5
      %v643 = vsel %vm625, %v641, %v642
      %v644 = vrot.slane %v642, 4
      %v645 = vrot.slane %v227, 5
      %v646 = vsel %vm625, %v644, %v645
      %v647 = vrot.slane %v614, 5
      %v648 = vrot.slane %v647, 4
      %v649 = vrot.slane %v208, 5
      %v650 = vsel %vm625, %v648, %v649
      %v651 = vrot.slane %v649, 4
      %v652 = vrot.slane %v228, 5
      %v653 = vsel %vm625, %v651, %v652
      %s654 = scalar_lea.vmem %s1, 128
      %v655 = vld [vmem:[%s654] sm:$0xf]
      %v656 = vld [vmem:[%s654 + $0x4] sm:$0xf]
      %v657 = vld [vmem:[%s654 + $0x8] sm:$0xf]
      %v658 = vld [vmem:[%s654 + $0xc] sm:$0xf]
      %v659 = vld [vmem:[%s654 + $0x10] sm:$0xf]
      %v660 = vld [vmem:[%s654 + $0x14] sm:$0xf]
      %v661 = vld [vmem:[%s654 + $0x18] sm:$0xf]
      %v662 = vld [vmem:[%s654 + $0x1c] sm:$0xf]
      %v663 = vld [vmem:[%s654 + $0x20] sm:$0xf]
      %v664 = vld [vmem:[%s654 + $0x24] sm:$0xf]
      %v665 = vld [vmem:[%s654 + $0x28] sm:$0xf]
      %v666 = vld [vmem:[%s654 + $0x2c] sm:$0xf]
      %v667 = vld [vmem:[%s654 + $0x30] sm:$0xf]
      %v668 = vld [vmem:[%s654 + $0x34] sm:$0xf]
      %v669 = vld [vmem:[%s654 + $0x38] sm:$0xf]
      %v670 = vld [vmem:[%s654 + $0x3c] sm:$0xf]
      %v671 = vunpack.c.l.b16 %v629
      %v672 = vunpack.c.l.b16 %v632
      %v673 = vunpack.c.l.b16 %v636
      %v674 = vunpack.c.l.b16 %v639
      %v675 = vunpack.c.l.b16 %v643
      %v676 = vunpack.c.l.b16 %v646
      %v677 = vunpack.c.l.b16 %v650
      %v678 = vunpack.c.l.b16 %v653
      %v679 = vpack.c.b16 %v672, %v671
      %v680 = vpack.c.b16 %v674, %v673
      %v681 = vpack.c.b16 %v676, %v675
      %v682 = vpack.c.b16 %v678, %v677
      %v703 = vunpack.c.l.b16 %v655
      %v704 = vunpack.c.l.b16 %v656
      %v705 = vunpack.c.l.b16 %v657
      %v706 = vunpack.c.l.b16 %v658
      %v707 = vunpack.c.l.b16 %v659
      %v708 = vunpack.c.l.b16 %v660
      %v709 = vunpack.c.l.b16 %v661
      %v710 = vunpack.c.l.b16 %v662
      %v711 = vunpack.c.l.b16 %v663
      %v712 = vunpack.c.l.b16 %v664
      %v713 = vunpack.c.l.b16 %v665
      %v714 = vunpack.c.l.b16 %v666
      %v715 = vunpack.c.l.b16 %v667
      %v716 = vunpack.c.l.b16 %v668
      %v717 = vunpack.c.l.b16 %v669
      %v718 = vunpack.c.l.b16 %v670
      %v719 = vpack.c.b16 %v704, %v703
      %v720 = vpack.c.b16 %v706, %v705
      %v721 = vpack.c.b16 %v708, %v707
      %v722 = vpack.c.b16 %v710, %v709
      %v723 = vpack.c.b16 %v712, %v711
      %v724 = vpack.c.b16 %v714, %v713
      %v725 = vpack.c.b16 %v716, %v715
      %v726 = vpack.c.b16 %v718, %v717
      %735 = vmatprep.subr.bf16.mxu0 0
      %736 = vmatpush1.bf16.msra.mxu0 %v719
      %737 = vmatprep.subr.bf16.mxu0 0
      %738 = vmatpush1.bf16.msra.mxu0 %v720
      %739 = vmatprep.subr.bf16.mxu0 0
      %740 = vmatpush1.bf16.msra.mxu0 %v721
      %741 = vmatprep.subr.bf16.mxu0 0
      %742 = vmatpush1.bf16.msra.mxu0 %v722
      %743 = vmatprep.subr.bf16.mxu0 0
      %744 = vmatpush1.bf16.msra.mxu0 %v723
      %745 = vmatprep.subr.bf16.mxu0 0
      %746 = vmatpush1.bf16.msra.mxu0 %v724
      %747 = vmatprep.subr.bf16.mxu0 0
      %748 = vmatpush1.bf16.msra.mxu0 %v725
      %749 = vmatprep.subr.bf16.mxu0 0
      %750 = vmatpush1.bf16.msra.mxu0 %v726
      %751 = vmatprep.subr.bf16.mxu0 0
      %752 = vmatpush1.bf16.msra.mxu0 0
      %753 = vmatprep.subr.bf16.mxu0 0
      %754 = vmatpush1.bf16.msra.mxu0 0
      %755 = vmatprep.subr.bf16.mxu0 0
      %756 = vmatpush1.bf16.msra.mxu0 0
      %757 = vmatprep.subr.bf16.mxu0 0
      %758 = vmatpush1.bf16.msra.mxu0 0
      %759 = vmatprep.subr.bf16.mxu0 0
      %760 = vmatpush1.bf16.msra.mxu0 0
      %761 = vmatprep.subr.bf16.mxu0 0
      %762 = vmatpush1.bf16.msra.mxu0 0
      %763 = vmatprep.subr.bf16.mxu0 0
      %764 = vmatpush1.bf16.msra.mxu0 0
      %765 = vmatprep.subr.bf16.mxu0 0
      %766 = vmatpush1.bf16.msra.mxu0 0
      %767 = vmatprep.mubr.bf16.mxu0 0
      %768 = vmatmul.mubr.bf16.gmra.mrb[0].mxu0 %v679
      %v769 = vpop.f32.mrb[0].mxu0
      %v770 = vadd.f32 0.0, %v769
      %v771 = vpop.f32.mrb[0].mxu0
      %v772 = vpop.f32.mrb[0].mxu0
      %v773 = vadd.f32 0.0, %v772
      %v774 = vpop.f32.mrb[0].mxu0
      %775 = vmatprep.mubr.bf16.mxu0 0
      %776 = vmatmul.mubr.bf16.gmra.mrb[0].mxu0 %v680
      %v777 = vpop.f32.mrb[0].mxu0
      %v778 = vadd.f32 0.0, %v777
      %v779 = vpop.f32.mrb[0].mxu0
      %v780 = vpop.f32.mrb[0].mxu0
      %v781 = vadd.f32 0.0, %v780
      %v782 = vpop.f32.mrb[0].mxu0
      %783 = vmatprep.mubr.bf16.mxu0 0
      %784 = vmatmul.mubr.bf16.gmra.mrb[0].mxu0 %v681
      %v785 = vpop.f32.mrb[0].mxu0
      %v786 = vadd.f32 0.0, %v785
      %v787 = vpop.f32.mrb[0].mxu0
      %v788 = vpop.f32.mrb[0].mxu0
      %v789 = vadd.f32 0.0, %v788
      %v790 = vpop.f32.mrb[0].mxu0
      %791 = vmatprep.mubr.bf16.mxu0 0
      %792 = vmatmul.mubr.bf16.gmra.mrb[0].mxu0 %v682
      %v793 = vpop.f32.mrb[0].mxu0
      %v794 = vadd.f32 0.0, %v793
      %v795 = vpop.f32.mrb[0].mxu0
      %v796 = vpop.f32.mrb[0].mxu0
      %v797 = vadd.f32 0.0, %v796
      %v798 = vpop.f32.mrb[0].mxu0
      %799 = vdwg.mxu0
      %v800 = vadd.f32 %v581, %v770
      %v801 = vadd.f32 %v584, %v773
      %v802 = vadd.f32 %v589, %v778
      %v803 = vadd.f32 %v592, %v781
      %v804 = vadd.f32 %v597, %v786
      %v805 = vadd.f32 %v600, %v789
      %v806 = vadd.f32 %v605, %v794
      %v807 = vadd.f32 %v608, %v797
      %s808 = sadd.s32 %s197, 1
      %s809 = smul.u32 %s808, 3
      %s810 = smul.addr %s809, 4
      %s811 = scalar_lea.vmem %s184, %s810
      %v812 = vld [vmem:[%s811] sm:$0xf]
      %v813 = vld [vmem:[%s811 + $0x4] sm:$0xf]
      %v814 = vld [vmem:[%s811 + $0xc] sm:$0xf]
      %v815 = vld [vmem:[%s811 + $0x10] sm:$0xf]
      %v816 = vld [vmem:[%s811 + $0x18] sm:$0xf]
      %v817 = vld [vmem:[%s811 + $0x1c] sm:$0xf]
      %v818 = vld [vmem:[%s811 + $0x24] sm:$0xf]
      %v819 = vld [vmem:[%s811 + $0x28] sm:$0xf]
      %s820 = scalar_lea.vmem %s1, 192
      %v821 = vld [vmem:[%s820] sm:$0xf]
      %v822 = vld [vmem:[%s820 + $0x4] sm:$0xf]
      %v823 = vld [vmem:[%s820 + $0x8] sm:$0xf]
      %v824 = vld [vmem:[%s820 + $0xc] sm:$0xf]
      %v825 = vld [vmem:[%s820 + $0x10] sm:$0xf]
      %v826 = vld [vmem:[%s820 + $0x14] sm:$0xf]
      %v827 = vld [vmem:[%s820 + $0x18] sm:$0xf]
      %v828 = vld [vmem:[%s820 + $0x1c] sm:$0xf]
      %v829 = vld [vmem:[%s820 + $0x20] sm:$0xf]
      %v830 = vld [vmem:[%s820 + $0x24] sm:$0xf]
      %v831 = vld [vmem:[%s820 + $0x28] sm:$0xf]
      %v832 = vld [vmem:[%s820 + $0x2c] sm:$0xf]
      %v833 = vld [vmem:[%s820 + $0x30] sm:$0xf]
      %v834 = vld [vmem:[%s820 + $0x34] sm:$0xf]
      %v835 = vld [vmem:[%s820 + $0x38] sm:$0xf]
      %v836 = vld [vmem:[%s820 + $0x3c] sm:$0xf]
      %v845 = vunpack.c.l.b16 %v812
      %v846 = vunpack.c.l.b16 %v813
      %v847 = vunpack.c.l.b16 %v814
      %v848 = vunpack.c.l.b16 %v815
      %v849 = vunpack.c.l.b16 %v816
      %v850 = vunpack.c.l.b16 %v817
      %v851 = vunpack.c.l.b16 %v818
      %v852 = vunpack.c.l.b16 %v819
      %v853 = vpack.c.b16 %v846, %v845
      %v854 = vpack.c.b16 %v848, %v847
      %v855 = vpack.c.b16 %v850, %v849
      %v856 = vpack.c.b16 %v852, %v851
      %v877 = vunpack.c.l.b16 %v821
      %v878 = vunpack.c.l.b16 %v822
      %v879 = vunpack.c.l.b16 %v823
      %v880 = vunpack.c.l.b16 %v824
      %v881 = vunpack.c.l.b16 %v825
      %v882 = vunpack.c.l.b16 %v826
      %v883 = vunpack.c.l.b16 %v827
      %v884 = vunpack.c.l.b16 %v828
      %v885 = vunpack.c.l.b16 %v829
      %v886 = vunpack.c.l.b16 %v830
      %v887 = vunpack.c.l.b16 %v831
      %v888 = vunpack.c.l.b16 %v832
      %v889 = vunpack.c.l.b16 %v833
      %v890 = vunpack.c.l.b16 %v834
      %v891 = vunpack.c.l.b16 %v835
      %v892 = vunpack.c.l.b16 %v836
      %v893 = vpack.c.b16 %v878, %v877
      %v894 = vpack.c.b16 %v880, %v879
      %v895 = vpack.c.b16 %v882, %v881
      %v896 = vpack.c.b16 %v884, %v883
      %v897 = vpack.c.b16 %v886, %v885
      %v898 = vpack.c.b16 %v888, %v887
      %v899 = vpack.c.b16 %v890, %v889
      %v900 = vpack.c.b16 %v892, %v891
      %909 = vmatprep.subr.bf16.mxu0 0
      %910 = vmatpush1.bf16.msra.mxu0 %v893
      %911 = vmatprep.subr.bf16.mxu0 0
      %912 = vmatpush1.bf16.msra.mxu0 %v894
      %913 = vmatprep.subr.bf16.mxu0 0
      %914 = vmatpush1.bf16.msra.mxu0 %v895
      %915 = vmatprep.subr.bf16.mxu0 0
      %916 = vmatpush1.bf16.msra.mxu0 %v896
      %917 = vmatprep.subr.bf16.mxu0 0
      %918 = vmatpush1.bf16.msra.mxu0 %v897
      %919 = vmatprep.subr.bf16.mxu0 0
      %920 = vmatpush1.bf16.msra.mxu0 %v898
      %921 = vmatprep.subr.bf16.mxu0 0
      %922 = vmatpush1.bf16.msra.mxu0 %v899
      %923 = vmatprep.subr.bf16.mxu0 0
      %924 = vmatpush1.bf16.msra.mxu0 %v900
      %925 = vmatprep.subr.bf16.mxu0 0
      %926 = vmatpush1.bf16.msra.mxu0 0
      %927 = vmatprep.subr.bf16.mxu0 0
      %928 = vmatpush1.bf16.msra.mxu0 0
      %929 = vmatprep.subr.bf16.mxu0 0
      %930 = vmatpush1.bf16.msra.mxu0 0
      %931 = vmatprep.subr.bf16.mxu0 0
      %932 = vmatpush1.bf16.msra.mxu0 0
      %933 = vmatprep.subr.bf16.mxu0 0
      %934 = vmatpush1.bf16.msra.mxu0 0
      %935 = vmatprep.subr.bf16.mxu0 0
      %936 = vmatpush1.bf16.msra.mxu0 0
      %937 = vmatprep.subr.bf16.mxu0 0
      %938 = vmatpush1.bf16.msra.mxu0 0
      %939 = vmatprep.subr.bf16.mxu0 0
      %940 = vmatpush1.bf16.msra.mxu0 0
      %941 = vmatprep.mubr.bf16.mxu0 0
      %942 = vmatmul.mubr.bf16.gmra.mrb[0].mxu0 %v853
      %v943 = vpop.f32.mrb[0].mxu0
      %v944 = vadd.f32 0.0, %v943
      %v945 = vpop.f32.mrb[0].mxu0
      %v946 = vpop.f32.mrb[0].mxu0
      %v947 = vadd.f32 0.0, %v946
      %v948 = vpop.f32.mrb[0].mxu0
      %949 = vmatprep.mubr.bf16.mxu0 0
      %950 = vmatmul.mubr.bf16.gmra.mrb[0].mxu0 %v854
      %v951 = vpop.f32.mrb[0].mxu0
      %v952 = vadd.f32 0.0, %v951
      %v953 = vpop.f32.mrb[0].mxu0
      %v954 = vpop.f32.mrb[0].mxu0
      %v955 = vadd.f32 0.0, %v954
      %v956 = vpop.f32.mrb[0].mxu0
      %957 = vmatprep.mubr.bf16.mxu0 0
      %958 = vmatmul.mubr.bf16.gmra.mrb[0].mxu0 %v855
      %v959 = vpop.f32.mrb[0].mxu0
      %v960 = vadd.f32 0.0, %v959
      %v961 = vpop.f32.mrb[0].mxu0
      %v962 = vpop.f32.mrb[0].mxu0
      %v963 = vadd.f32 0.0, %v962
      %v964 = vpop.f32.mrb[0].mxu0
      %965 = vmatprep.mubr.bf16.mxu0 0
      %966 = vmatmul.mubr.bf16.gmra.mrb[0].mxu0 %v856
      %v967 = vpop.f32.mrb[0].mxu0
      %v968 = vadd.f32 0.0, %v967
      %v969 = vpop.f32.mrb[0].mxu0
      %v970 = vpop.f32.mrb[0].mxu0
      %v971 = vadd.f32 0.0, %v970
      %v972 = vpop.f32.mrb[0].mxu0
      %973 = vdwg.mxu0
      %v974 = vadd.f32 %v800, %v944
      %v975 = vadd.f32 %v801, %v947
      %v976 = vadd.f32 %v802, %v952
      %v977 = vadd.f32 %v803, %v955
      %v978 = vadd.f32 %v804, %v960
      %v979 = vadd.f32 %v805, %v963
      %v980 = vadd.f32 %v806, %v968
      %v981 = vadd.f32 %v807, %v971
      %v982 = vld [vmem:[%s811] sm:$0xf]
      %v983 = vld [vmem:[%s811 + $0x4] sm:$0xf]
      %v984 = vld [vmem:[%s811 + $0x8] sm:$0x1]
      %v985 = vld [vmem:[%s811 + $0xc] sm:$0xf]
      %v986 = vld [vmem:[%s811 + $0x10] sm:$0xf]
      %v987 = vld [vmem:[%s811 + $0x14] sm:$0x1]
      %v988 = vld [vmem:[%s811 + $0x18] sm:$0xf]
      %v989 = vld [vmem:[%s811 + $0x1c] sm:$0xf]
      %v990 = vld [vmem:[%s811 + $0x20] sm:$0x1]
      %v991 = vld [vmem:[%s811 + $0x24] sm:$0xf]
      %v992 = vld [vmem:[%s811 + $0x28] sm:$0xf]
      %v993 = vld [vmem:[%s811 + $0x2c] sm:$0x1]
      %v995 = vshrl.u32 %v982, 16
      %v997 = vrot.slane %v995, 4
      %v998 = vshll.u32 %v982, 16
      %v1000 = vrot.slane %v998, 5
      %v1001 = vor.u32 %v997, %v1000
      %v1002 = vrot.slane %v1001, 4
      %v1004 = vshll.u32 %v983, 16
      %v1006 = vrot.slane %v1004, 5
      %v1007 = vsel %vm231, %v1002, %v1006
      %v1008 = vshrl.u32 %v983, 16
      %v1010 = vrot.slane %v1008, 4
      %v1011 = vor.u32 %v1010, %v1006
      %v1012 = vrot.slane %v1011, 4
      %v1014 = vshll.u32 %v984, 16
      %v1016 = vrot.slane %v1014, 5
      %v1017 = vsel %vm231, %v1012, %v1016
      %v1019 = vshrl.u32 %v985, 16
      %v1021 = vrot.slane %v1019, 4
      %v1022 = vshll.u32 %v985, 16
      %v1024 = vrot.slane %v1022, 5
      %v1025 = vor.u32 %v1021, %v1024
      %v1026 = vrot.slane %v1025, 4
      %v1028 = vshll.u32 %v986, 16
      %v1030 = vrot.slane %v1028, 5
      %v1031 = vsel %vm231, %v1026, %v1030
      %v1032 = vshrl.u32 %v986, 16
      %v1034 = vrot.slane %v1032, 4
      %v1035 = vor.u32 %v1034, %v1030
      %v1036 = vrot.slane %v1035, 4
      %v1038 = vshll.u32 %v987, 16
      %v1040 = vrot.slane %v1038, 5
      %v1041 = vsel %vm231, %v1036, %v1040
      %v1043 = vshrl.u32 %v988, 16
      %v1045 = vrot.slane %v1043, 4
      %v1046 = vshll.u32 %v988, 16
      %v1048 = vrot.slane %v1046, 5
      %v1049 = vor.u32 %v1045, %v1048
      %v1050 = vrot.slane %v1049, 4
      %v1052 = vshll.u32 %v989, 16
      %v1054 = vrot.slane %v1052, 5
      %v1055 = vsel %vm231, %v1050, %v1054
      %v1056 = vshrl.u32 %v989, 16
      %v1058 = vrot.slane %v1056, 4
      %v1059 = vor.u32 %v1058, %v1054
      %v1060 = vrot.slane %v1059, 4
      %v1062 = vshll.u32 %v990, 16
      %v1064 = vrot.slane %v1062, 5
      %v1065 = vsel %vm231, %v1060, %v1064
      %v1067 = vshrl.u32 %v991, 16
      %v1069 = vrot.slane %v1067, 4
      %v1070 = vshll.u32 %v991, 16
      %v1072 = vrot.slane %v1070, 5
      %v1073 = vor.u32 %v1069, %v1072
      %v1074 = vrot.slane %v1073, 4
      %v1076 = vshll.u32 %v992, 16
      %v1078 = vrot.slane %v1076, 5
      %v1079 = vsel %vm231, %v1074, %v1078
      %v1080 = vshrl.u32 %v992, 16
      %v1082 = vrot.slane %v1080, 4
      %v1083 = vor.u32 %v1082, %v1078
      %v1084 = vrot.slane %v1083, 4
      %v1086 = vshll.u32 %v993, 16
      %v1088 = vrot.slane %v1086, 5
      %v1089 = vsel %vm231, %v1084, %v1088
      %s1090 = scalar_lea.vmem %s1, 256
      %v1091 = vld [vmem:[%s1090] sm:$0xf]
      %v1092 = vld [vmem:[%s1090 + $0x4] sm:$0xf]
      %v1093 = vld [vmem:[%s1090 + $0x8] sm:$0xf]
      %v1094 = vld [vmem:[%s1090 + $0xc] sm:$0xf]
      %v1095 = vld [vmem:[%s1090 + $0x10] sm:$0xf]
      %v1096 = vld [vmem:[%s1090 + $0x14] sm:$0xf]
      %v1097 = vld [vmem:[%s1090 + $0x18] sm:$0xf]
      %v1098 = vld [vmem:[%s1090 + $0x1c] sm:$0xf]
      %v1099 = vld [vmem:[%s1090 + $0x20] sm:$0xf]
      %v1100 = vld [vmem:[%s1090 + $0x24] sm:$0xf]
      %v1101 = vld [vmem:[%s1090 + $0x28] sm:$0xf]
      %v1102 = vld [vmem:[%s1090 + $0x2c] sm:$0xf]
      %v1103 = vld [vmem:[%s1090 + $0x30] sm:$0xf]
      %v1104 = vld [vmem:[%s1090 + $0x34] sm:$0xf]
      %v1105 = vld [vmem:[%s1090 + $0x38] sm:$0xf]
      %v1106 = vld [vmem:[%s1090 + $0x3c] sm:$0xf]
      %v1107 = vunpack.c.l.b16 %v1007
      %v1108 = vunpack.c.l.b16 %v1017
      %v1109 = vunpack.c.l.b16 %v1031
      %v1110 = vunpack.c.l.b16 %v1041
      %v1111 = vunpack.c.l.b16 %v1055
      %v1112 = vunpack.c.l.b16 %v1065
      %v1113 = vunpack.c.l.b16 %v1079
      %v1114 = vunpack.c.l.b16 %v1089
      %v1115 = vpack.c.b16 %v1108, %v1107
      %v1116 = vpack.c.b16 %v1110, %v1109
      %v1117 = vpack.c.b16 %v1112, %v1111
      %v1118 = vpack.c.b16 %v1114, %v1113
      %v1139 = vunpack.c.l.b16 %v1091
      %v1140 = vunpack.c.l.b16 %v1092
      %v1141 = vunpack.c.l.b16 %v1093
      %v1142 = vunpack.c.l.b16 %v1094
      %v1143 = vunpack.c.l.b16 %v1095
      %v1144 = vunpack.c.l.b16 %v1096
      %v1145 = vunpack.c.l.b16 %v1097
      %v1146 = vunpack.c.l.b16 %v1098
      %v1147 = vunpack.c.l.b16 %v1099
      %v1148 = vunpack.c.l.b16 %v1100
      %v1149 = vunpack.c.l.b16 %v1101
      %v1150 = vunpack.c.l.b16 %v1102
      %v1151 = vunpack.c.l.b16 %v1103
      %v1152 = vunpack.c.l.b16 %v1104
      %v1153 = vunpack.c.l.b16 %v1105
      %v1154 = vunpack.c.l.b16 %v1106
      %v1155 = vpack.c.b16 %v1140, %v1139
      %v1156 = vpack.c.b16 %v1142, %v1141
      %v1157 = vpack.c.b16 %v1144, %v1143
      %v1158 = vpack.c.b16 %v1146, %v1145
      %v1159 = vpack.c.b16 %v1148, %v1147
      %v1160 = vpack.c.b16 %v1150, %v1149
      %v1161 = vpack.c.b16 %v1152, %v1151
      %v1162 = vpack.c.b16 %v1154, %v1153
      %1171 = vmatprep.subr.bf16.mxu0 0
      %1172 = vmatpush1.bf16.msra.mxu0 %v1155
      %1173 = vmatprep.subr.bf16.mxu0 0
      %1174 = vmatpush1.bf16.msra.mxu0 %v1156
      %1175 = vmatprep.subr.bf16.mxu0 0
      %1176 = vmatpush1.bf16.msra.mxu0 %v1157
      %1177 = vmatprep.subr.bf16.mxu0 0
      %1178 = vmatpush1.bf16.msra.mxu0 %v1158
      %1179 = vmatprep.subr.bf16.mxu0 0
      %1180 = vmatpush1.bf16.msra.mxu0 %v1159
      %1181 = vmatprep.subr.bf16.mxu0 0
      %1182 = vmatpush1.bf16.msra.mxu0 %v1160
      %1183 = vmatprep.subr.bf16.mxu0 0
      %1184 = vmatpush1.bf16.msra.mxu0 %v1161
      %1185 = vmatprep.subr.bf16.mxu0 0
      %1186 = vmatpush1.bf16.msra.mxu0 %v1162
      %1187 = vmatprep.subr.bf16.mxu0 0
      %1188 = vmatpush1.bf16.msra.mxu0 0
      %1189 = vmatprep.subr.bf16.mxu0 0
      %1190 = vmatpush1.bf16.msra.mxu0 0
      %1191 = vmatprep.subr.bf16.mxu0 0
      %1192 = vmatpush1.bf16.msra.mxu0 0
      %1193 = vmatprep.subr.bf16.mxu0 0
      %1194 = vmatpush1.bf16.msra.mxu0 0
      %1195 = vmatprep.subr.bf16.mxu0 0
      %1196 = vmatpush1.bf16.msra.mxu0 0
      %1197 = vmatprep.subr.bf16.mxu0 0
      %1198 = vmatpush1.bf16.msra.mxu0 0
      %1199 = vmatprep.subr.bf16.mxu0 0
      %1200 = vmatpush1.bf16.msra.mxu0 0
      %1201 = vmatprep.subr.bf16.mxu0 0
      %1202 = vmatpush1.bf16.msra.mxu0 0
      %1203 = vmatprep.mubr.bf16.mxu0 0
      %1204 = vmatmul.mubr.bf16.gmra.mrb[0].mxu0 %v1115
      %v1205 = vpop.f32.mrb[0].mxu0
      %v1206 = vadd.f32 0.0, %v1205
      %v1207 = vpop.f32.mrb[0].mxu0
      %v1208 = vpop.f32.mrb[0].mxu0
      %v1209 = vadd.f32 0.0, %v1208
      %v1210 = vpop.f32.mrb[0].mxu0
      %1211 = vmatprep.mubr.bf16.mxu0 0
      %1212 = vmatmul.mubr.bf16.gmra.mrb[0].mxu0 %v1116
      %v1213 = vpop.f32.mrb[0].mxu0
      %v1214 = vadd.f32 0.0, %v1213
      %v1215 = vpop.f32.mrb[0].mxu0
      %v1216 = vpop.f32.mrb[0].mxu0
      %v1217 = vadd.f32 0.0, %v1216
      %v1218 = vpop.f32.mrb[0].mxu0
      %1219 = vmatprep.mubr.bf16.mxu0 0
      %1220 = vmatmul.mubr.bf16.gmra.mrb[0].mxu0 %v1117
      %v1221 = vpop.f32.mrb[0].mxu0
      %v1222 = vadd.f32 0.0, %v1221
      %v1223 = vpop.f32.mrb[0].mxu0
      %v1224 = vpop.f32.mrb[0].mxu0
      %v1225 = vadd.f32 0.0, %v1224
      %v1226 = vpop.f32.mrb[0].mxu0
      %1227 = vmatprep.mubr.bf16.mxu0 0
      %1228 = vmatmul.mubr.bf16.gmra.mrb[0].mxu0 %v1118
      %v1229 = vpop.f32.mrb[0].mxu0
      %v1230 = vadd.f32 0.0, %v1229
      %v1231 = vpop.f32.mrb[0].mxu0
      %v1232 = vpop.f32.mrb[0].mxu0
      %v1233 = vadd.f32 0.0, %v1232
      %v1234 = vpop.f32.mrb[0].mxu0
      %1235 = vdwg.mxu0
      %v1236 = vadd.f32 %v974, %v1206
      %v1237 = vadd.f32 %v975, %v1209
      %v1238 = vadd.f32 %v976, %v1214
      %v1239 = vadd.f32 %v977, %v1217
      %v1240 = vadd.f32 %v978, %v1222
      %v1241 = vadd.f32 %v979, %v1225
      %v1242 = vadd.f32 %v980, %v1230
      %v1243 = vadd.f32 %v981, %v1233
      %v1244 = vld [vmem:[%s811] sm:$0xe]
      %v1245 = vld [vmem:[%s811 + $0xc] sm:$0xe]
      %v1246 = vld [vmem:[%s811 + $0x18] sm:$0xe]
      %v1247 = vld [vmem:[%s811 + $0x24] sm:$0xe]
      %v1260 = vrot.slane %v1244, 5
      %v1261 = vrot.slane %v1260, 4
      %v1262 = vrot.slane %v983, 5
      %v1263 = vsel %vm625, %v1261, %v1262
      %v1264 = vrot.slane %v1262, 4
      %v1265 = vrot.slane %v984, 5
      %v1266 = vsel %vm625, %v1264, %v1265
      %v1267 = vrot.slane %v1245, 5
      %v1268 = vrot.slane %v1267, 4
      %v1269 = vrot.slane %v986, 5
      %v1270 = vsel %vm625, %v1268, %v1269
      %v1271 = vrot.slane %v1269, 4
      %v1272 = vrot.slane %v987, 5
      %v1273 = vsel %vm625, %v1271, %v1272
      %v1274 = vrot.slane %v1246, 5
      %v1275 = vrot.slane %v1274, 4
      %v1276 = vrot.slane %v989, 5
      %v1277 = vsel %vm625, %v1275, %v1276
      %v1278 = vrot.slane %v1276, 4
      %v1279 = vrot.slane %v990, 5
      %v1280 = vsel %vm625, %v1278, %v1279
      %v1281 = vrot.slane %v1247, 5
      %v1282 = vrot.slane %v1281, 4
      %v1283 = vrot.slane %v992, 5
      %v1284 = vsel %vm625, %v1282, %v1283
      %v1285 = vrot.slane %v1283, 4
      %v1286 = vrot.slane %v993, 5
      %v1287 = vsel %vm625, %v1285, %v1286
      %s1288 = scalar_lea.vmem %s1, 320
      %v1289 = vld [vmem:[%s1288] sm:$0xf]
      %v1290 = vld [vmem:[%s1288 + $0x4] sm:$0xf]
      %v1291 = vld [vmem:[%s1288 + $0x8] sm:$0xf]
      %v1292 = vld [vmem:[%s1288 + $0xc] sm:$0xf]
      %v1293 = vld [vmem:[%s1288 + $0x10] sm:$0xf]
      %v1294 = vld [vmem:[%s1288 + $0x14] sm:$0xf]
      %v1295 = vld [vmem:[%s1288 + $0x18] sm:$0xf]
      %v1296 = vld [vmem:[%s1288 + $0x1c] sm:$0xf]
      %v1297 = vld [vmem:[%s1288 + $0x20] sm:$0xf]
      %v1298 = vld [vmem:[%s1288 + $0x24] sm:$0xf]
      %v1299 = vld [vmem:[%s1288 + $0x28] sm:$0xf]
      %v1300 = vld [vmem:[%s1288 + $0x2c] sm:$0xf]
      %v1301 = vld [vmem:[%s1288 + $0x30] sm:$0xf]
      %v1302 = vld [vmem:[%s1288 + $0x34] sm:$0xf]
      %v1303 = vld [vmem:[%s1288 + $0x38] sm:$0xf]
      %v1304 = vld [vmem:[%s1288 + $0x3c] sm:$0xf]
      %v1305 = vunpack.c.l.b16 %v1263
      %v1306 = vunpack.c.l.b16 %v1266
      %v1307 = vunpack.c.l.b16 %v1270
      %v1308 = vunpack.c.l.b16 %v1273
      %v1309 = vunpack.c.l.b16 %v1277
      %v1310 = vunpack.c.l.b16 %v1280
      %v1311 = vunpack.c.l.b16 %v1284
      %v1312 = vunpack.c.l.b16 %v1287
      %v1313 = vpack.c.b16 %v1306, %v1305
      %v1314 = vpack.c.b16 %v1308, %v1307
      %v1315 = vpack.c.b16 %v1310, %v1309
      %v1316 = vpack.c.b16 %v1312, %v1311
      %v1337 = vunpack.c.l.b16 %v1289
      %v1338 = vunpack.c.l.b16 %v1290
      %v1339 = vunpack.c.l.b16 %v1291
      %v1340 = vunpack.c.l.b16 %v1292
      %v1341 = vunpack.c.l.b16 %v1293
      %v1342 = vunpack.c.l.b16 %v1294
      %v1343 = vunpack.c.l.b16 %v1295
      %v1344 = vunpack.c.l.b16 %v1296
      %v1345 = vunpack.c.l.b16 %v1297
      %v1346 = vunpack.c.l.b16 %v1298
      %v1347 = vunpack.c.l.b16 %v1299
      %v1348 = vunpack.c.l.b16 %v1300
      %v1349 = vunpack.c.l.b16 %v1301
      %v1350 = vunpack.c.l.b16 %v1302
      %v1351 = vunpack.c.l.b16 %v1303
      %v1352 = vunpack.c.l.b16 %v1304
      %v1353 = vpack.c.b16 %v1338, %v1337
      %v1354 = vpack.c.b16 %v1340, %v1339
      %v1355 = vpack.c.b16 %v1342, %v1341
      %v1356 = vpack.c.b16 %v1344, %v1343
      %v1357 = vpack.c.b16 %v1346, %v1345
      %v1358 = vpack.c.b16 %v1348, %v1347
      %v1359 = vpack.c.b16 %v1350, %v1349
      %v1360 = vpack.c.b16 %v1352, %v1351
      %1369 = vmatprep.subr.bf16.mxu0 0
      %1370 = vmatpush1.bf16.msra.mxu0 %v1353
      %1371 = vmatprep.subr.bf16.mxu0 0
      %1372 = vmatpush1.bf16.msra.mxu0 %v1354
      %1373 = vmatprep.subr.bf16.mxu0 0
      %1374 = vmatpush1.bf16.msra.mxu0 %v1355
      %1375 = vmatprep.subr.bf16.mxu0 0
      %1376 = vmatpush1.bf16.msra.mxu0 %v1356
      %1377 = vmatprep.subr.bf16.mxu0 0
      %1378 = vmatpush1.bf16.msra.mxu0 %v1357
      %1379 = vmatprep.subr.bf16.mxu0 0
      %1380 = vmatpush1.bf16.msra.mxu0 %v1358
      %1381 = vmatprep.subr.bf16.mxu0 0
      %1382 = vmatpush1.bf16.msra.mxu0 %v1359
      %1383 = vmatprep.subr.bf16.mxu0 0
      %1384 = vmatpush1.bf16.msra.mxu0 %v1360
      %1385 = vmatprep.subr.bf16.mxu0 0
      %1386 = vmatpush1.bf16.msra.mxu0 0
      %1387 = vmatprep.subr.bf16.mxu0 0
      %1388 = vmatpush1.bf16.msra.mxu0 0
      %1389 = vmatprep.subr.bf16.mxu0 0
      %1390 = vmatpush1.bf16.msra.mxu0 0
      %1391 = vmatprep.subr.bf16.mxu0 0
      %1392 = vmatpush1.bf16.msra.mxu0 0
      %1393 = vmatprep.subr.bf16.mxu0 0
      %1394 = vmatpush1.bf16.msra.mxu0 0
      %1395 = vmatprep.subr.bf16.mxu0 0
      %1396 = vmatpush1.bf16.msra.mxu0 0
      %1397 = vmatprep.subr.bf16.mxu0 0
      %1398 = vmatpush1.bf16.msra.mxu0 0
      %1399 = vmatprep.subr.bf16.mxu0 0
      %1400 = vmatpush1.bf16.msra.mxu0 0
      %1401 = vmatprep.mubr.bf16.mxu0 0
      %1402 = vmatmul.mubr.bf16.gmra.mrb[0].mxu0 %v1313
      %v1403 = vpop.f32.mrb[0].mxu0
      %v1404 = vadd.f32 0.0, %v1403
      %v1405 = vpop.f32.mrb[0].mxu0
      %v1406 = vpop.f32.mrb[0].mxu0
      %v1407 = vadd.f32 0.0, %v1406
      %v1408 = vpop.f32.mrb[0].mxu0
      %1409 = vmatprep.mubr.bf16.mxu0 0
      %1410 = vmatmul.mubr.bf16.gmra.mrb[0].mxu0 %v1314
      %v1411 = vpop.f32.mrb[0].mxu0
      %v1412 = vadd.f32 0.0, %v1411
      %v1413 = vpop.f32.mrb[0].mxu0
      %v1414 = vpop.f32.mrb[0].mxu0
      %v1415 = vadd.f32 0.0, %v1414
      %v1416 = vpop.f32.mrb[0].mxu0
      %1417 = vmatprep.mubr.bf16.mxu0 0
      %1418 = vmatmul.mubr.bf16.gmra.mrb[0].mxu0 %v1315
      %v1419 = vpop.f32.mrb[0].mxu0
      %v1420 = vadd.f32 0.0, %v1419
      %v1421 = vpop.f32.mrb[0].mxu0
      %v1422 = vpop.f32.mrb[0].mxu0
      %v1423 = vadd.f32 0.0, %v1422
      %v1424 = vpop.f32.mrb[0].mxu0
      %1425 = vmatprep.mubr.bf16.mxu0 0
      %1426 = vmatmul.mubr.bf16.gmra.mrb[0].mxu0 %v1316
      %v1427 = vpop.f32.mrb[0].mxu0
      %v1428 = vadd.f32 0.0, %v1427
      %v1429 = vpop.f32.mrb[0].mxu0
      %v1430 = vpop.f32.mrb[0].mxu0
      %v1431 = vadd.f32 0.0, %v1430
      %v1432 = vpop.f32.mrb[0].mxu0
      %1433 = vdwg.mxu0
      %v1434 = vadd.f32 %v1236, %v1404
      %v1435 = vadd.f32 %v1237, %v1407
      %v1436 = vadd.f32 %v1238, %v1412
      %v1437 = vadd.f32 %v1239, %v1415
      %v1438 = vadd.f32 %v1240, %v1420
      %v1439 = vadd.f32 %v1241, %v1423
      %v1440 = vadd.f32 %v1242, %v1428
      %v1441 = vadd.f32 %v1243, %v1431
      %s1442 = sadd.s32 %s197, 2
      %s1443 = smul.u32 %s1442, 3
      %s1444 = smul.addr %s1443, 4
      %s1445 = scalar_lea.vmem %s184, %s1444
      %v1446 = vld [vmem:[%s1445] sm:$0xf]
      %v1447 = vld [vmem:[%s1445 + $0x4] sm:$0xf]
      %v1448 = vld [vmem:[%s1445 + $0xc] sm:$0xf]
      %v1449 = vld [vmem:[%s1445 + $0x10] sm:$0xf]
      %v1450 = vld [vmem:[%s1445 + $0x18] sm:$0xf]
      %v1451 = vld [vmem:[%s1445 + $0x1c] sm:$0xf]
      %v1452 = vld [vmem:[%s1445 + $0x24] sm:$0xf]
      %v1453 = vld [vmem:[%s1445 + $0x28] sm:$0xf]
      %s1454 = scalar_lea.vmem %s1, 384
      %v1455 = vld [vmem:[%s1454] sm:$0xf]
      %v1456 = vld [vmem:[%s1454 + $0x4] sm:$0xf]
      %v1457 = vld [vmem:[%s1454 + $0x8] sm:$0xf]
      %v1458 = vld [vmem:[%s1454 + $0xc] sm:$0xf]
      %v1459 = vld [vmem:[%s1454 + $0x10] sm:$0xf]
      %v1460 = vld [vmem:[%s1454 + $0x14] sm:$0xf]
      %v1461 = vld [vmem:[%s1454 + $0x18] sm:$0xf]
      %v1462 = vld [vmem:[%s1454 + $0x1c] sm:$0xf]
      %v1463 = vld [vmem:[%s1454 + $0x20] sm:$0xf]
      %v1464 = vld [vmem:[%s1454 + $0x24] sm:$0xf]
      %v1465 = vld [vmem:[%s1454 + $0x28] sm:$0xf]
      %v1466 = vld [vmem:[%s1454 + $0x2c] sm:$0xf]
      %v1467 = vld [vmem:[%s1454 + $0x30] sm:$0xf]
      %v1468 = vld [vmem:[%s1454 + $0x34] sm:$0xf]
      %v1469 = vld [vmem:[%s1454 + $0x38] sm:$0xf]
      %v1470 = vld [vmem:[%s1454 + $0x3c] sm:$0xf]
      %v1479 = vunpack.c.l.b16 %v1446
      %v1480 = vunpack.c.l.b16 %v1447
      %v1481 = vunpack.c.l.b16 %v1448
      %v1482 = vunpack.c.l.b16 %v1449
      %v1483 = vunpack.c.l.b16 %v1450
      %v1484 = vunpack.c.l.b16 %v1451
      %v1485 = vunpack.c.l.b16 %v1452
      %v1486 = vunpack.c.l.b16 %v1453
      %v1487 = vpack.c.b16 %v1480, %v1479
      %v1488 = vpack.c.b16 %v1482, %v1481
      %v1489 = vpack.c.b16 %v1484, %v1483
      %v1490 = vpack.c.b16 %v1486, %v1485
      %v1511 = vunpack.c.l.b16 %v1455
      %v1512 = vunpack.c.l.b16 %v1456
      %v1513 = vunpack.c.l.b16 %v1457
      %v1514 = vunpack.c.l.b16 %v1458
      %v1515 = vunpack.c.l.b16 %v1459
      %v1516 = vunpack.c.l.b16 %v1460
      %v1517 = vunpack.c.l.b16 %v1461
      %v1518 = vunpack.c.l.b16 %v1462
      %v1519 = vunpack.c.l.b16 %v1463
      %v1520 = vunpack.c.l.b16 %v1464
      %v1521 = vunpack.c.l.b16 %v1465
      %v1522 = vunpack.c.l.b16 %v1466
      %v1523 = vunpack.c.l.b16 %v1467
      %v1524 = vunpack.c.l.b16 %v1468
      %v1525 = vunpack.c.l.b16 %v1469
      %v1526 = vunpack.c.l.b16 %v1470
      %v1527 = vpack.c.b16 %v1512, %v1511
      %v1528 = vpack.c.b16 %v1514, %v1513
      %v1529 = vpack.c.b16 %v1516, %v1515
      %v1530 = vpack.c.b16 %v1518, %v1517
      %v1531 = vpack.c.b16 %v1520, %v1519
      %v1532 = vpack.c.b16 %v1522, %v1521
      %v1533 = vpack.c.b16 %v1524, %v1523
      %v1534 = vpack.c.b16 %v1526, %v1525
      %1543 = vmatprep.subr.bf16.mxu0 0
      %1544 = vmatpush1.bf16.msra.mxu0 %v1527
      %1545 = vmatprep.subr.bf16.mxu0 0
      %1546 = vmatpush1.bf16.msra.mxu0 %v1528
      %1547 = vmatprep.subr.bf16.mxu0 0
      %1548 = vmatpush1.bf16.msra.mxu0 %v1529
      %1549 = vmatprep.subr.bf16.mxu0 0
      %1550 = vmatpush1.bf16.msra.mxu0 %v1530
      %1551 = vmatprep.subr.bf16.mxu0 0
      %1552 = vmatpush1.bf16.msra.mxu0 %v1531
      %1553 = vmatprep.subr.bf16.mxu0 0
      %1554 = vmatpush1.bf16.msra.mxu0 %v1532
      %1555 = vmatprep.subr.bf16.mxu0 0
      %1556 = vmatpush1.bf16.msra.mxu0 %v1533
      %1557 = vmatprep.subr.bf16.mxu0 0
      %1558 = vmatpush1.bf16.msra.mxu0 %v1534
      %1559 = vmatprep.subr.bf16.mxu0 0
      %1560 = vmatpush1.bf16.msra.mxu0 0
      %1561 = vmatprep.subr.bf16.mxu0 0
      %1562 = vmatpush1.bf16.msra.mxu0 0
      %1563 = vmatprep.subr.bf16.mxu0 0
      %1564 = vmatpush1.bf16.msra.mxu0 0
      %1565 = vmatprep.subr.bf16.mxu0 0
      %1566 = vmatpush1.bf16.msra.mxu0 0
      %1567 = vmatprep.subr.bf16.mxu0 0
      %1568 = vmatpush1.bf16.msra.mxu0 0
      %1569 = vmatprep.subr.bf16.mxu0 0
      %1570 = vmatpush1.bf16.msra.mxu0 0
      %1571 = vmatprep.subr.bf16.mxu0 0
      %1572 = vmatpush1.bf16.msra.mxu0 0
      %1573 = vmatprep.subr.bf16.mxu0 0
      %1574 = vmatpush1.bf16.msra.mxu0 0
      %1575 = vmatprep.mubr.bf16.mxu0 0
      %1576 = vmatmul.mubr.bf16.gmra.mrb[0].mxu0 %v1487
      %v1577 = vpop.f32.mrb[0].mxu0
      %v1578 = vadd.f32 0.0, %v1577
      %v1579 = vpop.f32.mrb[0].mxu0
      %v1580 = vpop.f32.mrb[0].mxu0
      %v1581 = vadd.f32 0.0, %v1580
      %v1582 = vpop.f32.mrb[0].mxu0
      %1583 = vmatprep.mubr.bf16.mxu0 0
      %1584 = vmatmul.mubr.bf16.gmra.mrb[0].mxu0 %v1488
      %v1585 = vpop.f32.mrb[0].mxu0
      %v1586 = vadd.f32 0.0, %v1585
      %v1587 = vpop.f32.mrb[0].mxu0
      %v1588 = vpop.f32.mrb[0].mxu0
      %v1589 = vadd.f32 0.0, %v1588
      %v1590 = vpop.f32.mrb[0].mxu0
      %1591 = vmatprep.mubr.bf16.mxu0 0
      %1592 = vmatmul.mubr.bf16.gmra.mrb[0].mxu0 %v1489
      %v1593 = vpop.f32.mrb[0].mxu0
      %v1594 = vadd.f32 0.0, %v1593
      %v1595 = vpop.f32.mrb[0].mxu0
      %v1596 = vpop.f32.mrb[0].mxu0
      %v1597 = vadd.f32 0.0, %v1596
      %v1598 = vpop.f32.mrb[0].mxu0
      %1599 = vmatprep.mubr.bf16.mxu0 0
      %1600 = vmatmul.mubr.bf16.gmra.mrb[0].mxu0 %v1490
      %v1601 = vpop.f32.mrb[0].mxu0
      %v1602 = vadd.f32 0.0, %v1601
      %v1603 = vpop.f32.mrb[0].mxu0
      %v1604 = vpop.f32.mrb[0].mxu0
      %v1605 = vadd.f32 0.0, %v1604
      %v1606 = vpop.f32.mrb[0].mxu0
      %1607 = vdwg.mxu0
      %v1608 = vadd.f32 %v1434, %v1578
      %v1609 = vadd.f32 %v1435, %v1581
      %v1610 = vadd.f32 %v1436, %v1586
      %v1611 = vadd.f32 %v1437, %v1589
      %v1612 = vadd.f32 %v1438, %v1594
      %v1613 = vadd.f32 %v1439, %v1597
      %v1614 = vadd.f32 %v1440, %v1602
      %v1615 = vadd.f32 %v1441, %v1605
      %v1616 = vld [vmem:[%s1445] sm:$0xf]
      %v1617 = vld [vmem:[%s1445 + $0x4] sm:$0xf]
      %v1618 = vld [vmem:[%s1445 + $0x8] sm:$0x1]
      %v1619 = vld [vmem:[%s1445 + $0xc] sm:$0xf]
      %v1620 = vld [vmem:[%s1445 + $0x10] sm:$0xf]
      %v1621 = vld [vmem:[%s1445 + $0x14] sm:$0x1]
      %v1622 = vld [vmem:[%s1445 + $0x18] sm:$0xf]
      %v1623 = vld [vmem:[%s1445 + $0x1c] sm:$0xf]
      %v1624 = vld [vmem:[%s1445 + $0x20] sm:$0x1]
      %v1625 = vld [vmem:[%s1445 + $0x24] sm:$0xf]
      %v1626 = vld [vmem:[%s1445 + $0x28] sm:$0xf]
      %v1627 = vld [vmem:[%s1445 + $0x2c] sm:$0x1]
      %v1629 = vshrl.u32 %v1616, 16
      %v1631 = vrot.slane %v1629, 4
      %v1632 = vshll.u32 %v1616, 16
      %v1634 = vrot.slane %v1632, 5
      %v1635 = vor.u32 %v1631, %v1634
      %v1636 = vrot.slane %v1635, 4
      %v1638 = vshll.u32 %v1617, 16
      %v1640 = vrot.slane %v1638, 5
      %v1641 = vsel %vm231, %v1636, %v1640
      %v1642 = vshrl.u32 %v1617, 16
      %v1644 = vrot.slane %v1642, 4
      %v1645 = vor.u32 %v1644, %v1640
      %v1646 = vrot.slane %v1645, 4
      %v1648 = vshll.u32 %v1618, 16
      %v1650 = vrot.slane %v1648, 5
      %v1651 = vsel %vm231, %v1646, %v1650
      %v1653 = vshrl.u32 %v1619, 16
      %v1655 = vrot.slane %v1653, 4
      %v1656 = vshll.u32 %v1619, 16
      %v1658 = vrot.slane %v1656, 5
      %v1659 = vor.u32 %v1655, %v1658
      %v1660 = vrot.slane %v1659, 4
      %v1662 = vshll.u32 %v1620, 16
      %v1664 = vrot.slane %v1662, 5
      %v1665 = vsel %vm231, %v1660, %v1664
      %v1666 = vshrl.u32 %v1620, 16
      %v1668 = vrot.slane %v1666, 4
      %v1669 = vor.u32 %v1668, %v1664
      %v1670 = vrot.slane %v1669, 4
      %v1672 = vshll.u32 %v1621, 16
      %v1674 = vrot.slane %v1672, 5
      %v1675 = vsel %vm231, %v1670, %v1674
      %v1677 = vshrl.u32 %v1622, 16
      %v1679 = vrot.slane %v1677, 4
      %v1680 = vshll.u32 %v1622, 16
      %v1682 = vrot.slane %v1680, 5
      %v1683 = vor.u32 %v1679, %v1682
      %v1684 = vrot.slane %v1683, 4
      %v1686 = vshll.u32 %v1623, 16
      %v1688 = vrot.slane %v1686, 5
      %v1689 = vsel %vm231, %v1684, %v1688
      %v1690 = vshrl.u32 %v1623, 16
      %v1692 = vrot.slane %v1690, 4
      %v1693 = vor.u32 %v1692, %v1688
      %v1694 = vrot.slane %v1693, 4
      %v1696 = vshll.u32 %v1624, 16
      %v1698 = vrot.slane %v1696, 5
      %v1699 = vsel %vm231, %v1694, %v1698
      %v1701 = vshrl.u32 %v1625, 16
      %v1703 = vrot.slane %v1701, 4
      %v1704 = vshll.u32 %v1625, 16
      %v1706 = vrot.slane %v1704, 5
      %v1707 = vor.u32 %v1703, %v1706
      %v1708 = vrot.slane %v1707, 4
      %v1710 = vshll.u32 %v1626, 16
      %v1712 = vrot.slane %v1710, 5
      %v1713 = vsel %vm231, %v1708, %v1712
      %v1714 = vshrl.u32 %v1626, 16
      %v1716 = vrot.slane %v1714, 4
      %v1717 = vor.u32 %v1716, %v1712
      %v1718 = vrot.slane %v1717, 4
      %v1720 = vshll.u32 %v1627, 16
      %v1722 = vrot.slane %v1720, 5
      %v1723 = vsel %vm231, %v1718, %v1722
      %s1724 = scalar_lea.vmem %s1, 448
      %v1725 = vld [vmem:[%s1724] sm:$0xf]
      %v1726 = vld [vmem:[%s1724 + $0x4] sm:$0xf]
      %v1727 = vld [vmem:[%s1724 + $0x8] sm:$0xf]
      %v1728 = vld [vmem:[%s1724 + $0xc] sm:$0xf]
      %v1729 = vld [vmem:[%s1724 + $0x10] sm:$0xf]
      %v1730 = vld [vmem:[%s1724 + $0x14] sm:$0xf]
      %v1731 = vld [vmem:[%s1724 + $0x18] sm:$0xf]
      %v1732 = vld [vmem:[%s1724 + $0x1c] sm:$0xf]
      %v1733 = vld [vmem:[%s1724 + $0x20] sm:$0xf]
      %v1734 = vld [vmem:[%s1724 + $0x24] sm:$0xf]
      %v1735 = vld [vmem:[%s1724 + $0x28] sm:$0xf]
      %v1736 = vld [vmem:[%s1724 + $0x2c] sm:$0xf]
      %v1737 = vld [vmem:[%s1724 + $0x30] sm:$0xf]
      %v1738 = vld [vmem:[%s1724 + $0x34] sm:$0xf]
      %v1739 = vld [vmem:[%s1724 + $0x38] sm:$0xf]
      %v1740 = vld [vmem:[%s1724 + $0x3c] sm:$0xf]
      %v1741 = vunpack.c.l.b16 %v1641
      %v1742 = vunpack.c.l.b16 %v1651
      %v1743 = vunpack.c.l.b16 %v1665
      %v1744 = vunpack.c.l.b16 %v1675
      %v1745 = vunpack.c.l.b16 %v1689
      %v1746 = vunpack.c.l.b16 %v1699
      %v1747 = vunpack.c.l.b16 %v1713
      %v1748 = vunpack.c.l.b16 %v1723
      %v1749 = vpack.c.b16 %v1742, %v1741
      %v1750 = vpack.c.b16 %v1744, %v1743
      %v1751 = vpack.c.b16 %v1746, %v1745
      %v1752 = vpack.c.b16 %v1748, %v1747
      %v1773 = vunpack.c.l.b16 %v1725
      %v1774 = vunpack.c.l.b16 %v1726
      %v1775 = vunpack.c.l.b16 %v1727
      %v1776 = vunpack.c.l.b16 %v1728
      %v1777 = vunpack.c.l.b16 %v1729
      %v1778 = vunpack.c.l.b16 %v1730
      %v1779 = vunpack.c.l.b16 %v1731
      %v1780 = vunpack.c.l.b16 %v1732
      %v1781 = vunpack.c.l.b16 %v1733
      %v1782 = vunpack.c.l.b16 %v1734
      %v1783 = vunpack.c.l.b16 %v1735
      %v1784 = vunpack.c.l.b16 %v1736
      %v1785 = vunpack.c.l.b16 %v1737
      %v1786 = vunpack.c.l.b16 %v1738
      %v1787 = vunpack.c.l.b16 %v1739
      %v1788 = vunpack.c.l.b16 %v1740
      %v1789 = vpack.c.b16 %v1774, %v1773
      %v1790 = vpack.c.b16 %v1776, %v1775
      %v1791 = vpack.c.b16 %v1778, %v1777
      %v1792 = vpack.c.b16 %v1780, %v1779
      %v1793 = vpack.c.b16 %v1782, %v1781
      %v1794 = vpack.c.b16 %v1784, %v1783
      %v1795 = vpack.c.b16 %v1786, %v1785
      %v1796 = vpack.c.b16 %v1788, %v1787
      %1805 = vmatprep.subr.bf16.mxu0 0
      %1806 = vmatpush1.bf16.msra.mxu0 %v1789
      %1807 = vmatprep.subr.bf16.mxu0 0
      %1808 = vmatpush1.bf16.msra.mxu0 %v1790
      %1809 = vmatprep.subr.bf16.mxu0 0
      %1810 = vmatpush1.bf16.msra.mxu0 %v1791
      %1811 = vmatprep.subr.bf16.mxu0 0
      %1812 = vmatpush1.bf16.msra.mxu0 %v1792
      %1813 = vmatprep.subr.bf16.mxu0 0
      %1814 = vmatpush1.bf16.msra.mxu0 %v1793
      %1815 = vmatprep.subr.bf16.mxu0 0
      %1816 = vmatpush1.bf16.msra.mxu0 %v1794
      %1817 = vmatprep.subr.bf16.mxu0 0
      %1818 = vmatpush1.bf16.msra.mxu0 %v1795
      %1819 = vmatprep.subr.bf16.mxu0 0
      %1820 = vmatpush1.bf16.msra.mxu0 %v1796
      %1821 = vmatprep.subr.bf16.mxu0 0
      %1822 = vmatpush1.bf16.msra.mxu0 0
      %1823 = vmatprep.subr.bf16.mxu0 0
      %1824 = vmatpush1.bf16.msra.mxu0 0
      %1825 = vmatprep.subr.bf16.mxu0 0
      %1826 = vmatpush1.bf16.msra.mxu0 0
      %1827 = vmatprep.subr.bf16.mxu0 0
      %1828 = vmatpush1.bf16.msra.mxu0 0
      %1829 = vmatprep.subr.bf16.mxu0 0
      %1830 = vmatpush1.bf16.msra.mxu0 0
      %1831 = vmatprep.subr.bf16.mxu0 0
      %1832 = vmatpush1.bf16.msra.mxu0 0
      %1833 = vmatprep.subr.bf16.mxu0 0
      %1834 = vmatpush1.bf16.msra.mxu0 0
      %1835 = vmatprep.subr.bf16.mxu0 0
      %1836 = vmatpush1.bf16.msra.mxu0 0
      %1837 = vmatprep.mubr.bf16.mxu0 0
      %1838 = vmatmul.mubr.bf16.gmra.mrb[0].mxu0 %v1749
      %v1839 = vpop.f32.mrb[0].mxu0
      %v1840 = vadd.f32 0.0, %v1839
      %v1841 = vpop.f32.mrb[0].mxu0
      %v1842 = vpop.f32.mrb[0].mxu0
      %v1843 = vadd.f32 0.0, %v1842
      %v1844 = vpop.f32.mrb[0].mxu0
      %1845 = vmatprep.mubr.bf16.mxu0 0
      %1846 = vmatmul.mubr.bf16.gmra.mrb[0].mxu0 %v1750
      %v1847 = vpop.f32.mrb[0].mxu0
      %v1848 = vadd.f32 0.0, %v1847
      %v1849 = vpop.f32.mrb[0].mxu0
      %v1850 = vpop.f32.mrb[0].mxu0
      %v1851 = vadd.f32 0.0, %v1850
      %v1852 = vpop.f32.mrb[0].mxu0
      %1853 = vmatprep.mubr.bf16.mxu0 0
      %1854 = vmatmul.mubr.bf16.gmra.mrb[0].mxu0 %v1751
      %v1855 = vpop.f32.mrb[0].mxu0
      %v1856 = vadd.f32 0.0, %v1855
      %v1857 = vpop.f32.mrb[0].mxu0
      %v1858 = vpop.f32.mrb[0].mxu0
      %v1859 = vadd.f32 0.0, %v1858
      %v1860 = vpop.f32.mrb[0].mxu0
      %1861 = vmatprep.mubr.bf16.mxu0 0
      %1862 = vmatmul.mubr.bf16.gmra.mrb[0].mxu0 %v1752
      %v1863 = vpop.f32.mrb[0].mxu0
      %v1864 = vadd.f32 0.0, %v1863
      %v1865 = vpop.f32.mrb[0].mxu0
      %v1866 = vpop.f32.mrb[0].mxu0
      %v1867 = vadd.f32 0.0, %v1866
      %v1868 = vpop.f32.mrb[0].mxu0
      %1869 = vdwg.mxu0
      %v1870 = vadd.f32 %v1608, %v1840
      %v1871 = vadd.f32 %v1609, %v1843
      %v1872 = vadd.f32 %v1610, %v1848
      %v1873 = vadd.f32 %v1611, %v1851
      %v1874 = vadd.f32 %v1612, %v1856
      %v1875 = vadd.f32 %v1613, %v1859
      %v1876 = vadd.f32 %v1614, %v1864
      %v1877 = vadd.f32 %v1615, %v1867
      %v1878 = vld [vmem:[%s1445] sm:$0xe]
      %v1879 = vld [vmem:[%s1445 + $0xc] sm:$0xe]
      %v1880 = vld [vmem:[%s1445 + $0x18] sm:$0xe]
      %v1881 = vld [vmem:[%s1445 + $0x24] sm:$0xe]
      %v1894 = vrot.slane %v1878, 5
      %v1895 = vrot.slane %v1894, 4
      %v1896 = vrot.slane %v1617, 5
      %v1897 = vsel %vm625, %v1895, %v1896
      %v1898 = vrot.slane %v1896, 4
      %v1899 = vrot.slane %v1618, 5
      %v1900 = vsel %vm625, %v1898, %v1899
      %v1901 = vrot.slane %v1879, 5
      %v1902 = vrot.slane %v1901, 4
      %v1903 = vrot.slane %v1620, 5
      %v1904 = vsel %vm625, %v1902, %v1903
      %v1905 = vrot.slane %v1903, 4
      %v1906 = vrot.slane %v1621, 5
      %v1907 = vsel %vm625, %v1905, %v1906
      %v1908 = vrot.slane %v1880, 5
      %v1909 = vrot.slane %v1908, 4
      %v1910 = vrot.slane %v1623, 5
      %v1911 = vsel %vm625, %v1909, %v1910
      %v1912 = vrot.slane %v1910, 4
      %v1913 = vrot.slane %v1624, 5
      %v1914 = vsel %vm625, %v1912, %v1913
      %v1915 = vrot.slane %v1881, 5
      %v1916 = vrot.slane %v1915, 4
      %v1917 = vrot.slane %v1626, 5
      %v1918 = vsel %vm625, %v1916, %v1917
      %v1919 = vrot.slane %v1917, 4
      %v1920 = vrot.slane %v1627, 5
      %v1921 = vsel %vm625, %v1919, %v1920
      %s1922 = scalar_lea.vmem %s1, 512
      %v1923 = vld [vmem:[%s1922] sm:$0xf]
      %v1924 = vld [vmem:[%s1922 + $0x4] sm:$0xf]
      %v1925 = vld [vmem:[%s1922 + $0x8] sm:$0xf]
      %v1926 = vld [vmem:[%s1922 + $0xc] sm:$0xf]
      %v1927 = vld [vmem:[%s1922 + $0x10] sm:$0xf]
      %v1928 = vld [vmem:[%s1922 + $0x14] sm:$0xf]
      %v1929 = vld [vmem:[%s1922 + $0x18] sm:$0xf]
      %v1930 = vld [vmem:[%s1922 + $0x1c] sm:$0xf]
      %v1931 = vld [vmem:[%s1922 + $0x20] sm:$0xf]
      %v1932 = vld [vmem:[%s1922 + $0x24] sm:$0xf]
      %v1933 = vld [vmem:[%s1922 + $0x28] sm:$0xf]
      %v1934 = vld [vmem:[%s1922 + $0x2c] sm:$0xf]
      %v1935 = vld [vmem:[%s1922 + $0x30] sm:$0xf]
      %v1936 = vld [vmem:[%s1922 + $0x34] sm:$0xf]
      %v1937 = vld [vmem:[%s1922 + $0x38] sm:$0xf]
      %v1938 = vld [vmem:[%s1922 + $0x3c] sm:$0xf]
      %v1939 = vunpack.c.l.b16 %v1897
      %v1940 = vunpack.c.l.b16 %v1900
      %v1941 = vunpack.c.l.b16 %v1904
      %v1942 = vunpack.c.l.b16 %v1907
      %v1943 = vunpack.c.l.b16 %v1911
      %v1944 = vunpack.c.l.b16 %v1914
      %v1945 = vunpack.c.l.b16 %v1918
      %v1946 = vunpack.c.l.b16 %v1921
      %v1947 = vpack.c.b16 %v1940, %v1939
      %v1948 = vpack.c.b16 %v1942, %v1941
      %v1949 = vpack.c.b16 %v1944, %v1943
      %v1950 = vpack.c.b16 %v1946, %v1945
      %v1971 = vunpack.c.l.b16 %v1923
      %v1972 = vunpack.c.l.b16 %v1924
      %v1973 = vunpack.c.l.b16 %v1925
      %v1974 = vunpack.c.l.b16 %v1926
      %v1975 = vunpack.c.l.b16 %v1927
      %v1976 = vunpack.c.l.b16 %v1928
      %v1977 = vunpack.c.l.b16 %v1929
      %v1978 = vunpack.c.l.b16 %v1930
      %v1979 = vunpack.c.l.b16 %v1931
      %v1980 = vunpack.c.l.b16 %v1932
      %v1981 = vunpack.c.l.b16 %v1933
      %v1982 = vunpack.c.l.b16 %v1934
      %v1983 = vunpack.c.l.b16 %v1935
      %v1984 = vunpack.c.l.b16 %v1936
      %v1985 = vunpack.c.l.b16 %v1937
      %v1986 = vunpack.c.l.b16 %v1938
      %v1987 = vpack.c.b16 %v1972, %v1971
      %v1988 = vpack.c.b16 %v1974, %v1973
      %v1989 = vpack.c.b16 %v1976, %v1975
      %v1990 = vpack.c.b16 %v1978, %v1977
      %v1991 = vpack.c.b16 %v1980, %v1979
      %v1992 = vpack.c.b16 %v1982, %v1981
      %v1993 = vpack.c.b16 %v1984, %v1983
      %v1994 = vpack.c.b16 %v1986, %v1985
      %2003 = vmatprep.subr.bf16.mxu0 0
      %2004 = vmatpush1.bf16.msra.mxu0 %v1987
      %2005 = vmatprep.subr.bf16.mxu0 0
      %2006 = vmatpush1.bf16.msra.mxu0 %v1988
      %2007 = vmatprep.subr.bf16.mxu0 0
      %2008 = vmatpush1.bf16.msra.mxu0 %v1989
      %2009 = vmatprep.subr.bf16.mxu0 0
      %2010 = vmatpush1.bf16.msra.mxu0 %v1990
      %2011 = vmatprep.subr.bf16.mxu0 0
      %2012 = vmatpush1.bf16.msra.mxu0 %v1991
      %2013 = vmatprep.subr.bf16.mxu0 0
      %2014 = vmatpush1.bf16.msra.mxu0 %v1992
      %2015 = vmatprep.subr.bf16.mxu0 0
      %2016 = vmatpush1.bf16.msra.mxu0 %v1993
      %2017 = vmatprep.subr.bf16.mxu0 0
      %2018 = vmatpush1.bf16.msra.mxu0 %v1994
      %2019 = vmatprep.subr.bf16.mxu0 0
      %2020 = vmatpush1.bf16.msra.mxu0 0
      %2021 = vmatprep.subr.bf16.mxu0 0
      %2022 = vmatpush1.bf16.msra.mxu0 0
      %2023 = vmatprep.subr.bf16.mxu0 0
      %2024 = vmatpush1.bf16.msra.mxu0 0
      %2025 = vmatprep.subr.bf16.mxu0 0
      %2026 = vmatpush1.bf16.msra.mxu0 0
      %2027 = vmatprep.subr.bf16.mxu0 0
      %2028 = vmatpush1.bf16.msra.mxu0 0
      %2029 = vmatprep.subr.bf16.mxu0 0
      %2030 = vmatpush1.bf16.msra.mxu0 0
      %2031 = vmatprep.subr.bf16.mxu0 0
      %2032 = vmatpush1.bf16.msra.mxu0 0
      %2033 = vmatprep.subr.bf16.mxu0 0
      %2034 = vmatpush1.bf16.msra.mxu0 0
      %2035 = vmatprep.mubr.bf16.mxu0 0
      %2036 = vmatmul.mubr.bf16.gmra.mrb[0].mxu0 %v1947
      %v2037 = vpop.f32.mrb[0].mxu0
      %v2038 = vadd.f32 0.0, %v2037
      %v2039 = vpop.f32.mrb[0].mxu0
      %v2040 = vpop.f32.mrb[0].mxu0
      %v2041 = vadd.f32 0.0, %v2040
      %v2042 = vpop.f32.mrb[0].mxu0
      %2043 = vmatprep.mubr.bf16.mxu0 0
      %2044 = vmatmul.mubr.bf16.gmra.mrb[0].mxu0 %v1948
      %v2045 = vpop.f32.mrb[0].mxu0
      %v2046 = vadd.f32 0.0, %v2045
      %v2047 = vpop.f32.mrb[0].mxu0
      %v2048 = vpop.f32.mrb[0].mxu0
      %v2049 = vadd.f32 0.0, %v2048
      %v2050 = vpop.f32.mrb[0].mxu0
      %2051 = vmatprep.mubr.bf16.mxu0 0
      %2052 = vmatmul.mubr.bf16.gmra.mrb[0].mxu0 %v1949
      %v2053 = vpop.f32.mrb[0].mxu0
      %v2054 = vadd.f32 0.0, %v2053
      %v2055 = vpop.f32.mrb[0].mxu0
      %v2056 = vpop.f32.mrb[0].mxu0
      %v2057 = vadd.f32 0.0, %v2056
      %v2058 = vpop.f32.mrb[0].mxu0
      %2059 = vmatprep.mubr.bf16.mxu0 0
      %2060 = vmatmul.mubr.bf16.gmra.mrb[0].mxu0 %v1950
      %v2061 = vpop.f32.mrb[0].mxu0
      %v2062 = vadd.f32 0.0, %v2061
      %v2063 = vpop.f32.mrb[0].mxu0
      %v2064 = vpop.f32.mrb[0].mxu0
      %v2065 = vadd.f32 0.0, %v2064
      %v2066 = vpop.f32.mrb[0].mxu0
      %2067 = vdwg.mxu0
      %v2068 = vadd.f32 %v1870, %v2038
      %v2069 = vadd.f32 %v1871, %v2041
      %v2070 = vadd.f32 %v1872, %v2046
      %v2071 = vadd.f32 %v1873, %v2049
      %v2072 = vadd.f32 %v1874, %v2054
      %v2073 = vadd.f32 %v1875, %v2057
      %v2074 = vadd.f32 %v1876, %v2062
      %v2075 = vadd.f32 %v1877, %v2065
      %v2076 = vld [vmem:[%s2] sm:$0x1]
      %v2078 = vlaneseq
      %v2079 = vshrl.u32 %v2078, 7
      %v2080 = vsub.s32 0, %v2079
      %v2081 = vrot.slane %v2076, %v2080
      %v2083 = vadd.f32 %v2068, %v2081
      %v2084 = vadd.f32 %v2069, %v2081
      %v2085 = vadd.f32 %v2070, %v2081
      %v2086 = vadd.f32 %v2071, %v2081
      %v2087 = vadd.f32 %v2072, %v2081
      %v2088 = vadd.f32 %v2073, %v2081
      %v2089 = vadd.f32 %v2074, %v2081
      %v2090 = vadd.f32 %v2075, %v2081
      %v2091 = vmax.f32 %v2083, 0.0
      %v2092 = vmax.f32 %v2084, 0.0
      %v2093 = vmax.f32 %v2085, 0.0
      %v2094 = vmax.f32 %v2086, 0.0
      %v2095 = vmax.f32 %v2087, 0.0
      %v2096 = vmax.f32 %v2088, 0.0
      %v2097 = vmax.f32 %v2089, 0.0
      %v2098 = vmax.f32 %v2090, 0.0
      %v2099 = vpack.c.bf16 %v2092, %v2091
      %v2100 = vpack.c.bf16 %v2094, %v2093
      %v2101 = vpack.c.bf16 %v2096, %v2095
      %v2102 = vpack.c.bf16 %v2098, %v2097
      %v2107 = vunpack.c.l.b16 %v2099
      %v2108 = vunpack.c.h.b16 %v2099
      %v2109 = vunpack.c.l.b16 %v2100
      %v2110 = vunpack.c.h.b16 %v2100
      %v2111 = vunpack.c.l.b16 %v2101
      %v2112 = vunpack.c.h.b16 %v2101
      %v2113 = vunpack.c.l.b16 %v2102
      %v2114 = vunpack.c.h.b16 %v2102
      %v2115 = vpack.c.b16 %v2107, %v2107
      %v2116 = vpack.c.b16 %v2108, %v2108
      %v2117 = vpack.c.b16 %v2109, %v2109
      %v2118 = vpack.c.b16 %v2110, %v2110
      %v2119 = vpack.c.b16 %v2111, %v2111
      %v2120 = vpack.c.b16 %v2112, %v2112
      %v2121 = vpack.c.b16 %v2113, %v2113
      %v2122 = vpack.c.b16 %v2114, %v2114
      %2131 = vst [vmem:[%s194] sm:$0xf] %v2115
      %2132 = vst [vmem:[%s194 + $0x4] sm:$0xf] %v2116
      %2133 = vst [vmem:[%s194 + $0x8] sm:$0xf] %v2117
      %2134 = vst [vmem:[%s194 + $0xc] sm:$0xf] %v2118
      %2135 = vst [vmem:[%s194 + $0x10] sm:$0xf] %v2119
      %2136 = vst [vmem:[%s194 + $0x14] sm:$0xf] %v2120
      %2137 = vst [vmem:[%s194 + $0x18] sm:$0xf] %v2121
      %2138 = vst [vmem:[%s194 + $0x1c] sm:$0xf] %v2122
      %s2139 = smul.u32 4, %s19
      %p2140 = scmp.lt.s32.totalorder %s18, 1
      %s2141 = scalar_select %p2140, %s18, 1
      %p2142 = scmp.lt.s32.totalorder %s2139, 15
      %s2143 = scalar_select %p2142, %s2139, 15
      %s2144 = smul.addr %s2143, 2
      %s2145 = smul.addr %s2141, 32
      %s2146 = sadd.s32 %s2144, %s2145
      %s2147 = smul.addr %s2146, 4
      %s2148 = scalar_lea.vmem %s3, %s2147
      // Predicated region
      $region33: #{encoder_cnn_forward.12} parent=31 // pred_check
        %p2149 = pneg %p114
      $region34: #{encoder_cnn_forward.12} parent=31 // pred_check_branch
        %2151 = sbr.rel (%p2149) target = $region36
      $region35: #{encoder_cnn_forward.12} parent=31 // pred_region
        %s2152 = smul.u32 4, %s19
      $region36: #{encoder_cnn_forward.12} parent=31 // pred_fallthru
        _
    $region32: #{encoder_cnn_forward.12} parent=5 // pred_fallthru
      _
    %p2153 = scmp.le.s32.totalorder 2, %s9
    // Predicated region
    $region37: #{encoder_cnn_forward.12} parent=5 // pred_check
      %p2154 = pneg %p2153
    $region38: #{encoder_cnn_forward.12} parent=5 // pred_check_branch
      %2156 = sbr.rel (%p2154) target = $region40
    $region39: #{encoder_cnn_forward.12} parent=5 // pred_region
      %s2157 = ssub.s32 %s9, 2
      // Predicated region
      $region41: #{encoder_cnn_forward.12} parent=39 // pred_check
        %p2158 = pneg %p120
      $region42: #{encoder_cnn_forward.12} parent=39 // pred_check_branch
        %2160 = sbr.rel (%p2158) target = $region44
      $region43: #{encoder_cnn_forward.12} parent=39 // pred_region
        %s2161 = smul.u32 4, %s21
        %p2162 = scmp.lt.s32.totalorder %s20, 1
        %s2163 = scalar_select %p2162, %s20, 1
        %p2164 = scmp.lt.s32.totalorder %s2161, 15
        %s2165 = scalar_select %p2164, %s2161, 15
        %s2166 = smul.addr %s2165, 2
        %s2167 = smul.addr %s2163, 32
        %s2168 = sadd.s32 %s2166, %s2167
        %s2169 = smul.addr %s2168, 4
        %s2170 = scalar_lea.vmem %s3, %s2169
      $region44: #{encoder_cnn_forward.12} parent=39 // pred_fallthru
        _
    $region40: #{encoder_cnn_forward.12} parent=5 // pred_fallthru
      _
  $region6: #{encoder_cnn_forward.12} parent=0 // loop_footer
    %s13 = sadd.s32 1, %s9
  $region7: #{encoder_cnn_forward.12} parent=0 // loop_footer_branch
    %8 = sbr.rel target = $region3
  $region8: #{encoder_cnn_forward.12} parent=0 // loop_exit
    _

// kernel: encoder_cnn_forward.17
$region0: #{encoder_cnn_forward.17}
  #allocation0 [shape = 'u32[]', space=smem, size = 0x4, offset = 0x4, fixed_abs, tag = 'smem constant byte address 0x4 - core index']
  #allocation1 [shape = 'u32[144,128]{1,0:T(1,128)}', space=vmem, size = 0x12000, scoped, tag = 'internal scratch']
  %s0 = inlined_call_operand.vmem [shape: bf16[2,64,256], index: 0, kind: input, shape index: {}]
  %s1 = inlined_call_operand.vmem [shape: f32[256,256], index: 1, kind: input, shape index: {}]
  %s2 = inlined_call_operand.vmem [shape: f32[1,256], index: 2, kind: input, shape index: {}]
  %s3 = inlined_call_operand.hbm [shape: f32[2,256], index: 3, kind: output, shape index: {}]
  %s4 = sld [smem:[#allocation0]]
  $region22: #{encoder_cnn_forward.17} parent=0
    _
  %s6 = ssub.s32 1, %s4
  %s7 = scalar_select 0, %s6, %s4
  $region1: #{encoder_cnn_forward.17} parent=0
    #allocation2 [shape = 'u8[2048]{0}', space=vmem, size = 0x800, scoped, tag = 'output window, operand 0, single buffered']
    #allocation3 [shape = 's32[1]{0}', space=sflag, size = 0x4, scoped, tag = 'scoped memory for encoder_cnn_forward.17']
    %8 = vsyncpa [#allocation3], 0
    // Predicated region
    $region2: #{encoder_cnn_forward.17} parent=1 // pred_check
      _
    $region3: #{encoder_cnn_forward.17} parent=1 // pred_check_branch
      %10 = sbr.rel (0) target = $region5
    $region4: #{encoder_cnn_forward.17} parent=1 // pred_region
      _
    $region5: #{encoder_cnn_forward.17} parent=1 // pred_fallthru
      _
    // Predicated region
    $region6: #{encoder_cnn_forward.17} parent=1 // pred_check
      _
    $region7: #{encoder_cnn_forward.17} parent=1 // pred_check_branch
      %12 = sbr.rel (0) target = $region9
    $region8: #{encoder_cnn_forward.17} parent=1 // pred_region
      _
    $region9: #{encoder_cnn_forward.17} parent=1 // pred_fallthru
      _
    // Predicated region
    $region10: #{encoder_cnn_forward.17} parent=1 // pred_check
      _
    $region11: #{encoder_cnn_forward.17} parent=1 // pred_check_branch
      %14 = sbr.rel (0) target = $region13
    $region12: #{encoder_cnn_forward.17} parent=1 // pred_region
      _
    $region13: #{encoder_cnn_forward.17} parent=1 // pred_fallthru
      _
    %v15 = vld [vmem:[%s0] sm:$0xff]
    %v16 = vld [vmem:[%s0 + $0x8] sm:$0xff]
    %v17 = vld [vmem:[%s0 + $0x10] sm:$0xff]
    %v18 = vld [vmem:[%s0 + $0x18] sm:$0xff]
    %v19 = vld [vmem:[%s0 + $0x20] sm:$0xff]
    %v20 = vld [vmem:[%s0 + $0x28] sm:$0xff]
    %v21 = vld [vmem:[%s0 + $0x30] sm:$0xff]
    %v22 = vld [vmem:[%s0 + $0x38] sm:$0xff]
    %v23 = vld [vmem:[%s0 + $0x40] sm:$0xff]
    %v24 = vld [vmem:[%s0 + $0x48] sm:$0xff]
    %v25 = vld [vmem:[%s0 + $0x50] sm:$0xff]
    %v26 = vld [vmem:[%s0 + $0x58] sm:$0xff]
    %v27 = vld [vmem:[%s0 + $0x60] sm:$0xff]
    %v28 = vld [vmem:[%s0 + $0x68] sm:$0xff]
    %v29 = vld [vmem:[%s0 + $0x70] sm:$0xff]
    %v30 = vld [vmem:[%s0 + $0x78] sm:$0xff]
    %v31 = vunpack.c.l.bf16 %v15
    %v32 = vunpack.c.h.bf16 %v15
    %v33 = vunpack.c.l.bf16 %v16
    %v34 = vunpack.c.h.bf16 %v16
    %v35 = vunpack.c.l.bf16 %v17
    %v36 = vunpack.c.h.bf16 %v17
    %v37 = vunpack.c.l.bf16 %v18
    %v38 = vunpack.c.h.bf16 %v18
    %v39 = vunpack.c.l.bf16 %v19
    %v40 = vunpack.c.h.bf16 %v19
    %v41 = vunpack.c.l.bf16 %v20
    %v42 = vunpack.c.h.bf16 %v20
    %v43 = vunpack.c.l.bf16 %v21
    %v44 = vunpack.c.h.bf16 %v21
    %v45 = vunpack.c.l.bf16 %v22
    %v46 = vunpack.c.h.bf16 %v22
    %v47 = vunpack.c.l.bf16 %v23
    %v48 = vunpack.c.h.bf16 %v23
    %v49 = vunpack.c.l.bf16 %v24
    %v50 = vunpack.c.h.bf16 %v24
    %v51 = vunpack.c.l.bf16 %v25
    %v52 = vunpack.c.h.bf16 %v25
    %v53 = vunpack.c.l.bf16 %v26
    %v54 = vunpack.c.h.bf16 %v26
    %v55 = vunpack.c.l.bf16 %v27
    %v56 = vunpack.c.h.bf16 %v27
    %v57 = vunpack.c.l.bf16 %v28
    %v58 = vunpack.c.h.bf16 %v28
    %v59 = vunpack.c.l.bf16 %v29
    %v60 = vunpack.c.h.bf16 %v29
    %v61 = vunpack.c.l.bf16 %v30
    %v62 = vunpack.c.h.bf16 %v30
    %v63 = vadd.f32 %v31, %v33
    %v64 = vadd.f32 %v63, %v35
    %v65 = vadd.f32 %v64, %v37
    %v66 = vadd.f32 %v65, %v39
    %v67 = vadd.f32 %v66, %v41
    %v68 = vadd.f32 %v67, %v43
    %v69 = vadd.f32 %v68, %v45
    %v70 = vrot.slane %v69, 4
    %v71 = vadd.f32 %v69, %v70
    %v72 = vrot.slane %v71, 2
    %v73 = vadd.f32 %v71, %v72
    %v74 = vrot.slane %v73, 1
    %v75 = vadd.f32 %v73, %v74
    %v76 = vadd.f32 %v32, %v34
    %v77 = vadd.f32 %v76, %v36
    %v78 = vadd.f32 %v77, %v38
    %v79 = vadd.f32 %v78, %v40
    %v80 = vadd.f32 %v79, %v42
    %v81 = vadd.f32 %v80, %v44
    %v82 = vadd.f32 %v81, %v46
    %v83 = vrot.slane %v82, 4
    %v84 = vadd.f32 %v82, %v83
    %v85 = vrot.slane %v84, 2
    %v86 = vadd.f32 %v84, %v85
    %v87 = vrot.slane %v86, 1
    %v88 = vadd.f32 %v86, %v87
    %v89 = vadd.f32 %v47, %v49
    %v90 = vadd.f32 %v89, %v51
    %v91 = vadd.f32 %v90, %v53
    %v92 = vadd.f32 %v91, %v55
    %v93 = vadd.f32 %v92, %v57
    %v94 = vadd.f32 %v93, %v59
    %v95 = vadd.f32 %v94, %v61
    %v96 = vrot.slane %v95, 4
    %v97 = vadd.f32 %v95, %v96
    %v98 = vrot.slane %v97, 2
    %v99 = vadd.f32 %v97, %v98
    %v100 = vrot.slane %v99, 1
    %v101 = vadd.f32 %v99, %v100
    %v102 = vadd.f32 %v48, %v50
    %v103 = vadd.f32 %v102, %v52
    %v104 = vadd.f32 %v103, %v54
    %v105 = vadd.f32 %v104, %v56
    %v106 = vadd.f32 %v105, %v58
    %v107 = vadd.f32 %v106, %v60
    %v108 = vadd.f32 %v107, %v62
    %v109 = vrot.slane %v108, 4
    %v110 = vadd.f32 %v108, %v109
    %v111 = vrot.slane %v110, 2
    %v112 = vadd.f32 %v110, %v111
    %v113 = vrot.slane %v112, 1
    %v114 = vadd.f32 %v112, %v113
    %v115 = vrcp.pop 64.0
    %v116 = vmul.f32 %v75, %v115
    %v117 = vmul.f32 %v88, %v115
    %v118 = vmul.f32 %v101, %v115
    %v119 = vmul.f32 %v114, %v115
    %v120 = vld [vmem:[%s1] sm:$0xff]
    %v121 = vld [vmem:[%s1 + $0x8] sm:$0xff]
    %v122 = vld [vmem:[%s1 + $0x10] sm:$0xff]
    %v123 = vld [vmem:[%s1 + $0x18] sm:$0xff]
    %v124 = vld [vmem:[%s1 + $0x20] sm:$0xff]
    %v125 = vld [vmem:[%s1 + $0x28] sm:$0xff]
    %v126 = vld [vmem:[%s1 + $0x30] sm:$0xff]
    %v127 = vld [vmem:[%s1 + $0x38] sm:$0xff]
    %v128 = vld [vmem:[%s1 + $0x40] sm:$0xff]
    %v129 = vld [vmem:[%s1 + $0x48] sm:$0xff]
    %v130 = vld [vmem:[%s1 + $0x50] sm:$0xff]
    %v131 = vld [vmem:[%s1 + $0x58] sm:$0xff]
    %v132 = vld [vmem:[%s1 + $0x60] sm:$0xff]
    %v133 = vld [vmem:[%s1 + $0x68] sm:$0xff]
    %v134 = vld [vmem:[%s1 + $0x70] sm:$0xff]
    %v135 = vld [vmem:[%s1 + $0x78] sm:$0xff]
    %v136 = vld [vmem:[%s1 + $0x80] sm:$0xff]
    %v137 = vld [vmem:[%s1 + $0x88] sm:$0xff]
    %v138 = vld [vmem:[%s1 + $0x90] sm:$0xff]
    %v139 = vld [vmem:[%s1 + $0x98] sm:$0xff]
    %v140 = vld [vmem:[%s1 + $0xa0] sm:$0xff]
    %v141 = vld [vmem:[%s1 + $0xa8] sm:$0xff]
    %v142 = vld [vmem:[%s1 + $0xb0] sm:$0xff]
    %v143 = vld [vmem:[%s1 + $0xb8] sm:$0xff]
    %v144 = vld [vmem:[%s1 + $0xc0] sm:$0xff]
    %v145 = vld [vmem:[%s1 + $0xc8] sm:$0xff]
    %v146 = vld [vmem:[%s1 + $0xd0] sm:$0xff]
    %v147 = vld [vmem:[%s1 + $0xd8] sm:$0xff]
    %v148 = vld [vmem:[%s1 + $0xe0] sm:$0xff]
    %v149 = vld [vmem:[%s1 + $0xe8] sm:$0xff]
    %v150 = vld [vmem:[%s1 + $0xf0] sm:$0xff]
    %v151 = vld [vmem:[%s1 + $0xf8] sm:$0xff]
    %v152 = vld [vmem:[%s1 + $0x100] sm:$0xff]
    %v153 = vld [vmem:[%s1 + $0x108] sm:$0xff]
    %v154 = vld [vmem:[%s1 + $0x110] sm:$0xff]
    %v155 = vld [vmem:[%s1 + $0x118] sm:$0xff]
    %v156 = vld [vmem:[%s1 + $0x120] sm:$0xff]
    %v157 = vld [vmem:[%s1 + $0x128] sm:$0xff]
    %v158 = vld [vmem:[%s1 + $0x130] sm:$0xff]
    %v159 = vld [vmem:[%s1 + $0x138] sm:$0xff]
    %v160 = vld [vmem:[%s1 + $0x140] sm:$0xff]
    %v161 = vld [vmem:[%s1 + $0x148] sm:$0xff]
    %v162 = vld [vmem:[%s1 + $0x150] sm:$0xff]
    %v163 = vld [vmem:[%s1 + $0x158] sm:$0xff]
    %v164 = vld [vmem:[%s1 + $0x160] sm:$0xff]
    %v165 = vld [vmem:[%s1 + $0x168] sm:$0xff]
    %v166 = vld [vmem:[%s1 + $0x170] sm:$0xff]
    %v167 = vld [vmem:[%s1 + $0x178] sm:$0xff]
    %v168 = vld [vmem:[%s1 + $0x180] sm:$0xff]
    %v169 = vld [vmem:[%s1 + $0x188] sm:$0xff]
    %v170 = vld [vmem:[%s1 + $0x190] sm:$0xff]
    %v171 = vld [vmem:[%s1 + $0x198] sm:$0xff]
    %v172 = vld [vmem:[%s1 + $0x1a0] sm:$0xff]
    %v173 = vld [vmem:[%s1 + $0x1a8] sm:$0xff]
    %v174 = vld [vmem:[%s1 + $0x1b0] sm:$0xff]
    %v175 = vld [vmem:[%s1 + $0x1b8] sm:$0xff]
    %v176 = vld [vmem:[%s1 + $0x1c0] sm:$0xff]
    %v177 = vld [vmem:[%s1 + $0x1c8] sm:$0xff]
    %v178 = vld [vmem:[%s1 + $0x1d0] sm:$0xff]
    %v179 = vld [vmem:[%s1 + $0x1d8] sm:$0xff]
    %v180 = vld [vmem:[%s1 + $0x1e0] sm:$0xff]
    %v181 = vld [vmem:[%s1 + $0x1e8] sm:$0xff]
    %v182 = vld [vmem:[%s1 + $0x1f0] sm:$0xff]
    %v183 = vld [vmem:[%s1 + $0x1f8] sm:$0xff]
    %v184 = vld [vmem:[%s2] sm:$0x3]
    %v186 = vlaneseq
    %v187 = vshrl.u32 %v186, 7
    %v188 = vsub.s32 0, %v187
    %v189 = vrot.slane %v184, %v188
    %v190 = vlaneseq
    %v191 = vshrl.u32 %v190, 7
    %v192 = vsub.s32 1, %v191
    %v193 = vrot.slane %v184, %v192
    %vm200 = vcmask 1041409
    %v201 = vsel %vm200, %v118, %v116
    %v202 = vsel %vm200, %v119, %v117
    %205 = vmatprep.subr.mxu0 %v121
    %206 = vmatpush1.msra.mxu0 %v120
    %207 = vmatprep.subr.mxu0 %v123
    %208 = vmatpush1.msra.mxu0 %v122
    %209 = vmatprep.subr.mxu0 %v125
    %210 = vmatpush1.msra.mxu0 %v124
    %211 = vmatprep.subr.mxu0 %v127
    %212 = vmatpush1.msra.mxu0 %v126
    %213 = vmatprep.subr.mxu0 %v129
    %214 = vmatpush1.msra.mxu0 %v128
    %215 = vmatprep.subr.mxu0 %v131
    %216 = vmatpush1.msra.mxu0 %v130
    %217 = vmatprep.subr.mxu0 %v133
    %218 = vmatpush1.msra.mxu0 %v132
    %219 = vmatprep.subr.mxu0 %v135
    %220 = vmatpush1.msra.mxu0 %v134
    %221 = vmatprep.subr.mxu0 %v137
    %222 = vmatpush1.msra.mxu0 %v136
    %223 = vmatprep.subr.mxu0 %v139
    %224 = vmatpush1.msra.mxu0 %v138
    %225 = vmatprep.subr.mxu0 %v141
    %226 = vmatpush1.msra.mxu0 %v140
    %227 = vmatprep.subr.mxu0 %v143
    %228 = vmatpush1.msra.mxu0 %v142
    %229 = vmatprep.subr.mxu0 %v145
    %230 = vmatpush1.msra.mxu0 %v144
    %231 = vmatprep.subr.mxu0 %v147
    %232 = vmatpush1.msra.mxu0 %v146
    %233 = vmatprep.subr.mxu0 %v149
    %234 = vmatpush1.msra.mxu0 %v148
    %235 = vmatprep.subr.mxu0 %v151
    %236 = vmatpush1.msra.mxu0 %v150
    %237 = vmatprep.subr.mxu0 %v153
    %238 = vmatpush1.msra.mxu0 %v152
    %239 = vmatprep.subr.mxu0 %v155
    %240 = vmatpush1.msra.mxu0 %v154
    %241 = vmatprep.subr.mxu0 %v157
    %242 = vmatpush1.msra.mxu0 %v156
    %243 = vmatprep.subr.mxu0 %v159
    %244 = vmatpush1.msra.mxu0 %v158
    %245 = vmatprep.subr.mxu0 %v161
    %246 = vmatpush1.msra.mxu0 %v160
    %247 = vmatprep.subr.mxu0 %v163
    %248 = vmatpush1.msra.mxu0 %v162
    %249 = vmatprep.subr.mxu0 %v165
    %250 = vmatpush1.msra.mxu0 %v164
    %251 = vmatprep.subr.mxu0 %v167
    %252 = vmatpush1.msra.mxu0 %v166
    %253 = vmatprep.subr.mxu0 %v169
    %254 = vmatpush1.msra.mxu0 %v168
    %255 = vmatprep.subr.mxu0 %v171
    %256 = vmatpush1.msra.mxu0 %v170
    %257 = vmatprep.subr.mxu0 %v173
    %258 = vmatpush1.msra.mxu0 %v172
    %259 = vmatprep.subr.mxu0 %v175
    %260 = vmatpush1.msra.mxu0 %v174
    %261 = vmatprep.subr.mxu0 %v177
    %262 = vmatpush1.msra.mxu0 %v176
    %263 = vmatprep.subr.mxu0 %v179
    %264 = vmatpush1.msra.mxu0 %v178
    %265 = vmatprep.subr.mxu0 %v181
    %266 = vmatpush1.msra.mxu0 %v180
    %267 = vmatprep.subr.mxu0 %v183
    %268 = vmatpush1.msra.mxu0 %v182
    %269 = vmatprep.mubr.f32.mxu0 %v202
    %270 = vmatmul.mubr.f32.gmra.mrb[0].mxu0 %v201
    %v271 = vpop.f32.mrb[0].mxu0
    %v272 = vadd.f32 %v189, %v271
    %v273 = vpop.f32.mrb[0].mxu0
    %v274 = vadd.f32 %v193, %v273
    %275 = vdwg.mxu0
    %v278 = vcombine.low %v272, %v274
    %v280 = vunpack.c.l.s4 1983009808
    %v281 = vunpack.c.0.s8 %v280
    %v282 = vlaneseq
    %v283 = vshrl.u32 %v282, 7
    %v284 = vsub.s32 %v281, %v283
    %v285 = vrot.slane %v278, %v284
    %287 = vst [vmem:[#allocation2] sm:$0xf] %v285
    // Predicated region
    $region14: #{encoder_cnn_forward.17} parent=1 // pred_check
      _
    $region15: #{encoder_cnn_forward.17} parent=1 // pred_check_branch
      %289 = sbr.rel (0) target = $region17
    $region16: #{encoder_cnn_forward.17} parent=1 // pred_region
      %s291 = ssub.s32 64, 64
      %292 = vsyncadd [#allocation3], %s291
      %s294 = sshll.u32 [#allocation2], 4
      %s295 = int_to_ptr.vmem [resolvable:$true] %s294
      %297 = dma.vmem_to_hbm [thread:$0]  %s295, 64, %s3, [#allocation3]
    $region17: #{encoder_cnn_forward.17} parent=1 // pred_fallthru
      _
    // Predicated region
    $region18: #{encoder_cnn_forward.17} parent=1 // pred_check
      _
    $region19: #{encoder_cnn_forward.17} parent=1 // pred_check_branch
      %299 = sbr.rel (0) target = $region21
    $region20: #{encoder_cnn_forward.17} parent=1 // pred_region
      %300 = dma.done [#allocation3], 64
    $region21: #{encoder_cnn_forward.17} parent=1 // pred_fallthru
      _
    %301 = vsyncpa [#allocation3], 1

// kernel: encoder_cnn_forward.15
$region0: #{encoder_cnn_forward.15}
  #allocation0 [shape = 'u32[]', space=smem, size = 0x4, offset = 0x4, fixed_abs, tag = 'smem constant byte address 0x4 - core index']
  #allocation1 [shape = 'u32[144,128]{1,0:T(1,128)}', space=vmem, size = 0x12000, scoped, tag = 'internal scratch']
  %s0 = inlined_call_operand.vmem [shape: bf16[2,4,9,9,128], index: 0, kind: input, shape index: {}]
  %s1 = inlined_call_operand.vmem [shape: bf16[9,128,128], index: 1, kind: input, shape index: {}]
  %s2 = inlined_call_operand.vmem [shape: f32[1,128], index: 2, kind: input, shape index: {}]
  %s3 = inlined_call_operand.vmem [shape: bf16[2,8,8,128], index: 3, kind: output, shape index: {}]
  %s4 = sld [smem:[#allocation0]]
  $region45: #{encoder_cnn_forward.15} parent=0
    _
  %s6 = ssub.s32 1, %s4
  %s7 = scalar_select 0, %s6, %s4
  loop: start=0, step=1, limit=18
  $region2: #{encoder_cnn_forward.15} parent=0 // loop_pre_header
    _
  $region3: #{encoder_cnn_forward.15} parent=0 // loop_header
    %s9 = sphi 0, %s13
    %p10 = scmp.ge.s32.totalorder %s9, 18
    %s16 = sphi 0, %s28
    %s17 = sphi 0, %s24
    %s18 = sphi 0, %s16
    %s19 = sphi 0, %s17
    %s20 = sphi 0, %s18
    %s21 = sphi 0, %s19
    %s31 = sphi 0, %s33
    %s34 = sphi 0, %s31
    %s35 = sphi 0, %s34
    %s51 = sphi 0, %s35
    %s55 = sphi 0, %s55
    %s57 = sphi 0, %s55
    %s58 = sphi 0, %s57
    %s72 = sphi 0, %s58
    %s76 = sphi 0, %s76
    %s78 = sphi 0, %s76
    %s79 = sphi 0, %s78
    %s93 = sphi 0, %s79
    %s101 = sphi 0, %s103
    %s104 = sphi 0, %s101
    %s105 = sphi 0, %s104
    %s121 = sphi 0, %s105
  $region4: #{encoder_cnn_forward.15} parent=0 // loop_header_branch
    %12 = sbr.rel (%p10) target = $region8
  $region5: #{encoder_cnn_forward.15} parent=0 // loop_body
    %s14 = ssub.s32 %s9, 1
    %s15 = ssub.s32 %s9, 2
    %s22 = sadd.s32 1, %s17
    %p23 = scmp.ge.s32.totalorder %s22, 8
    %s24 = scalar_select %p23, 0, %s22
    %s25 = sadd.s32 1, %s16
    %s26 = scalar_select %p23, %s25, %s16
    %p27 = scmp.ge.s32.totalorder %s26, 2
    %s28 = scalar_select %p27, 0, %s26
    %s29 = ssub.s32 %s16, %s28
    %p30 = scmp.eq.s32.totalorder %s29, 0
    %s32 = sadd.s32 %s31, 1
    %s33 = scalar_select %p30, %s31, %s32
    %p36 = pneg %p30
    %p37 = scmp.eq.s32.totalorder %s9, 15
    %p38 = por %p36, %p37
    %p39 = scmp.ne.s32.totalorder %s31, %s34
    %p40 = scmp.eq.s32.totalorder %s9, 0
    %p41 = por %p39, %p40
    %p42 = scmp.ne.s32.totalorder %s31, %s34
    %p43 = scmp.eq.s32.totalorder %s14, 15
    %p44 = por %p42, %p43
    %p45 = scmp.ne.s32.totalorder %s34, %s35
    %p46 = scmp.eq.s32.totalorder %s14, 0
    %p47 = por %p45, %p46
    %p48 = scmp.ne.s32.totalorder %s34, %s35
    %p49 = scmp.eq.s32.totalorder %s15, 15
    %p50 = por %p48, %p49
    %p52 = scmp.ne.s32.totalorder %s35, %s51
    %p53 = scmp.eq.s32.totalorder %s15, 0
    %p54 = por %p52, %p53
    %s56 = sadd.s32 %s55, 1
    %p59 = scmp.eq.s32.totalorder %s9, 15
    %p60 = scmp.ne.s32.totalorder %s55, %s57
    %p61 = scmp.eq.s32.totalorder %s9, 0
    %p62 = por %p60, %p61
    %p63 = scmp.ne.s32.totalorder %s55, %s57
    %p64 = scmp.eq.s32.totalorder %s14, 15
    %p65 = por %p63, %p64
    %p66 = scmp.ne.s32.totalorder %s57, %s58
    %p67 = scmp.eq.s32.totalorder %s14, 0
    %p68 = por %p66, %p67
    %p69 = scmp.ne.s32.totalorder %s57, %s58
    %p70 = scmp.eq.s32.totalorder %s15, 15
    %p71 = por %p69, %p70
    %p73 = scmp.ne.s32.totalorder %s58, %s72
    %p74 = scmp.eq.s32.totalorder %s15, 0
    %p75 = por %p73, %p74
    %s77 = sadd.s32 %s76, 1
    %p80 = scmp.eq.s32.totalorder %s9, 15
    %p81 = scmp.ne.s32.totalorder %s76, %s78
    %p82 = scmp.eq.s32.totalorder %s9, 0
    %p83 = por %p81, %p82
    %p84 = scmp.ne.s32.totalorder %s76, %s78
    %p85 = scmp.eq.s32.totalorder %s14, 15
    %p86 = por %p84, %p85
    %p87 = scmp.ne.s32.totalorder %s78, %s79
    %p88 = scmp.eq.s32.totalorder %s14, 0
    %p89 = por %p87, %p88
    %p90 = scmp.ne.s32.totalorder %s78, %s79
    %p91 = scmp.eq.s32.totalorder %s15, 15
    %p92 = por %p90, %p91
    %p94 = scmp.ne.s32.totalorder %s79, %s93
    %p95 = scmp.eq.s32.totalorder %s15, 0
    %p96 = por %p94, %p95
    %s97 = ssub.s32 %s16, %s28
    %s98 = ssub.s32 %s17, %s24
    %s99 = sor.u32 %s97, %s98
    %p100 = scmp.eq.s32.totalorder %s99, 0
    %s102 = sadd.s32 %s101, 1
    %s103 = scalar_select %p100, %s101, %s102
    %p106 = pneg %p100
    %p107 = scmp.eq.s32.totalorder %s9, 15
    %p108 = por %p106, %p107
    %p109 = scmp.ne.s32.totalorder %s101, %s104
    %p110 = scmp.eq.s32.totalorder %s9, 0
    %p111 = por %p109, %p110
    %p112 = scmp.ne.s32.totalorder %s101, %s104
    %p113 = scmp.eq.s32.totalorder %s14, 15
    %p114 = por %p112, %p113
    %p115 = scmp.ne.s32.totalorder %s104, %s105
    %p116 = scmp.eq.s32.totalorder %s14, 0
    %p117 = por %p115, %p116
    %p118 = scmp.ne.s32.totalorder %s104, %s105
    %p119 = scmp.eq.s32.totalorder %s15, 15
    %p120 = por %p118, %p119
    %p122 = scmp.ne.s32.totalorder %s105, %s121
    %p123 = scmp.eq.s32.totalorder %s15, 0
    %p124 = por %p122, %p123
    %p125 = scmp.le.s32.totalorder 1, %s9
    %p126 = scmp.lt.s32.totalorder %s9, 17
    %p127 = pnand %p125, %p126
    %p128 = pneg %p127
    // Predicated region
    $region9: #{encoder_cnn_forward.15} parent=5 // pred_check
      _
    $region10: #{encoder_cnn_forward.15} parent=5 // pred_check_branch
      %130 = sbr.rel (%p127) target = $region12
    $region11: #{encoder_cnn_forward.15} parent=5 // pred_region
      %s131 = ssub.s32 %s9, 1
      // Predicated region
      $region13: #{encoder_cnn_forward.15} parent=11 // pred_check
        %p132 = pneg %p68
      $region14: #{encoder_cnn_forward.15} parent=11 // pred_check_branch
        %134 = sbr.rel (%p132) target = $region16
      $region15: #{encoder_cnn_forward.15} parent=11 // pred_region
        _
      $region16: #{encoder_cnn_forward.15} parent=11 // pred_fallthru
        _
      // Predicated region
      $region17: #{encoder_cnn_forward.15} parent=11 // pred_check
        %p135 = pneg %p89
      $region18: #{encoder_cnn_forward.15} parent=11 // pred_check_branch
        %137 = sbr.rel (%p135) target = $region20
      $region19: #{encoder_cnn_forward.15} parent=11 // pred_region
        _
      $region20: #{encoder_cnn_forward.15} parent=11 // pred_fallthru
        _
    $region12: #{encoder_cnn_forward.15} parent=5 // pred_fallthru
      _
    %p138 = scmp.lt.s32.totalorder %s9, 16
    // Predicated region
    $region21: #{encoder_cnn_forward.15} parent=5 // pred_check
      %p139 = pneg %p138
    $region22: #{encoder_cnn_forward.15} parent=5 // pred_check_branch
      %141 = sbr.rel (%p139) target = $region24
    $region23: #{encoder_cnn_forward.15} parent=5 // pred_region
      // Predicated region
      $region25: #{encoder_cnn_forward.15} parent=23 // pred_check
        %p142 = pneg %p41
      $region26: #{encoder_cnn_forward.15} parent=23 // pred_check_branch
        %144 = sbr.rel (%p142) target = $region28
      $region27: #{encoder_cnn_forward.15} parent=23 // pred_region
        %p145 = scmp.lt.s32.totalorder %s16, 1
        %s146 = scalar_select %p145, %s16, 1
        %s147 = smul.addr %s146, 72
        %s148 = smul.addr %s147, 4
        %s149 = scalar_lea.vmem %s0, %s148
      $region28: #{encoder_cnn_forward.15} parent=23 // pred_fallthru
        _
    $region24: #{encoder_cnn_forward.15} parent=5 // pred_fallthru
      _
    %p150 = scmp.le.s32.totalorder 1, %s9
    %p151 = scmp.lt.s32.totalorder %s9, 17
    %p152 = pnand %p150, %p151
    %p153 = pneg %p152
    // Predicated region
    $region29: #{encoder_cnn_forward.15} parent=5 // pred_check
      _
    $region30: #{encoder_cnn_forward.15} parent=5 // pred_check_branch
      %155 = sbr.rel (%p152) target = $region32
    $region31: #{encoder_cnn_forward.15} parent=5 // pred_region
      %s156 = ssub.s32 %s9, 1
      %p157 = scmp.lt.s32.totalorder %s18, 1
      %s158 = scalar_select %p157, %s18, 1
      %s159 = smul.addr %s158, 72
      %s160 = smul.addr %s159, 4
      %s161 = scalar_lea.vmem %s0, %s160
      %p162 = pneg %p47
      %p163 = pneg %p44
      %p164 = pneg %p68
      %p165 = pneg %p65
      %p166 = pneg %p89
      %p167 = pneg %p86
      %p168 = pneg %p117
      %p169 = pneg %p114
      %p170 = scmp.lt.s32.totalorder %s18, 1
      %s171 = scalar_select %p170, %s18, 1
      %p172 = scmp.lt.s32.totalorder %s19, 7
      %s173 = scalar_select %p172, %s19, 7
      %s174 = smul.addr %s171, 8
      %s175 = sadd.s32 %s173, %s174
      %s176 = smul.addr %s175, 4
      %s177 = scalar_lea.vmem %s3, %s176
      %p178 = scmp.lt.s32.totalorder %s18, 1
      %s179 = scalar_select %p178, %s18, 1
      %s180 = smul.addr %s179, 72
      %s181 = smul.addr %s180, 4
      %s182 = scalar_lea.vmem %s0, %s181
      %p183 = scmp.lt.s32.totalorder %s18, 1
      %s184 = scalar_select %p183, %s18, 1
      %p185 = scmp.lt.s32.totalorder %s19, 7
      %s186 = scalar_select %p185, %s19, 7
      %s187 = smul.addr %s184, 8
      %s188 = sadd.s32 %s186, %s187
      %s189 = smul.addr %s188, 4
      %s190 = scalar_lea.vmem %s3, %s189
      %s192 = smul.u32 %s19, 2
      %s193 = smul.addr %s192, 4
      %s194 = scalar_lea.vmem %s182, %s193
      %v195 = vld [vmem:[%s194] sm:$0xf]
      %v196 = vld [vmem:[%s1] sm:$0xf]
      %v197 = vld [vmem:[%s1 + $0x4] sm:$0xf]
      %v198 = vld [vmem:[%s1 + $0x8] sm:$0xf]
      %v199 = vld [vmem:[%s1 + $0xc] sm:$0xf]
      %v200 = vld [vmem:[%s1 + $0x10] sm:$0xf]
      %v201 = vld [vmem:[%s1 + $0x14] sm:$0xf]
      %v202 = vld [vmem:[%s1 + $0x18] sm:$0xf]
      %v203 = vld [vmem:[%s1 + $0x1c] sm:$0xf]
      %v204 = vld [vmem:[%s1 + $0x20] sm:$0xf]
      %v205 = vld [vmem:[%s1 + $0x24] sm:$0xf]
      %v206 = vld [vmem:[%s1 + $0x28] sm:$0xf]
      %v207 = vld [vmem:[%s1 + $0x2c] sm:$0xf]
      %v208 = vld [vmem:[%s1 + $0x30] sm:$0xf]
      %v209 = vld [vmem:[%s1 + $0x34] sm:$0xf]
      %v210 = vld [vmem:[%s1 + $0x38] sm:$0xf]
      %v211 = vld [vmem:[%s1 + $0x3c] sm:$0xf]
      %s212 = sadd.s32 %s192, 18
      %s213 = smul.addr %s212, 4
      %s214 = scalar_lea.vmem %s182, %s213
      %v215 = vld [vmem:[%s214] sm:$0xf]
      %s216 = scalar_lea.vmem %s1, 64
      %v217 = vld [vmem:[%s216] sm:$0xf]
      %v218 = vld [vmem:[%s216 + $0x4] sm:$0xf]
      %v219 = vld [vmem:[%s216 + $0x8] sm:$0xf]
      %v220 = vld [vmem:[%s216 + $0xc] sm:$0xf]
      %v221 = vld [vmem:[%s216 + $0x10] sm:$0xf]
      %v222 = vld [vmem:[%s216 + $0x14] sm:$0xf]
      %v223 = vld [vmem:[%s216 + $0x18] sm:$0xf]
      %v224 = vld [vmem:[%s216 + $0x1c] sm:$0xf]
      %v225 = vld [vmem:[%s216 + $0x20] sm:$0xf]
      %v226 = vld [vmem:[%s216 + $0x24] sm:$0xf]
      %v227 = vld [vmem:[%s216 + $0x28] sm:$0xf]
      %v228 = vld [vmem:[%s216 + $0x2c] sm:$0xf]
      %v229 = vld [vmem:[%s216 + $0x30] sm:$0xf]
      %v230 = vld [vmem:[%s216 + $0x34] sm:$0xf]
      %v231 = vld [vmem:[%s216 + $0x38] sm:$0xf]
      %v232 = vld [vmem:[%s216 + $0x3c] sm:$0xf]
      %v249 = vunpack.c.l.b16 %v217
      %v250 = vunpack.c.l.b16 %v218
      %v251 = vunpack.c.l.b16 %v219
      %v252 = vunpack.c.l.b16 %v220
      %v253 = vunpack.c.l.b16 %v221
      %v254 = vunpack.c.l.b16 %v222
      %v255 = vunpack.c.l.b16 %v223
      %v256 = vunpack.c.l.b16 %v224
      %v257 = vunpack.c.l.b16 %v225
      %v258 = vunpack.c.l.b16 %v226
      %v259 = vunpack.c.l.b16 %v227
      %v260 = vunpack.c.l.b16 %v228
      %v261 = vunpack.c.l.b16 %v229
      %v262 = vunpack.c.l.b16 %v230
      %v263 = vunpack.c.l.b16 %v231
      %v264 = vunpack.c.l.b16 %v232
      %v265 = vpack.c.b16 %v250, %v249
      %v266 = vpack.c.b16 %v252, %v251
      %v267 = vpack.c.b16 %v254, %v253
      %v268 = vpack.c.b16 %v256, %v255
      %v269 = vpack.c.b16 %v258, %v257
      %v270 = vpack.c.b16 %v260, %v259
      %v271 = vpack.c.b16 %v262, %v261
      %v272 = vpack.c.b16 %v264, %v263
      %281 = vmatprep.subr.bf16.mxu0 0
      %282 = vmatpush1.bf16.msra.mxu0 %v265
      %283 = vmatprep.subr.bf16.mxu0 0
      %284 = vmatpush1.bf16.msra.mxu0 %v266
      %285 = vmatprep.subr.bf16.mxu0 0
      %286 = vmatpush1.bf16.msra.mxu0 %v267
      %287 = vmatprep.subr.bf16.mxu0 0
      %288 = vmatpush1.bf16.msra.mxu0 %v268
      %289 = vmatprep.subr.bf16.mxu0 0
      %290 = vmatpush1.bf16.msra.mxu0 %v269
      %291 = vmatprep.subr.bf16.mxu0 0
      %292 = vmatpush1.bf16.msra.mxu0 %v270
      %293 = vmatprep.subr.bf16.mxu0 0
      %294 = vmatpush1.bf16.msra.mxu0 %v271
      %295 = vmatprep.subr.bf16.mxu0 0
      %296 = vmatpush1.bf16.msra.mxu0 %v272
      %297 = vmatprep.subr.bf16.mxu0 0
      %298 = vmatpush1.bf16.msra.mxu0 0
      %299 = vmatprep.subr.bf16.mxu0 0
      %300 = vmatpush1.bf16.msra.mxu0 0
      %301 = vmatprep.subr.bf16.mxu0 0
      %302 = vmatpush1.bf16.msra.mxu0 0
      %303 = vmatprep.subr.bf16.mxu0 0
      %304 = vmatpush1.bf16.msra.mxu0 0
      %305 = vmatprep.subr.bf16.mxu0 0
      %306 = vmatpush1.bf16.msra.mxu0 0
      %307 = vmatprep.subr.bf16.mxu0 0
      %308 = vmatpush1.bf16.msra.mxu0 0
      %309 = vmatprep.subr.bf16.mxu0 0
      %310 = vmatpush1.bf16.msra.mxu0 0
      %311 = vmatprep.subr.bf16.mxu0 0
      %312 = vmatpush1.bf16.msra.mxu0 0
      %313 = vmatprep.mubr.bf16.mxu0 0
      %314 = vmatmul.mubr.bf16.gmra.mrb[0].mxu0 %v215
      %v315 = vpop.f32.mrb[0].mxu0
      %v316 = vadd.f32 0.0, %v315
      %v317 = vpop.f32.mrb[0].mxu0
      %v318 = vpop.f32.mrb[0].mxu0
      %v319 = vpop.f32.mrb[0].mxu0
      %320 = vdwg.mxu0
      %v337 = vunpack.c.l.b16 %v196
      %v338 = vunpack.c.l.b16 %v197
      %v339 = vunpack.c.l.b16 %v198
      %v340 = vunpack.c.l.b16 %v199
      %v341 = vunpack.c.l.b16 %v200
      %v342 = vunpack.c.l.b16 %v201
      %v343 = vunpack.c.l.b16 %v202
      %v344 = vunpack.c.l.b16 %v203
      %v345 = vunpack.c.l.b16 %v204
      %v346 = vunpack.c.l.b16 %v205
      %v347 = vunpack.c.l.b16 %v206
      %v348 = vunpack.c.l.b16 %v207
      %v349 = vunpack.c.l.b16 %v208
      %v350 = vunpack.c.l.b16 %v209
      %v351 = vunpack.c.l.b16 %v210
      %v352 = vunpack.c.l.b16 %v211
      %v353 = vpack.c.b16 %v338, %v337
      %v354 = vpack.c.b16 %v340, %v339
      %v355 = vpack.c.b16 %v342, %v341
      %v356 = vpack.c.b16 %v344, %v343
      %v357 = vpack.c.b16 %v346, %v345
      %v358 = vpack.c.b16 %v348, %v347
      %v359 = vpack.c.b16 %v350, %v349
      %v360 = vpack.c.b16 %v352, %v351
      %369 = vmatprep.subr.bf16.mxu0 0
      %370 = vmatpush1.bf16.msra.mxu0 %v353
      %371 = vmatprep.subr.bf16.mxu0 0
      %372 = vmatpush1.bf16.msra.mxu0 %v354
      %373 = vmatprep.subr.bf16.mxu0 0
      %374 = vmatpush1.bf16.msra.mxu0 %v355
      %375 = vmatprep.subr.bf16.mxu0 0
      %376 = vmatpush1.bf16.msra.mxu0 %v356
      %377 = vmatprep.subr.bf16.mxu0 0
      %378 = vmatpush1.bf16.msra.mxu0 %v357
      %379 = vmatprep.subr.bf16.mxu0 0
      %380 = vmatpush1.bf16.msra.mxu0 %v358
      %381 = vmatprep.subr.bf16.mxu0 0
      %382 = vmatpush1.bf16.msra.mxu0 %v359
      %383 = vmatprep.subr.bf16.mxu0 0
      %384 = vmatpush1.bf16.msra.mxu0 %v360
      %385 = vmatprep.subr.bf16.mxu0 0
      %386 = vmatpush1.bf16.msra.mxu0 0
      %387 = vmatprep.subr.bf16.mxu0 0
      %388 = vmatpush1.bf16.msra.mxu0 0
      %389 = vmatprep.subr.bf16.mxu0 0
      %390 = vmatpush1.bf16.msra.mxu0 0
      %391 = vmatprep.subr.bf16.mxu0 0
      %392 = vmatpush1.bf16.msra.mxu0 0
      %393 = vmatprep.subr.bf16.mxu0 0
      %394 = vmatpush1.bf16.msra.mxu0 0
      %395 = vmatprep.subr.bf16.mxu0 0
      %396 = vmatpush1.bf16.msra.mxu0 0
      %397 = vmatprep.subr.bf16.mxu0 0
      %398 = vmatpush1.bf16.msra.mxu0 0
      %399 = vmatprep.subr.bf16.mxu0 0
      %400 = vmatpush1.bf16.msra.mxu0 0
      %401 = vmatprep.mubr.bf16.mxu0 0
      %402 = vmatmul.mubr.bf16.gmra.mrb[0].mxu0 %v195
      %v403 = vpop.f32.mrb[0].mxu0
      %v404 = vadd.f32 %v316, %v403
      %v405 = vpop.f32.mrb[0].mxu0
      %v406 = vpop.f32.mrb[0].mxu0
      %v407 = vpop.f32.mrb[0].mxu0
      %408 = vdwg.mxu0
      %v409 = vld [vmem:[%s194] sm:$0xf]
      %v410 = vld [vmem:[%s194 + $0x4] sm:$0x1]
      %s411 = scalar_lea.vmem %s1, 128
      %v412 = vld [vmem:[%s411] sm:$0xf]
      %v413 = vld [vmem:[%s411 + $0x4] sm:$0xf]
      %v414 = vld [vmem:[%s411 + $0x8] sm:$0xf]
      %v415 = vld [vmem:[%s411 + $0xc] sm:$0xf]
      %v416 = vld [vmem:[%s411 + $0x10] sm:$0xf]
      %v417 = vld [vmem:[%s411 + $0x14] sm:$0xf]
      %v418 = vld [vmem:[%s411 + $0x18] sm:$0xf]
      %v419 = vld [vmem:[%s411 + $0x1c] sm:$0xf]
      %v420 = vld [vmem:[%s411 + $0x20] sm:$0xf]
      %v421 = vld [vmem:[%s411 + $0x24] sm:$0xf]
      %v422 = vld [vmem:[%s411 + $0x28] sm:$0xf]
      %v423 = vld [vmem:[%s411 + $0x2c] sm:$0xf]
      %v424 = vld [vmem:[%s411 + $0x30] sm:$0xf]
      %v425 = vld [vmem:[%s411 + $0x34] sm:$0xf]
      %v426 = vld [vmem:[%s411 + $0x38] sm:$0xf]
      %v427 = vld [vmem:[%s411 + $0x3c] sm:$0xf]
      %v430 = vunpack.c.l.b16 %v409
      %v431 = vunpack.c.l.b16 %v410
      %v432 = vpack.c.b16 %v431, %v430
      %v434 = vshrl.u32 %v432, 16
      %v436 = vshll.u32 %v432, 16
      %v438 = vrot.slane %v436, 1
      %v439 = vor.u32 %v434, %v438
      %v457 = vunpack.c.l.b16 %v412
      %v458 = vunpack.c.l.b16 %v413
      %v459 = vunpack.c.l.b16 %v414
      %v460 = vunpack.c.l.b16 %v415
      %v461 = vunpack.c.l.b16 %v416
      %v462 = vunpack.c.l.b16 %v417
      %v463 = vunpack.c.l.b16 %v418
      %v464 = vunpack.c.l.b16 %v419
      %v465 = vunpack.c.l.b16 %v420
      %v466 = vunpack.c.l.b16 %v421
      %v467 = vunpack.c.l.b16 %v422
      %v468 = vunpack.c.l.b16 %v423
      %v469 = vunpack.c.l.b16 %v424
      %v470 = vunpack.c.l.b16 %v425
      %v471 = vunpack.c.l.b16 %v426
      %v472 = vunpack.c.l.b16 %v427
      %v473 = vpack.c.b16 %v458, %v457
      %v474 = vpack.c.b16 %v460, %v459
      %v475 = vpack.c.b16 %v462, %v461
      %v476 = vpack.c.b16 %v464, %v463
      %v477 = vpack.c.b16 %v466, %v465
      %v478 = vpack.c.b16 %v468, %v467
      %v479 = vpack.c.b16 %v470, %v469
      %v480 = vpack.c.b16 %v472, %v471
      %489 = vmatprep.subr.bf16.mxu0 0
      %490 = vmatpush1.bf16.msra.mxu0 %v473
      %491 = vmatprep.subr.bf16.mxu0 0
      %492 = vmatpush1.bf16.msra.mxu0 %v474
      %493 = vmatprep.subr.bf16.mxu0 0
      %494 = vmatpush1.bf16.msra.mxu0 %v475
      %495 = vmatprep.subr.bf16.mxu0 0
      %496 = vmatpush1.bf16.msra.mxu0 %v476
      %497 = vmatprep.subr.bf16.mxu0 0
      %498 = vmatpush1.bf16.msra.mxu0 %v477
      %499 = vmatprep.subr.bf16.mxu0 0
      %500 = vmatpush1.bf16.msra.mxu0 %v478
      %501 = vmatprep.subr.bf16.mxu0 0
      %502 = vmatpush1.bf16.msra.mxu0 %v479
      %503 = vmatprep.subr.bf16.mxu0 0
      %504 = vmatpush1.bf16.msra.mxu0 %v480
      %505 = vmatprep.subr.bf16.mxu0 0
      %506 = vmatpush1.bf16.msra.mxu0 0
      %507 = vmatprep.subr.bf16.mxu0 0
      %508 = vmatpush1.bf16.msra.mxu0 0
      %509 = vmatprep.subr.bf16.mxu0 0
      %510 = vmatpush1.bf16.msra.mxu0 0
      %511 = vmatprep.subr.bf16.mxu0 0
      %512 = vmatpush1.bf16.msra.mxu0 0
      %513 = vmatprep.subr.bf16.mxu0 0
      %514 = vmatpush1.bf16.msra.mxu0 0
      %515 = vmatprep.subr.bf16.mxu0 0
      %516 = vmatpush1.bf16.msra.mxu0 0
      %517 = vmatprep.subr.bf16.mxu0 0
      %518 = vmatpush1.bf16.msra.mxu0 0
      %519 = vmatprep.subr.bf16.mxu0 0
      %520 = vmatpush1.bf16.msra.mxu0 0
      %521 = vmatprep.mubr.bf16.mxu0 0
      %522 = vmatmul.mubr.bf16.gmra.mrb[0].mxu0 %v439
      %v523 = vpop.f32.mrb[0].mxu0
      %v524 = vadd.f32 0.0, %v523
      %v525 = vpop.f32.mrb[0].mxu0
      %v526 = vpop.f32.mrb[0].mxu0
      %v527 = vpop.f32.mrb[0].mxu0
      %528 = vdwg.mxu0
      %v529 = vadd.f32 %v404, %v524
      %s530 = sadd.s32 %s192, 36
      %s531 = smul.addr %s530, 4
      %s532 = scalar_lea.vmem %s182, %s531
      %v533 = vld [vmem:[%s532] sm:$0xf]
      %s534 = scalar_lea.vmem %s1, 192
      %v535 = vld [vmem:[%s534] sm:$0xf]
      %v536 = vld [vmem:[%s534 + $0x4] sm:$0xf]
      %v537 = vld [vmem:[%s534 + $0x8] sm:$0xf]
      %v538 = vld [vmem:[%s534 + $0xc] sm:$0xf]
      %v539 = vld [vmem:[%s534 + $0x10] sm:$0xf]
      %v540 = vld [vmem:[%s534 + $0x14] sm:$0xf]
      %v541 = vld [vmem:[%s534 + $0x18] sm:$0xf]
      %v542 = vld [vmem:[%s534 + $0x1c] sm:$0xf]
      %v543 = vld [vmem:[%s534 + $0x20] sm:$0xf]
      %v544 = vld [vmem:[%s534 + $0x24] sm:$0xf]
      %v545 = vld [vmem:[%s534 + $0x28] sm:$0xf]
      %v546 = vld [vmem:[%s534 + $0x2c] sm:$0xf]
      %v547 = vld [vmem:[%s534 + $0x30] sm:$0xf]
      %v548 = vld [vmem:[%s534 + $0x34] sm:$0xf]
      %v549 = vld [vmem:[%s534 + $0x38] sm:$0xf]
      %v550 = vld [vmem:[%s534 + $0x3c] sm:$0xf]
      %v567 = vunpack.c.l.b16 %v535
      %v568 = vunpack.c.l.b16 %v536
      %v569 = vunpack.c.l.b16 %v537
      %v570 = vunpack.c.l.b16 %v538
      %v571 = vunpack.c.l.b16 %v539
      %v572 = vunpack.c.l.b16 %v540
      %v573 = vunpack.c.l.b16 %v541
      %v574 = vunpack.c.l.b16 %v542
      %v575 = vunpack.c.l.b16 %v543
      %v576 = vunpack.c.l.b16 %v544
      %v577 = vunpack.c.l.b16 %v545
      %v578 = vunpack.c.l.b16 %v546
      %v579 = vunpack.c.l.b16 %v547
      %v580 = vunpack.c.l.b16 %v548
      %v581 = vunpack.c.l.b16 %v549
      %v582 = vunpack.c.l.b16 %v550
      %v583 = vpack.c.b16 %v568, %v567
      %v584 = vpack.c.b16 %v570, %v569
      %v585 = vpack.c.b16 %v572, %v571
      %v586 = vpack.c.b16 %v574, %v573
      %v587 = vpack.c.b16 %v576, %v575
      %v588 = vpack.c.b16 %v578, %v577
      %v589 = vpack.c.b16 %v580, %v579
      %v590 = vpack.c.b16 %v582, %v581
      %599 = vmatprep.subr.bf16.mxu0 0
      %600 = vmatpush1.bf16.msra.mxu0 %v583
      %601 = vmatprep.subr.bf16.mxu0 0
      %602 = vmatpush1.bf16.msra.mxu0 %v584
      %603 = vmatprep.subr.bf16.mxu0 0
      %604 = vmatpush1.bf16.msra.mxu0 %v585
      %605 = vmatprep.subr.bf16.mxu0 0
      %606 = vmatpush1.bf16.msra.mxu0 %v586
      %607 = vmatprep.subr.bf16.mxu0 0
      %608 = vmatpush1.bf16.msra.mxu0 %v587
      %609 = vmatprep.subr.bf16.mxu0 0
      %610 = vmatpush1.bf16.msra.mxu0 %v588
      %611 = vmatprep.subr.bf16.mxu0 0
      %612 = vmatpush1.bf16.msra.mxu0 %v589
      %613 = vmatprep.subr.bf16.mxu0 0
      %614 = vmatpush1.bf16.msra.mxu0 %v590
      %615 = vmatprep.subr.bf16.mxu0 0
      %616 = vmatpush1.bf16.msra.mxu0 0
      %617 = vmatprep.subr.bf16.mxu0 0
      %618 = vmatpush1.bf16.msra.mxu0 0
      %619 = vmatprep.subr.bf16.mxu0 0
      %620 = vmatpush1.bf16.msra.mxu0 0
      %621 = vmatprep.subr.bf16.mxu0 0
      %622 = vmatpush1.bf16.msra.mxu0 0
      %623 = vmatprep.subr.bf16.mxu0 0
      %624 = vmatpush1.bf16.msra.mxu0 0
      %625 = vmatprep.subr.bf16.mxu0 0
      %626 = vmatpush1.bf16.msra.mxu0 0
      %627 = vmatprep.subr.bf16.mxu0 0
      %628 = vmatpush1.bf16.msra.mxu0 0
      %629 = vmatprep.subr.bf16.mxu0 0
      %630 = vmatpush1.bf16.msra.mxu0 0
      %631 = vmatprep.mubr.bf16.mxu0 0
      %632 = vmatmul.mubr.bf16.gmra.mrb[0].mxu0 %v533
      %v633 = vpop.f32.mrb[0].mxu0
      %v634 = vadd.f32 0.0, %v633
      %v635 = vpop.f32.mrb[0].mxu0
      %v636 = vpop.f32.mrb[0].mxu0
      %v637 = vpop.f32.mrb[0].mxu0
      %638 = vdwg.mxu0
      %v639 = vadd.f32 %v529, %v634
      %s640 = sadd.s32 %s192, 54
      %s641 = smul.addr %s640, 4
      %s642 = scalar_lea.vmem %s182, %s641
      %v643 = vld [vmem:[%s642] sm:$0xf]
      %s644 = scalar_lea.vmem %s1, 256
      %v645 = vld [vmem:[%s644] sm:$0xf]
      %v646 = vld [vmem:[%s644 + $0x4] sm:$0xf]
      %v647 = vld [vmem:[%s644 + $0x8] sm:$0xf]
      %v648 = vld [vmem:[%s644 + $0xc] sm:$0xf]
      %v649 = vld [vmem:[%s644 + $0x10] sm:$0xf]
      %v650 = vld [vmem:[%s644 + $0x14] sm:$0xf]
      %v651 = vld [vmem:[%s644 + $0x18] sm:$0xf]
      %v652 = vld [vmem:[%s644 + $0x1c] sm:$0xf]
      %v653 = vld [vmem:[%s644 + $0x20] sm:$0xf]
      %v654 = vld [vmem:[%s644 + $0x24] sm:$0xf]
      %v655 = vld [vmem:[%s644 + $0x28] sm:$0xf]
      %v656 = vld [vmem:[%s644 + $0x2c] sm:$0xf]
      %v657 = vld [vmem:[%s644 + $0x30] sm:$0xf]
      %v658 = vld [vmem:[%s644 + $0x34] sm:$0xf]
      %v659 = vld [vmem:[%s644 + $0x38] sm:$0xf]
      %v660 = vld [vmem:[%s644 + $0x3c] sm:$0xf]
      %v677 = vunpack.c.l.b16 %v645
      %v678 = vunpack.c.l.b16 %v646
      %v679 = vunpack.c.l.b16 %v647
      %v680 = vunpack.c.l.b16 %v648
      %v681 = vunpack.c.l.b16 %v649
      %v682 = vunpack.c.l.b16 %v650
      %v683 = vunpack.c.l.b16 %v651
      %v684 = vunpack.c.l.b16 %v652
      %v685 = vunpack.c.l.b16 %v653
      %v686 = vunpack.c.l.b16 %v654
      %v687 = vunpack.c.l.b16 %v655
      %v688 = vunpack.c.l.b16 %v656
      %v689 = vunpack.c.l.b16 %v657
      %v690 = vunpack.c.l.b16 %v658
      %v691 = vunpack.c.l.b16 %v659
      %v692 = vunpack.c.l.b16 %v660
      %v693 = vpack.c.b16 %v678, %v677
      %v694 = vpack.c.b16 %v680, %v679
      %v695 = vpack.c.b16 %v682, %v681
      %v696 = vpack.c.b16 %v684, %v683
      %v697 = vpack.c.b16 %v686, %v685
      %v698 = vpack.c.b16 %v688, %v687
      %v699 = vpack.c.b16 %v690, %v689
      %v700 = vpack.c.b16 %v692, %v691
      %709 = vmatprep.subr.bf16.mxu0 0
      %710 = vmatpush1.bf16.msra.mxu0 %v693
      %711 = vmatprep.subr.bf16.mxu0 0
      %712 = vmatpush1.bf16.msra.mxu0 %v694
      %713 = vmatprep.subr.bf16.mxu0 0
      %714 = vmatpush1.bf16.msra.mxu0 %v695
      %715 = vmatprep.subr.bf16.mxu0 0
      %716 = vmatpush1.bf16.msra.mxu0 %v696
      %717 = vmatprep.subr.bf16.mxu0 0
      %718 = vmatpush1.bf16.msra.mxu0 %v697
      %719 = vmatprep.subr.bf16.mxu0 0
      %720 = vmatpush1.bf16.msra.mxu0 %v698
      %721 = vmatprep.subr.bf16.mxu0 0
      %722 = vmatpush1.bf16.msra.mxu0 %v699
      %723 = vmatprep.subr.bf16.mxu0 0
      %724 = vmatpush1.bf16.msra.mxu0 %v700
      %725 = vmatprep.subr.bf16.mxu0 0
      %726 = vmatpush1.bf16.msra.mxu0 0
      %727 = vmatprep.subr.bf16.mxu0 0
      %728 = vmatpush1.bf16.msra.mxu0 0
      %729 = vmatprep.subr.bf16.mxu0 0
      %730 = vmatpush1.bf16.msra.mxu0 0
      %731 = vmatprep.subr.bf16.mxu0 0
      %732 = vmatpush1.bf16.msra.mxu0 0
      %733 = vmatprep.subr.bf16.mxu0 0
      %734 = vmatpush1.bf16.msra.mxu0 0
      %735 = vmatprep.subr.bf16.mxu0 0
      %736 = vmatpush1.bf16.msra.mxu0 0
      %737 = vmatprep.subr.bf16.mxu0 0
      %738 = vmatpush1.bf16.msra.mxu0 0
      %739 = vmatprep.subr.bf16.mxu0 0
      %740 = vmatpush1.bf16.msra.mxu0 0
      %741 = vmatprep.mubr.bf16.mxu0 0
      %742 = vmatmul.mubr.bf16.gmra.mrb[0].mxu0 %v643
      %v743 = vpop.f32.mrb[0].mxu0
      %v744 = vadd.f32 0.0, %v743
      %v745 = vpop.f32.mrb[0].mxu0
      %v746 = vpop.f32.mrb[0].mxu0
      %v747 = vpop.f32.mrb[0].mxu0
      %748 = vdwg.mxu0
      %v749 = vadd.f32 %v639, %v744
      %v750 = vld [vmem:[%s532] sm:$0xf]
      %v751 = vld [vmem:[%s532 + $0x4] sm:$0x1]
      %s752 = scalar_lea.vmem %s1, 320
      %v753 = vld [vmem:[%s752] sm:$0xf]
      %v754 = vld [vmem:[%s752 + $0x4] sm:$0xf]
      %v755 = vld [vmem:[%s752 + $0x8] sm:$0xf]
      %v756 = vld [vmem:[%s752 + $0xc] sm:$0xf]
      %v757 = vld [vmem:[%s752 + $0x10] sm:$0xf]
      %v758 = vld [vmem:[%s752 + $0x14] sm:$0xf]
      %v759 = vld [vmem:[%s752 + $0x18] sm:$0xf]
      %v760 = vld [vmem:[%s752 + $0x1c] sm:$0xf]
      %v761 = vld [vmem:[%s752 + $0x20] sm:$0xf]
      %v762 = vld [vmem:[%s752 + $0x24] sm:$0xf]
      %v763 = vld [vmem:[%s752 + $0x28] sm:$0xf]
      %v764 = vld [vmem:[%s752 + $0x2c] sm:$0xf]
      %v765 = vld [vmem:[%s752 + $0x30] sm:$0xf]
      %v766 = vld [vmem:[%s752 + $0x34] sm:$0xf]
      %v767 = vld [vmem:[%s752 + $0x38] sm:$0xf]
      %v768 = vld [vmem:[%s752 + $0x3c] sm:$0xf]
      %v771 = vunpack.c.l.b16 %v750
      %v772 = vunpack.c.l.b16 %v751
      %v773 = vpack.c.b16 %v772, %v771
      %v775 = vshrl.u32 %v773, 16
      %v777 = vshll.u32 %v773, 16
      %v779 = vrot.slane %v777, 1
      %v780 = vor.u32 %v775, %v779
      %v798 = vunpack.c.l.b16 %v753
      %v799 = vunpack.c.l.b16 %v754
      %v800 = vunpack.c.l.b16 %v755
      %v801 = vunpack.c.l.b16 %v756
      %v802 = vunpack.c.l.b16 %v757
      %v803 = vunpack.c.l.b16 %v758
      %v804 = vunpack.c.l.b16 %v759
      %v805 = vunpack.c.l.b16 %v760
      %v806 = vunpack.c.l.b16 %v761
      %v807 = vunpack.c.l.b16 %v762
      %v808 = vunpack.c.l.b16 %v763
      %v809 = vunpack.c.l.b16 %v764
      %v810 = vunpack.c.l.b16 %v765
      %v811 = vunpack.c.l.b16 %v766
      %v812 = vunpack.c.l.b16 %v767
      %v813 = vunpack.c.l.b16 %v768
      %v814 = vpack.c.b16 %v799, %v798
      %v815 = vpack.c.b16 %v801, %v800
      %v816 = vpack.c.b16 %v803, %v802
      %v817 = vpack.c.b16 %v805, %v804
      %v818 = vpack.c.b16 %v807, %v806
      %v819 = vpack.c.b16 %v809, %v808
      %v820 = vpack.c.b16 %v811, %v810
      %v821 = vpack.c.b16 %v813, %v812
      %830 = vmatprep.subr.bf16.mxu0 0
      %831 = vmatpush1.bf16.msra.mxu0 %v814
      %832 = vmatprep.subr.bf16.mxu0 0
      %833 = vmatpush1.bf16.msra.mxu0 %v815
      %834 = vmatprep.subr.bf16.mxu0 0
      %835 = vmatpush1.bf16.msra.mxu0 %v816
      %836 = vmatprep.subr.bf16.mxu0 0
      %837 = vmatpush1.bf16.msra.mxu0 %v817
      %838 = vmatprep.subr.bf16.mxu0 0
      %839 = vmatpush1.bf16.msra.mxu0 %v818
      %840 = vmatprep.subr.bf16.mxu0 0
      %841 = vmatpush1.bf16.msra.mxu0 %v819
      %842 = vmatprep.subr.bf16.mxu0 0
      %843 = vmatpush1.bf16.msra.mxu0 %v820
      %844 = vmatprep.subr.bf16.mxu0 0
      %845 = vmatpush1.bf16.msra.mxu0 %v821
      %846 = vmatprep.subr.bf16.mxu0 0
      %847 = vmatpush1.bf16.msra.mxu0 0
      %848 = vmatprep.subr.bf16.mxu0 0
      %849 = vmatpush1.bf16.msra.mxu0 0
      %850 = vmatprep.subr.bf16.mxu0 0
      %851 = vmatpush1.bf16.msra.mxu0 0
      %852 = vmatprep.subr.bf16.mxu0 0
      %853 = vmatpush1.bf16.msra.mxu0 0
      %854 = vmatprep.subr.bf16.mxu0 0
      %855 = vmatpush1.bf16.msra.mxu0 0
      %856 = vmatprep.subr.bf16.mxu0 0
      %857 = vmatpush1.bf16.msra.mxu0 0
      %858 = vmatprep.subr.bf16.mxu0 0
      %859 = vmatpush1.bf16.msra.mxu0 0
      %860 = vmatprep.subr.bf16.mxu0 0
      %861 = vmatpush1.bf16.msra.mxu0 0
      %862 = vmatprep.mubr.bf16.mxu0 0
      %863 = vmatmul.mubr.bf16.gmra.mrb[0].mxu0 %v780
      %v864 = vpop.f32.mrb[0].mxu0
      %v865 = vadd.f32 0.0, %v864
      %v866 = vpop.f32.mrb[0].mxu0
      %v867 = vpop.f32.mrb[0].mxu0
      %v868 = vpop.f32.mrb[0].mxu0
      %869 = vdwg.mxu0
      %v870 = vadd.f32 %v749, %v865
      %s871 = sadd.s32 %s19, 1
      %s872 = smul.u32 %s871, 2
      %s873 = smul.addr %s872, 4
      %s874 = scalar_lea.vmem %s182, %s873
      %v875 = vld [vmem:[%s874] sm:$0xf]
      %s876 = scalar_lea.vmem %s1, 384
      %v877 = vld [vmem:[%s876] sm:$0xf]
      %v878 = vld [vmem:[%s876 + $0x4] sm:$0xf]
      %v879 = vld [vmem:[%s876 + $0x8] sm:$0xf]
      %v880 = vld [vmem:[%s876 + $0xc] sm:$0xf]
      %v881 = vld [vmem:[%s876 + $0x10] sm:$0xf]
      %v882 = vld [vmem:[%s876 + $0x14] sm:$0xf]
      %v883 = vld [vmem:[%s876 + $0x18] sm:$0xf]
      %v884 = vld [vmem:[%s876 + $0x1c] sm:$0xf]
      %v885 = vld [vmem:[%s876 + $0x20] sm:$0xf]
      %v886 = vld [vmem:[%s876 + $0x24] sm:$0xf]
      %v887 = vld [vmem:[%s876 + $0x28] sm:$0xf]
      %v888 = vld [vmem:[%s876 + $0x2c] sm:$0xf]
      %v889 = vld [vmem:[%s876 + $0x30] sm:$0xf]
      %v890 = vld [vmem:[%s876 + $0x34] sm:$0xf]
      %v891 = vld [vmem:[%s876 + $0x38] sm:$0xf]
      %v892 = vld [vmem:[%s876 + $0x3c] sm:$0xf]
      %v909 = vunpack.c.l.b16 %v877
      %v910 = vunpack.c.l.b16 %v878
      %v911 = vunpack.c.l.b16 %v879
      %v912 = vunpack.c.l.b16 %v880
      %v913 = vunpack.c.l.b16 %v881
      %v914 = vunpack.c.l.b16 %v882
      %v915 = vunpack.c.l.b16 %v883
      %v916 = vunpack.c.l.b16 %v884
      %v917 = vunpack.c.l.b16 %v885
      %v918 = vunpack.c.l.b16 %v886
      %v919 = vunpack.c.l.b16 %v887
      %v920 = vunpack.c.l.b16 %v888
      %v921 = vunpack.c.l.b16 %v889
      %v922 = vunpack.c.l.b16 %v890
      %v923 = vunpack.c.l.b16 %v891
      %v924 = vunpack.c.l.b16 %v892
      %v925 = vpack.c.b16 %v910, %v909
      %v926 = vpack.c.b16 %v912, %v911
      %v927 = vpack.c.b16 %v914, %v913
      %v928 = vpack.c.b16 %v916, %v915
      %v929 = vpack.c.b16 %v918, %v917
      %v930 = vpack.c.b16 %v920, %v919
      %v931 = vpack.c.b16 %v922, %v921
      %v932 = vpack.c.b16 %v924, %v923
      %941 = vmatprep.subr.bf16.mxu0 0
      %942 = vmatpush1.bf16.msra.mxu0 %v925
      %943 = vmatprep.subr.bf16.mxu0 0
      %944 = vmatpush1.bf16.msra.mxu0 %v926
      %945 = vmatprep.subr.bf16.mxu0 0
      %946 = vmatpush1.bf16.msra.mxu0 %v927
      %947 = vmatprep.subr.bf16.mxu0 0
      %948 = vmatpush1.bf16.msra.mxu0 %v928
      %949 = vmatprep.subr.bf16.mxu0 0
      %950 = vmatpush1.bf16.msra.mxu0 %v929
      %951 = vmatprep.subr.bf16.mxu0 0
      %952 = vmatpush1.bf16.msra.mxu0 %v930
      %953 = vmatprep.subr.bf16.mxu0 0
      %954 = vmatpush1.bf16.msra.mxu0 %v931
      %955 = vmatprep.subr.bf16.mxu0 0
      %956 = vmatpush1.bf16.msra.mxu0 %v932
      %957 = vmatprep.subr.bf16.mxu0 0
      %958 = vmatpush1.bf16.msra.mxu0 0
      %959 = vmatprep.subr.bf16.mxu0 0
      %960 = vmatpush1.bf16.msra.mxu0 0
      %961 = vmatprep.subr.bf16.mxu0 0
      %962 = vmatpush1.bf16.msra.mxu0 0
      %963 = vmatprep.subr.bf16.mxu0 0
      %964 = vmatpush1.bf16.msra.mxu0 0
      %965 = vmatprep.subr.bf16.mxu0 0
      %966 = vmatpush1.bf16.msra.mxu0 0
      %967 = vmatprep.subr.bf16.mxu0 0
      %968 = vmatpush1.bf16.msra.mxu0 0
      %969 = vmatprep.subr.bf16.mxu0 0
      %970 = vmatpush1.bf16.msra.mxu0 0
      %971 = vmatprep.subr.bf16.mxu0 0
      %972 = vmatpush1.bf16.msra.mxu0 0
      %973 = vmatprep.mubr.bf16.mxu0 0
      %974 = vmatmul.mubr.bf16.gmra.mrb[0].mxu0 %v875
      %v975 = vpop.f32.mrb[0].mxu0
      %v976 = vadd.f32 0.0, %v975
      %v977 = vpop.f32.mrb[0].mxu0
      %v978 = vpop.f32.mrb[0].mxu0
      %v979 = vpop.f32.mrb[0].mxu0
      %980 = vdwg.mxu0
      %v981 = vadd.f32 %v870, %v976
      %s982 = sadd.s32 %s872, 18
      %s983 = smul.addr %s982, 4
      %s984 = scalar_lea.vmem %s182, %s983
      %v985 = vld [vmem:[%s984] sm:$0xf]
      %s986 = scalar_lea.vmem %s1, 448
      %v987 = vld [vmem:[%s986] sm:$0xf]
      %v988 = vld [vmem:[%s986 + $0x4] sm:$0xf]
      %v989 = vld [vmem:[%s986 + $0x8] sm:$0xf]
      %v990 = vld [vmem:[%s986 + $0xc] sm:$0xf]
      %v991 = vld [vmem:[%s986 + $0x10] sm:$0xf]
      %v992 = vld [vmem:[%s986 + $0x14] sm:$0xf]
      %v993 = vld [vmem:[%s986 + $0x18] sm:$0xf]
      %v994 = vld [vmem:[%s986 + $0x1c] sm:$0xf]
      %v995 = vld [vmem:[%s986 + $0x20] sm:$0xf]
      %v996 = vld [vmem:[%s986 + $0x24] sm:$0xf]
      %v997 = vld [vmem:[%s986 + $0x28] sm:$0xf]
      %v998 = vld [vmem:[%s986 + $0x2c] sm:$0xf]
      %v999 = vld [vmem:[%s986 + $0x30] sm:$0xf]
      %v1000 = vld [vmem:[%s986 + $0x34] sm:$0xf]
      %v1001 = vld [vmem:[%s986 + $0x38] sm:$0xf]
      %v1002 = vld [vmem:[%s986 + $0x3c] sm:$0xf]
      %v1019 = vunpack.c.l.b16 %v987
      %v1020 = vunpack.c.l.b16 %v988
      %v1021 = vunpack.c.l.b16 %v989
      %v1022 = vunpack.c.l.b16 %v990
      %v1023 = vunpack.c.l.b16 %v991
      %v1024 = vunpack.c.l.b16 %v992
      %v1025 = vunpack.c.l.b16 %v993
      %v1026 = vunpack.c.l.b16 %v994
      %v1027 = vunpack.c.l.b16 %v995
      %v1028 = vunpack.c.l.b16 %v996
      %v1029 = vunpack.c.l.b16 %v997
      %v1030 = vunpack.c.l.b16 %v998
      %v1031 = vunpack.c.l.b16 %v999
      %v1032 = vunpack.c.l.b16 %v1000
      %v1033 = vunpack.c.l.b16 %v1001
      %v1034 = vunpack.c.l.b16 %v1002
      %v1035 = vpack.c.b16 %v1020, %v1019
      %v1036 = vpack.c.b16 %v1022, %v1021
      %v1037 = vpack.c.b16 %v1024, %v1023
      %v1038 = vpack.c.b16 %v1026, %v1025
      %v1039 = vpack.c.b16 %v1028, %v1027
      %v1040 = vpack.c.b16 %v1030, %v1029
      %v1041 = vpack.c.b16 %v1032, %v1031
      %v1042 = vpack.c.b16 %v1034, %v1033
      %1051 = vmatprep.subr.bf16.mxu0 0
      %1052 = vmatpush1.bf16.msra.mxu0 %v1035
      %1053 = vmatprep.subr.bf16.mxu0 0
      %1054 = vmatpush1.bf16.msra.mxu0 %v1036
      %1055 = vmatprep.subr.bf16.mxu0 0
      %1056 = vmatpush1.bf16.msra.mxu0 %v1037
      %1057 = vmatprep.subr.bf16.mxu0 0
      %1058 = vmatpush1.bf16.msra.mxu0 %v1038
      %1059 = vmatprep.subr.bf16.mxu0 0
      %1060 = vmatpush1.bf16.msra.mxu0 %v1039
      %1061 = vmatprep.subr.bf16.mxu0 0
      %1062 = vmatpush1.bf16.msra.mxu0 %v1040
      %1063 = vmatprep.subr.bf16.mxu0 0
      %1064 = vmatpush1.bf16.msra.mxu0 %v1041
      %1065 = vmatprep.subr.bf16.mxu0 0
      %1066 = vmatpush1.bf16.msra.mxu0 %v1042
      %1067 = vmatprep.subr.bf16.mxu0 0
      %1068 = vmatpush1.bf16.msra.mxu0 0
      %1069 = vmatprep.subr.bf16.mxu0 0
      %1070 = vmatpush1.bf16.msra.mxu0 0
      %1071 = vmatprep.subr.bf16.mxu0 0
      %1072 = vmatpush1.bf16.msra.mxu0 0
      %1073 = vmatprep.subr.bf16.mxu0 0
      %1074 = vmatpush1.bf16.msra.mxu0 0
      %1075 = vmatprep.subr.bf16.mxu0 0
      %1076 = vmatpush1.bf16.msra.mxu0 0
      %1077 = vmatprep.subr.bf16.mxu0 0
      %1078 = vmatpush1.bf16.msra.mxu0 0
      %1079 = vmatprep.subr.bf16.mxu0 0
      %1080 = vmatpush1.bf16.msra.mxu0 0
      %1081 = vmatprep.subr.bf16.mxu0 0
      %1082 = vmatpush1.bf16.msra.mxu0 0
      %1083 = vmatprep.mubr.bf16.mxu0 0
      %1084 = vmatmul.mubr.bf16.gmra.mrb[0].mxu0 %v985
      %v1085 = vpop.f32.mrb[0].mxu0
      %v1086 = vadd.f32 0.0, %v1085
      %v1087 = vpop.f32.mrb[0].mxu0
      %v1088 = vpop.f32.mrb[0].mxu0
      %v1089 = vpop.f32.mrb[0].mxu0
      %1090 = vdwg.mxu0
      %v1091 = vadd.f32 %v981, %v1086
      %v1092 = vld [vmem:[%s874] sm:$0xf]
      %v1093 = vld [vmem:[%s874 + $0x4] sm:$0x1]
      %s1094 = scalar_lea.vmem %s1, 512
      %v1095 = vld [vmem:[%s1094] sm:$0xf]
      %v1096 = vld [vmem:[%s1094 + $0x4] sm:$0xf]
      %v1097 = vld [vmem:[%s1094 + $0x8] sm:$0xf]
      %v1098 = vld [vmem:[%s1094 + $0xc] sm:$0xf]
      %v1099 = vld [vmem:[%s1094 + $0x10] sm:$0xf]
      %v1100 = vld [vmem:[%s1094 + $0x14] sm:$0xf]
      %v1101 = vld [vmem:[%s1094 + $0x18] sm:$0xf]
      %v1102 = vld [vmem:[%s1094 + $0x1c] sm:$0xf]
      %v1103 = vld [vmem:[%s1094 + $0x20] sm:$0xf]
      %v1104 = vld [vmem:[%s1094 + $0x24] sm:$0xf]
      %v1105 = vld [vmem:[%s1094 + $0x28] sm:$0xf]
      %v1106 = vld [vmem:[%s1094 + $0x2c] sm:$0xf]
      %v1107 = vld [vmem:[%s1094 + $0x30] sm:$0xf]
      %v1108 = vld [vmem:[%s1094 + $0x34] sm:$0xf]
      %v1109 = vld [vmem:[%s1094 + $0x38] sm:$0xf]
      %v1110 = vld [vmem:[%s1094 + $0x3c] sm:$0xf]
      %v1113 = vunpack.c.l.b16 %v1092
      %v1114 = vunpack.c.l.b16 %v1093
      %v1115 = vpack.c.b16 %v1114, %v1113
      %v1117 = vshrl.u32 %v1115, 16
      %v1119 = vshll.u32 %v1115, 16
      %v1121 = vrot.slane %v1119, 1
      %v1122 = vor.u32 %v1117, %v1121
      %v1140 = vunpack.c.l.b16 %v1095
      %v1141 = vunpack.c.l.b16 %v1096
      %v1142 = vunpack.c.l.b16 %v1097
      %v1143 = vunpack.c.l.b16 %v1098
      %v1144 = vunpack.c.l.b16 %v1099
      %v1145 = vunpack.c.l.b16 %v1100
      %v1146 = vunpack.c.l.b16 %v1101
      %v1147 = vunpack.c.l.b16 %v1102
      %v1148 = vunpack.c.l.b16 %v1103
      %v1149 = vunpack.c.l.b16 %v1104
      %v1150 = vunpack.c.l.b16 %v1105
      %v1151 = vunpack.c.l.b16 %v1106
      %v1152 = vunpack.c.l.b16 %v1107
      %v1153 = vunpack.c.l.b16 %v1108
      %v1154 = vunpack.c.l.b16 %v1109
      %v1155 = vunpack.c.l.b16 %v1110
      %v1156 = vpack.c.b16 %v1141, %v1140
      %v1157 = vpack.c.b16 %v1143, %v1142
      %v1158 = vpack.c.b16 %v1145, %v1144
      %v1159 = vpack.c.b16 %v1147, %v1146
      %v1160 = vpack.c.b16 %v1149, %v1148
      %v1161 = vpack.c.b16 %v1151, %v1150
      %v1162 = vpack.c.b16 %v1153, %v1152
      %v1163 = vpack.c.b16 %v1155, %v1154
      %1172 = vmatprep.subr.bf16.mxu0 0
      %1173 = vmatpush1.bf16.msra.mxu0 %v1156
      %1174 = vmatprep.subr.bf16.mxu0 0
      %1175 = vmatpush1.bf16.msra.mxu0 %v1157
      %1176 = vmatprep.subr.bf16.mxu0 0
      %1177 = vmatpush1.bf16.msra.mxu0 %v1158
      %1178 = vmatprep.subr.bf16.mxu0 0
      %1179 = vmatpush1.bf16.msra.mxu0 %v1159
      %1180 = vmatprep.subr.bf16.mxu0 0
      %1181 = vmatpush1.bf16.msra.mxu0 %v1160
      %1182 = vmatprep.subr.bf16.mxu0 0
      %1183 = vmatpush1.bf16.msra.mxu0 %v1161
      %1184 = vmatprep.subr.bf16.mxu0 0
      %1185 = vmatpush1.bf16.msra.mxu0 %v1162
      %1186 = vmatprep.subr.bf16.mxu0 0
      %1187 = vmatpush1.bf16.msra.mxu0 %v1163
      %1188 = vmatprep.subr.bf16.mxu0 0
      %1189 = vmatpush1.bf16.msra.mxu0 0
      %1190 = vmatprep.subr.bf16.mxu0 0
      %1191 = vmatpush1.bf16.msra.mxu0 0
      %1192 = vmatprep.subr.bf16.mxu0 0
      %1193 = vmatpush1.bf16.msra.mxu0 0
      %1194 = vmatprep.subr.bf16.mxu0 0
      %1195 = vmatpush1.bf16.msra.mxu0 0
      %1196 = vmatprep.subr.bf16.mxu0 0
      %1197 = vmatpush1.bf16.msra.mxu0 0
      %1198 = vmatprep.subr.bf16.mxu0 0
      %1199 = vmatpush1.bf16.msra.mxu0 0
      %1200 = vmatprep.subr.bf16.mxu0 0
      %1201 = vmatpush1.bf16.msra.mxu0 0
      %1202 = vmatprep.subr.bf16.mxu0 0
      %1203 = vmatpush1.bf16.msra.mxu0 0
      %1204 = vmatprep.mubr.bf16.mxu0 0
      %1205 = vmatmul.mubr.bf16.gmra.mrb[0].mxu0 %v1122
      %v1206 = vpop.f32.mrb[0].mxu0
      %v1207 = vadd.f32 0.0, %v1206
      %v1208 = vpop.f32.mrb[0].mxu0
      %v1209 = vpop.f32.mrb[0].mxu0
      %v1210 = vpop.f32.mrb[0].mxu0
      %1211 = vdwg.mxu0
      %v1212 = vadd.f32 %v1091, %v1207
      %v1213 = vld [vmem:[%s2] sm:$0x1]
      %v1215 = vlaneseq
      %v1216 = vshrl.u32 %v1215, 7
      %v1217 = vsub.s32 0, %v1216
      %v1218 = vrot.slane %v1213, %v1217
      %v1220 = vadd.f32 %v1212, %v1218
      %v1221 = vmax.f32 %v1220, 0.0
      %v1222 = vpack.c.bf16 %v1221, %v1221
      %1223 = vst [vmem:[%s190] sm:$0xf] %v1222
      %p1224 = scmp.lt.s32.totalorder %s18, 1
      %s1225 = scalar_select %p1224, %s18, 1
      %p1226 = scmp.lt.s32.totalorder %s19, 7
      %s1227 = scalar_select %p1226, %s19, 7
      %s1228 = smul.addr %s1225, 8
      %s1229 = sadd.s32 %s1227, %s1228
      %s1230 = smul.addr %s1229, 4
      %s1231 = scalar_lea.vmem %s3, %s1230
      // Predicated region
      $region33: #{encoder_cnn_forward.15} parent=31 // pred_check
        %p1232 = pneg %p114
      $region34: #{encoder_cnn_forward.15} parent=31 // pred_check_branch
        %1234 = sbr.rel (%p1232) target = $region36
      $region35: #{encoder_cnn_forward.15} parent=31 // pred_region
        _
      $region36: #{encoder_cnn_forward.15} parent=31 // pred_fallthru
        _
    $region32: #{encoder_cnn_forward.15} parent=5 // pred_fallthru
      _
    %p1235 = scmp.le.s32.totalorder 2, %s9
    // Predicated region
    $region37: #{encoder_cnn_forward.15} parent=5 // pred_check
      %p1236 = pneg %p1235
    $region38: #{encoder_cnn_forward.15} parent=5 // pred_check_branch
      %1238 = sbr.rel (%p1236) target = $region40
    $region39: #{encoder_cnn_forward.15} parent=5 // pred_region
      %s1239 = ssub.s32 %s9, 2
      // Predicated region
      $region41: #{encoder_cnn_forward.15} parent=39 // pred_check
        %p1240 = pneg %p120
      $region42: #{encoder_cnn_forward.15} parent=39 // pred_check_branch
        %1242 = sbr.rel (%p1240) target = $region44
      $region43: #{encoder_cnn_forward.15} parent=39 // pred_region
        %p1243 = scmp.lt.s32.totalorder %s20, 1
        %s1244 = scalar_select %p1243, %s20, 1
        %p1245 = scmp.lt.s32.totalorder %s21, 7
        %s1246 = scalar_select %p1245, %s21, 7
        %s1247 = smul.addr %s1244, 8
        %s1248 = sadd.s32 %s1246, %s1247
        %s1249 = smul.addr %s1248, 4
        %s1250 = scalar_lea.vmem %s3, %s1249
      $region44: #{encoder_cnn_forward.15} parent=39 // pred_fallthru
        _
    $region40: #{encoder_cnn_forward.15} parent=5 // pred_fallthru
      _
  $region6: #{encoder_cnn_forward.15} parent=0 // loop_footer
    %s13 = sadd.s32 1, %s9
  $region7: #{encoder_cnn_forward.15} parent=0 // loop_footer_branch
    %8 = sbr.rel target = $region3
  $region8: #{encoder_cnn_forward.15} parent=0 // loop_exit
    _

// kernel: encoder_cnn_forward.16
$region0: #{encoder_cnn_forward.16}
  #allocation0 [shape = 'u32[]', space=smem, size = 0x4, offset = 0x4, fixed_abs, tag = 'smem constant byte address 0x4 - core index']
  #allocation1 [shape = 'u32[144,128]{1,0:T(1,128)}', space=vmem, size = 0x12000, scoped, tag = 'internal scratch']
  %s0 = inlined_call_operand.vmem [shape: bf16[128,128], index: 0, kind: input, shape index: {}]
  %s1 = inlined_call_operand.vmem [shape: bf16[128,128], index: 1, kind: input, shape index: {}]
  %s2 = inlined_call_operand.vmem [shape: bf16[256,256], index: 2, kind: input, shape index: {}]
  %s3 = inlined_call_operand.vmem [shape: f32[1,256], index: 3, kind: input, shape index: {}]
  %s4 = inlined_call_operand.vmem [shape: bf16[128,256], index: 4, kind: output, shape index: {}]
  %s5 = sld [smem:[#allocation0]]
  $region49: #{encoder_cnn_forward.16} parent=0
    _
  %s7 = ssub.s32 1, %s5
  %s8 = scalar_select 0, %s7, %s5
  loop: start=0, step=1, limit=4
  $region2: #{encoder_cnn_forward.16} parent=0 // loop_pre_header
    _
  $region3: #{encoder_cnn_forward.16} parent=0 // loop_header
    %s10 = sphi 0, %s14
    %p11 = scmp.ge.s32.totalorder %s10, 4
    %s20 = sphi 0, %s22
    %s23 = sphi 0, %s20
    %s24 = sphi 0, %s23
    %s40 = sphi 0, %s24
    %s46 = sphi 0, %s48
    %s49 = sphi 0, %s46
    %s50 = sphi 0, %s49
    %s66 = sphi 0, %s50
    %s70 = sphi 0, %s70
    %s72 = sphi 0, %s70
    %s73 = sphi 0, %s72
    %s87 = sphi 0, %s73
    %s91 = sphi 0, %s91
    %s93 = sphi 0, %s91
    %s94 = sphi 0, %s93
    %s108 = sphi 0, %s94
    %s114 = sphi 0, %s116
    %s117 = sphi 0, %s114
    %s118 = sphi 0, %s117
    %s134 = sphi 0, %s118
  $region4: #{encoder_cnn_forward.16} parent=0 // loop_header_branch
    %13 = sbr.rel (%p11) target = $region8
  $region5: #{encoder_cnn_forward.16} parent=0 // loop_body
    %s15 = ssub.s32 %s10, 1
    %s16 = ssub.s32 %s10, 2
    %s17 = sadd.s32 %s10, 1
    %s18 = ssub.s32 %s10, %s17
    %p19 = scmp.eq.s32.totalorder %s18, 0
    %s21 = sadd.s32 %s20, 1
    %s22 = scalar_select %p19, %s20, %s21
    %p25 = pneg %p19
    %p26 = scmp.eq.s32.totalorder %s10, 1
    %p27 = por %p25, %p26
    %p28 = scmp.ne.s32.totalorder %s20, %s23
    %p29 = scmp.eq.s32.totalorder %s10, 0
    %p30 = por %p28, %p29
    %p31 = scmp.ne.s32.totalorder %s20, %s23
    %p32 = scmp.eq.s32.totalorder %s15, 1
    %p33 = por %p31, %p32
    %p34 = scmp.ne.s32.totalorder %s23, %s24
    %p35 = scmp.eq.s32.totalorder %s15, 0
    %p36 = por %p34, %p35
    %p37 = scmp.ne.s32.totalorder %s23, %s24
    %p38 = scmp.eq.s32.totalorder %s16, 1
    %p39 = por %p37, %p38
    %p41 = scmp.ne.s32.totalorder %s24, %s40
    %p42 = scmp.eq.s32.totalorder %s16, 0
    %p43 = por %p41, %p42
    %s44 = ssub.s32 %s10, %s17
    %p45 = scmp.eq.s32.totalorder %s44, 0
    %s47 = sadd.s32 %s46, 1
    %s48 = scalar_select %p45, %s46, %s47
    %p51 = pneg %p45
    %p52 = scmp.eq.s32.totalorder %s10, 1
    %p53 = por %p51, %p52
    %p54 = scmp.ne.s32.totalorder %s46, %s49
    %p55 = scmp.eq.s32.totalorder %s10, 0
    %p56 = por %p54, %p55
    %p57 = scmp.ne.s32.totalorder %s46, %s49
    %p58 = scmp.eq.s32.totalorder %s15, 1
    %p59 = por %p57, %p58
    %p60 = scmp.ne.s32.totalorder %s49, %s50
    %p61 = scmp.eq.s32.totalorder %s15, 0
    %p62 = por %p60, %p61
    %p63 = scmp.ne.s32.totalorder %s49, %s50
    %p64 = scmp.eq.s32.totalorder %s16, 1
    %p65 = por %p63, %p64
    %p67 = scmp.ne.s32.totalorder %s50, %s66
    %p68 = scmp.eq.s32.totalorder %s16, 0
    %p69 = por %p67, %p68
    %s71 = sadd.s32 %s70, 1
    %p74 = scmp.eq.s32.totalorder %s10, 1
    %p75 = scmp.ne.s32.totalorder %s70, %s72
    %p76 = scmp.eq.s32.totalorder %s10, 0
    %p77 = por %p75, %p76
    %p78 = scmp.ne.s32.totalorder %s70, %s72
    %p79 = scmp.eq.s32.totalorder %s15, 1
    %p80 = por %p78, %p79
    %p81 = scmp.ne.s32.totalorder %s72, %s73
    %p82 = scmp.eq.s32.totalorder %s15, 0
    %p83 = por %p81, %p82
    %p84 = scmp.ne.s32.totalorder %s72, %s73
    %p85 = scmp.eq.s32.totalorder %s16, 1
    %p86 = por %p84, %p85
    %p88 = scmp.ne.s32.totalorder %s73, %s87
    %p89 = scmp.eq.s32.totalorder %s16, 0
    %p90 = por %p88, %p89
    %s92 = sadd.s32 %s91, 1
    %p95 = scmp.eq.s32.totalorder %s10, 1
    %p96 = scmp.ne.s32.totalorder %s91, %s93
    %p97 = scmp.eq.s32.totalorder %s10, 0
    %p98 = por %p96, %p97
    %p99 = scmp.ne.s32.totalorder %s91, %s93
    %p100 = scmp.eq.s32.totalorder %s15, 1
    %p101 = por %p99, %p100
    %p102 = scmp.ne.s32.totalorder %s93, %s94
    %p103 = scmp.eq.s32.totalorder %s15, 0
    %p104 = por %p102, %p103
    %p105 = scmp.ne.s32.totalorder %s93, %s94
    %p106 = scmp.eq.s32.totalorder %s16, 1
    %p107 = por %p105, %p106
    %p109 = scmp.ne.s32.totalorder %s94, %s108
    %p110 = scmp.eq.s32.totalorder %s16, 0
    %p111 = por %p109, %p110
    %s112 = ssub.s32 %s10, %s17
    %p113 = scmp.eq.s32.totalorder %s112, 0
    %s115 = sadd.s32 %s114, 1
    %s116 = scalar_select %p113, %s114, %s115
    %p119 = pneg %p113
    %p120 = scmp.eq.s32.totalorder %s10, 1
    %p121 = por %p119, %p120
    %p122 = scmp.ne.s32.totalorder %s114, %s117
    %p123 = scmp.eq.s32.totalorder %s10, 0
    %p124 = por %p122, %p123
    %p125 = scmp.ne.s32.totalorder %s114, %s117
    %p126 = scmp.eq.s32.totalorder %s15, 1
    %p127 = por %p125, %p126
    %p128 = scmp.ne.s32.totalorder %s117, %s118
    %p129 = scmp.eq.s32.totalorder %s15, 0
    %p130 = por %p128, %p129
    %p131 = scmp.ne.s32.totalorder %s117, %s118
    %p132 = scmp.eq.s32.totalorder %s16, 1
    %p133 = por %p131, %p132
    %p135 = scmp.ne.s32.totalorder %s118, %s134
    %p136 = scmp.eq.s32.totalorder %s16, 0
    %p137 = por %p135, %p136
    %p138 = scmp.le.s32.totalorder 1, %s10
    %p139 = scmp.lt.s32.totalorder %s10, 3
    %p140 = pnand %p138, %p139
    %p141 = pneg %p140
    // Predicated region
    $region9: #{encoder_cnn_forward.16} parent=5 // pred_check
      _
    $region10: #{encoder_cnn_forward.16} parent=5 // pred_check_branch
      %143 = sbr.rel (%p140) target = $region12
    $region11: #{encoder_cnn_forward.16} parent=5 // pred_region
      %s144 = ssub.s32 %s10, 1
      // Predicated region
      $region13: #{encoder_cnn_forward.16} parent=11 // pred_check
        %p145 = pneg %p83
      $region14: #{encoder_cnn_forward.16} parent=11 // pred_check_branch
        %147 = sbr.rel (%p145) target = $region16
      $region15: #{encoder_cnn_forward.16} parent=11 // pred_region
        _
      $region16: #{encoder_cnn_forward.16} parent=11 // pred_fallthru
        _
      // Predicated region
      $region17: #{encoder_cnn_forward.16} parent=11 // pred_check
        %p148 = pneg %p104
      $region18: #{encoder_cnn_forward.16} parent=11 // pred_check_branch
        %150 = sbr.rel (%p148) target = $region20
      $region19: #{encoder_cnn_forward.16} parent=11 // pred_region
        _
      $region20: #{encoder_cnn_forward.16} parent=11 // pred_fallthru
        _
    $region12: #{encoder_cnn_forward.16} parent=5 // pred_fallthru
      _
    %p151 = scmp.lt.s32.totalorder %s10, 2
    // Predicated region
    $region21: #{encoder_cnn_forward.16} parent=5 // pred_check
      %p152 = pneg %p151
    $region22: #{encoder_cnn_forward.16} parent=5 // pred_check_branch
      %154 = sbr.rel (%p152) target = $region24
    $region23: #{encoder_cnn_forward.16} parent=5 // pred_region
      // Predicated region
      $region25: #{encoder_cnn_forward.16} parent=23 // pred_check
        %p155 = pneg %p30
      $region26: #{encoder_cnn_forward.16} parent=23 // pred_check_branch
        %157 = sbr.rel (%p155) target = $region28
      $region27: #{encoder_cnn_forward.16} parent=23 // pred_region
        %s158 = smul.u32 8, %s10
        %p159 = scmp.lt.s32.totalorder %s158, 15
        %s160 = scalar_select %p159, %s158, 15
        %s161 = smul.addr %s160, 4
        %s162 = scalar_lea.vmem %s0, %s161
        %s163 = smul.u32 8, %s10
      $region28: #{encoder_cnn_forward.16} parent=23 // pred_fallthru
        _
      // Predicated region
      $region29: #{encoder_cnn_forward.16} parent=23 // pred_check
        %p164 = pneg %p56
      $region30: #{encoder_cnn_forward.16} parent=23 // pred_check_branch
        %166 = sbr.rel (%p164) target = $region32
      $region31: #{encoder_cnn_forward.16} parent=23 // pred_region
        %s167 = smul.u32 8, %s10
        %p168 = scmp.lt.s32.totalorder %s167, 15
        %s169 = scalar_select %p168, %s167, 15
        %s170 = smul.addr %s169, 4
        %s171 = scalar_lea.vmem %s1, %s170
        %s172 = smul.u32 8, %s10
      $region32: #{encoder_cnn_forward.16} parent=23 // pred_fallthru
        _
    $region24: #{encoder_cnn_forward.16} parent=5 // pred_fallthru
      _
    %p173 = scmp.le.s32.totalorder 1, %s10
    %p174 = scmp.lt.s32.totalorder %s10, 3
    %p175 = pnand %p173, %p174
    %p176 = pneg %p175
    // Predicated region
    $region33: #{encoder_cnn_forward.16} parent=5 // pred_check
      _
    $region34: #{encoder_cnn_forward.16} parent=5 // pred_check_branch
      %178 = sbr.rel (%p175) target = $region36
    $region35: #{encoder_cnn_forward.16} parent=5 // pred_region
      %s179 = ssub.s32 %s10, 1
      %s180 = smul.u32 8, %s15
      %p181 = scmp.lt.s32.totalorder %s180, 15
      %s182 = scalar_select %p181, %s180, 15
      %s183 = smul.addr %s182, 4
      %s184 = scalar_lea.vmem %s0, %s183
      %p185 = pneg %p36
      %p186 = pneg %p33
      %s187 = smul.u32 8, %s15
      %p188 = scmp.lt.s32.totalorder %s187, 15
      %s189 = scalar_select %p188, %s187, 15
      %s190 = smul.addr %s189, 4
      %s191 = scalar_lea.vmem %s1, %s190
      %p192 = pneg %p62
      %p193 = pneg %p59
      %p194 = pneg %p83
      %p195 = pneg %p80
      %p196 = pneg %p104
      %p197 = pneg %p101
      %p198 = pneg %p130
      %p199 = pneg %p127
      %s200 = smul.u32 8, %s15
      %p201 = scmp.lt.s32.totalorder %s200, 15
      %s202 = scalar_select %p201, %s200, 15
      %s203 = smul.addr %s202, 2
      %s204 = smul.addr %s203, 4
      %s205 = scalar_lea.vmem %s4, %s204
      %s206 = smul.u32 8, %s15
      %p207 = scmp.lt.s32.totalorder %s206, 15
      %s208 = scalar_select %p207, %s206, 15
      %s209 = smul.addr %s208, 4
      %s210 = scalar_lea.vmem %s0, %s209
      %s211 = smul.u32 8, %s15
      %s212 = smul.u32 8, %s15
      %p213 = scmp.lt.s32.totalorder %s212, 15
      %s214 = scalar_select %p213, %s212, 15
      %s215 = smul.addr %s214, 4
      %s216 = scalar_lea.vmem %s1, %s215
      %s217 = smul.u32 8, %s15
      %s218 = smul.u32 8, %s15
      %p219 = scmp.lt.s32.totalorder %s218, 15
      %s220 = scalar_select %p219, %s218, 15
      %s221 = smul.addr %s220, 2
      %s222 = smul.addr %s221, 4
      %s223 = scalar_lea.vmem %s4, %s222
      %s224 = smul.u32 8, %s15
      %v225 = vld [vmem:[%s210] sm:$0xf]
      %v226 = vld [vmem:[%s210 + $0x4] sm:$0xf]
      %v227 = vld [vmem:[%s210 + $0x8] sm:$0xf]
      %v228 = vld [vmem:[%s210 + $0xc] sm:$0xf]
      %v229 = vld [vmem:[%s210 + $0x10] sm:$0xf]
      %v230 = vld [vmem:[%s210 + $0x14] sm:$0xf]
      %v231 = vld [vmem:[%s210 + $0x18] sm:$0xf]
      %v232 = vld [vmem:[%s210 + $0x1c] sm:$0xf]
      %v233 = vld [vmem:[%s216] sm:$0xf]
      %v234 = vld [vmem:[%s216 + $0x4] sm:$0xf]
      %v235 = vld [vmem:[%s216 + $0x8] sm:$0xf]
      %v236 = vld [vmem:[%s216 + $0xc] sm:$0xf]
      %v237 = vld [vmem:[%s216 + $0x10] sm:$0xf]
      %v238 = vld [vmem:[%s216 + $0x14] sm:$0xf]
      %v239 = vld [vmem:[%s216 + $0x18] sm:$0xf]
      %v240 = vld [vmem:[%s216 + $0x1c] sm:$0xf]
      %v249 = vunpack.c.l.b16 %v225
      %v250 = vunpack.c.l.b16 %v226
      %v251 = vunpack.c.l.b16 %v227
      %v252 = vunpack.c.l.b16 %v228
      %v253 = vunpack.c.l.b16 %v229
      %v254 = vunpack.c.l.b16 %v230
      %v255 = vunpack.c.l.b16 %v231
      %v256 = vunpack.c.l.b16 %v232
      %v257 = vpack.c.b16 %v250, %v249
      %v258 = vpack.c.b16 %v252, %v251
      %v259 = vpack.c.b16 %v254, %v253
      %v260 = vpack.c.b16 %v256, %v255
      %v273 = vunpack.c.l.b16 %v233
      %v274 = vunpack.c.l.b16 %v234
      %v275 = vunpack.c.l.b16 %v235
      %v276 = vunpack.c.l.b16 %v236
      %v277 = vunpack.c.l.b16 %v237
      %v278 = vunpack.c.l.b16 %v238
      %v279 = vunpack.c.l.b16 %v239
      %v280 = vunpack.c.l.b16 %v240
      %v281 = vpack.c.b16 %v274, %v273
      %v282 = vpack.c.b16 %v276, %v275
      %v283 = vpack.c.b16 %v278, %v277
      %v284 = vpack.c.b16 %v280, %v279
      %v289 = vld [vmem:[%s2] sm:$0xff]
      %v290 = vld [vmem:[%s2 + $0x8] sm:$0xff]
      %v291 = vld [vmem:[%s2 + $0x10] sm:$0xff]
      %v292 = vld [vmem:[%s2 + $0x18] sm:$0xff]
      %v293 = vld [vmem:[%s2 + $0x20] sm:$0xff]
      %v294 = vld [vmem:[%s2 + $0x28] sm:$0xff]
      %v295 = vld [vmem:[%s2 + $0x30] sm:$0xff]
      %v296 = vld [vmem:[%s2 + $0x38] sm:$0xff]
      %v297 = vld [vmem:[%s2 + $0x40] sm:$0xff]
      %v298 = vld [vmem:[%s2 + $0x48] sm:$0xff]
      %v299 = vld [vmem:[%s2 + $0x50] sm:$0xff]
      %v300 = vld [vmem:[%s2 + $0x58] sm:$0xff]
      %v301 = vld [vmem:[%s2 + $0x60] sm:$0xff]
      %v302 = vld [vmem:[%s2 + $0x68] sm:$0xff]
      %v303 = vld [vmem:[%s2 + $0x70] sm:$0xff]
      %v304 = vld [vmem:[%s2 + $0x78] sm:$0xff]
      %v305 = vld [vmem:[%s2 + $0x80] sm:$0xff]
      %v306 = vld [vmem:[%s2 + $0x88] sm:$0xff]
      %v307 = vld [vmem:[%s2 + $0x90] sm:$0xff]
      %v308 = vld [vmem:[%s2 + $0x98] sm:$0xff]
      %v309 = vld [vmem:[%s2 + $0xa0] sm:$0xff]
      %v310 = vld [vmem:[%s2 + $0xa8] sm:$0xff]
      %v311 = vld [vmem:[%s2 + $0xb0] sm:$0xff]
      %v312 = vld [vmem:[%s2 + $0xb8] sm:$0xff]
      %v313 = vld [vmem:[%s2 + $0xc0] sm:$0xff]
      %v314 = vld [vmem:[%s2 + $0xc8] sm:$0xff]
      %v315 = vld [vmem:[%s2 + $0xd0] sm:$0xff]
      %v316 = vld [vmem:[%s2 + $0xd8] sm:$0xff]
      %v317 = vld [vmem:[%s2 + $0xe0] sm:$0xff]
      %v318 = vld [vmem:[%s2 + $0xe8] sm:$0xff]
      %v319 = vld [vmem:[%s2 + $0xf0] sm:$0xff]
      %v320 = vld [vmem:[%s2 + $0xf8] sm:$0xff]
      %v321 = vld [vmem:[%s3] sm:$0x3]
      %v323 = vlaneseq
      %v324 = vshrl.u32 %v323, 7
      %v325 = vsub.s32 0, %v324
      %v326 = vrot.slane %v321, %v325
      %v327 = vlaneseq
      %v328 = vshrl.u32 %v327, 7
      %v329 = vsub.s32 1, %v328
      %v330 = vrot.slane %v321, %v329
      %v365 = vunpack.c.l.b16 %v289
      %v366 = vunpack.c.h.b16 %v289
      %v367 = vunpack.c.l.b16 %v290
      %v368 = vunpack.c.h.b16 %v290
      %v369 = vunpack.c.l.b16 %v291
      %v370 = vunpack.c.h.b16 %v291
      %v371 = vunpack.c.l.b16 %v292
      %v372 = vunpack.c.h.b16 %v292
      %v373 = vunpack.c.l.b16 %v293
      %v374 = vunpack.c.h.b16 %v293
      %v375 = vunpack.c.l.b16 %v294
      %v376 = vunpack.c.h.b16 %v294
      %v377 = vunpack.c.l.b16 %v295
      %v378 = vunpack.c.h.b16 %v295
      %v379 = vunpack.c.l.b16 %v296
      %v380 = vunpack.c.h.b16 %v296
      %v381 = vunpack.c.l.b16 %v297
      %v382 = vunpack.c.h.b16 %v297
      %v383 = vunpack.c.l.b16 %v298
      %v384 = vunpack.c.h.b16 %v298
      %v385 = vunpack.c.l.b16 %v299
      %v386 = vunpack.c.h.b16 %v299
      %v387 = vunpack.c.l.b16 %v300
      %v388 = vunpack.c.h.b16 %v300
      %v389 = vunpack.c.l.b16 %v301
      %v390 = vunpack.c.h.b16 %v301
      %v391 = vunpack.c.l.b16 %v302
      %v392 = vunpack.c.h.b16 %v302
      %v393 = vunpack.c.l.b16 %v303
      %v394 = vunpack.c.h.b16 %v303
      %v395 = vunpack.c.l.b16 %v304
      %v396 = vunpack.c.h.b16 %v304
      %v397 = vunpack.c.l.b16 %v305
      %v398 = vunpack.c.h.b16 %v305
      %v399 = vunpack.c.l.b16 %v306
      %v400 = vunpack.c.h.b16 %v306
      %v401 = vunpack.c.l.b16 %v307
      %v402 = vunpack.c.h.b16 %v307
      %v403 = vunpack.c.l.b16 %v308
      %v404 = vunpack.c.h.b16 %v308
      %v405 = vunpack.c.l.b16 %v309
      %v406 = vunpack.c.h.b16 %v309
      %v407 = vunpack.c.l.b16 %v310
      %v408 = vunpack.c.h.b16 %v310
      %v409 = vunpack.c.l.b16 %v311
      %v410 = vunpack.c.h.b16 %v311
      %v411 = vunpack.c.l.b16 %v312
      %v412 = vunpack.c.h.b16 %v312
      %v413 = vunpack.c.l.b16 %v313
      %v414 = vunpack.c.h.b16 %v313
      %v415 = vunpack.c.l.b16 %v314
      %v416 = vunpack.c.h.b16 %v314
      %v417 = vunpack.c.l.b16 %v315
      %v418 = vunpack.c.h.b16 %v315
      %v419 = vunpack.c.l.b16 %v316
      %v420 = vunpack.c.h.b16 %v316
      %v421 = vunpack.c.l.b16 %v317
      %v422 = vunpack.c.h.b16 %v317
      %v423 = vunpack.c.l.b16 %v318
      %v424 = vunpack.c.h.b16 %v318
      %v425 = vunpack.c.l.b16 %v319
      %v426 = vunpack.c.h.b16 %v319
      %v427 = vunpack.c.l.b16 %v320
      %v428 = vunpack.c.h.b16 %v320
      %v429 = vpack.c.b16 %v367, %v365
      %v430 = vpack.c.b16 %v368, %v366
      %v431 = vpack.c.b16 %v371, %v369
      %v432 = vpack.c.b16 %v372, %v370
      %v433 = vpack.c.b16 %v375, %v373
      %v434 = vpack.c.b16 %v376, %v374
      %v435 = vpack.c.b16 %v379, %v377
      %v436 = vpack.c.b16 %v380, %v378
      %v437 = vpack.c.b16 %v383, %v381
      %v438 = vpack.c.b16 %v384, %v382
      %v439 = vpack.c.b16 %v387, %v385
      %v440 = vpack.c.b16 %v388, %v386
      %v441 = vpack.c.b16 %v391, %v389
      %v442 = vpack.c.b16 %v392, %v390
      %v443 = vpack.c.b16 %v395, %v393
      %v444 = vpack.c.b16 %v396, %v394
      %v445 = vpack.c.b16 %v399, %v397
      %v446 = vpack.c.b16 %v400, %v398
      %v447 = vpack.c.b16 %v403, %v401
      %v448 = vpack.c.b16 %v404, %v402
      %v449 = vpack.c.b16 %v407, %v405
      %v450 = vpack.c.b16 %v408, %v406
      %v451 = vpack.c.b16 %v411, %v409
      %v452 = vpack.c.b16 %v412, %v410
      %v453 = vpack.c.b16 %v415, %v413
      %v454 = vpack.c.b16 %v416, %v414
      %v455 = vpack.c.b16 %v419, %v417
      %v456 = vpack.c.b16 %v420, %v418
      %v457 = vpack.c.b16 %v423, %v421
      %v458 = vpack.c.b16 %v424, %v422
      %v459 = vpack.c.b16 %v427, %v425
      %v460 = vpack.c.b16 %v428, %v426
      %493 = vmatprep.subr.bf16.mxu0 %v430
      %494 = vmatpush1.bf16.msra.mxu0 %v429
      %495 = vmatprep.subr.bf16.mxu0 %v432
      %496 = vmatpush1.bf16.msra.mxu0 %v431
      %497 = vmatprep.subr.bf16.mxu0 %v434
      %498 = vmatpush1.bf16.msra.mxu0 %v433
      %499 = vmatprep.subr.bf16.mxu0 %v436
      %500 = vmatpush1.bf16.msra.mxu0 %v435
      %501 = vmatprep.subr.bf16.mxu0 %v438
      %502 = vmatpush1.bf16.msra.mxu0 %v437
      %503 = vmatprep.subr.bf16.mxu0 %v440
      %504 = vmatpush1.bf16.msra.mxu0 %v439
      %505 = vmatprep.subr.bf16.mxu0 %v442
      %506 = vmatpush1.bf16.msra.mxu0 %v441
      %507 = vmatprep.subr.bf16.mxu0 %v444
      %508 = vmatpush1.bf16.msra.mxu0 %v443
      %509 = vmatprep.subr.bf16.mxu0 %v446
      %510 = vmatpush1.bf16.msra.mxu0 %v445
      %511 = vmatprep.subr.bf16.mxu0 %v448
      %512 = vmatpush1.bf16.msra.mxu0 %v447
      %513 = vmatprep.subr.bf16.mxu0 %v450
      %514 = vmatpush1.bf16.msra.mxu0 %v449
      %515 = vmatprep.subr.bf16.mxu0 %v452
      %516 = vmatpush1.bf16.msra.mxu0 %v451
      %517 = vmatprep.subr.bf16.mxu0 %v454
      %518 = vmatpush1.bf16.msra.mxu0 %v453
      %519 = vmatprep.subr.bf16.mxu0 %v456
      %520 = vmatpush1.bf16.msra.mxu0 %v455
      %521 = vmatprep.subr.bf16.mxu0 %v458
      %522 = vmatpush1.bf16.msra.mxu0 %v457
      %523 = vmatprep.subr.bf16.mxu0 %v460
      %524 = vmatpush1.bf16.msra.mxu0 %v459
      %525 = vmatprep.mubr.bf16.mxu0 %v281
      %526 = vmatmul.mubr.bf16.gmra.mrb[0].mxu0 %v257
      %v527 = vpop.f32.mrb[0].mxu0
      %v528 = vadd.f32 %v326, %v527
      %v529 = vpop.f32.mrb[0].mxu0
      %v530 = vadd.f32 %v330, %v529
      %v531 = vpop.f32.mrb[0].mxu0
      %v532 = vadd.f32 %v326, %v531
      %v533 = vpop.f32.mrb[0].mxu0
      %v534 = vadd.f32 %v330, %v533
      %535 = vmatprep.mubr.bf16.mxu0 %v282
      %536 = vmatmul.mubr.bf16.gmra.mrb[0].mxu0 %v258
      %v537 = vpop.f32.mrb[0].mxu0
      %v538 = vadd.f32 %v326, %v537
      %v539 = vpop.f32.mrb[0].mxu0
      %v540 = vadd.f32 %v330, %v539
      %v541 = vpop.f32.mrb[0].mxu0
      %v542 = vadd.f32 %v326, %v541
      %v543 = vpop.f32.mrb[0].mxu0
      %v544 = vadd.f32 %v330, %v543
      %545 = vmatprep.mubr.bf16.mxu0 %v283
      %546 = vmatmul.mubr.bf16.gmra.mrb[0].mxu0 %v259
      %v547 = vpop.f32.mrb[0].mxu0
      %v548 = vadd.f32 %v326, %v547
      %v549 = vpop.f32.mrb[0].mxu0
      %v550 = vadd.f32 %v330, %v549
      %v551 = vpop.f32.mrb[0].mxu0
      %v552 = vadd.f32 %v326, %v551
      %v553 = vpop.f32.mrb[0].mxu0
      %v554 = vadd.f32 %v330, %v553
      %555 = vmatprep.mubr.bf16.mxu0 %v284
      %556 = vmatmul.mubr.bf16.gmra.mrb[0].mxu0 %v260
      %v557 = vpop.f32.mrb[0].mxu0
      %v558 = vadd.f32 %v326, %v557
      %v559 = vpop.f32.mrb[0].mxu0
      %v560 = vadd.f32 %v330, %v559
      %v561 = vpop.f32.mrb[0].mxu0
      %v562 = vadd.f32 %v326, %v561
      %v563 = vpop.f32.mrb[0].mxu0
      %v564 = vadd.f32 %v330, %v563
      %565 = vdwg.mxu0
      %v566 = vmax.f32 %v528, 0.0
      %v567 = vmax.f32 %v530, 0.0
      %v568 = vmax.f32 %v532, 0.0
      %v569 = vmax.f32 %v534, 0.0
      %v570 = vmax.f32 %v538, 0.0
      %v571 = vmax.f32 %v540, 0.0
      %v572 = vmax.f32 %v542, 0.0
      %v573 = vmax.f32 %v544, 0.0
      %v574 = vmax.f32 %v548, 0.0
      %v575 = vmax.f32 %v550, 0.0
      %v576 = vmax.f32 %v552, 0.0
      %v577 = vmax.f32 %v554, 0.0
      %v578 = vmax.f32 %v558, 0.0
      %v579 = vmax.f32 %v560, 0.0
      %v580 = vmax.f32 %v562, 0.0
      %v581 = vmax.f32 %v564, 0.0
      %v582 = vpack.c.bf16 %v568, %v566
      %v583 = vpack.c.bf16 %v569, %v567
      %v584 = vpack.c.bf16 %v572, %v570
      %v585 = vpack.c.bf16 %v573, %v571
      %v586 = vpack.c.bf16 %v576, %v574
      %v587 = vpack.c.bf16 %v577, %v575
      %v588 = vpack.c.bf16 %v580, %v578
      %v589 = vpack.c.bf16 %v581, %v579
      %v598 = vunpack.c.l.b16 %v582
      %v599 = vunpack.c.l.b16 %v583
      %v600 = vunpack.c.h.b16 %v582
      %v601 = vunpack.c.h.b16 %v583
      %v602 = vunpack.c.l.b16 %v584
      %v603 = vunpack.c.l.b16 %v585
      %v604 = vunpack.c.h.b16 %v584
      %v605 = vunpack.c.h.b16 %v585
      %v606 = vunpack.c.l.b16 %v586
      %v607 = vunpack.c.l.b16 %v587
      %v608 = vunpack.c.h.b16 %v586
      %v609 = vunpack.c.h.b16 %v587
      %v610 = vunpack.c.l.b16 %v588
      %v611 = vunpack.c.l.b16 %v589
      %v612 = vunpack.c.h.b16 %v588
      %v613 = vunpack.c.h.b16 %v589
      %v614 = vpack.c.b16 %v599, %v598
      %v615 = vpack.c.b16 %v601, %v600
      %v616 = vpack.c.b16 %v603, %v602
      %v617 = vpack.c.b16 %v605, %v604
      %v618 = vpack.c.b16 %v607, %v606
      %v619 = vpack.c.b16 %v609, %v608
      %v620 = vpack.c.b16 %v611, %v610
      %v621 = vpack.c.b16 %v613, %v612
      %630 = vst [vmem:[%s223] sm:$0xff] %v614
      %631 = vst [vmem:[%s223 + $0x8] sm:$0xff] %v615
      %632 = vst [vmem:[%s223 + $0x10] sm:$0xff] %v616
      %633 = vst [vmem:[%s223 + $0x18] sm:$0xff] %v617
      %634 = vst [vmem:[%s223 + $0x20] sm:$0xff] %v618
      %635 = vst [vmem:[%s223 + $0x28] sm:$0xff] %v619
      %636 = vst [vmem:[%s223 + $0x30] sm:$0xff] %v620
      %637 = vst [vmem:[%s223 + $0x38] sm:$0xff] %v621
      %s638 = smul.u32 8, %s15
      %p639 = scmp.lt.s32.totalorder %s638, 15
      %s640 = scalar_select %p639, %s638, 15
      %s641 = smul.addr %s640, 2
      %s642 = smul.addr %s641, 4
      %s643 = scalar_lea.vmem %s4, %s642
      // Predicated region
      $region37: #{encoder_cnn_forward.16} parent=35 // pred_check
        %p644 = pneg %p127
      $region38: #{encoder_cnn_forward.16} parent=35 // pred_check_branch
        %646 = sbr.rel (%p644) target = $region40
      $region39: #{encoder_cnn_forward.16} parent=35 // pred_region
        %s647 = smul.u32 8, %s15
      $region40: #{encoder_cnn_forward.16} parent=35 // pred_fallthru
        _
    $region36: #{encoder_cnn_forward.16} parent=5 // pred_fallthru
      _
    %p648 = scmp.le.s32.totalorder 2, %s10
    // Predicated region
    $region41: #{encoder_cnn_forward.16} parent=5 // pred_check
      %p649 = pneg %p648
    $region42: #{encoder_cnn_forward.16} parent=5 // pred_check_branch
      %651 = sbr.rel (%p649) target = $region44
    $region43: #{encoder_cnn_forward.16} parent=5 // pred_region
      %s652 = ssub.s32 %s10, 2
      // Predicated region
      $region45: #{encoder_cnn_forward.16} parent=43 // pred_check
        %p653 = pneg %p133
      $region46: #{encoder_cnn_forward.16} parent=43 // pred_check_branch
        %655 = sbr.rel (%p653) target = $region48
      $region47: #{encoder_cnn_forward.16} parent=43 // pred_region
        %s656 = smul.u32 8, %s16
        %p657 = scmp.lt.s32.totalorder %s656, 15
        %s658 = scalar_select %p657, %s656, 15
        %s659 = smul.addr %s658, 2
        %s660 = smul.addr %s659, 4
        %s661 = scalar_lea.vmem %s4, %s660
      $region48: #{encoder_cnn_forward.16} parent=43 // pred_fallthru
        _
    $region44: #{encoder_cnn_forward.16} parent=5 // pred_fallthru
      _
  $region6: #{encoder_cnn_forward.16} parent=0 // loop_footer
    %s14 = sadd.s32 1, %s10
  $region7: #{encoder_cnn_forward.16} parent=0 // loop_footer_branch
    %9 = sbr.rel target = $region3
  $region8: #{encoder_cnn_forward.16} parent=0 // loop_exit
    _

</llo_original>
